<compile_context>
chip_gen: v6e
topology: v6e:2x2x1
jax: 0.10.0
libtpu: 0.0.40
codegen_flags: <defaults>
</compile_context>

<pallas_src>
import functools
import numpy as np
import jax
import jax.numpy as jnp
from jax import lax
from jax.experimental import pallas as pl
from jax.experimental.pallas import tpu as pltpu

WAVELETS = {
    'sym2': [-0.12940952255092145, 0.22414386804185735, 0.836516303737469,
             0.48296291314469025],
    'sym6': [0.015404109327027373, 0.0034907120842174702, -0.11799011114819057,
             -0.048311742585633, 0.4910559419267466, 0.787641141030194,
             0.3379294217276218, -0.07263752278646252, -0.021060292512300564,
             0.04472490177066578, 0.0017677118642428036, -0.007800708325034148],
}

# Hyper-parameters from AugmentPipe.__init__
P = 0.4
XFLIP, ROTATE90, XINT, XINT_MAX = 0.2, 0.2, 0.2, 0.125
IMGFILTER, IMGFILTER_BANDS, IMGFILTER_STD = 0.2, [1, 1, 1, 1], 1.0
NOISE, CUTOUT, NOISE_STD, CUTOUT_SIZE = 0.3, 0.6, 0.1, 0.5

# Comfortably below v7x's 64 MiB physical VMEM; above v5e's 16 MiB default.
VMEM_LIMIT_BYTES = 32 * 1024 * 1024
# Per-grid-step VMEM byte budget used to pick how many (b, c) images to batch.
BLOCK_BUDGET_BYTES = 6 * 1024 * 1024


def _compiler_params():
    return pltpu.CompilerParams(
        dimension_semantics=("parallel",),
        vmem_limit_bytes=VMEM_LIMIT_BYTES)


def _pick_batch_tile(n, per_image_bytes, budget_bytes=BLOCK_BUDGET_BYTES,
                     cap=32):
    """Largest divisor of n that fits the VMEM budget and keeps >=2 grid steps."""
    max_tb = int(max(1, min(cap, budget_bytes // max(int(per_image_bytes), 1))))
    best = 1
    for d in range(1, n + 1):
        if n % d == 0 and d <= max_tb and n // d >= 2:
            best = max(best, d)
    return best


# ----------------------------------------------------------------------------
# Deterministic buffers (upfirdn2d.setup_filter / Hz_fbank construction)
# ----------------------------------------------------------------------------
def _setup_filter(f):
    f = np.asarray(f, dtype=np.float64)
    f = f / f.sum()                       # normalize, 1-D separable
    return f.astype(np.float32)


def _build_hz_fbank():
    hz_lo = np.asarray(WAVELETS['sym2'], dtype=np.float64)
    hz_hi = hz_lo * (-1) ** np.arange(hz_lo.size)
    hz_lo2 = np.convolve(hz_lo, hz_lo[::-1]) / 2
    hz_hi2 = np.convolve(hz_hi, hz_hi[::-1]) / 2
    hz_fbank = np.eye(4, 1)
    for i in range(1, hz_fbank.shape[0]):
        hz_fbank = np.dstack([hz_fbank, np.zeros_like(hz_fbank)]).reshape(
            hz_fbank.shape[0], -1)[:, :-1]
        hz_fbank = np.stack([np.convolve(row, hz_lo2) for row in hz_fbank])
        c = hz_fbank.shape[1]
        hz_fbank[i, (c - hz_hi2.size) // 2:(c + hz_hi2.size) // 2] += hz_hi2
    return hz_fbank.astype(np.float32)    # (4, 43)


def _reflect_index(n, p):
    """torch 'reflect' pad: index into the original axis for each padded pos."""
    idx = np.arange(-p, n + p)
    period = 2 * (n - 1)
    idx = np.mod(idx, period)
    idx = np.where(idx >= n, period - idx, idx)
    return idx                            # (n + 2p,)


# ----------------------------------------------------------------------------
# 3x3 batched affine helpers (small "matrix()" glue, plain JAX)
# ----------------------------------------------------------------------------
def _mat3(rows, batch):
    elems = []
    for row in rows:
        for e in row:
            e = jnp.asarray(e, jnp.float32)
            elems.append(jnp.broadcast_to(e, (batch,)))
    return jnp.stack(elems, axis=-1).reshape(batch, 3, 3)


def scale2d(sx, sy, batch):
    return _mat3([[sx, 0, 0], [0, sy, 0], [0, 0, 1]], batch)


def scale2d_inv(sx, sy, batch):
    return scale2d(1.0 / sx, 1.0 / sy, batch)


def rotate2d(theta, batch):
    return _mat3([[jnp.cos(theta), jnp.sin(-theta), 0],
                  [jnp.sin(theta), jnp.cos(theta), 0],
                  [0, 0, 1]], batch)


def rotate2d_inv(theta, batch):
    return rotate2d(-theta, batch)


def translate2d(tx, ty, batch):
    return _mat3([[1, 0, tx], [0, 1, ty], [0, 0, 1]], batch)


def translate2d_inv(tx, ty, batch):
    return translate2d(-tx, -ty, batch)


# ----------------------------------------------------------------------------
# Pallas kernel 1: fused polyphase 2x upsample (upfirdn2d.upsample2d, up=2).
# TB (b, c) images per grid step.  Output is PHASE-MAJOR:
#   out[:, 0:hp , :] = even output rows,  out[:, hp: , :] = odd output rows
#   out[:, :, 0:wp]  = even output cols,  out[:, :, wp:] = odd output cols
# which the bilinear resampler indexes directly (no interleave in HBM).
# The 3-pixel zero border needed by the FIR is built in a VMEM scratch
# (no wrapper-side jnp.pad HBM round trip).
# ----------------------------------------------------------------------------
def _upsample2x_kernel(g_even, g_odd, hp, wp, x_ref, o_ref, xz, wbuf):
    # x_ref: (TB, hp, wp)        reflect-padded image (no zero border)
    # xz   : (TB, hp+6, wp+6)    zero-bordered scratch
    # wbuf : (TB, hp+6, 2*wp)    width-pass scratch (phase-major columns)
    # o_ref: (TB, 2*hp, 2*wp)    phase-major output
    xz[...] = jnp.zeros_like(xz)
    xz[:, 3:3 + hp, 3:3 + wp] = x_ref[...]

    acc_e = g_even[0] * xz[:, :, 0:wp]
    acc_o = g_odd[0] * xz[:, :, 1:1 + wp]
    for j in range(1, 6):
        acc_e = acc_e + g_even[j] * xz[:, :, j:j + wp]
        acc_o = acc_o + g_odd[j] * xz[:, :, j + 1:j + 1 + wp]
    wbuf[:, :, 0:wp] = acc_e
    wbuf[:, :, wp:] = acc_o

    acc_e = g_even[0] * wbuf[:, 0:hp, :]
    acc_o = g_odd[0] * wbuf[:, 1:1 + hp, :]
    for j in range(1, 6):
        acc_e = acc_e + g_even[j] * wbuf[:, j:j + hp, :]
        acc_o = acc_o + g_odd[j] * wbuf[:, j + 1:j + 1 + hp, :]
    o_ref[:, 0:hp, :] = acc_e
    o_ref[:, hp:, :] = acc_o


def upsample2x_pm(x, taps):
    # x: (N, hp, wp) f32, already reflect-padded.  taps: 12 numpy floats
    # (flipped + gain-scaled Hz_geom).  Returns (N, 2hp, 2wp) phase-major.
    n, hp, wp = x.shape
    g_even = tuple(float(v) for v in taps[0::2])
    g_odd = tuple(float(v) for v in taps[1::2])
    per_img_bytes = 4 * (2 * hp * wp + 8 * hp * wp
                         + (hp + 6) * (wp + 6) + 2 * wp * (hp + 6))
    tb = _pick_batch_tile(n, per_img_bytes)
    kern = functools.partial(_upsample2x_kernel, g_even, g_odd, hp, wp)
    return pl.pallas_call(
        kern,
        out_shape=jax.ShapeDtypeStruct((n, 2 * hp, 2 * wp), jnp.float32),
        grid=(n // tb,),
        in_specs=[pl.BlockSpec((tb, hp, wp), lambda i: (i, 0, 0))],
        out_specs=pl.BlockSpec((tb, 2 * hp, 2 * wp), lambda i: (i, 0, 0)),
        scratch_shapes=[pltpu.VMEM((tb, hp + 6, wp + 6), jnp.float32),
                        pltpu.VMEM((tb, hp + 6, 2 * wp), jnp.float32)],
        compiler_params=_compiler_params(),
    )(x.astype(jnp.float32))


# ----------------------------------------------------------------------------
# Pallas kernel 2: fused FIR downsample (upfirdn2d.downsample2d, down=2,
# flip_filter=True) with the /2 decimation folded in.  Input is the cropped
# grid-sample output in phase-major order (rows [0:h+5] = even cropped rows,
# [h+5:] = odd; columns likewise with w+5).  TB images per grid step.
# ----------------------------------------------------------------------------
def _downsample2x_kernel(f_even, f_odd, h, w, x_ref, o_ref, wbuf):
    # x_ref: (TB, 2h+10, 2w+10) phase-major; o_ref: (TB, h, w); wbuf: (TB, 2h+10, w)
    w5 = w + 5
    h5 = h + 5
    acc = f_even[0] * x_ref[:, :, 0:w] + f_odd[0] * x_ref[:, :, w5:w5 + w]
    for j in range(1, 6):
        acc = acc + f_even[j] * x_ref[:, :, j:j + w]
        acc = acc + f_odd[j] * x_ref[:, :, w5 + j:w5 + j + w]
    wbuf[...] = acc
    acc = f_even[0] * wbuf[:, 0:h, :] + f_odd[0] * wbuf[:, h5:h5 + h, :]
    for j in range(1, 6):
        acc = acc + f_even[j] * wbuf[:, j:j + h, :]
        acc = acc + f_odd[j] * wbuf[:, h5 + j:h5 + j + h, :]
    o_ref[...] = acc


def downsample2x_pm(x, taps, h, w):
    # x: (N, 2h+10, 2w+10) phase-major cropped grid-sample output.
    n = x.shape[0]
    f_even = tuple(float(v) for v in taps[0::2])
    f_odd = tuple(float(v) for v in taps[1::2])
    per_img_bytes = 4 * (2 * (2 * h + 10) * (2 * w + 10)
                         + 2 * h * w + (2 * h + 10) * w)
    tb = _pick_batch_tile(n, per_img_bytes)
    kern = functools.partial(_downsample2x_kernel, f_even, f_odd, h, w)
    return pl.pallas_call(
        kern,
        out_shape=jax.ShapeDtypeStruct((n, h, w), jnp.float32),
        grid=(n // tb,),
        in_specs=[pl.BlockSpec((tb, 2 * h + 10, 2 * w + 10),
                               lambda i: (i, 0, 0))],
        out_specs=pl.BlockSpec((tb, h, w), lambda i: (i, 0, 0)),
        scratch_shapes=[pltpu.VMEM((tb, 2 * h + 10, w), jnp.float32)],
        compiler_params=_compiler_params(),
    )(x.astype(jnp.float32))


# ----------------------------------------------------------------------------
# Pallas kernel 3: per-sample 43-tap separable band filter as MXU matmuls.
# Per grid step one SAMPLE (all C channels) against per-sample (W, W) / (H, H)
# operators with the reflect padding folded in (reflection is linear), so no
# reflect-padded image copy and no per-channel matrix duplication in HBM.
# ----------------------------------------------------------------------------
def _bandfilter_kernel(c, h, w, x_ref, tw_ref, th_ref, o_ref):
    # x_ref: (1, C, H, W); tw_ref: (1, W, W); th_ref: (1, H, H); o_ref: (1, C, H, W)
    tw = tw_ref[0]
    th = th_ref[0]
    if h % 8 == 0:
        x = x_ref[0].reshape(c * h, w)
        tmp = jnp.dot(x, tw, preferred_element_type=jnp.float32).reshape(c, h, w)
    else:
        tmp = jnp.stack([jnp.dot(x_ref[0, ci], tw,
                                 preferred_element_type=jnp.float32)
                         for ci in range(c)])
    for ci in range(c):
        o_ref[0, ci] = jnp.dot(th, tmp[ci], preferred_element_type=jnp.float32)


def bandfilter(x, t_w, t_h):
    b, c, h, w = x.shape
    kern = functools.partial(_bandfilter_kernel, c, h, w)
    return pl.pallas_call(
        kern,
        out_shape=jax.ShapeDtypeStruct((b, c, h, w), jnp.float32),
        grid=(b,),
        in_specs=[pl.BlockSpec((1, c, h, w), lambda i: (i, 0, 0, 0)),
                  pl.BlockSpec((1, w, w), lambda i: (i, 0, 0)),
                  pl.BlockSpec((1, h, h), lambda i: (i, 0, 0))],
        out_specs=pl.BlockSpec((1, c, h, w), lambda i: (i, 0, 0, 0)),
        compiler_params=_compiler_params(),
    )(x.astype(jnp.float32), t_w.astype(jnp.float32), t_h.astype(jnp.float32))


def _toeplitz_bank(hz, lin, lout):
    # hz: (N, T) per-row filter.  T[n, i, o] = hz[n, i-o] if 0 <= i-o < T else 0
    t = hz.shape[1]
    d = jnp.arange(lin)[:, None] - jnp.arange(lout)[None, :]
    valid = ((d >= 0) & (d < t)).astype(jnp.float32)
    dcl = jnp.clip(d, 0, t - 1)
    return hz[:, dcl] * valid[None, :, :]


# ----------------------------------------------------------------------------
# Pallas kernel 4: fused noise + cutout.  Noise is drawn with jax.random in the
# wrapper (pltpu.prng_* has no CPU/interpret lowering); the kernel fuses the
# add and the cutout mask rebuilt from iota.  Cutout params arrive as a flat
# 1-D SMEM scalar-prefetch array.
# TODO(synk): when targeting TPU hardware only, generate the noise in-kernel
# with pltpu.prng_seed / prng_random_bits and gate it with pl.when(sigma > 0).
# ----------------------------------------------------------------------------
def _noise_cutout_kernel(h, w, par_ref, img_ref, noise_ref, o_ref):
    b = pl.program_id(0)
    ctr_x = par_ref[b * 4 + 0]
    ctr_y = par_ref[b * 4 + 1]
    sz_x = par_ref[b * 4 + 2]
    sz_y = par_ref[b * 4 + 3]

    xc = (lax.broadcasted_iota(jnp.int32, (h, w), 1).astype(jnp.float32)
          + 0.5) * (1.0 / w)
    yc = (lax.broadcasted_iota(jnp.int32, (h, w), 0).astype(jnp.float32)
          + 0.5) * (1.0 / h)
    mask = jnp.logical_or(jnp.abs(xc - ctr_x) >= sz_x * 0.5,
                          jnp.abs(yc - ctr_y) >= sz_y * 0.5)
    mask = mask.astype(jnp.float32)

    o_ref[0] = (img_ref[0] + noise_ref[0]) * mask[None, :, :]


def noise_cutout(img, noise, params):
    b, c, h, w = img.shape
    kern = functools.partial(_noise_cutout_kernel, h, w)
    return pl.pallas_call(
        kern,
        out_shape=jax.ShapeDtypeStruct((b, c, h, w), jnp.float32),
        grid_spec=pltpu.PrefetchScalarGridSpec(
            num_scalar_prefetch=1,
            grid=(b,),
            in_specs=[pl.BlockSpec((1, c, h, w), lambda i, *_: (i, 0, 0, 0)),
                      pl.BlockSpec((1, c, h, w), lambda i, *_: (i, 0, 0, 0))],
            out_specs=pl.BlockSpec((1, c, h, w), lambda i, *_: (i, 0, 0, 0)),
        ),
        compiler_params=_compiler_params(),
    )(params, img.astype(jnp.float32), noise.astype(jnp.float32))


# ----------------------------------------------------------------------------
# affine_grid + grid_sample (bilinear, zeros padding, align_corners=False),
# evaluated only on the cropped output region and directly in the phase-major
# order the downsample kernel wants; gather indices are remapped to read the
# phase-major upsampled image and are NOT replicated per channel.
# TODO(synk): the data-dependent bilinear gather itself stays in plain JAX; a
# Pallas version would need a manual row-granular DMA gather (separable
# row/column remap since only flip / rot90 / integer shift are enabled).
# ----------------------------------------------------------------------------
def affine_grid_sample_pm(img_pm, theta, out_h, out_w, row_ids, col_ids):
    b, c, hin, win = img_pm.shape
    hp, wp = hin // 2, win // 2
    xs = (2.0 * col_ids.astype(jnp.float32) + 1.0) / out_w - 1.0
    ys = (2.0 * row_ids.astype(jnp.float32) + 1.0) / out_h - 1.0
    gx = (theta[:, 0, 0, None, None] * xs[None, None, :]
          + theta[:, 0, 1, None, None] * ys[None, :, None]
          + theta[:, 0, 2, None, None])
    gy = (theta[:, 1, 0, None, None] * xs[None, None, :]
          + theta[:, 1, 1, None, None] * ys[None, :, None]
          + theta[:, 1, 2, None, None])
    ix = ((gx + 1.0) * win - 1.0) * 0.5
    iy = ((gy + 1.0) * hin - 1.0) * 0.5
    x0 = jnp.floor(ix)
    y0 = jnp.floor(iy)
    x1 = x0 + 1.0
    y1 = y0 + 1.0
    wx1 = ix - x0
    wx0 = 1.0 - wx1
    wy1 = iy - y0
    wy0 = 1.0 - wy1

    flat = img_pm.reshape(b, c, hin * win)
    nr = row_ids.shape[0]
    nc = col_ids.shape[0]

    def corner(xf, yf):
        valid = ((xf >= 0) & (xf <= win - 1) &
                 (yf >= 0) & (yf <= hin - 1)).astype(jnp.float32)
        xi = jnp.clip(xf.astype(jnp.int32), 0, win - 1)
        yi = jnp.clip(yf.astype(jnp.int32), 0, hin - 1)
        # conceptual (interleaved) -> phase-major storage coordinates
        xi = (xi & 1) * wp + (xi >> 1)
        yi = (yi & 1) * hp + (yi >> 1)
        idx = (yi * win + xi).reshape(b, nr * nc)        # (B, K), no C replication
        vals = jax.vmap(lambda im, ii: jnp.take(im, ii, axis=1))(flat, idx)
        return vals.reshape(b, c, nr, nc) * valid[:, None, :, :]

    out = (corner(x0, y0) * (wx0 * wy0)[:, None]
           + corner(x1, y0) * (wx1 * wy0)[:, None]
           + corner(x0, y1) * (wx0 * wy1)[:, None]
           + corner(x1, y1) * (wx1 * wy1)[:, None])
    return out


# ----------------------------------------------------------------------------
# Full AugmentPipe.forward
# ----------------------------------------------------------------------------
def augment_pipe_forward(image, key):
    image = image.astype(jnp.float32)
    B, C, H, W = image.shape
    hz_geom = _setup_filter(WAVELETS['sym6'])                # np (12,)
    hz_fbank = jnp.asarray(_build_hz_fbank())                # (4, 43)
    hz_pad = hz_geom.shape[0] // 4                           # 3

    keys = iter(jax.random.split(key, 24))
    nxt = lambda: next(keys)

    # -------- geometric transform selection (glue) --------
    G_inv = jnp.tile(jnp.eye(3, dtype=jnp.float32)[None], (B, 1, 1))

    i_flip = jnp.floor(jax.random.uniform(nxt(), (B,)) * 2)
    i_flip = jnp.where(jax.random.uniform(nxt(), (B,)) < XFLIP * P, i_flip, 0.0)
    G_inv = G_inv @ scale2d_inv(1 - 2 * i_flip, 1.0, B)

    i_rot = jnp.floor(jax.random.uniform(nxt(), (B,)) * 4)
    i_rot = jnp.where(jax.random.uniform(nxt(), (B,)) < ROTATE90 * P, i_rot, 0.0)
    G_inv = G_inv @ rotate2d_inv(-np.pi / 2 * i_rot, B)

    t = (jax.random.uniform(nxt(), (B, 2)) * 2 - 1) * XINT_MAX
    t = jnp.where(jax.random.uniform(nxt(), (B, 1)) < XINT * P, t, 0.0)
    G_inv = G_inv @ translate2d_inv(jnp.round(t[:, 0] * W),
                                    jnp.round(t[:, 1] * H), B)

    # -------- static worst-case reflect margins (jit-friendly) --------
    # Numerically identical to the data-dependent margin whenever that margin
    # would have sufficed (extra reflect content is never sampled).
    cx = (W - 1) / 2.0
    cy = (H - 1) / 2.0
    tx_max = float(np.floor(XINT_MAX * W + 0.5))
    ty_max = float(np.floor(XINT_MAX * H + 0.5))
    corner_max = max(cx + tx_max, cy + ty_max)
    mx = int(np.ceil(min(max(corner_max + 2 * hz_pad - cx, 0.0), W - 1)))
    my = int(np.ceil(min(max(corner_max + 2 * hz_pad - cy, 0.0), H - 1)))
    image = jnp.pad(image, ((0, 0), (0, 0), (my, my), (mx, mx)), mode='reflect')
    # mx0 == mx1, my0 == my1 -> the reference's recentering translate is I_3.

    Hp, Wp = H + 2 * my, W + 2 * mx
    # -------- upfirdn2d.upsample2d(up=2, f=Hz_geom): fused polyphase kernel ----
    f_up = (hz_geom * 2.0)[::-1]           # gain=4 total (2 per pass), unflipped
    up_pm = upsample2x_pm(image.reshape(B * C, Hp, Wp), f_up)  # (B*C, 2Hp, 2Wp)
    hin, win = 2 * Hp, 2 * Wp

    G_inv = scale2d(2.0, 2.0, B) @ G_inv @ scale2d_inv(2.0, 2.0, B)
    G_inv = translate2d(-0.5, -0.5, B) @ G_inv @ translate2d_inv(-0.5, -0.5, B)
    out_h = (H + hz_pad * 2) * 2
    out_w = (W + hz_pad * 2) * 2
    G_inv = (scale2d(2.0 / win, 2.0 / hin, B) @ G_inv
             @ scale2d_inv(2.0 / out_w, 2.0 / out_h, B))

    # -------- affine grid + bilinear resample (cropped, phase-major order) ----
    row_ids = np.concatenate([np.arange(1, out_h - 1, 2),
                              np.arange(2, out_h - 1, 2)])
    col_ids = np.concatenate([np.arange(1, out_w - 1, 2),
                              np.arange(2, out_w - 1, 2)])
    sampled = affine_grid_sample_pm(
        up_pm.reshape(B, C, hin, win), G_inv[:, :2, :],
        out_h, out_w, jnp.asarray(row_ids), jnp.asarray(col_ids))
    # sampled: (B, C, 2H+10, 2W+10), phase-major cropped grid-sample output.

    # -------- upfirdn2d.downsample2d(down=2, padding=-Hz_pad*2, flip=True) ----
    image = downsample2x_pm(
        sampled.reshape(B * C, 2 * H + 10, 2 * W + 10), hz_geom, H, W)
    image = image.reshape(B, C, H, W)

    # -------- imgfilter: per-sample frequency-band amplification (MXU) --------
    num_bands = hz_fbank.shape[0]
    expected_power = jnp.asarray(np.array([10, 1, 1, 1]) / 13, jnp.float32)
    g = jnp.ones((B, num_bands), jnp.float32)
    for i, band_strength in enumerate(IMGFILTER_BANDS):
        t_i = jnp.exp2(jax.random.normal(nxt(), (B,)) * IMGFILTER_STD)
        t_i = jnp.where(jax.random.uniform(nxt(), (B,)) <
                        IMGFILTER * P * band_strength, t_i, 1.0)
        tband = jnp.ones((B, num_bands), jnp.float32).at[:, i].set(t_i)
        tband = tband / jnp.sqrt(jnp.sum(expected_power * jnp.square(tband),
                                         axis=-1, keepdims=True))
        g = g * tband
    hz_prime = g @ hz_fbank                                   # (B, 43), per-sample

    # Banded Toeplitz operators with the reflect padding folded in (linear),
    # pre-oriented so both in-kernel matmuls are plain row-major dots.
    pf = hz_fbank.shape[1] // 2                               # 21
    assert H > pf and W > pf, "spatial size must exceed Hz_fbank//2 (21)"
    rw = np.zeros((W + 2 * pf, W), np.float32)
    rw[np.arange(W + 2 * pf), _reflect_index(W, pf)] = 1.0
    rh = np.zeros((H + 2 * pf, H), np.float32)
    rh[np.arange(H + 2 * pf), _reflect_index(H, pf)] = 1.0
    tw_pad = _toeplitz_bank(hz_prime, W + 2 * pf, W)          # (B, W+42, W)
    th_pad = _toeplitz_bank(hz_prime, H + 2 * pf, H)          # (B, H+42, H)
    t_w = jnp.einsum('ij,bio->bjo', jnp.asarray(rw), tw_pad)  # (B, W, W)
    t_h = jnp.einsum('ij,boi->boj', jnp.asarray(rh),
                     jnp.swapaxes(th_pad, 1, 2))              # (B, H, H)
    image = bandfilter(image, t_w, t_h)

    # -------- noise + cutout (fused elementwise Pallas kernel) --------
    sigma = jnp.abs(jax.random.normal(nxt(), (B,))) * NOISE_STD
    sigma = jnp.where(jax.random.uniform(nxt(), (B,)) < NOISE * P, sigma, 0.0)
    noise = jax.random.normal(nxt(), (B, C, H, W), jnp.float32) * \
        sigma[:, None, None, None]
    size = jnp.full((B, 2), CUTOUT_SIZE, jnp.float32)
    size = jnp.where(jax.random.uniform(nxt(), (B, 1)) < CUTOUT * P, size, 0.0)
    center = jax.random.uniform(nxt(), (B, 2))
    params = jnp.concatenate([center, size], axis=-1)         # (B, 4)
    params = params.reshape(-1).astype(jnp.float32)           # flat 1-D SMEM
    image = noise_cutout(image, noise, params)
    return image


if __name__ == "__main__":
    key = jax.random.PRNGKey(0)
    k_img, k_aug = jax.random.split(key)
    # Spatial size must exceed Hz_fbank//2 = 21 for the reflect band-filter
    # (same requirement as the torch reference); use 32x32.
    B, C, H, W = 2, 4, 32, 32
    image = jax.random.normal(k_img, (B, C, H, W), jnp.float32)
    fwd = jax.jit(augment_pipe_forward)
    out = jax.block_until_ready(fwd(image, k_aug))
    assert out.shape == (B, C, H, W)
    assert bool(jnp.all(jnp.isfinite(out)))
    print("KERNEL_OK")
</pallas_src>

<mosaic_0001>
module attributes {stable_mosaic.version = 11 : i64} {
  func.func @_upsample2x_kernel(%arg0: i32, %arg1: memref<4x52x52xf32, #tpu.memory_space<vmem>>, %arg2: memref<4x104x104xf32, #tpu.memory_space<vmem>>, %arg3: memref<4x58x58xf32, #tpu.memory_space<vmem>>, %arg4: memref<4x58x104xf32, #tpu.memory_space<vmem>>) attributes {dimension_semantics = [#tpu.dimension_semantics<parallel>], iteration_bounds = array<i64: 2>, scalar_prefetch = 0 : i64, scratch_operands = 2 : i64, tpu.core_type = #tpu.core_type<tc>, window_params = [{transform_indices = @transform_0, window_bounds = array<i64: 4, 52, 52>}, {transform_indices = @transform_1, window_bounds = array<i64: 4, 104, 104>}]} {
    %cst = arith.constant 0.000000e+00 : f32
    %0 = vector.broadcast %cst : f32 to vector<4x58x58xf32>
    %c0 = arith.constant 0 : index
    %c0_0 = arith.constant 0 : index
    %c0_1 = arith.constant 0 : index
    %1 = vector.load %arg3[%c0, %c0_0, %c0_1] : memref<4x58x58xf32, #tpu.memory_space<vmem>>, vector<4x58x58xf32>
    tpu.vector_store %arg3[%c0, %c0_0, %c0_1], %0 {strides = array<i32>} : memref<4x58x58xf32, #tpu.memory_space<vmem>>, vector<4x58x58xf32>,
    %c0_2 = arith.constant 0 : index
    %c0_3 = arith.constant 0 : index
    %c0_4 = arith.constant 0 : index
    %2 = vector.load %arg1[%c0_2, %c0_3, %c0_4] : memref<4x52x52xf32, #tpu.memory_space<vmem>>, vector<4x52x52xf32>
    %c0_5 = arith.constant 0 : index
    %c3 = arith.constant 3 : index
    %c3_6 = arith.constant 3 : index
    %3 = vector.load %arg3[%c0_5, %c3, %c3_6] : memref<4x58x58xf32, #tpu.memory_space<vmem>>, vector<4x52x52xf32>
    tpu.vector_store %arg3[%c0_5, %c3, %c3_6], %2 {strides = array<i32>} : memref<4x58x58xf32, #tpu.memory_space<vmem>>, vector<4x52x52xf32>,
    %c0_7 = arith.constant 0 : index
    %c0_8 = arith.constant 0 : index
    %c0_9 = arith.constant 0 : index
    %4 = vector.load %arg3[%c0_7, %c0_8, %c0_9] : memref<4x58x58xf32, #tpu.memory_space<vmem>>, vector<4x58x52xf32>
    %cst_10 = arith.constant -0.0110318679 : f32
    %5 = vector.broadcast %cst_10 : f32 to vector<4x58x52xf32>
    %6 = arith.mulf %5, %4 : vector<4x58x52xf32>
    %c0_11 = arith.constant 0 : index
    %c0_12 = arith.constant 0 : index
    %c1 = arith.constant 1 : index
    %7 = vector.load %arg3[%c0_11, %c0_12, %c1] : memref<4x58x58xf32, #tpu.memory_space<vmem>>, vector<4x58x52xf32>
    %cst_13 = arith.constant 0.00249992218 : f32
    %8 = vector.broadcast %cst_13 : f32 to vector<4x58x52xf32>
    %9 = arith.mulf %8, %7 : vector<4x58x52xf32>
    %c0_14 = arith.constant 0 : index
    %c0_15 = arith.constant 0 : index
    %c1_16 = arith.constant 1 : index
    %10 = vector.load %arg3[%c0_14, %c0_15, %c1_16] : memref<4x58x58xf32, #tpu.memory_space<vmem>>, vector<4x58x52xf32>
    %cst_17 = arith.constant 0.063250564 : f32
    %11 = vector.broadcast %cst_17 : f32 to vector<4x58x52xf32>
    %12 = arith.mulf %11, %10 : vector<4x58x52xf32>
    %13 = arith.addf %6, %12 : vector<4x58x52xf32>
    %c0_18 = arith.constant 0 : index
    %c0_19 = arith.constant 0 : index
    %c2 = arith.constant 2 : index
    %14 = vector.load %arg3[%c0_18, %c0_19, %c2] : memref<4x58x58xf32, #tpu.memory_space<vmem>>, vector<4x58x52xf32>
    %cst_20 = arith.constant -0.0297837518 : f32
    %15 = vector.broadcast %cst_20 : f32 to vector<4x58x52xf32>
    %16 = arith.mulf %15, %14 : vector<4x58x52xf32>
    %17 = arith.addf %9, %16 : vector<4x58x52xf32>
    %c0_21 = arith.constant 0 : index
    %c0_22 = arith.constant 0 : index
    %c2_23 = arith.constant 2 : index
    %18 = vector.load %arg3[%c0_21, %c0_22, %c2_23] : memref<4x58x58xf32, #tpu.memory_space<vmem>>, vector<4x58x52xf32>
    %cst_24 = arith.constant -0.102724969 : f32
    %19 = vector.broadcast %cst_24 : f32 to vector<4x58x52xf32>
    %20 = arith.mulf %19, %18 : vector<4x58x52xf32>
    %21 = arith.addf %13, %20 : vector<4x58x52xf32>
    %c0_25 = arith.constant 0 : index
    %c0_26 = arith.constant 0 : index
    %c3_27 = arith.constant 3 : index
    %22 = vector.load %arg3[%c0_25, %c0_26, %c3_27] : memref<4x58x58xf32, #tpu.memory_space<vmem>>, vector<4x58x52xf32>
    %cst_28 = arith.constant 0.477904379 : f32
    %23 = vector.broadcast %cst_28 : f32 to vector<4x58x52xf32>
    %24 = arith.mulf %23, %22 : vector<4x58x52xf32>
    %25 = arith.addf %17, %24 : vector<4x58x52xf32>
    %c0_29 = arith.constant 0 : index
    %c0_30 = arith.constant 0 : index
    %c3_31 = arith.constant 3 : index
    %26 = vector.load %arg3[%c0_29, %c0_30, %c3_31] : memref<4x58x58xf32, #tpu.memory_space<vmem>>, vector<4x58x52xf32>
    %cst_32 = arith.constant 1.11389279 : f32
    %27 = vector.broadcast %cst_32 : f32 to vector<4x58x52xf32>
    %28 = arith.mulf %27, %26 : vector<4x58x52xf32>
    %29 = arith.addf %21, %28 : vector<4x58x52xf32>
    %c0_33 = arith.constant 0 : index
    %c0_34 = arith.constant 0 : index
    %c4 = arith.constant 4 : index
    %30 = vector.load %arg3[%c0_33, %c0_34, %c4] : memref<4x58x58xf32, #tpu.memory_space<vmem>>, vector<4x58x52xf32>
    %cst_35 = arith.constant 0.694457948 : f32
    %31 = vector.broadcast %cst_35 : f32 to vector<4x58x52xf32>
    %32 = arith.mulf %31, %30 : vector<4x58x52xf32>
    %33 = arith.addf %25, %32 : vector<4x58x52xf32>
    %c0_36 = arith.constant 0 : index
    %c0_37 = arith.constant 0 : index
    %c4_38 = arith.constant 4 : index
    %34 = vector.load %arg3[%c0_36, %c0_37, %c4_38] : memref<4x58x58xf32, #tpu.memory_space<vmem>>, vector<4x58x52xf32>
    %cst_39 = arith.constant -0.0683231205 : f32
    %35 = vector.broadcast %cst_39 : f32 to vector<4x58x52xf32>
    %36 = arith.mulf %35, %34 : vector<4x58x52xf32>
    %37 = arith.addf %29, %36 : vector<4x58x52xf32>
    %c0_40 = arith.constant 0 : index
    %c0_41 = arith.constant 0 : index
    %c5 = arith.constant 5 : index
    %38 = vector.load %arg3[%c0_40, %c0_41, %c5] : memref<4x58x58xf32, #tpu.memory_space<vmem>>, vector<4x58x52xf32>
    %cst_42 = arith.constant -0.166863218 : f32
    %39 = vector.broadcast %cst_42 : f32 to vector<4x58x52xf32>
    %40 = arith.mulf %39, %38 : vector<4x58x52xf32>
    %41 = arith.addf %33, %40 : vector<4x58x52xf32>
    %c0_43 = arith.constant 0 : index
    %c0_44 = arith.constant 0 : index
    %c5_45 = arith.constant 5 : index
    %42 = vector.load %arg3[%c0_43, %c0_44, %c5_45] : memref<4x58x58xf32, #tpu.memory_space<vmem>>, vector<4x58x52xf32>
    %cst_46 = arith.constant 0.00493661221 : f32
    %43 = vector.broadcast %cst_46 : f32 to vector<4x58x52xf32>
    %44 = arith.mulf %43, %42 : vector<4x58x52xf32>
    %45 = arith.addf %37, %44 : vector<4x58x52xf32>
    %c0_47 = arith.constant 0 : index
    %c0_48 = arith.constant 0 : index
    %c6 = arith.constant 6 : index
    %46 = vector.load %arg3[%c0_47, %c0_48, %c6] : memref<4x58x58xf32, #tpu.memory_space<vmem>>, vector<4x58x52xf32>
    %cst_49 = arith.constant 2.178470e-02 : f32
    %47 = vector.broadcast %cst_49 : f32 to vector<4x58x52xf32>
    %48 = arith.mulf %47, %46 : vector<4x58x52xf32>
    %49 = arith.addf %41, %48 : vector<4x58x52xf32>
    %c0_50 = arith.constant 0 : index
    %c0_51 = arith.constant 0 : index
    %c0_52 = arith.constant 0 : index
    %50 = vector.load %arg4[%c0_50, %c0_51, %c0_52] : memref<4x58x104xf32, #tpu.memory_space<vmem>>, vector<4x58x52xf32>
    tpu.vector_store %arg4[%c0_50, %c0_51, %c0_52], %45 {strides = array<i32>} : memref<4x58x104xf32, #tpu.memory_space<vmem>>, vector<4x58x52xf32>,
    %c0_53 = arith.constant 0 : index
    %c0_54 = arith.constant 0 : index
    %c52 = arith.constant 52 : index
    %51 = vector.load %arg4[%c0_53, %c0_54, %c52] : memref<4x58x104xf32, #tpu.memory_space<vmem>>, vector<4x58x52xf32>
    tpu.vector_store %arg4[%c0_53, %c0_54, %c52], %49 {strides = array<i32>} : memref<4x58x104xf32, #tpu.memory_space<vmem>>, vector<4x58x52xf32>,
    %c0_55 = arith.constant 0 : index
    %c0_56 = arith.constant 0 : index
    %c0_57 = arith.constant 0 : index
    %52 = vector.load %arg4[%c0_55, %c0_56, %c0_57] : memref<4x58x104xf32, #tpu.memory_space<vmem>>, vector<4x52x104xf32>
    %cst_58 = arith.constant -0.0110318679 : f32
    %53 = vector.broadcast %cst_58 : f32 to vector<4x52x104xf32>
    %54 = arith.mulf %53, %52 : vector<4x52x104xf32>
    %c0_59 = arith.constant 0 : index
    %c1_60 = arith.constant 1 : index
    %c0_61 = arith.constant 0 : index
    %55 = vector.load %arg4[%c0_59, %c1_60, %c0_61] : memref<4x58x104xf32, #tpu.memory_space<vmem>>, vector<4x52x104xf32>
    %cst_62 = arith.constant 0.00249992218 : f32
    %56 = vector.broadcast %cst_62 : f32 to vector<4x52x104xf32>
    %57 = arith.mulf %56, %55 : vector<4x52x104xf32>
    %c0_63 = arith.constant 0 : index
    %c1_64 = arith.constant 1 : index
    %c0_65 = arith.constant 0 : index
    %58 = vector.load %arg4[%c0_63, %c1_64, %c0_65] : memref<4x58x104xf32, #tpu.memory_space<vmem>>, vector<4x52x104xf32>
    %cst_66 = arith.constant 0.063250564 : f32
    %59 = vector.broadcast %cst_66 : f32 to vector<4x52x104xf32>
    %60 = arith.mulf %59, %58 : vector<4x52x104xf32>
    %61 = arith.addf %54, %60 : vector<4x52x104xf32>
    %c0_67 = arith.constant 0 : index
    %c2_68 = arith.constant 2 : index
    %c0_69 = arith.constant 0 : index
    %62 = vector.load %arg4[%c0_67, %c2_68, %c0_69] : memref<4x58x104xf32, #tpu.memory_space<vmem>>, vector<4x52x104xf32>
    %cst_70 = arith.constant -0.0297837518 : f32
    %63 = vector.broadcast %cst_70 : f32 to vector<4x52x104xf32>
    %64 = arith.mulf %63, %62 : vector<4x52x104xf32>
    %65 = arith.addf %57, %64 : vector<4x52x104xf32>
    %c0_71 = arith.constant 0 : index
    %c2_72 = arith.constant 2 : index
    %c0_73 = arith.constant 0 : index
    %66 = vector.load %arg4[%c0_71, %c2_72, %c0_73] : memref<4x58x104xf32, #tpu.memory_space<vmem>>, vector<4x52x104xf32>
    %cst_74 = arith.constant -0.102724969 : f32
    %67 = vector.broadcast %cst_74 : f32 to vector<4x52x104xf32>
    %68 = arith.mulf %67, %66 : vector<4x52x104xf32>
    %69 = arith.addf %61, %68 : vector<4x52x104xf32>
    %c0_75 = arith.constant 0 : index
    %c3_76 = arith.constant 3 : index
    %c0_77 = arith.constant 0 : index
    %70 = vector.load %arg4[%c0_75, %c3_76, %c0_77] : memref<4x58x104xf32, #tpu.memory_space<vmem>>, vector<4x52x104xf32>
    %cst_78 = arith.constant 0.477904379 : f32
    %71 = vector.broadcast %cst_78 : f32 to vector<4x52x104xf32>
    %72 = arith.mulf %71, %70 : vector<4x52x104xf32>
    %73 = arith.addf %65, %72 : vector<4x52x104xf32>
    %c0_79 = arith.constant 0 : index
    %c3_80 = arith.constant 3 : index
    %c0_81 = arith.constant 0 : index
    %74 = vector.load %arg4[%c0_79, %c3_80, %c0_81] : memref<4x58x104xf32, #tpu.memory_space<vmem>>, vector<4x52x104xf32>
    %cst_82 = arith.constant 1.11389279 : f32
    %75 = vector.broadcast %cst_82 : f32 to vector<4x52x104xf32>
    %76 = arith.mulf %75, %74 : vector<4x52x104xf32>
    %77 = arith.addf %69, %76 : vector<4x52x104xf32>
    %c0_83 = arith.constant 0 : index
    %c4_84 = arith.constant 4 : index
    %c0_85 = arith.constant 0 : index
    %78 = vector.load %arg4[%c0_83, %c4_84, %c0_85] : memref<4x58x104xf32, #tpu.memory_space<vmem>>, vector<4x52x104xf32>
    %cst_86 = arith.constant 0.694457948 : f32
    %79 = vector.broadcast %cst_86 : f32 to vector<4x52x104xf32>
    %80 = arith.mulf %79, %78 : vector<4x52x104xf32>
    %81 = arith.addf %73, %80 : vector<4x52x104xf32>
    %c0_87 = arith.constant 0 : index
    %c4_88 = arith.constant 4 : index
    %c0_89 = arith.constant 0 : index
    %82 = vector.load %arg4[%c0_87, %c4_88, %c0_89] : memref<4x58x104xf32, #tpu.memory_space<vmem>>, vector<4x52x104xf32>
    %cst_90 = arith.constant -0.0683231205 : f32
    %83 = vector.broadcast %cst_90 : f32 to vector<4x52x104xf32>
    %84 = arith.mulf %83, %82 : vector<4x52x104xf32>
    %85 = arith.addf %77, %84 : vector<4x52x104xf32>
    %c0_91 = arith.constant 0 : index
    %c5_92 = arith.constant 5 : index
    %c0_93 = arith.constant 0 : index
    %86 = vector.load %arg4[%c0_91, %c5_92, %c0_93] : memref<4x58x104xf32, #tpu.memory_space<vmem>>, vector<4x52x104xf32>
    %cst_94 = arith.constant -0.166863218 : f32
    %87 = vector.broadcast %cst_94 : f32 to vector<4x52x104xf32>
    %88 = arith.mulf %87, %86 : vector<4x52x104xf32>
    %89 = arith.addf %81, %88 : vector<4x52x104xf32>
    %c0_95 = arith.constant 0 : index
    %c5_96 = arith.constant 5 : index
    %c0_97 = arith.constant 0 : index
    %90 = vector.load %arg4[%c0_95, %c5_96, %c0_97] : memref<4x58x104xf32, #tpu.memory_space<vmem>>, vector<4x52x104xf32>
    %cst_98 = arith.constant 0.00493661221 : f32
    %91 = vector.broadcast %cst_98 : f32 to vector<4x52x104xf32>
    %92 = arith.mulf %91, %90 : vector<4x52x104xf32>
    %93 = arith.addf %85, %92 : vector<4x52x104xf32>
    %c0_99 = arith.constant 0 : index
    %c6_100 = arith.constant 6 : index
    %c0_101 = arith.constant 0 : index
    %94 = vector.load %arg4[%c0_99, %c6_100, %c0_101] : memref<4x58x104xf32, #tpu.memory_space<vmem>>, vector<4x52x104xf32>
    %cst_102 = arith.constant 2.178470e-02 : f32
    %95 = vector.broadcast %cst_102 : f32 to vector<4x52x104xf32>
    %96 = arith.mulf %95, %94 : vector<4x52x104xf32>
    %97 = arith.addf %89, %96 : vector<4x52x104xf32>
    %c0_103 = arith.constant 0 : index
    %c0_104 = arith.constant 0 : index
    %c0_105 = arith.constant 0 : index
    %98 = vector.load %arg2[%c0_103, %c0_104, %c0_105] : memref<4x104x104xf32, #tpu.memory_space<vmem>>, vector<4x52x104xf32>
    tpu.vector_store %arg2[%c0_103, %c0_104, %c0_105], %93 {strides = array<i32>} : memref<4x104x104xf32, #tpu.memory_space<vmem>>, vector<4x52x104xf32>,
    %c0_106 = arith.constant 0 : index
    %c52_107 = arith.constant 52 : index
    %c0_108 = arith.constant 0 : index
    %99 = vector.load %arg2[%c0_106, %c52_107, %c0_108] : memref<4x104x104xf32, #tpu.memory_space<vmem>>, vector<4x52x104xf32>
    tpu.vector_store %arg2[%c0_106, %c52_107, %c0_108], %97 {strides = array<i32>} : memref<4x104x104xf32, #tpu.memory_space<vmem>>, vector<4x52x104xf32>,
    return
  }
  func.func @transform_0(%arg0: i32) -> (i32, i32, i32) {
    %c0_i32 = arith.constant 0 : i32
    %c0_i32_0 = arith.constant 0 : i32
    %c0_i32_1 = arith.constant 0 : i32
    return %arg0, %c0_i32, %c0_i32_0 : i32, i32, i32
  }
  func.func @transform_1(%arg0: i32) -> (i32, i32, i32) {
    %c0_i32 = arith.constant 0 : i32
    %c0_i32_0 = arith.constant 0 : i32
    %c0_i32_1 = arith.constant 0 : i32
    return %arg0, %c0_i32, %c0_i32_0 : i32, i32, i32
  }
}

module attributes {stable_mosaic.version = 11 : i64} {
  func.func @_downsample2x_kernel(%arg0: i32, %arg1: memref<4x74x74xf32, #tpu.memory_space<vmem>>, %arg2: memref<4x32x32xf32, #tpu.memory_space<vmem>>, %arg3: memref<4x74x32xf32, #tpu.memory_space<vmem>>) attributes {dimension_semantics = [#tpu.dimension_semantics<parallel>], iteration_bounds = array<i64: 2>, scalar_prefetch = 0 : i64, scratch_operands = 1 : i64, tpu.core_type = #tpu.core_type<tc>, window_params = [{transform_indices = @transform_0, window_bounds = array<i64: 4, 74, 74>}, {transform_indices = @transform_1, window_bounds = array<i64: 4, 32, 32>}]} {
    %c0 = arith.constant 0 : index
    %c0_0 = arith.constant 0 : index
    %c0_1 = arith.constant 0 : index
    %0 = vector.load %arg1[%c0, %c0_0, %c0_1] : memref<4x74x74xf32, #tpu.memory_space<vmem>>, vector<4x74x32xf32>
    %cst = arith.constant 0.0108923502 : f32
    %1 = vector.broadcast %cst : f32 to vector<4x74x32xf32>
    %2 = arith.mulf %1, %0 : vector<4x74x32xf32>
    %c0_2 = arith.constant 0 : index
    %c0_3 = arith.constant 0 : index
    %c37 = arith.constant 37 : index
    %3 = vector.load %arg1[%c0_2, %c0_3, %c37] : memref<4x74x74xf32, #tpu.memory_space<vmem>>, vector<4x74x32xf32>
    %cst_4 = arith.constant 0.00246830611 : f32
    %4 = vector.broadcast %cst_4 : f32 to vector<4x74x32xf32>
    %5 = arith.mulf %4, %3 : vector<4x74x32xf32>
    %6 = arith.addf %2, %5 : vector<4x74x32xf32>
    %c0_5 = arith.constant 0 : index
    %c0_6 = arith.constant 0 : index
    %c1 = arith.constant 1 : index
    %7 = vector.load %arg1[%c0_5, %c0_6, %c1] : memref<4x74x74xf32, #tpu.memory_space<vmem>>, vector<4x74x32xf32>
    %cst_7 = arith.constant -0.0834316089 : f32
    %8 = vector.broadcast %cst_7 : f32 to vector<4x74x32xf32>
    %9 = arith.mulf %8, %7 : vector<4x74x32xf32>
    %10 = arith.addf %6, %9 : vector<4x74x32xf32>
    %c0_8 = arith.constant 0 : index
    %c0_9 = arith.constant 0 : index
    %c38 = arith.constant 38 : index
    %11 = vector.load %arg1[%c0_8, %c0_9, %c38] : memref<4x74x74xf32, #tpu.memory_space<vmem>>, vector<4x74x32xf32>
    %cst_10 = arith.constant -0.0341615602 : f32
    %12 = vector.broadcast %cst_10 : f32 to vector<4x74x32xf32>
    %13 = arith.mulf %12, %11 : vector<4x74x32xf32>
    %14 = arith.addf %10, %13 : vector<4x74x32xf32>
    %c0_11 = arith.constant 0 : index
    %c0_12 = arith.constant 0 : index
    %c2 = arith.constant 2 : index
    %15 = vector.load %arg1[%c0_11, %c0_12, %c2] : memref<4x74x74xf32, #tpu.memory_space<vmem>>, vector<4x74x32xf32>
    %cst_13 = arith.constant 0.347228974 : f32
    %16 = vector.broadcast %cst_13 : f32 to vector<4x74x32xf32>
    %17 = arith.mulf %16, %15 : vector<4x74x32xf32>
    %18 = arith.addf %14, %17 : vector<4x74x32xf32>
    %c0_14 = arith.constant 0 : index
    %c0_15 = arith.constant 0 : index
    %c39 = arith.constant 39 : index
    %19 = vector.load %arg1[%c0_14, %c0_15, %c39] : memref<4x74x74xf32, #tpu.memory_space<vmem>>, vector<4x74x32xf32>
    %cst_16 = arith.constant 0.556946397 : f32
    %20 = vector.broadcast %cst_16 : f32 to vector<4x74x32xf32>
    %21 = arith.mulf %20, %19 : vector<4x74x32xf32>
    %22 = arith.addf %18, %21 : vector<4x74x32xf32>
    %c0_17 = arith.constant 0 : index
    %c0_18 = arith.constant 0 : index
    %c3 = arith.constant 3 : index
    %23 = vector.load %arg1[%c0_17, %c0_18, %c3] : memref<4x74x74xf32, #tpu.memory_space<vmem>>, vector<4x74x32xf32>
    %cst_19 = arith.constant 0.23895219 : f32
    %24 = vector.broadcast %cst_19 : f32 to vector<4x74x32xf32>
    %25 = arith.mulf %24, %23 : vector<4x74x32xf32>
    %26 = arith.addf %22, %25 : vector<4x74x32xf32>
    %c0_20 = arith.constant 0 : index
    %c0_21 = arith.constant 0 : index
    %c40 = arith.constant 40 : index
    %27 = vector.load %arg1[%c0_20, %c0_21, %c40] : memref<4x74x74xf32, #tpu.memory_space<vmem>>, vector<4x74x32xf32>
    %cst_22 = arith.constant -0.0513624847 : f32
    %28 = vector.broadcast %cst_22 : f32 to vector<4x74x32xf32>
    %29 = arith.mulf %28, %27 : vector<4x74x32xf32>
    %30 = arith.addf %26, %29 : vector<4x74x32xf32>
    %c0_23 = arith.constant 0 : index
    %c0_24 = arith.constant 0 : index
    %c4 = arith.constant 4 : index
    %31 = vector.load %arg1[%c0_23, %c0_24, %c4] : memref<4x74x74xf32, #tpu.memory_space<vmem>>, vector<4x74x32xf32>
    %cst_25 = arith.constant -0.0148918759 : f32
    %32 = vector.broadcast %cst_25 : f32 to vector<4x74x32xf32>
    %33 = arith.mulf %32, %31 : vector<4x74x32xf32>
    %34 = arith.addf %30, %33 : vector<4x74x32xf32>
    %c0_26 = arith.constant 0 : index
    %c0_27 = arith.constant 0 : index
    %c41 = arith.constant 41 : index
    %35 = vector.load %arg1[%c0_26, %c0_27, %c41] : memref<4x74x74xf32, #tpu.memory_space<vmem>>, vector<4x74x32xf32>
    %cst_28 = arith.constant 0.031625282 : f32
    %36 = vector.broadcast %cst_28 : f32 to vector<4x74x32xf32>
    %37 = arith.mulf %36, %35 : vector<4x74x32xf32>
    %38 = arith.addf %34, %37 : vector<4x74x32xf32>
    %c0_29 = arith.constant 0 : index
    %c0_30 = arith.constant 0 : index
    %c5 = arith.constant 5 : index
    %39 = vector.load %arg1[%c0_29, %c0_30, %c5] : memref<4x74x74xf32, #tpu.memory_space<vmem>>, vector<4x74x32xf32>
    %cst_31 = arith.constant 0.00124996109 : f32
    %40 = vector.broadcast %cst_31 : f32 to vector<4x74x32xf32>
    %41 = arith.mulf %40, %39 : vector<4x74x32xf32>
    %42 = arith.addf %38, %41 : vector<4x74x32xf32>
    %c0_32 = arith.constant 0 : index
    %c0_33 = arith.constant 0 : index
    %c42 = arith.constant 42 : index
    %43 = vector.load %arg1[%c0_32, %c0_33, %c42] : memref<4x74x74xf32, #tpu.memory_space<vmem>>, vector<4x74x32xf32>
    %cst_34 = arith.constant -0.00551593397 : f32
    %44 = vector.broadcast %cst_34 : f32 to vector<4x74x32xf32>
    %45 = arith.mulf %44, %43 : vector<4x74x32xf32>
    %46 = arith.addf %42, %45 : vector<4x74x32xf32>
    %c0_35 = arith.constant 0 : index
    %c0_36 = arith.constant 0 : index
    %c0_37 = arith.constant 0 : index
    %47 = vector.load %arg3[%c0_35, %c0_36, %c0_37] : memref<4x74x32xf32, #tpu.memory_space<vmem>>, vector<4x74x32xf32>
    tpu.vector_store %arg3[%c0_35, %c0_36, %c0_37], %46 {strides = array<i32>} : memref<4x74x32xf32, #tpu.memory_space<vmem>>, vector<4x74x32xf32>,
    %c0_38 = arith.constant 0 : index
    %c0_39 = arith.constant 0 : index
    %c0_40 = arith.constant 0 : index
    %48 = vector.load %arg3[%c0_38, %c0_39, %c0_40] : memref<4x74x32xf32, #tpu.memory_space<vmem>>, vector<4x32x32xf32>
    %cst_41 = arith.constant 0.0108923502 : f32
    %49 = vector.broadcast %cst_41 : f32 to vector<4x32x32xf32>
    %50 = arith.mulf %49, %48 : vector<4x32x32xf32>
    %c0_42 = arith.constant 0 : index
    %c37_43 = arith.constant 37 : index
    %c0_44 = arith.constant 0 : index
    %51 = vector.load %arg3[%c0_42, %c37_43, %c0_44] : memref<4x74x32xf32, #tpu.memory_space<vmem>>, vector<4x32x32xf32>
    %cst_45 = arith.constant 0.00246830611 : f32
    %52 = vector.broadcast %cst_45 : f32 to vector<4x32x32xf32>
    %53 = arith.mulf %52, %51 : vector<4x32x32xf32>
    %54 = arith.addf %50, %53 : vector<4x32x32xf32>
    %c0_46 = arith.constant 0 : index
    %c1_47 = arith.constant 1 : index
    %c0_48 = arith.constant 0 : index
    %55 = vector.load %arg3[%c0_46, %c1_47, %c0_48] : memref<4x74x32xf32, #tpu.memory_space<vmem>>, vector<4x32x32xf32>
    %cst_49 = arith.constant -0.0834316089 : f32
    %56 = vector.broadcast %cst_49 : f32 to vector<4x32x32xf32>
    %57 = arith.mulf %56, %55 : vector<4x32x32xf32>
    %58 = arith.addf %54, %57 : vector<4x32x32xf32>
    %c0_50 = arith.constant 0 : index
    %c38_51 = arith.constant 38 : index
    %c0_52 = arith.constant 0 : index
    %59 = vector.load %arg3[%c0_50, %c38_51, %c0_52] : memref<4x74x32xf32, #tpu.memory_space<vmem>>, vector<4x32x32xf32>
    %cst_53 = arith.constant -0.0341615602 : f32
    %60 = vector.broadcast %cst_53 : f32 to vector<4x32x32xf32>
    %61 = arith.mulf %60, %59 : vector<4x32x32xf32>
    %62 = arith.addf %58, %61 : vector<4x32x32xf32>
    %c0_54 = arith.constant 0 : index
    %c2_55 = arith.constant 2 : index
    %c0_56 = arith.constant 0 : index
    %63 = vector.load %arg3[%c0_54, %c2_55, %c0_56] : memref<4x74x32xf32, #tpu.memory_space<vmem>>, vector<4x32x32xf32>
    %cst_57 = arith.constant 0.347228974 : f32
    %64 = vector.broadcast %cst_57 : f32 to vector<4x32x32xf32>
    %65 = arith.mulf %64, %63 : vector<4x32x32xf32>
    %66 = arith.addf %62, %65 : vector<4x32x32xf32>
    %c0_58 = arith.constant 0 : index
    %c39_59 = arith.constant 39 : index
    %c0_60 = arith.constant 0 : index
    %67 = vector.load %arg3[%c0_58, %c39_59, %c0_60] : memref<4x74x32xf32, #tpu.memory_space<vmem>>, vector<4x32x32xf32>
    %cst_61 = arith.constant 0.556946397 : f32
    %68 = vector.broadcast %cst_61 : f32 to vector<4x32x32xf32>
    %69 = arith.mulf %68, %67 : vector<4x32x32xf32>
    %70 = arith.addf %66, %69 : vector<4x32x32xf32>
    %c0_62 = arith.constant 0 : index
    %c3_63 = arith.constant 3 : index
    %c0_64 = arith.constant 0 : index
    %71 = vector.load %arg3[%c0_62, %c3_63, %c0_64] : memref<4x74x32xf32, #tpu.memory_space<vmem>>, vector<4x32x32xf32>
    %cst_65 = arith.constant 0.23895219 : f32
    %72 = vector.broadcast %cst_65 : f32 to vector<4x32x32xf32>
    %73 = arith.mulf %72, %71 : vector<4x32x32xf32>
    %74 = arith.addf %70, %73 : vector<4x32x32xf32>
    %c0_66 = arith.constant 0 : index
    %c40_67 = arith.constant 40 : index
    %c0_68 = arith.constant 0 : index
    %75 = vector.load %arg3[%c0_66, %c40_67, %c0_68] : memref<4x74x32xf32, #tpu.memory_space<vmem>>, vector<4x32x32xf32>
    %cst_69 = arith.constant -0.0513624847 : f32
    %76 = vector.broadcast %cst_69 : f32 to vector<4x32x32xf32>
    %77 = arith.mulf %76, %75 : vector<4x32x32xf32>
    %78 = arith.addf %74, %77 : vector<4x32x32xf32>
    %c0_70 = arith.constant 0 : index
    %c4_71 = arith.constant 4 : index
    %c0_72 = arith.constant 0 : index
    %79 = vector.load %arg3[%c0_70, %c4_71, %c0_72] : memref<4x74x32xf32, #tpu.memory_space<vmem>>, vector<4x32x32xf32>
    %cst_73 = arith.constant -0.0148918759 : f32
    %80 = vector.broadcast %cst_73 : f32 to vector<4x32x32xf32>
    %81 = arith.mulf %80, %79 : vector<4x32x32xf32>
    %82 = arith.addf %78, %81 : vector<4x32x32xf32>
    %c0_74 = arith.constant 0 : index
    %c41_75 = arith.constant 41 : index
    %c0_76 = arith.constant 0 : index
    %83 = vector.load %arg3[%c0_74, %c41_75, %c0_76] : memref<4x74x32xf32, #tpu.memory_space<vmem>>, vector<4x32x32xf32>
    %cst_77 = arith.constant 0.031625282 : f32
    %84 = vector.broadcast %cst_77 : f32 to vector<4x32x32xf32>
    %85 = arith.mulf %84, %83 : vector<4x32x32xf32>
    %86 = arith.addf %82, %85 : vector<4x32x32xf32>
    %c0_78 = arith.constant 0 : index
    %c5_79 = arith.constant 5 : index
    %c0_80 = arith.constant 0 : index
    %87 = vector.load %arg3[%c0_78, %c5_79, %c0_80] : memref<4x74x32xf32, #tpu.memory_space<vmem>>, vector<4x32x32xf32>
    %cst_81 = arith.constant 0.00124996109 : f32
    %88 = vector.broadcast %cst_81 : f32 to vector<4x32x32xf32>
    %89 = arith.mulf %88, %87 : vector<4x32x32xf32>
    %90 = arith.addf %86, %89 : vector<4x32x32xf32>
    %c0_82 = arith.constant 0 : index
    %c42_83 = arith.constant 42 : index
    %c0_84 = arith.constant 0 : index
    %91 = vector.load %arg3[%c0_82, %c42_83, %c0_84] : memref<4x74x32xf32, #tpu.memory_space<vmem>>, vector<4x32x32xf32>
    %cst_85 = arith.constant -0.00551593397 : f32
    %92 = vector.broadcast %cst_85 : f32 to vector<4x32x32xf32>
    %93 = arith.mulf %92, %91 : vector<4x32x32xf32>
    %94 = arith.addf %90, %93 : vector<4x32x32xf32>
    %c0_86 = arith.constant 0 : index
    %c0_87 = arith.constant 0 : index
    %c0_88 = arith.constant 0 : index
    %95 = vector.load %arg2[%c0_86, %c0_87, %c0_88] : memref<4x32x32xf32, #tpu.memory_space<vmem>>, vector<4x32x32xf32>
    tpu.vector_store %arg2[%c0_86, %c0_87, %c0_88], %94 {strides = array<i32>} : memref<4x32x32xf32, #tpu.memory_space<vmem>>, vector<4x32x32xf32>,
    return
  }
  func.func @transform_0(%arg0: i32) -> (i32, i32, i32) {
    %c0_i32 = arith.constant 0 : i32
    %c0_i32_0 = arith.constant 0 : i32
    %c0_i32_1 = arith.constant 0 : i32
    return %arg0, %c0_i32, %c0_i32_0 : i32, i32, i32
  }
  func.func @transform_1(%arg0: i32) -> (i32, i32, i32) {
    %c0_i32 = arith.constant 0 : i32
    %c0_i32_0 = arith.constant 0 : i32
    %c0_i32_1 = arith.constant 0 : i32
    return %arg0, %c0_i32, %c0_i32_0 : i32, i32, i32
  }
}

module attributes {stable_mosaic.version = 11 : i64} {
  func.func @_bandfilter_kernel(%arg0: i32, %arg1: memref<1x4x32x32xf32, #tpu.memory_space<vmem>>, %arg2: memref<1x32x32xf32, #tpu.memory_space<vmem>>, %arg3: memref<1x32x32xf32, #tpu.memory_space<vmem>>, %arg4: memref<1x4x32x32xf32, #tpu.memory_space<vmem>>) attributes {dimension_semantics = [#tpu.dimension_semantics<parallel>], iteration_bounds = array<i64: 2>, scalar_prefetch = 0 : i64, scratch_operands = 0 : i64, tpu.core_type = #tpu.core_type<tc>, window_params = [{transform_indices = @transform_0, window_bounds = array<i64: 1, 4, 32, 32>}, {transform_indices = @transform_1, window_bounds = array<i64: 1, 32, 32>}, {transform_indices = @transform_2, window_bounds = array<i64: 1, 32, 32>}, {transform_indices = @transform_3, window_bounds = array<i64: 1, 4, 32, 32>}]} {
    %c0 = arith.constant 0 : index
    %c0_0 = arith.constant 0 : index
    %c0_1 = arith.constant 0 : index
    %0 = vector.load %arg2[%c0, %c0_0, %c0_1] : memref<1x32x32xf32, #tpu.memory_space<vmem>>, vector<1x32x32xf32>
    %1 = vector.shape_cast %0 : vector<1x32x32xf32> to vector<32x32xf32>
    %c0_2 = arith.constant 0 : index
    %c0_3 = arith.constant 0 : index
    %c0_4 = arith.constant 0 : index
    %2 = vector.load %arg3[%c0_2, %c0_3, %c0_4] : memref<1x32x32xf32, #tpu.memory_space<vmem>>, vector<1x32x32xf32>
    %3 = vector.shape_cast %2 : vector<1x32x32xf32> to vector<32x32xf32>
    %c0_5 = arith.constant 0 : index
    %c0_6 = arith.constant 0 : index
    %c0_7 = arith.constant 0 : index
    %c0_8 = arith.constant 0 : index
    %4 = vector.load %arg1[%c0_5, %c0_6, %c0_7, %c0_8] : memref<1x4x32x32xf32, #tpu.memory_space<vmem>>, vector<1x4x32x32xf32>
    %5 = vector.shape_cast %4 : vector<1x4x32x32xf32> to vector<4x32x32xf32>
    %6 = vector.shape_cast %5 : vector<4x32x32xf32> to vector<128x32xf32>
    %cst = arith.constant dense<0.000000e+00> : vector<128x32xf32>
    %7 = tpu.matmul %6, %1, %cst {dimension_numbers = #tpu.dot_dimension_numbers<[1], [0], [0], [1], [0, 0, 1, 1], [], []>} : vector<128x32xf32>, vector<32x32xf32>, vector<128x32xf32> -> vector<128x32xf32>
    %8 = vector.shape_cast %7 : vector<128x32xf32> to vector<4x32x32xf32>
    %9 = vector.extract_strided_slice %8 {offsets = [0, 0, 0], sizes = [1, 32, 32], strides = [1, 1, 1]} : vector<4x32x32xf32> to vector<1x32x32xf32>
    %10 = vector.shape_cast %9 : vector<1x32x32xf32> to vector<32x32xf32>
    %cst_9 = arith.constant dense<0.000000e+00> : vector<32x32xf32>
    %11 = tpu.matmul %3, %10, %cst_9 {dimension_numbers = #tpu.dot_dimension_numbers<[1], [0], [0], [1], [0, 0, 1, 1], [], []>} : vector<32x32xf32>, vector<32x32xf32>, vector<32x32xf32> -> vector<32x32xf32>
    %c0_10 = arith.constant 0 : index
    %c0_11 = arith.constant 0 : index
    %c0_12 = arith.constant 0 : index
    %c0_13 = arith.constant 0 : index
    %12 = vector.load %arg4[%c0_10, %c0_11, %c0_12, %c0_13] : memref<1x4x32x32xf32, #tpu.memory_space<vmem>>, vector<1x1x32x32xf32>
    %13 = vector.shape_cast %12 : vector<1x1x32x32xf32> to vector<32x32xf32>
    %14 = vector.shape_cast %11 : vector<32x32xf32> to vector<1x1x32x32xf32>
    tpu.vector_store %arg4[%c0_10, %c0_11, %c0_12, %c0_13], %14 {strides = array<i32>} : memref<1x4x32x32xf32, #tpu.memory_space<vmem>>, vector<1x1x32x32xf32>,
    %15 = vector.extract_strided_slice %8 {offsets = [1, 0, 0], sizes = [1, 32, 32], strides = [1, 1, 1]} : vector<4x32x32xf32> to vector<1x32x32xf32>
    %16 = vector.shape_cast %15 : vector<1x32x32xf32> to vector<32x32xf32>
    %cst_14 = arith.constant dense<0.000000e+00> : vector<32x32xf32>
    %17 = tpu.matmul %3, %16, %cst_14 {dimension_numbers = #tpu.dot_dimension_numbers<[1], [0], [0], [1], [0, 0, 1, 1], [], []>} : vector<32x32xf32>, vector<32x32xf32>, vector<32x32xf32> -> vector<32x32xf32>
    %c0_15 = arith.constant 0 : index
    %c1 = arith.constant 1 : index
    %c0_16 = arith.constant 0 : index
    %c0_17 = arith.constant 0 : index
    %18 = vector.load %arg4[%c0_15, %c1, %c0_16, %c0_17] : memref<1x4x32x32xf32, #tpu.memory_space<vmem>>, vector<1x1x32x32xf32>
    %19 = vector.shape_cast %18 : vector<1x1x32x32xf32> to vector<32x32xf32>
    %20 = vector.shape_cast %17 : vector<32x32xf32> to vector<1x1x32x32xf32>
    tpu.vector_store %arg4[%c0_15, %c1, %c0_16, %c0_17], %20 {strides = array<i32>} : memref<1x4x32x32xf32, #tpu.memory_space<vmem>>, vector<1x1x32x32xf32>,
    %21 = vector.extract_strided_slice %8 {offsets = [2, 0, 0], sizes = [1, 32, 32], strides = [1, 1, 1]} : vector<4x32x32xf32> to vector<1x32x32xf32>
    %22 = vector.shape_cast %21 : vector<1x32x32xf32> to vector<32x32xf32>
    %cst_18 = arith.constant dense<0.000000e+00> : vector<32x32xf32>
    %23 = tpu.matmul %3, %22, %cst_18 {dimension_numbers = #tpu.dot_dimension_numbers<[1], [0], [0], [1], [0, 0, 1, 1], [], []>} : vector<32x32xf32>, vector<32x32xf32>, vector<32x32xf32> -> vector<32x32xf32>
    %c0_19 = arith.constant 0 : index
    %c2 = arith.constant 2 : index
    %c0_20 = arith.constant 0 : index
    %c0_21 = arith.constant 0 : index
    %24 = vector.load %arg4[%c0_19, %c2, %c0_20, %c0_21] : memref<1x4x32x32xf32, #tpu.memory_space<vmem>>, vector<1x1x32x32xf32>
    %25 = vector.shape_cast %24 : vector<1x1x32x32xf32> to vector<32x32xf32>
    %26 = vector.shape_cast %23 : vector<32x32xf32> to vector<1x1x32x32xf32>
    tpu.vector_store %arg4[%c0_19, %c2, %c0_20, %c0_21], %26 {strides = array<i32>} : memref<1x4x32x32xf32, #tpu.memory_space<vmem>>, vector<1x1x32x32xf32>,
    %27 = vector.extract_strided_slice %8 {offsets = [3, 0, 0], sizes = [1, 32, 32], strides = [1, 1, 1]} : vector<4x32x32xf32> to vector<1x32x32xf32>
    %28 = vector.shape_cast %27 : vector<1x32x32xf32> to vector<32x32xf32>
    %cst_22 = arith.constant dense<0.000000e+00> : vector<32x32xf32>
    %29 = tpu.matmul %3, %28, %cst_22 {dimension_numbers = #tpu.dot_dimension_numbers<[1], [0], [0], [1], [0, 0, 1, 1], [], []>} : vector<32x32xf32>, vector<32x32xf32>, vector<32x32xf32> -> vector<32x32xf32>
    %c0_23 = arith.constant 0 : index
    %c3 = arith.constant 3 : index
    %c0_24 = arith.constant 0 : index
    %c0_25 = arith.constant 0 : index
    %30 = vector.load %arg4[%c0_23, %c3, %c0_24, %c0_25] : memref<1x4x32x32xf32, #tpu.memory_space<vmem>>, vector<1x1x32x32xf32>
    %31 = vector.shape_cast %30 : vector<1x1x32x32xf32> to vector<32x32xf32>
    %32 = vector.shape_cast %29 : vector<32x32xf32> to vector<1x1x32x32xf32>
    tpu.vector_store %arg4[%c0_23, %c3, %c0_24, %c0_25], %32 {strides = array<i32>} : memref<1x4x32x32xf32, #tpu.memory_space<vmem>>, vector<1x1x32x32xf32>,
    return
  }
  func.func @transform_0(%arg0: i32) -> (i32, i32, i32, i32) {
    %c0_i32 = arith.constant 0 : i32
    %c0_i32_0 = arith.constant 0 : i32
    %c0_i32_1 = arith.constant 0 : i32
    %c0_i32_2 = arith.constant 0 : i32
    return %arg0, %c0_i32, %c0_i32_0, %c0_i32_1 : i32, i32, i32, i32
  }
  func.func @transform_1(%arg0: i32) -> (i32, i32, i32) {
    %c0_i32 = arith.constant 0 : i32
    %c0_i32_0 = arith.constant 0 : i32
    %c0_i32_1 = arith.constant 0 : i32
    return %arg0, %c0_i32, %c0_i32_0 : i32, i32, i32
  }
  func.func @transform_2(%arg0: i32) -> (i32, i32, i32) {
    %c0_i32 = arith.constant 0 : i32
    %c0_i32_0 = arith.constant 0 : i32
    %c0_i32_1 = arith.constant 0 : i32
    return %arg0, %c0_i32, %c0_i32_0 : i32, i32, i32
  }
  func.func @transform_3(%arg0: i32) -> (i32, i32, i32, i32) {
    %c0_i32 = arith.constant 0 : i32
    %c0_i32_0 = arith.constant 0 : i32
    %c0_i32_1 = arith.constant 0 : i32
    %c0_i32_2 = arith.constant 0 : i32
    return %arg0, %c0_i32, %c0_i32_0, %c0_i32_1 : i32, i32, i32, i32
  }
}

module attributes {stable_mosaic.version = 11 : i64} {
  func.func @_noise_cutout_kernel(%arg0: i32, %arg1: memref<8xf32, #tpu.memory_space<smem>>, %arg2: memref<1x4x32x32xf32, #tpu.memory_space<vmem>>, %arg3: memref<1x4x32x32xf32, #tpu.memory_space<vmem>>, %arg4: memref<1x4x32x32xf32, #tpu.memory_space<vmem>>) attributes {dimension_semantics = [#tpu.dimension_semantics<parallel>], iteration_bounds = array<i64: 2>, scalar_prefetch = 1 : i64, scratch_operands = 0 : i64, tpu.core_type = #tpu.core_type<tc>, window_params = [{transform_indices = @transform_0, window_bounds = array<i64: 1, 4, 32, 32>}, {transform_indices = @transform_1, window_bounds = array<i64: 1, 4, 32, 32>}, {transform_indices = @transform_2, window_bounds = array<i64: 1, 4, 32, 32>}]} {
    %c4_i32 = arith.constant 4 : i32
    %0 = arith.muli %arg0, %c4_i32 : i32
    %c0_i32 = arith.constant 0 : i32
    %1 = arith.addi %0, %c0_i32 : i32
    %2 = arith.index_cast %1 : i32 to index
    %3 = memref.load %arg1[%2] : memref<8xf32, #tpu.memory_space<smem>>
    %c4_i32_0 = arith.constant 4 : i32
    %4 = arith.muli %arg0, %c4_i32_0 : i32
    %c1_i32 = arith.constant 1 : i32
    %5 = arith.addi %4, %c1_i32 : i32
    %6 = arith.index_cast %5 : i32 to index
    %7 = memref.load %arg1[%6] : memref<8xf32, #tpu.memory_space<smem>>
    %c4_i32_1 = arith.constant 4 : i32
    %8 = arith.muli %arg0, %c4_i32_1 : i32
    %c2_i32 = arith.constant 2 : i32
    %9 = arith.addi %8, %c2_i32 : i32
    %10 = arith.index_cast %9 : i32 to index
    %11 = memref.load %arg1[%10] : memref<8xf32, #tpu.memory_space<smem>>
    %c4_i32_2 = arith.constant 4 : i32
    %12 = arith.muli %arg0, %c4_i32_2 : i32
    %c3_i32 = arith.constant 3 : i32
    %13 = arith.addi %12, %c3_i32 : i32
    %14 = arith.index_cast %13 : i32 to index
    %15 = memref.load %arg1[%14] : memref<8xf32, #tpu.memory_space<smem>>
    %16 = tpu.iota {dimensions = array<i32: 1>} : vector<32x32xi32>
    %17 = arith.sitofp %16 : vector<32x32xi32> to vector<32x32xf32>
    %cst = arith.constant 5.000000e-01 : f32
    %18 = vector.broadcast %cst : f32 to vector<32x32xf32>
    %19 = arith.addf %17, %18 : vector<32x32xf32>
    %cst_3 = arith.constant 3.125000e-02 : f32
    %20 = vector.broadcast %cst_3 : f32 to vector<32x32xf32>
    %21 = arith.mulf %19, %20 : vector<32x32xf32>
    %22 = tpu.iota {dimensions = array<i32: 0>} : vector<32x32xi32>
    %23 = arith.sitofp %22 : vector<32x32xi32> to vector<32x32xf32>
    %cst_4 = arith.constant 5.000000e-01 : f32
    %24 = vector.broadcast %cst_4 : f32 to vector<32x32xf32>
    %25 = arith.addf %23, %24 : vector<32x32xf32>
    %cst_5 = arith.constant 3.125000e-02 : f32
    %26 = vector.broadcast %cst_5 : f32 to vector<32x32xf32>
    %27 = arith.mulf %25, %26 : vector<32x32xf32>
    %28 = vector.broadcast %3 : f32 to vector<32x32xf32>
    %29 = arith.subf %21, %28 : vector<32x32xf32>
    %30 = math.absf %29 : vector<32x32xf32>
    %cst_6 = arith.constant 5.000000e-01 : f32
    %31 = arith.mulf %11, %cst_6 : f32
    %32 = vector.broadcast %31 : f32 to vector<32x32xf32>
    %33 = arith.cmpf oge, %30, %32 : vector<32x32xf32>
    %34 = vector.broadcast %7 : f32 to vector<32x32xf32>
    %35 = arith.subf %27, %34 : vector<32x32xf32>
    %36 = math.absf %35 : vector<32x32xf32>
    %cst_7 = arith.constant 5.000000e-01 : f32
    %37 = arith.mulf %15, %cst_7 : f32
    %38 = vector.broadcast %37 : f32 to vector<32x32xf32>
    %39 = arith.cmpf oge, %36, %38 : vector<32x32xf32>
    %40 = arith.ori %33, %39 : vector<32x32xi1>
    %41 = arith.extui %40 : vector<32x32xi1> to vector<32x32xi32>
    %42 = arith.sitofp %41 : vector<32x32xi32> to vector<32x32xf32>
    %c0 = arith.constant 0 : index
    %c0_8 = arith.constant 0 : index
    %c0_9 = arith.constant 0 : index
    %c0_10 = arith.constant 0 : index
    %43 = vector.load %arg2[%c0, %c0_8, %c0_9, %c0_10] : memref<1x4x32x32xf32, #tpu.memory_space<vmem>>, vector<1x4x32x32xf32>
    %44 = vector.shape_cast %43 : vector<1x4x32x32xf32> to vector<4x32x32xf32>
    %c0_11 = arith.constant 0 : index
    %c0_12 = arith.constant 0 : index
    %c0_13 = arith.constant 0 : index
    %c0_14 = arith.constant 0 : index
    %45 = vector.load %arg3[%c0_11, %c0_12, %c0_13, %c0_14] : memref<1x4x32x32xf32, #tpu.memory_space<vmem>>, vector<1x4x32x32xf32>
    %46 = vector.shape_cast %45 : vector<1x4x32x32xf32> to vector<4x32x32xf32>
    %47 = arith.addf %44, %46 : vector<4x32x32xf32>
    %48 = vector.shape_cast %42 : vector<32x32xf32> to vector<1x32x32xf32>
    %49 = vector.broadcast %48 : vector<1x32x32xf32> to vector<4x32x32xf32>
    %50 = arith.mulf %47, %49 : vector<4x32x32xf32>
    %c0_15 = arith.constant 0 : index
    %c0_16 = arith.constant 0 : index
    %c0_17 = arith.constant 0 : index
    %c0_18 = arith.constant 0 : index
    %51 = vector.load %arg4[%c0_15, %c0_16, %c0_17, %c0_18] : memref<1x4x32x32xf32, #tpu.memory_space<vmem>>, vector<1x4x32x32xf32>
    %52 = vector.shape_cast %51 : vector<1x4x32x32xf32> to vector<4x32x32xf32>
    %53 = vector.shape_cast %50 : vector<4x32x32xf32> to vector<1x4x32x32xf32>
    tpu.vector_store %arg4[%c0_15, %c0_16, %c0_17, %c0_18], %53 {strides = array<i32>} : memref<1x4x32x32xf32, #tpu.memory_space<vmem>>, vector<1x4x32x32xf32>,
    return
  }
  func.func @transform_0(%arg0: i32, %arg1: memref<8xf32, #tpu.memory_space<smem>>) -> (i32, i32, i32, i32) {
    %c0_i32 = arith.constant 0 : i32
    %c0_i32_0 = arith.constant 0 : i32
    %c0_i32_1 = arith.constant 0 : i32
    %c0_i32_2 = arith.constant 0 : i32
    return %arg0, %c0_i32, %c0_i32_0, %c0_i32_1 : i32, i32, i32, i32
  }
  func.func @transform_1(%arg0: i32, %arg1: memref<8xf32, #tpu.memory_space<smem>>) -> (i32, i32, i32, i32) {
    %c0_i32 = arith.constant 0 : i32
    %c0_i32_0 = arith.constant 0 : i32
    %c0_i32_1 = arith.constant 0 : i32
    %c0_i32_2 = arith.constant 0 : i32
    return %arg0, %c0_i32, %c0_i32_0, %c0_i32_1 : i32, i32, i32, i32
  }
  func.func @transform_2(%arg0: i32, %arg1: memref<8xf32, #tpu.memory_space<smem>>) -> (i32, i32, i32, i32) {
    %c0_i32 = arith.constant 0 : i32
    %c0_i32_0 = arith.constant 0 : i32
    %c0_i32_1 = arith.constant 0 : i32
    %c0_i32_2 = arith.constant 0 : i32
    return %arg0, %c0_i32, %c0_i32_0, %c0_i32_1 : i32, i32, i32, i32
  }
}

</mosaic_0001>

<llo_original>
// kernel: augment_pipe_forward.6
$region0: #{augment_pipe_forward.6}
  #allocation0 [shape = 'u32[]', space=smem, size = 0x4, offset = 0x4, fixed_abs, tag = 'smem constant byte address 0x4 - core index']
  #allocation1 [shape = 'u32[144,128]{1,0:T(1,128)}', space=vmem, size = 0x12000, scoped, tag = 'internal scratch']
  #allocation2 [shape = 'f32[4,58,58]{2,1,0:T(8,128)}', space=vmem, size = 0x20000, scoped, tag = 'scratch operand']
  #allocation3 [shape = 'f32[4,58,104]{2,1,0:T(8,128)}', space=vmem, size = 0x20000, scoped, tag = 'scratch operand']
  %s0 = inlined_call_operand.vmem [shape: f32[8,52,52], index: 0, kind: input, shape index: {}]
  %s1 = inlined_call_operand.vmem [shape: f32[8,104,104], index: 1, kind: output, shape index: {}]
  %s2 = sld [smem:[#allocation0]]
  $region37: #{augment_pipe_forward.6} parent=0
    _
  %s4 = ssub.s32 1, %s2
  %s5 = scalar_select 0, %s4, %s2
  loop: start=0, step=1, limit=4
  $region2: #{augment_pipe_forward.6} parent=0 // loop_pre_header
    _
  $region3: #{augment_pipe_forward.6} parent=0 // loop_header
    %s7 = sphi 0, %s11
    %p8 = scmp.ge.s32.totalorder %s7, 4
    %s17 = sphi 0, %s19
    %s20 = sphi 0, %s17
    %s21 = sphi 0, %s20
    %s37 = sphi 0, %s21
    %s43 = sphi 0, %s45
    %s46 = sphi 0, %s43
    %s47 = sphi 0, %s46
    %s63 = sphi 0, %s47
  $region4: #{augment_pipe_forward.6} parent=0 // loop_header_branch
    %10 = sbr.rel (%p8) target = $region8
  $region5: #{augment_pipe_forward.6} parent=0 // loop_body
    %s12 = ssub.s32 %s7, 1
    %s13 = ssub.s32 %s7, 2
    %s14 = sadd.s32 %s7, 1
    %s15 = ssub.s32 %s7, %s14
    %p16 = scmp.eq.s32.totalorder %s15, 0
    %s18 = sadd.s32 %s17, 1
    %s19 = scalar_select %p16, %s17, %s18
    %p22 = pneg %p16
    %p23 = scmp.eq.s32.totalorder %s7, 1
    %p24 = por %p22, %p23
    %p25 = scmp.ne.s32.totalorder %s17, %s20
    %p26 = scmp.eq.s32.totalorder %s7, 0
    %p27 = por %p25, %p26
    %p28 = scmp.ne.s32.totalorder %s17, %s20
    %p29 = scmp.eq.s32.totalorder %s12, 1
    %p30 = por %p28, %p29
    %p31 = scmp.ne.s32.totalorder %s20, %s21
    %p32 = scmp.eq.s32.totalorder %s12, 0
    %p33 = por %p31, %p32
    %p34 = scmp.ne.s32.totalorder %s20, %s21
    %p35 = scmp.eq.s32.totalorder %s13, 1
    %p36 = por %p34, %p35
    %p38 = scmp.ne.s32.totalorder %s21, %s37
    %p39 = scmp.eq.s32.totalorder %s13, 0
    %p40 = por %p38, %p39
    %s41 = ssub.s32 %s7, %s14
    %p42 = scmp.eq.s32.totalorder %s41, 0
    %s44 = sadd.s32 %s43, 1
    %s45 = scalar_select %p42, %s43, %s44
    %p48 = pneg %p42
    %p49 = scmp.eq.s32.totalorder %s7, 1
    %p50 = por %p48, %p49
    %p51 = scmp.ne.s32.totalorder %s43, %s46
    %p52 = scmp.eq.s32.totalorder %s7, 0
    %p53 = por %p51, %p52
    %p54 = scmp.ne.s32.totalorder %s43, %s46
    %p55 = scmp.eq.s32.totalorder %s12, 1
    %p56 = por %p54, %p55
    %p57 = scmp.ne.s32.totalorder %s46, %s47
    %p58 = scmp.eq.s32.totalorder %s12, 0
    %p59 = por %p57, %p58
    %p60 = scmp.ne.s32.totalorder %s46, %s47
    %p61 = scmp.eq.s32.totalorder %s13, 1
    %p62 = por %p60, %p61
    %p64 = scmp.ne.s32.totalorder %s47, %s63
    %p65 = scmp.eq.s32.totalorder %s13, 0
    %p66 = por %p64, %p65
    %p67 = scmp.le.s32.totalorder 1, %s7
    %p68 = scmp.lt.s32.totalorder %s7, 3
    %p69 = pnand %p67, %p68
    %p70 = pneg %p69
    // Predicated region
    $region9: #{augment_pipe_forward.6} parent=5 // pred_check
      _
    $region10: #{augment_pipe_forward.6} parent=5 // pred_check_branch
      %72 = sbr.rel (%p69) target = $region12
    $region11: #{augment_pipe_forward.6} parent=5 // pred_region
      %s73 = ssub.s32 %s7, 1
    $region12: #{augment_pipe_forward.6} parent=5 // pred_fallthru
      _
    %p74 = scmp.lt.s32.totalorder %s7, 2
    // Predicated region
    $region13: #{augment_pipe_forward.6} parent=5 // pred_check
      %p75 = pneg %p74
    $region14: #{augment_pipe_forward.6} parent=5 // pred_check_branch
      %77 = sbr.rel (%p75) target = $region16
    $region15: #{augment_pipe_forward.6} parent=5 // pred_region
      // Predicated region
      $region17: #{augment_pipe_forward.6} parent=15 // pred_check
        %p78 = pneg %p27
      $region18: #{augment_pipe_forward.6} parent=15 // pred_check_branch
        %80 = sbr.rel (%p78) target = $region20
      $region19: #{augment_pipe_forward.6} parent=15 // pred_region
        %s81 = smul.u32 4, %s7
        %p82 = scmp.lt.s32.totalorder %s81, 7
        %s83 = scalar_select %p82, %s81, 7
        %s84 = smul.addr %s83, 7
        %s85 = smul.addr %s84, 8
        %s86 = scalar_lea.vmem %s0, %s85
        %s87 = smul.u32 4, %s7
      $region20: #{augment_pipe_forward.6} parent=15 // pred_fallthru
        _
    $region16: #{augment_pipe_forward.6} parent=5 // pred_fallthru
      _
    %p88 = scmp.le.s32.totalorder 1, %s7
    %p89 = scmp.lt.s32.totalorder %s7, 3
    %p90 = pnand %p88, %p89
    %p91 = pneg %p90
    // Predicated region
    $region21: #{augment_pipe_forward.6} parent=5 // pred_check
      _
    $region22: #{augment_pipe_forward.6} parent=5 // pred_check_branch
      %93 = sbr.rel (%p90) target = $region24
    $region23: #{augment_pipe_forward.6} parent=5 // pred_region
      %s94 = ssub.s32 %s7, 1
      %s95 = smul.u32 4, %s12
      %p96 = scmp.lt.s32.totalorder %s95, 7
      %s97 = scalar_select %p96, %s95, 7
      %s98 = smul.addr %s97, 7
      %s99 = smul.addr %s98, 8
      %s100 = scalar_lea.vmem %s0, %s99
      %p101 = pneg %p33
      %p102 = pneg %p30
      %p103 = pneg %p59
      %p104 = pneg %p56
      %s105 = smul.u32 4, %s12
      %p106 = scmp.lt.s32.totalorder %s105, 7
      %s107 = scalar_select %p106, %s105, 7
      %s108 = smul.addr %s107, 13
      %s109 = smul.addr %s108, 8
      %s110 = scalar_lea.vmem %s1, %s109
      %s111 = smul.u32 4, %s12
      %p112 = scmp.lt.s32.totalorder %s111, 7
      %s113 = scalar_select %p112, %s111, 7
      %s114 = smul.addr %s113, 7
      %s115 = smul.addr %s114, 8
      %s116 = scalar_lea.vmem %s0, %s115
      %s117 = smul.u32 4, %s12
      %s118 = smul.u32 4, %s12
      %p119 = scmp.lt.s32.totalorder %s118, 7
      %s120 = scalar_select %p119, %s118, 7
      %s121 = smul.addr %s120, 13
      %s122 = smul.addr %s121, 8
      %s123 = scalar_lea.vmem %s1, %s122
      %s124 = smul.u32 4, %s12
      %vm125 = vcmask 474112
      %126 = vst.msk [vmem:[#allocation2] sm:$0xff] %vm125, 0.0
      %127 = vst.msk [vmem:[#allocation2 + $0x8] sm:$0xff] %vm125, 0.0
      %128 = vst.msk [vmem:[#allocation2 + $0x10] sm:$0xff] %vm125, 0.0
      %129 = vst.msk [vmem:[#allocation2 + $0x18] sm:$0xff] %vm125, 0.0
      %130 = vst.msk [vmem:[#allocation2 + $0x20] sm:$0xff] %vm125, 0.0
      %131 = vst.msk [vmem:[#allocation2 + $0x28] sm:$0xff] %vm125, 0.0
      %132 = vst.msk [vmem:[#allocation2 + $0x30] sm:$0xff] %vm125, 0.0
      %vm133 = vcmask 467968
      %134 = vst.msk [vmem:[#allocation2 + $0x38] sm:$0x3] %vm133, 0.0
      %135 = vst.msk [vmem:[#allocation2 + $0x40] sm:$0xff] %vm125, 0.0
      %136 = vst.msk [vmem:[#allocation2 + $0x48] sm:$0xff] %vm125, 0.0
      %137 = vst.msk [vmem:[#allocation2 + $0x50] sm:$0xff] %vm125, 0.0
      %138 = vst.msk [vmem:[#allocation2 + $0x58] sm:$0xff] %vm125, 0.0
      %139 = vst.msk [vmem:[#allocation2 + $0x60] sm:$0xff] %vm125, 0.0
      %140 = vst.msk [vmem:[#allocation2 + $0x68] sm:$0xff] %vm125, 0.0
      %141 = vst.msk [vmem:[#allocation2 + $0x70] sm:$0xff] %vm125, 0.0
      %142 = vst.msk [vmem:[#allocation2 + $0x78] sm:$0x3] %vm133, 0.0
      %143 = vst.msk [vmem:[#allocation2 + $0x80] sm:$0xff] %vm125, 0.0
      %144 = vst.msk [vmem:[#allocation2 + $0x88] sm:$0xff] %vm125, 0.0
      %145 = vst.msk [vmem:[#allocation2 + $0x90] sm:$0xff] %vm125, 0.0
      %146 = vst.msk [vmem:[#allocation2 + $0x98] sm:$0xff] %vm125, 0.0
      %147 = vst.msk [vmem:[#allocation2 + $0xa0] sm:$0xff] %vm125, 0.0
      %148 = vst.msk [vmem:[#allocation2 + $0xa8] sm:$0xff] %vm125, 0.0
      %149 = vst.msk [vmem:[#allocation2 + $0xb0] sm:$0xff] %vm125, 0.0
      %150 = vst.msk [vmem:[#allocation2 + $0xb8] sm:$0x3] %vm133, 0.0
      %151 = vst.msk [vmem:[#allocation2 + $0xc0] sm:$0xff] %vm125, 0.0
      %152 = vst.msk [vmem:[#allocation2 + $0xc8] sm:$0xff] %vm125, 0.0
      %153 = vst.msk [vmem:[#allocation2 + $0xd0] sm:$0xff] %vm125, 0.0
      %154 = vst.msk [vmem:[#allocation2 + $0xd8] sm:$0xff] %vm125, 0.0
      %155 = vst.msk [vmem:[#allocation2 + $0xe0] sm:$0xff] %vm125, 0.0
      %156 = vst.msk [vmem:[#allocation2 + $0xe8] sm:$0xff] %vm125, 0.0
      %157 = vst.msk [vmem:[#allocation2 + $0xf0] sm:$0xff] %vm125, 0.0
      %158 = vst.msk [vmem:[#allocation2 + $0xf8] sm:$0x3] %vm133, 0.0
      %v159 = vld [vmem:[%s116] sm:$0xff]
      %v160 = vld [vmem:[%s116 + $0x8] sm:$0xff]
      %v161 = vld [vmem:[%s116 + $0x10] sm:$0xff]
      %v162 = vld [vmem:[%s116 + $0x18] sm:$0xff]
      %v163 = vld [vmem:[%s116 + $0x20] sm:$0xff]
      %v164 = vld [vmem:[%s116 + $0x28] sm:$0xff]
      %v165 = vld [vmem:[%s116 + $0x30] sm:$0xf]
      %v166 = vld [vmem:[%s116 + $0x38] sm:$0xff]
      %v167 = vld [vmem:[%s116 + $0x40] sm:$0xff]
      %v168 = vld [vmem:[%s116 + $0x48] sm:$0xff]
      %v169 = vld [vmem:[%s116 + $0x50] sm:$0xff]
      %v170 = vld [vmem:[%s116 + $0x58] sm:$0xff]
      %v171 = vld [vmem:[%s116 + $0x60] sm:$0xff]
      %v172 = vld [vmem:[%s116 + $0x68] sm:$0xf]
      %v173 = vld [vmem:[%s116 + $0x70] sm:$0xff]
      %v174 = vld [vmem:[%s116 + $0x78] sm:$0xff]
      %v175 = vld [vmem:[%s116 + $0x80] sm:$0xff]
      %v176 = vld [vmem:[%s116 + $0x88] sm:$0xff]
      %v177 = vld [vmem:[%s116 + $0x90] sm:$0xff]
      %v178 = vld [vmem:[%s116 + $0x98] sm:$0xff]
      %v179 = vld [vmem:[%s116 + $0xa0] sm:$0xf]
      %v180 = vld [vmem:[%s116 + $0xa8] sm:$0xff]
      %v181 = vld [vmem:[%s116 + $0xb0] sm:$0xff]
      %v182 = vld [vmem:[%s116 + $0xb8] sm:$0xff]
      %v183 = vld [vmem:[%s116 + $0xc0] sm:$0xff]
      %v184 = vld [vmem:[%s116 + $0xc8] sm:$0xff]
      %v185 = vld [vmem:[%s116 + $0xd0] sm:$0xff]
      %v186 = vld [vmem:[%s116 + $0xd8] sm:$0xf]
      %215 = vrot.lane.b32.xlu0 %v159, 3
      %v216 = vpop.permute.xlu0 %215
      %217 = vrot.lane.b32.xlu0 %v160, 3
      %v218 = vpop.permute.xlu0 %217
      %219 = vrot.lane.b32.xlu0 %v161, 3
      %v220 = vpop.permute.xlu0 %219
      %221 = vrot.lane.b32.xlu0 %v162, 3
      %v222 = vpop.permute.xlu0 %221
      %223 = vrot.lane.b32.xlu0 %v163, 3
      %v224 = vpop.permute.xlu0 %223
      %225 = vrot.lane.b32.xlu0 %v164, 3
      %v226 = vpop.permute.xlu0 %225
      %227 = vrot.lane.b32.xlu0 %v165, 3
      %v228 = vpop.permute.xlu0 %227
      %229 = vrot.lane.b32.xlu0 %v166, 3
      %v230 = vpop.permute.xlu0 %229
      %231 = vrot.lane.b32.xlu0 %v167, 3
      %v232 = vpop.permute.xlu0 %231
      %233 = vrot.lane.b32.xlu0 %v168, 3
      %v234 = vpop.permute.xlu0 %233
      %235 = vrot.lane.b32.xlu0 %v169, 3
      %v236 = vpop.permute.xlu0 %235
      %237 = vrot.lane.b32.xlu0 %v170, 3
      %v238 = vpop.permute.xlu0 %237
      %239 = vrot.lane.b32.xlu0 %v171, 3
      %v240 = vpop.permute.xlu0 %239
      %241 = vrot.lane.b32.xlu0 %v172, 3
      %v242 = vpop.permute.xlu0 %241
      %243 = vrot.lane.b32.xlu0 %v173, 3
      %v244 = vpop.permute.xlu0 %243
      %245 = vrot.lane.b32.xlu0 %v174, 3
      %v246 = vpop.permute.xlu0 %245
      %247 = vrot.lane.b32.xlu0 %v175, 3
      %v248 = vpop.permute.xlu0 %247
      %249 = vrot.lane.b32.xlu0 %v176, 3
      %v250 = vpop.permute.xlu0 %249
      %251 = vrot.lane.b32.xlu0 %v177, 3
      %v252 = vpop.permute.xlu0 %251
      %253 = vrot.lane.b32.xlu0 %v178, 3
      %v254 = vpop.permute.xlu0 %253
      %255 = vrot.lane.b32.xlu0 %v179, 3
      %v256 = vpop.permute.xlu0 %255
      %257 = vrot.lane.b32.xlu0 %v180, 3
      %v258 = vpop.permute.xlu0 %257
      %259 = vrot.lane.b32.xlu0 %v181, 3
      %v260 = vpop.permute.xlu0 %259
      %261 = vrot.lane.b32.xlu0 %v182, 3
      %v262 = vpop.permute.xlu0 %261
      %263 = vrot.lane.b32.xlu0 %v183, 3
      %v264 = vpop.permute.xlu0 %263
      %265 = vrot.lane.b32.xlu0 %v184, 3
      %v266 = vpop.permute.xlu0 %265
      %267 = vrot.lane.b32.xlu0 %v185, 3
      %v268 = vpop.permute.xlu0 %267
      %269 = vrot.lane.b32.xlu0 %v186, 3
      %v270 = vpop.permute.xlu0 %269
      %vm299 = vcmask 449560
      %300 = vst.msk [vmem:[#allocation2 + $0x3] sm:$0xff] %vm299, %v216
      %301 = vst.msk [vmem:[#allocation2 + $0xb] sm:$0xff] %vm299, %v218
      %302 = vst.msk [vmem:[#allocation2 + $0x13] sm:$0xff] %vm299, %v220
      %303 = vst.msk [vmem:[#allocation2 + $0x1b] sm:$0xff] %vm299, %v222
      %304 = vst.msk [vmem:[#allocation2 + $0x23] sm:$0xff] %vm299, %v224
      %305 = vst.msk [vmem:[#allocation2 + $0x2b] sm:$0xff] %vm299, %v226
      %vm306 = vcmask 445464
      %307 = vst.msk [vmem:[#allocation2 + $0x33] sm:$0xf] %vm306, %v228
      %308 = vst.msk [vmem:[#allocation2 + $0x43] sm:$0xff] %vm299, %v230
      %309 = vst.msk [vmem:[#allocation2 + $0x4b] sm:$0xff] %vm299, %v232
      %310 = vst.msk [vmem:[#allocation2 + $0x53] sm:$0xff] %vm299, %v234
      %311 = vst.msk [vmem:[#allocation2 + $0x5b] sm:$0xff] %vm299, %v236
      %312 = vst.msk [vmem:[#allocation2 + $0x63] sm:$0xff] %vm299, %v238
      %313 = vst.msk [vmem:[#allocation2 + $0x6b] sm:$0xff] %vm299, %v240
      %314 = vst.msk [vmem:[#allocation2 + $0x73] sm:$0xf] %vm306, %v242
      %315 = vst.msk [vmem:[#allocation2 + $0x83] sm:$0xff] %vm299, %v244
      %316 = vst.msk [vmem:[#allocation2 + $0x8b] sm:$0xff] %vm299, %v246
      %317 = vst.msk [vmem:[#allocation2 + $0x93] sm:$0xff] %vm299, %v248
      %318 = vst.msk [vmem:[#allocation2 + $0x9b] sm:$0xff] %vm299, %v250
      %319 = vst.msk [vmem:[#allocation2 + $0xa3] sm:$0xff] %vm299, %v252
      %320 = vst.msk [vmem:[#allocation2 + $0xab] sm:$0xff] %vm299, %v254
      %321 = vst.msk [vmem:[#allocation2 + $0xb3] sm:$0xf] %vm306, %v256
      %322 = vst.msk [vmem:[#allocation2 + $0xc3] sm:$0xff] %vm299, %v258
      %323 = vst.msk [vmem:[#allocation2 + $0xcb] sm:$0xff] %vm299, %v260
      %324 = vst.msk [vmem:[#allocation2 + $0xd3] sm:$0xff] %vm299, %v262
      %325 = vst.msk [vmem:[#allocation2 + $0xdb] sm:$0xff] %vm299, %v264
      %326 = vst.msk [vmem:[#allocation2 + $0xe3] sm:$0xff] %vm299, %v266
      %327 = vst.msk [vmem:[#allocation2 + $0xeb] sm:$0xff] %vm299, %v268
      %328 = vst.msk [vmem:[#allocation2 + $0xf3] sm:$0xf] %vm306, %v270
      %v329 = vld [vmem:[#allocation2] sm:$0xff]
      %v330 = vld [vmem:[#allocation2 + $0x8] sm:$0xff]
      %v331 = vld [vmem:[#allocation2 + $0x10] sm:$0xff]
      %v332 = vld [vmem:[#allocation2 + $0x18] sm:$0xff]
      %v333 = vld [vmem:[#allocation2 + $0x20] sm:$0xff]
      %v334 = vld [vmem:[#allocation2 + $0x28] sm:$0xff]
      %v335 = vld [vmem:[#allocation2 + $0x30] sm:$0xff]
      %v336 = vld [vmem:[#allocation2 + $0x38] sm:$0x3]
      %v337 = vld [vmem:[#allocation2 + $0x40] sm:$0xff]
      %v338 = vld [vmem:[#allocation2 + $0x48] sm:$0xff]
      %v339 = vld [vmem:[#allocation2 + $0x50] sm:$0xff]
      %v340 = vld [vmem:[#allocation2 + $0x58] sm:$0xff]
      %v341 = vld [vmem:[#allocation2 + $0x60] sm:$0xff]
      %v342 = vld [vmem:[#allocation2 + $0x68] sm:$0xff]
      %v343 = vld [vmem:[#allocation2 + $0x70] sm:$0xff]
      %v344 = vld [vmem:[#allocation2 + $0x78] sm:$0x3]
      %v345 = vld [vmem:[#allocation2 + $0x80] sm:$0xff]
      %v346 = vld [vmem:[#allocation2 + $0x88] sm:$0xff]
      %v347 = vld [vmem:[#allocation2 + $0x90] sm:$0xff]
      %v348 = vld [vmem:[#allocation2 + $0x98] sm:$0xff]
      %v349 = vld [vmem:[#allocation2 + $0xa0] sm:$0xff]
      %v350 = vld [vmem:[#allocation2 + $0xa8] sm:$0xff]
      %v351 = vld [vmem:[#allocation2 + $0xb0] sm:$0xff]
      %v352 = vld [vmem:[#allocation2 + $0xb8] sm:$0x3]
      %v353 = vld [vmem:[#allocation2 + $0xc0] sm:$0xff]
      %v354 = vld [vmem:[#allocation2 + $0xc8] sm:$0xff]
      %v355 = vld [vmem:[#allocation2 + $0xd0] sm:$0xff]
      %v356 = vld [vmem:[#allocation2 + $0xd8] sm:$0xff]
      %v357 = vld [vmem:[#allocation2 + $0xe0] sm:$0xff]
      %v358 = vld [vmem:[#allocation2 + $0xe8] sm:$0xff]
      %v359 = vld [vmem:[#allocation2 + $0xf0] sm:$0xff]
      %v360 = vld [vmem:[#allocation2 + $0xf8] sm:$0x3]
      %v361 = vmul.f32 %v329, -0.011031868
      %v362 = vmul.f32 %v330, -0.011031868
      %v363 = vmul.f32 %v331, -0.011031868
      %v364 = vmul.f32 %v332, -0.011031868
      %v365 = vmul.f32 %v333, -0.011031868
      %v366 = vmul.f32 %v334, -0.011031868
      %v367 = vmul.f32 %v335, -0.011031868
      %v368 = vmul.f32 %v336, -0.011031868
      %v369 = vmul.f32 %v337, -0.011031868
      %v370 = vmul.f32 %v338, -0.011031868
      %v371 = vmul.f32 %v339, -0.011031868
      %v372 = vmul.f32 %v340, -0.011031868
      %v373 = vmul.f32 %v341, -0.011031868
      %v374 = vmul.f32 %v342, -0.011031868
      %v375 = vmul.f32 %v343, -0.011031868
      %v376 = vmul.f32 %v344, -0.011031868
      %v377 = vmul.f32 %v345, -0.011031868
      %v378 = vmul.f32 %v346, -0.011031868
      %v379 = vmul.f32 %v347, -0.011031868
      %v380 = vmul.f32 %v348, -0.011031868
      %v381 = vmul.f32 %v349, -0.011031868
      %v382 = vmul.f32 %v350, -0.011031868
      %v383 = vmul.f32 %v351, -0.011031868
      %v384 = vmul.f32 %v352, -0.011031868
      %v385 = vmul.f32 %v353, -0.011031868
      %v386 = vmul.f32 %v354, -0.011031868
      %v387 = vmul.f32 %v355, -0.011031868
      %v388 = vmul.f32 %v356, -0.011031868
      %v389 = vmul.f32 %v357, -0.011031868
      %v390 = vmul.f32 %v358, -0.011031868
      %v391 = vmul.f32 %v359, -0.011031868
      %v392 = vmul.f32 %v360, -0.011031868
      %v393 = vmul.f32 %v329, 0.0024999222
      %v394 = vmul.f32 %v330, 0.0024999222
      %v395 = vmul.f32 %v331, 0.0024999222
      %v396 = vmul.f32 %v332, 0.0024999222
      %v397 = vmul.f32 %v333, 0.0024999222
      %v398 = vmul.f32 %v334, 0.0024999222
      %v399 = vmul.f32 %v335, 0.0024999222
      %v400 = vmul.f32 %v336, 0.0024999222
      %v401 = vmul.f32 %v337, 0.0024999222
      %v402 = vmul.f32 %v338, 0.0024999222
      %v403 = vmul.f32 %v339, 0.0024999222
      %v404 = vmul.f32 %v340, 0.0024999222
      %v405 = vmul.f32 %v341, 0.0024999222
      %v406 = vmul.f32 %v342, 0.0024999222
      %v407 = vmul.f32 %v343, 0.0024999222
      %v408 = vmul.f32 %v344, 0.0024999222
      %v409 = vmul.f32 %v345, 0.0024999222
      %v410 = vmul.f32 %v346, 0.0024999222
      %v411 = vmul.f32 %v347, 0.0024999222
      %v412 = vmul.f32 %v348, 0.0024999222
      %v413 = vmul.f32 %v349, 0.0024999222
      %v414 = vmul.f32 %v350, 0.0024999222
      %v415 = vmul.f32 %v351, 0.0024999222
      %v416 = vmul.f32 %v352, 0.0024999222
      %v417 = vmul.f32 %v353, 0.0024999222
      %v418 = vmul.f32 %v354, 0.0024999222
      %v419 = vmul.f32 %v355, 0.0024999222
      %v420 = vmul.f32 %v356, 0.0024999222
      %v421 = vmul.f32 %v357, 0.0024999222
      %v422 = vmul.f32 %v358, 0.0024999222
      %v423 = vmul.f32 %v359, 0.0024999222
      %v424 = vmul.f32 %v360, 0.0024999222
      %v425 = vmul.f32 %v329, 0.063250564
      %v426 = vmul.f32 %v330, 0.063250564
      %v427 = vmul.f32 %v331, 0.063250564
      %v428 = vmul.f32 %v332, 0.063250564
      %v429 = vmul.f32 %v333, 0.063250564
      %v430 = vmul.f32 %v334, 0.063250564
      %v431 = vmul.f32 %v335, 0.063250564
      %v432 = vmul.f32 %v336, 0.063250564
      %v433 = vmul.f32 %v337, 0.063250564
      %v434 = vmul.f32 %v338, 0.063250564
      %v435 = vmul.f32 %v339, 0.063250564
      %v436 = vmul.f32 %v340, 0.063250564
      %v437 = vmul.f32 %v341, 0.063250564
      %v438 = vmul.f32 %v342, 0.063250564
      %v439 = vmul.f32 %v343, 0.063250564
      %v440 = vmul.f32 %v344, 0.063250564
      %v441 = vmul.f32 %v345, 0.063250564
      %v442 = vmul.f32 %v346, 0.063250564
      %v443 = vmul.f32 %v347, 0.063250564
      %v444 = vmul.f32 %v348, 0.063250564
      %v445 = vmul.f32 %v349, 0.063250564
      %v446 = vmul.f32 %v350, 0.063250564
      %v447 = vmul.f32 %v351, 0.063250564
      %v448 = vmul.f32 %v352, 0.063250564
      %v449 = vmul.f32 %v353, 0.063250564
      %v450 = vmul.f32 %v354, 0.063250564
      %v451 = vmul.f32 %v355, 0.063250564
      %v452 = vmul.f32 %v356, 0.063250564
      %v453 = vmul.f32 %v357, 0.063250564
      %v454 = vmul.f32 %v358, 0.063250564
      %v455 = vmul.f32 %v359, 0.063250564
      %v456 = vmul.f32 %v360, 0.063250564
      %489 = vrot.lane.b32.xlu0 %v425, 127
      %v490 = vpop.permute.xlu0 %489
      %491 = vrot.lane.b32.xlu0 %v426, 127
      %v492 = vpop.permute.xlu0 %491
      %493 = vrot.lane.b32.xlu0 %v427, 127
      %v494 = vpop.permute.xlu0 %493
      %495 = vrot.lane.b32.xlu0 %v428, 127
      %v496 = vpop.permute.xlu0 %495
      %497 = vrot.lane.b32.xlu0 %v429, 127
      %v498 = vpop.permute.xlu0 %497
      %499 = vrot.lane.b32.xlu0 %v430, 127
      %v500 = vpop.permute.xlu0 %499
      %501 = vrot.lane.b32.xlu0 %v431, 127
      %v502 = vpop.permute.xlu0 %501
      %503 = vrot.lane.b32.xlu0 %v432, 127
      %v504 = vpop.permute.xlu0 %503
      %505 = vrot.lane.b32.xlu0 %v433, 127
      %v506 = vpop.permute.xlu0 %505
      %507 = vrot.lane.b32.xlu0 %v434, 127
      %v508 = vpop.permute.xlu0 %507
      %509 = vrot.lane.b32.xlu0 %v435, 127
      %v510 = vpop.permute.xlu0 %509
      %511 = vrot.lane.b32.xlu0 %v436, 127
      %v512 = vpop.permute.xlu0 %511
      %513 = vrot.lane.b32.xlu0 %v437, 127
      %v514 = vpop.permute.xlu0 %513
      %515 = vrot.lane.b32.xlu0 %v438, 127
      %v516 = vpop.permute.xlu0 %515
      %517 = vrot.lane.b32.xlu0 %v439, 127
      %v518 = vpop.permute.xlu0 %517
      %519 = vrot.lane.b32.xlu0 %v440, 127
      %v520 = vpop.permute.xlu0 %519
      %521 = vrot.lane.b32.xlu0 %v441, 127
      %v522 = vpop.permute.xlu0 %521
      %523 = vrot.lane.b32.xlu0 %v442, 127
      %v524 = vpop.permute.xlu0 %523
      %525 = vrot.lane.b32.xlu0 %v443, 127
      %v526 = vpop.permute.xlu0 %525
      %527 = vrot.lane.b32.xlu0 %v444, 127
      %v528 = vpop.permute.xlu0 %527
      %529 = vrot.lane.b32.xlu0 %v445, 127
      %v530 = vpop.permute.xlu0 %529
      %531 = vrot.lane.b32.xlu0 %v446, 127
      %v532 = vpop.permute.xlu0 %531
      %533 = vrot.lane.b32.xlu0 %v447, 127
      %v534 = vpop.permute.xlu0 %533
      %535 = vrot.lane.b32.xlu0 %v448, 127
      %v536 = vpop.permute.xlu0 %535
      %537 = vrot.lane.b32.xlu0 %v449, 127
      %v538 = vpop.permute.xlu0 %537
      %539 = vrot.lane.b32.xlu0 %v450, 127
      %v540 = vpop.permute.xlu0 %539
      %541 = vrot.lane.b32.xlu0 %v451, 127
      %v542 = vpop.permute.xlu0 %541
      %543 = vrot.lane.b32.xlu0 %v452, 127
      %v544 = vpop.permute.xlu0 %543
      %545 = vrot.lane.b32.xlu0 %v453, 127
      %v546 = vpop.permute.xlu0 %545
      %547 = vrot.lane.b32.xlu0 %v454, 127
      %v548 = vpop.permute.xlu0 %547
      %549 = vrot.lane.b32.xlu0 %v455, 127
      %v550 = vpop.permute.xlu0 %549
      %551 = vrot.lane.b32.xlu0 %v456, 127
      %v552 = vpop.permute.xlu0 %551
      %v585 = vadd.f32 %v361, %v490
      %v586 = vadd.f32 %v362, %v492
      %v587 = vadd.f32 %v363, %v494
      %v588 = vadd.f32 %v364, %v496
      %v589 = vadd.f32 %v365, %v498
      %v590 = vadd.f32 %v366, %v500
      %v591 = vadd.f32 %v367, %v502
      %v592 = vadd.f32 %v368, %v504
      %v593 = vadd.f32 %v369, %v506
      %v594 = vadd.f32 %v370, %v508
      %v595 = vadd.f32 %v371, %v510
      %v596 = vadd.f32 %v372, %v512
      %v597 = vadd.f32 %v373, %v514
      %v598 = vadd.f32 %v374, %v516
      %v599 = vadd.f32 %v375, %v518
      %v600 = vadd.f32 %v376, %v520
      %v601 = vadd.f32 %v377, %v522
      %v602 = vadd.f32 %v378, %v524
      %v603 = vadd.f32 %v379, %v526
      %v604 = vadd.f32 %v380, %v528
      %v605 = vadd.f32 %v381, %v530
      %v606 = vadd.f32 %v382, %v532
      %v607 = vadd.f32 %v383, %v534
      %v608 = vadd.f32 %v384, %v536
      %v609 = vadd.f32 %v385, %v538
      %v610 = vadd.f32 %v386, %v540
      %v611 = vadd.f32 %v387, %v542
      %v612 = vadd.f32 %v388, %v544
      %v613 = vadd.f32 %v389, %v546
      %v614 = vadd.f32 %v390, %v548
      %v615 = vadd.f32 %v391, %v550
      %v616 = vadd.f32 %v392, %v552
      %v617 = vmul.f32 %v329, -0.029783752
      %v618 = vmul.f32 %v330, -0.029783752
      %v619 = vmul.f32 %v331, -0.029783752
      %v620 = vmul.f32 %v332, -0.029783752
      %v621 = vmul.f32 %v333, -0.029783752
      %v622 = vmul.f32 %v334, -0.029783752
      %v623 = vmul.f32 %v335, -0.029783752
      %v624 = vmul.f32 %v336, -0.029783752
      %v625 = vmul.f32 %v337, -0.029783752
      %v626 = vmul.f32 %v338, -0.029783752
      %v627 = vmul.f32 %v339, -0.029783752
      %v628 = vmul.f32 %v340, -0.029783752
      %v629 = vmul.f32 %v341, -0.029783752
      %v630 = vmul.f32 %v342, -0.029783752
      %v631 = vmul.f32 %v343, -0.029783752
      %v632 = vmul.f32 %v344, -0.029783752
      %v633 = vmul.f32 %v345, -0.029783752
      %v634 = vmul.f32 %v346, -0.029783752
      %v635 = vmul.f32 %v347, -0.029783752
      %v636 = vmul.f32 %v348, -0.029783752
      %v637 = vmul.f32 %v349, -0.029783752
      %v638 = vmul.f32 %v350, -0.029783752
      %v639 = vmul.f32 %v351, -0.029783752
      %v640 = vmul.f32 %v352, -0.029783752
      %v641 = vmul.f32 %v353, -0.029783752
      %v642 = vmul.f32 %v354, -0.029783752
      %v643 = vmul.f32 %v355, -0.029783752
      %v644 = vmul.f32 %v356, -0.029783752
      %v645 = vmul.f32 %v357, -0.029783752
      %v646 = vmul.f32 %v358, -0.029783752
      %v647 = vmul.f32 %v359, -0.029783752
      %v648 = vmul.f32 %v360, -0.029783752
      %681 = vrot.lane.b32.xlu0 %v617, 127
      %v682 = vpop.permute.xlu0 %681
      %683 = vrot.lane.b32.xlu0 %v618, 127
      %v684 = vpop.permute.xlu0 %683
      %685 = vrot.lane.b32.xlu0 %v619, 127
      %v686 = vpop.permute.xlu0 %685
      %687 = vrot.lane.b32.xlu0 %v620, 127
      %v688 = vpop.permute.xlu0 %687
      %689 = vrot.lane.b32.xlu0 %v621, 127
      %v690 = vpop.permute.xlu0 %689
      %691 = vrot.lane.b32.xlu0 %v622, 127
      %v692 = vpop.permute.xlu0 %691
      %693 = vrot.lane.b32.xlu0 %v623, 127
      %v694 = vpop.permute.xlu0 %693
      %695 = vrot.lane.b32.xlu0 %v624, 127
      %v696 = vpop.permute.xlu0 %695
      %697 = vrot.lane.b32.xlu0 %v625, 127
      %v698 = vpop.permute.xlu0 %697
      %699 = vrot.lane.b32.xlu0 %v626, 127
      %v700 = vpop.permute.xlu0 %699
      %701 = vrot.lane.b32.xlu0 %v627, 127
      %v702 = vpop.permute.xlu0 %701
      %703 = vrot.lane.b32.xlu0 %v628, 127
      %v704 = vpop.permute.xlu0 %703
      %705 = vrot.lane.b32.xlu0 %v629, 127
      %v706 = vpop.permute.xlu0 %705
      %707 = vrot.lane.b32.xlu0 %v630, 127
      %v708 = vpop.permute.xlu0 %707
      %709 = vrot.lane.b32.xlu0 %v631, 127
      %v710 = vpop.permute.xlu0 %709
      %711 = vrot.lane.b32.xlu0 %v632, 127
      %v712 = vpop.permute.xlu0 %711
      %713 = vrot.lane.b32.xlu0 %v633, 127
      %v714 = vpop.permute.xlu0 %713
      %715 = vrot.lane.b32.xlu0 %v634, 127
      %v716 = vpop.permute.xlu0 %715
      %717 = vrot.lane.b32.xlu0 %v635, 127
      %v718 = vpop.permute.xlu0 %717
      %719 = vrot.lane.b32.xlu0 %v636, 127
      %v720 = vpop.permute.xlu0 %719
      %721 = vrot.lane.b32.xlu0 %v637, 127
      %v722 = vpop.permute.xlu0 %721
      %723 = vrot.lane.b32.xlu0 %v638, 127
      %v724 = vpop.permute.xlu0 %723
      %725 = vrot.lane.b32.xlu0 %v639, 127
      %v726 = vpop.permute.xlu0 %725
      %727 = vrot.lane.b32.xlu0 %v640, 127
      %v728 = vpop.permute.xlu0 %727
      %729 = vrot.lane.b32.xlu0 %v641, 127
      %v730 = vpop.permute.xlu0 %729
      %731 = vrot.lane.b32.xlu0 %v642, 127
      %v732 = vpop.permute.xlu0 %731
      %733 = vrot.lane.b32.xlu0 %v643, 127
      %v734 = vpop.permute.xlu0 %733
      %735 = vrot.lane.b32.xlu0 %v644, 127
      %v736 = vpop.permute.xlu0 %735
      %737 = vrot.lane.b32.xlu0 %v645, 127
      %v738 = vpop.permute.xlu0 %737
      %739 = vrot.lane.b32.xlu0 %v646, 127
      %v740 = vpop.permute.xlu0 %739
      %741 = vrot.lane.b32.xlu0 %v647, 127
      %v742 = vpop.permute.xlu0 %741
      %743 = vrot.lane.b32.xlu0 %v648, 127
      %v744 = vpop.permute.xlu0 %743
      %v777 = vadd.f32 %v393, %v682
      %v778 = vadd.f32 %v394, %v684
      %v779 = vadd.f32 %v395, %v686
      %v780 = vadd.f32 %v396, %v688
      %v781 = vadd.f32 %v397, %v690
      %v782 = vadd.f32 %v398, %v692
      %v783 = vadd.f32 %v399, %v694
      %v784 = vadd.f32 %v400, %v696
      %v785 = vadd.f32 %v401, %v698
      %v786 = vadd.f32 %v402, %v700
      %v787 = vadd.f32 %v403, %v702
      %v788 = vadd.f32 %v404, %v704
      %v789 = vadd.f32 %v405, %v706
      %v790 = vadd.f32 %v406, %v708
      %v791 = vadd.f32 %v407, %v710
      %v792 = vadd.f32 %v408, %v712
      %v793 = vadd.f32 %v409, %v714
      %v794 = vadd.f32 %v410, %v716
      %v795 = vadd.f32 %v411, %v718
      %v796 = vadd.f32 %v412, %v720
      %v797 = vadd.f32 %v413, %v722
      %v798 = vadd.f32 %v414, %v724
      %v799 = vadd.f32 %v415, %v726
      %v800 = vadd.f32 %v416, %v728
      %v801 = vadd.f32 %v417, %v730
      %v802 = vadd.f32 %v418, %v732
      %v803 = vadd.f32 %v419, %v734
      %v804 = vadd.f32 %v420, %v736
      %v805 = vadd.f32 %v421, %v738
      %v806 = vadd.f32 %v422, %v740
      %v807 = vadd.f32 %v423, %v742
      %v808 = vadd.f32 %v424, %v744
      %v809 = vmul.f32 %v329, -0.10272497
      %v810 = vmul.f32 %v330, -0.10272497
      %v811 = vmul.f32 %v331, -0.10272497
      %v812 = vmul.f32 %v332, -0.10272497
      %v813 = vmul.f32 %v333, -0.10272497
      %v814 = vmul.f32 %v334, -0.10272497
      %v815 = vmul.f32 %v335, -0.10272497
      %v816 = vmul.f32 %v336, -0.10272497
      %v817 = vmul.f32 %v337, -0.10272497
      %v818 = vmul.f32 %v338, -0.10272497
      %v819 = vmul.f32 %v339, -0.10272497
      %v820 = vmul.f32 %v340, -0.10272497
      %v821 = vmul.f32 %v341, -0.10272497
      %v822 = vmul.f32 %v342, -0.10272497
      %v823 = vmul.f32 %v343, -0.10272497
      %v824 = vmul.f32 %v344, -0.10272497
      %v825 = vmul.f32 %v345, -0.10272497
      %v826 = vmul.f32 %v346, -0.10272497
      %v827 = vmul.f32 %v347, -0.10272497
      %v828 = vmul.f32 %v348, -0.10272497
      %v829 = vmul.f32 %v349, -0.10272497
      %v830 = vmul.f32 %v350, -0.10272497
      %v831 = vmul.f32 %v351, -0.10272497
      %v832 = vmul.f32 %v352, -0.10272497
      %v833 = vmul.f32 %v353, -0.10272497
      %v834 = vmul.f32 %v354, -0.10272497
      %v835 = vmul.f32 %v355, -0.10272497
      %v836 = vmul.f32 %v356, -0.10272497
      %v837 = vmul.f32 %v357, -0.10272497
      %v838 = vmul.f32 %v358, -0.10272497
      %v839 = vmul.f32 %v359, -0.10272497
      %v840 = vmul.f32 %v360, -0.10272497
      %873 = vrot.lane.b32.xlu0 %v809, 126
      %v874 = vpop.permute.xlu0 %873
      %875 = vrot.lane.b32.xlu0 %v810, 126
      %v876 = vpop.permute.xlu0 %875
      %877 = vrot.lane.b32.xlu0 %v811, 126
      %v878 = vpop.permute.xlu0 %877
      %879 = vrot.lane.b32.xlu0 %v812, 126
      %v880 = vpop.permute.xlu0 %879
      %881 = vrot.lane.b32.xlu0 %v813, 126
      %v882 = vpop.permute.xlu0 %881
      %883 = vrot.lane.b32.xlu0 %v814, 126
      %v884 = vpop.permute.xlu0 %883
      %885 = vrot.lane.b32.xlu0 %v815, 126
      %v886 = vpop.permute.xlu0 %885
      %887 = vrot.lane.b32.xlu0 %v816, 126
      %v888 = vpop.permute.xlu0 %887
      %889 = vrot.lane.b32.xlu0 %v817, 126
      %v890 = vpop.permute.xlu0 %889
      %891 = vrot.lane.b32.xlu0 %v818, 126
      %v892 = vpop.permute.xlu0 %891
      %893 = vrot.lane.b32.xlu0 %v819, 126
      %v894 = vpop.permute.xlu0 %893
      %895 = vrot.lane.b32.xlu0 %v820, 126
      %v896 = vpop.permute.xlu0 %895
      %897 = vrot.lane.b32.xlu0 %v821, 126
      %v898 = vpop.permute.xlu0 %897
      %899 = vrot.lane.b32.xlu0 %v822, 126
      %v900 = vpop.permute.xlu0 %899
      %901 = vrot.lane.b32.xlu0 %v823, 126
      %v902 = vpop.permute.xlu0 %901
      %903 = vrot.lane.b32.xlu0 %v824, 126
      %v904 = vpop.permute.xlu0 %903
      %905 = vrot.lane.b32.xlu0 %v825, 126
      %v906 = vpop.permute.xlu0 %905
      %907 = vrot.lane.b32.xlu0 %v826, 126
      %v908 = vpop.permute.xlu0 %907
      %909 = vrot.lane.b32.xlu0 %v827, 126
      %v910 = vpop.permute.xlu0 %909
      %911 = vrot.lane.b32.xlu0 %v828, 126
      %v912 = vpop.permute.xlu0 %911
      %913 = vrot.lane.b32.xlu0 %v829, 126
      %v914 = vpop.permute.xlu0 %913
      %915 = vrot.lane.b32.xlu0 %v830, 126
      %v916 = vpop.permute.xlu0 %915
      %917 = vrot.lane.b32.xlu0 %v831, 126
      %v918 = vpop.permute.xlu0 %917
      %919 = vrot.lane.b32.xlu0 %v832, 126
      %v920 = vpop.permute.xlu0 %919
      %921 = vrot.lane.b32.xlu0 %v833, 126
      %v922 = vpop.permute.xlu0 %921
      %923 = vrot.lane.b32.xlu0 %v834, 126
      %v924 = vpop.permute.xlu0 %923
      %925 = vrot.lane.b32.xlu0 %v835, 126
      %v926 = vpop.permute.xlu0 %925
      %927 = vrot.lane.b32.xlu0 %v836, 126
      %v928 = vpop.permute.xlu0 %927
      %929 = vrot.lane.b32.xlu0 %v837, 126
      %v930 = vpop.permute.xlu0 %929
      %931 = vrot.lane.b32.xlu0 %v838, 126
      %v932 = vpop.permute.xlu0 %931
      %933 = vrot.lane.b32.xlu0 %v839, 126
      %v934 = vpop.permute.xlu0 %933
      %935 = vrot.lane.b32.xlu0 %v840, 126
      %v936 = vpop.permute.xlu0 %935
      %v969 = vadd.f32 %v585, %v874
      %v970 = vadd.f32 %v586, %v876
      %v971 = vadd.f32 %v587, %v878
      %v972 = vadd.f32 %v588, %v880
      %v973 = vadd.f32 %v589, %v882
      %v974 = vadd.f32 %v590, %v884
      %v975 = vadd.f32 %v591, %v886
      %v976 = vadd.f32 %v592, %v888
      %v977 = vadd.f32 %v593, %v890
      %v978 = vadd.f32 %v594, %v892
      %v979 = vadd.f32 %v595, %v894
      %v980 = vadd.f32 %v596, %v896
      %v981 = vadd.f32 %v597, %v898
      %v982 = vadd.f32 %v598, %v900
      %v983 = vadd.f32 %v599, %v902
      %v984 = vadd.f32 %v600, %v904
      %v985 = vadd.f32 %v601, %v906
      %v986 = vadd.f32 %v602, %v908
      %v987 = vadd.f32 %v603, %v910
      %v988 = vadd.f32 %v604, %v912
      %v989 = vadd.f32 %v605, %v914
      %v990 = vadd.f32 %v606, %v916
      %v991 = vadd.f32 %v607, %v918
      %v992 = vadd.f32 %v608, %v920
      %v993 = vadd.f32 %v609, %v922
      %v994 = vadd.f32 %v610, %v924
      %v995 = vadd.f32 %v611, %v926
      %v996 = vadd.f32 %v612, %v928
      %v997 = vadd.f32 %v613, %v930
      %v998 = vadd.f32 %v614, %v932
      %v999 = vadd.f32 %v615, %v934
      %v1000 = vadd.f32 %v616, %v936
      %v1001 = vmul.f32 %v329, 0.47790438
      %v1002 = vmul.f32 %v330, 0.47790438
      %v1003 = vmul.f32 %v331, 0.47790438
      %v1004 = vmul.f32 %v332, 0.47790438
      %v1005 = vmul.f32 %v333, 0.47790438
      %v1006 = vmul.f32 %v334, 0.47790438
      %v1007 = vmul.f32 %v335, 0.47790438
      %v1008 = vmul.f32 %v336, 0.47790438
      %v1009 = vmul.f32 %v337, 0.47790438
      %v1010 = vmul.f32 %v338, 0.47790438
      %v1011 = vmul.f32 %v339, 0.47790438
      %v1012 = vmul.f32 %v340, 0.47790438
      %v1013 = vmul.f32 %v341, 0.47790438
      %v1014 = vmul.f32 %v342, 0.47790438
      %v1015 = vmul.f32 %v343, 0.47790438
      %v1016 = vmul.f32 %v344, 0.47790438
      %v1017 = vmul.f32 %v345, 0.47790438
      %v1018 = vmul.f32 %v346, 0.47790438
      %v1019 = vmul.f32 %v347, 0.47790438
      %v1020 = vmul.f32 %v348, 0.47790438
      %v1021 = vmul.f32 %v349, 0.47790438
      %v1022 = vmul.f32 %v350, 0.47790438
      %v1023 = vmul.f32 %v351, 0.47790438
      %v1024 = vmul.f32 %v352, 0.47790438
      %v1025 = vmul.f32 %v353, 0.47790438
      %v1026 = vmul.f32 %v354, 0.47790438
      %v1027 = vmul.f32 %v355, 0.47790438
      %v1028 = vmul.f32 %v356, 0.47790438
      %v1029 = vmul.f32 %v357, 0.47790438
      %v1030 = vmul.f32 %v358, 0.47790438
      %v1031 = vmul.f32 %v359, 0.47790438
      %v1032 = vmul.f32 %v360, 0.47790438
      %1065 = vrot.lane.b32.xlu0 %v1001, 126
      %v1066 = vpop.permute.xlu0 %1065
      %1067 = vrot.lane.b32.xlu0 %v1002, 126
      %v1068 = vpop.permute.xlu0 %1067
      %1069 = vrot.lane.b32.xlu0 %v1003, 126
      %v1070 = vpop.permute.xlu0 %1069
      %1071 = vrot.lane.b32.xlu0 %v1004, 126
      %v1072 = vpop.permute.xlu0 %1071
      %1073 = vrot.lane.b32.xlu0 %v1005, 126
      %v1074 = vpop.permute.xlu0 %1073
      %1075 = vrot.lane.b32.xlu0 %v1006, 126
      %v1076 = vpop.permute.xlu0 %1075
      %1077 = vrot.lane.b32.xlu0 %v1007, 126
      %v1078 = vpop.permute.xlu0 %1077
      %1079 = vrot.lane.b32.xlu0 %v1008, 126
      %v1080 = vpop.permute.xlu0 %1079
      %1081 = vrot.lane.b32.xlu0 %v1009, 126
      %v1082 = vpop.permute.xlu0 %1081
      %1083 = vrot.lane.b32.xlu0 %v1010, 126
      %v1084 = vpop.permute.xlu0 %1083
      %1085 = vrot.lane.b32.xlu0 %v1011, 126
      %v1086 = vpop.permute.xlu0 %1085
      %1087 = vrot.lane.b32.xlu0 %v1012, 126
      %v1088 = vpop.permute.xlu0 %1087
      %1089 = vrot.lane.b32.xlu0 %v1013, 126
      %v1090 = vpop.permute.xlu0 %1089
      %1091 = vrot.lane.b32.xlu0 %v1014, 126
      %v1092 = vpop.permute.xlu0 %1091
      %1093 = vrot.lane.b32.xlu0 %v1015, 126
      %v1094 = vpop.permute.xlu0 %1093
      %1095 = vrot.lane.b32.xlu0 %v1016, 126
      %v1096 = vpop.permute.xlu0 %1095
      %1097 = vrot.lane.b32.xlu0 %v1017, 126
      %v1098 = vpop.permute.xlu0 %1097
      %1099 = vrot.lane.b32.xlu0 %v1018, 126
      %v1100 = vpop.permute.xlu0 %1099
      %1101 = vrot.lane.b32.xlu0 %v1019, 126
      %v1102 = vpop.permute.xlu0 %1101
      %1103 = vrot.lane.b32.xlu0 %v1020, 126
      %v1104 = vpop.permute.xlu0 %1103
      %1105 = vrot.lane.b32.xlu0 %v1021, 126
      %v1106 = vpop.permute.xlu0 %1105
      %1107 = vrot.lane.b32.xlu0 %v1022, 126
      %v1108 = vpop.permute.xlu0 %1107
      %1109 = vrot.lane.b32.xlu0 %v1023, 126
      %v1110 = vpop.permute.xlu0 %1109
      %1111 = vrot.lane.b32.xlu0 %v1024, 126
      %v1112 = vpop.permute.xlu0 %1111
      %1113 = vrot.lane.b32.xlu0 %v1025, 126
      %v1114 = vpop.permute.xlu0 %1113
      %1115 = vrot.lane.b32.xlu0 %v1026, 126
      %v1116 = vpop.permute.xlu0 %1115
      %1117 = vrot.lane.b32.xlu0 %v1027, 126
      %v1118 = vpop.permute.xlu0 %1117
      %1119 = vrot.lane.b32.xlu0 %v1028, 126
      %v1120 = vpop.permute.xlu0 %1119
      %1121 = vrot.lane.b32.xlu0 %v1029, 126
      %v1122 = vpop.permute.xlu0 %1121
      %1123 = vrot.lane.b32.xlu0 %v1030, 126
      %v1124 = vpop.permute.xlu0 %1123
      %1125 = vrot.lane.b32.xlu0 %v1031, 126
      %v1126 = vpop.permute.xlu0 %1125
      %1127 = vrot.lane.b32.xlu0 %v1032, 126
      %v1128 = vpop.permute.xlu0 %1127
      %v1161 = vadd.f32 %v777, %v1066
      %v1162 = vadd.f32 %v778, %v1068
      %v1163 = vadd.f32 %v779, %v1070
      %v1164 = vadd.f32 %v780, %v1072
      %v1165 = vadd.f32 %v781, %v1074
      %v1166 = vadd.f32 %v782, %v1076
      %v1167 = vadd.f32 %v783, %v1078
      %v1168 = vadd.f32 %v784, %v1080
      %v1169 = vadd.f32 %v785, %v1082
      %v1170 = vadd.f32 %v786, %v1084
      %v1171 = vadd.f32 %v787, %v1086
      %v1172 = vadd.f32 %v788, %v1088
      %v1173 = vadd.f32 %v789, %v1090
      %v1174 = vadd.f32 %v790, %v1092
      %v1175 = vadd.f32 %v791, %v1094
      %v1176 = vadd.f32 %v792, %v1096
      %v1177 = vadd.f32 %v793, %v1098
      %v1178 = vadd.f32 %v794, %v1100
      %v1179 = vadd.f32 %v795, %v1102
      %v1180 = vadd.f32 %v796, %v1104
      %v1181 = vadd.f32 %v797, %v1106
      %v1182 = vadd.f32 %v798, %v1108
      %v1183 = vadd.f32 %v799, %v1110
      %v1184 = vadd.f32 %v800, %v1112
      %v1185 = vadd.f32 %v801, %v1114
      %v1186 = vadd.f32 %v802, %v1116
      %v1187 = vadd.f32 %v803, %v1118
      %v1188 = vadd.f32 %v804, %v1120
      %v1189 = vadd.f32 %v805, %v1122
      %v1190 = vadd.f32 %v806, %v1124
      %v1191 = vadd.f32 %v807, %v1126
      %v1192 = vadd.f32 %v808, %v1128
      %v1193 = vmul.f32 %v329, 1.1138928
      %v1194 = vmul.f32 %v330, 1.1138928
      %v1195 = vmul.f32 %v331, 1.1138928
      %v1196 = vmul.f32 %v332, 1.1138928
      %v1197 = vmul.f32 %v333, 1.1138928
      %v1198 = vmul.f32 %v334, 1.1138928
      %v1199 = vmul.f32 %v335, 1.1138928
      %v1200 = vmul.f32 %v336, 1.1138928
      %v1201 = vmul.f32 %v337, 1.1138928
      %v1202 = vmul.f32 %v338, 1.1138928
      %v1203 = vmul.f32 %v339, 1.1138928
      %v1204 = vmul.f32 %v340, 1.1138928
      %v1205 = vmul.f32 %v341, 1.1138928
      %v1206 = vmul.f32 %v342, 1.1138928
      %v1207 = vmul.f32 %v343, 1.1138928
      %v1208 = vmul.f32 %v344, 1.1138928
      %v1209 = vmul.f32 %v345, 1.1138928
      %v1210 = vmul.f32 %v346, 1.1138928
      %v1211 = vmul.f32 %v347, 1.1138928
      %v1212 = vmul.f32 %v348, 1.1138928
      %v1213 = vmul.f32 %v349, 1.1138928
      %v1214 = vmul.f32 %v350, 1.1138928
      %v1215 = vmul.f32 %v351, 1.1138928
      %v1216 = vmul.f32 %v352, 1.1138928
      %v1217 = vmul.f32 %v353, 1.1138928
      %v1218 = vmul.f32 %v354, 1.1138928
      %v1219 = vmul.f32 %v355, 1.1138928
      %v1220 = vmul.f32 %v356, 1.1138928
      %v1221 = vmul.f32 %v357, 1.1138928
      %v1222 = vmul.f32 %v358, 1.1138928
      %v1223 = vmul.f32 %v359, 1.1138928
      %v1224 = vmul.f32 %v360, 1.1138928
      %1257 = vrot.lane.b32.xlu0 %v1193, 125
      %v1258 = vpop.permute.xlu0 %1257
      %1259 = vrot.lane.b32.xlu0 %v1194, 125
      %v1260 = vpop.permute.xlu0 %1259
      %1261 = vrot.lane.b32.xlu0 %v1195, 125
      %v1262 = vpop.permute.xlu0 %1261
      %1263 = vrot.lane.b32.xlu0 %v1196, 125
      %v1264 = vpop.permute.xlu0 %1263
      %1265 = vrot.lane.b32.xlu0 %v1197, 125
      %v1266 = vpop.permute.xlu0 %1265
      %1267 = vrot.lane.b32.xlu0 %v1198, 125
      %v1268 = vpop.permute.xlu0 %1267
      %1269 = vrot.lane.b32.xlu0 %v1199, 125
      %v1270 = vpop.permute.xlu0 %1269
      %1271 = vrot.lane.b32.xlu0 %v1200, 125
      %v1272 = vpop.permute.xlu0 %1271
      %1273 = vrot.lane.b32.xlu0 %v1201, 125
      %v1274 = vpop.permute.xlu0 %1273
      %1275 = vrot.lane.b32.xlu0 %v1202, 125
      %v1276 = vpop.permute.xlu0 %1275
      %1277 = vrot.lane.b32.xlu0 %v1203, 125
      %v1278 = vpop.permute.xlu0 %1277
      %1279 = vrot.lane.b32.xlu0 %v1204, 125
      %v1280 = vpop.permute.xlu0 %1279
      %1281 = vrot.lane.b32.xlu0 %v1205, 125
      %v1282 = vpop.permute.xlu0 %1281
      %1283 = vrot.lane.b32.xlu0 %v1206, 125
      %v1284 = vpop.permute.xlu0 %1283
      %1285 = vrot.lane.b32.xlu0 %v1207, 125
      %v1286 = vpop.permute.xlu0 %1285
      %1287 = vrot.lane.b32.xlu0 %v1208, 125
      %v1288 = vpop.permute.xlu0 %1287
      %1289 = vrot.lane.b32.xlu0 %v1209, 125
      %v1290 = vpop.permute.xlu0 %1289
      %1291 = vrot.lane.b32.xlu0 %v1210, 125
      %v1292 = vpop.permute.xlu0 %1291
      %1293 = vrot.lane.b32.xlu0 %v1211, 125
      %v1294 = vpop.permute.xlu0 %1293
      %1295 = vrot.lane.b32.xlu0 %v1212, 125
      %v1296 = vpop.permute.xlu0 %1295
      %1297 = vrot.lane.b32.xlu0 %v1213, 125
      %v1298 = vpop.permute.xlu0 %1297
      %1299 = vrot.lane.b32.xlu0 %v1214, 125
      %v1300 = vpop.permute.xlu0 %1299
      %1301 = vrot.lane.b32.xlu0 %v1215, 125
      %v1302 = vpop.permute.xlu0 %1301
      %1303 = vrot.lane.b32.xlu0 %v1216, 125
      %v1304 = vpop.permute.xlu0 %1303
      %1305 = vrot.lane.b32.xlu0 %v1217, 125
      %v1306 = vpop.permute.xlu0 %1305
      %1307 = vrot.lane.b32.xlu0 %v1218, 125
      %v1308 = vpop.permute.xlu0 %1307
      %1309 = vrot.lane.b32.xlu0 %v1219, 125
      %v1310 = vpop.permute.xlu0 %1309
      %1311 = vrot.lane.b32.xlu0 %v1220, 125
      %v1312 = vpop.permute.xlu0 %1311
      %1313 = vrot.lane.b32.xlu0 %v1221, 125
      %v1314 = vpop.permute.xlu0 %1313
      %1315 = vrot.lane.b32.xlu0 %v1222, 125
      %v1316 = vpop.permute.xlu0 %1315
      %1317 = vrot.lane.b32.xlu0 %v1223, 125
      %v1318 = vpop.permute.xlu0 %1317
      %1319 = vrot.lane.b32.xlu0 %v1224, 125
      %v1320 = vpop.permute.xlu0 %1319
      %v1353 = vadd.f32 %v969, %v1258
      %v1354 = vadd.f32 %v970, %v1260
      %v1355 = vadd.f32 %v971, %v1262
      %v1356 = vadd.f32 %v972, %v1264
      %v1357 = vadd.f32 %v973, %v1266
      %v1358 = vadd.f32 %v974, %v1268
      %v1359 = vadd.f32 %v975, %v1270
      %v1360 = vadd.f32 %v976, %v1272
      %v1361 = vadd.f32 %v977, %v1274
      %v1362 = vadd.f32 %v978, %v1276
      %v1363 = vadd.f32 %v979, %v1278
      %v1364 = vadd.f32 %v980, %v1280
      %v1365 = vadd.f32 %v981, %v1282
      %v1366 = vadd.f32 %v982, %v1284
      %v1367 = vadd.f32 %v983, %v1286
      %v1368 = vadd.f32 %v984, %v1288
      %v1369 = vadd.f32 %v985, %v1290
      %v1370 = vadd.f32 %v986, %v1292
      %v1371 = vadd.f32 %v987, %v1294
      %v1372 = vadd.f32 %v988, %v1296
      %v1373 = vadd.f32 %v989, %v1298
      %v1374 = vadd.f32 %v990, %v1300
      %v1375 = vadd.f32 %v991, %v1302
      %v1376 = vadd.f32 %v992, %v1304
      %v1377 = vadd.f32 %v993, %v1306
      %v1378 = vadd.f32 %v994, %v1308
      %v1379 = vadd.f32 %v995, %v1310
      %v1380 = vadd.f32 %v996, %v1312
      %v1381 = vadd.f32 %v997, %v1314
      %v1382 = vadd.f32 %v998, %v1316
      %v1383 = vadd.f32 %v999, %v1318
      %v1384 = vadd.f32 %v1000, %v1320
      %v1385 = vmul.f32 %v329, 0.69445795
      %v1386 = vmul.f32 %v330, 0.69445795
      %v1387 = vmul.f32 %v331, 0.69445795
      %v1388 = vmul.f32 %v332, 0.69445795
      %v1389 = vmul.f32 %v333, 0.69445795
      %v1390 = vmul.f32 %v334, 0.69445795
      %v1391 = vmul.f32 %v335, 0.69445795
      %v1392 = vmul.f32 %v336, 0.69445795
      %v1393 = vmul.f32 %v337, 0.69445795
      %v1394 = vmul.f32 %v338, 0.69445795
      %v1395 = vmul.f32 %v339, 0.69445795
      %v1396 = vmul.f32 %v340, 0.69445795
      %v1397 = vmul.f32 %v341, 0.69445795
      %v1398 = vmul.f32 %v342, 0.69445795
      %v1399 = vmul.f32 %v343, 0.69445795
      %v1400 = vmul.f32 %v344, 0.69445795
      %v1401 = vmul.f32 %v345, 0.69445795
      %v1402 = vmul.f32 %v346, 0.69445795
      %v1403 = vmul.f32 %v347, 0.69445795
      %v1404 = vmul.f32 %v348, 0.69445795
      %v1405 = vmul.f32 %v349, 0.69445795
      %v1406 = vmul.f32 %v350, 0.69445795
      %v1407 = vmul.f32 %v351, 0.69445795
      %v1408 = vmul.f32 %v352, 0.69445795
      %v1409 = vmul.f32 %v353, 0.69445795
      %v1410 = vmul.f32 %v354, 0.69445795
      %v1411 = vmul.f32 %v355, 0.69445795
      %v1412 = vmul.f32 %v356, 0.69445795
      %v1413 = vmul.f32 %v357, 0.69445795
      %v1414 = vmul.f32 %v358, 0.69445795
      %v1415 = vmul.f32 %v359, 0.69445795
      %v1416 = vmul.f32 %v360, 0.69445795
      %1449 = vrot.lane.b32.xlu0 %v1385, 125
      %v1450 = vpop.permute.xlu0 %1449
      %1451 = vrot.lane.b32.xlu0 %v1386, 125
      %v1452 = vpop.permute.xlu0 %1451
      %1453 = vrot.lane.b32.xlu0 %v1387, 125
      %v1454 = vpop.permute.xlu0 %1453
      %1455 = vrot.lane.b32.xlu0 %v1388, 125
      %v1456 = vpop.permute.xlu0 %1455
      %1457 = vrot.lane.b32.xlu0 %v1389, 125
      %v1458 = vpop.permute.xlu0 %1457
      %1459 = vrot.lane.b32.xlu0 %v1390, 125
      %v1460 = vpop.permute.xlu0 %1459
      %1461 = vrot.lane.b32.xlu0 %v1391, 125
      %v1462 = vpop.permute.xlu0 %1461
      %1463 = vrot.lane.b32.xlu0 %v1392, 125
      %v1464 = vpop.permute.xlu0 %1463
      %1465 = vrot.lane.b32.xlu0 %v1393, 125
      %v1466 = vpop.permute.xlu0 %1465
      %1467 = vrot.lane.b32.xlu0 %v1394, 125
      %v1468 = vpop.permute.xlu0 %1467
      %1469 = vrot.lane.b32.xlu0 %v1395, 125
      %v1470 = vpop.permute.xlu0 %1469
      %1471 = vrot.lane.b32.xlu0 %v1396, 125
      %v1472 = vpop.permute.xlu0 %1471
      %1473 = vrot.lane.b32.xlu0 %v1397, 125
      %v1474 = vpop.permute.xlu0 %1473
      %1475 = vrot.lane.b32.xlu0 %v1398, 125
      %v1476 = vpop.permute.xlu0 %1475
      %1477 = vrot.lane.b32.xlu0 %v1399, 125
      %v1478 = vpop.permute.xlu0 %1477
      %1479 = vrot.lane.b32.xlu0 %v1400, 125
      %v1480 = vpop.permute.xlu0 %1479
      %1481 = vrot.lane.b32.xlu0 %v1401, 125
      %v1482 = vpop.permute.xlu0 %1481
      %1483 = vrot.lane.b32.xlu0 %v1402, 125
      %v1484 = vpop.permute.xlu0 %1483
      %1485 = vrot.lane.b32.xlu0 %v1403, 125
      %v1486 = vpop.permute.xlu0 %1485
      %1487 = vrot.lane.b32.xlu0 %v1404, 125
      %v1488 = vpop.permute.xlu0 %1487
      %1489 = vrot.lane.b32.xlu0 %v1405, 125
      %v1490 = vpop.permute.xlu0 %1489
      %1491 = vrot.lane.b32.xlu0 %v1406, 125
      %v1492 = vpop.permute.xlu0 %1491
      %1493 = vrot.lane.b32.xlu0 %v1407, 125
      %v1494 = vpop.permute.xlu0 %1493
      %1495 = vrot.lane.b32.xlu0 %v1408, 125
      %v1496 = vpop.permute.xlu0 %1495
      %1497 = vrot.lane.b32.xlu0 %v1409, 125
      %v1498 = vpop.permute.xlu0 %1497
      %1499 = vrot.lane.b32.xlu0 %v1410, 125
      %v1500 = vpop.permute.xlu0 %1499
      %1501 = vrot.lane.b32.xlu0 %v1411, 125
      %v1502 = vpop.permute.xlu0 %1501
      %1503 = vrot.lane.b32.xlu0 %v1412, 125
      %v1504 = vpop.permute.xlu0 %1503
      %1505 = vrot.lane.b32.xlu0 %v1413, 125
      %v1506 = vpop.permute.xlu0 %1505
      %1507 = vrot.lane.b32.xlu0 %v1414, 125
      %v1508 = vpop.permute.xlu0 %1507
      %1509 = vrot.lane.b32.xlu0 %v1415, 125
      %v1510 = vpop.permute.xlu0 %1509
      %1511 = vrot.lane.b32.xlu0 %v1416, 125
      %v1512 = vpop.permute.xlu0 %1511
      %v1545 = vadd.f32 %v1161, %v1450
      %v1546 = vadd.f32 %v1162, %v1452
      %v1547 = vadd.f32 %v1163, %v1454
      %v1548 = vadd.f32 %v1164, %v1456
      %v1549 = vadd.f32 %v1165, %v1458
      %v1550 = vadd.f32 %v1166, %v1460
      %v1551 = vadd.f32 %v1167, %v1462
      %v1552 = vadd.f32 %v1168, %v1464
      %v1553 = vadd.f32 %v1169, %v1466
      %v1554 = vadd.f32 %v1170, %v1468
      %v1555 = vadd.f32 %v1171, %v1470
      %v1556 = vadd.f32 %v1172, %v1472
      %v1557 = vadd.f32 %v1173, %v1474
      %v1558 = vadd.f32 %v1174, %v1476
      %v1559 = vadd.f32 %v1175, %v1478
      %v1560 = vadd.f32 %v1176, %v1480
      %v1561 = vadd.f32 %v1177, %v1482
      %v1562 = vadd.f32 %v1178, %v1484
      %v1563 = vadd.f32 %v1179, %v1486
      %v1564 = vadd.f32 %v1180, %v1488
      %v1565 = vadd.f32 %v1181, %v1490
      %v1566 = vadd.f32 %v1182, %v1492
      %v1567 = vadd.f32 %v1183, %v1494
      %v1568 = vadd.f32 %v1184, %v1496
      %v1569 = vadd.f32 %v1185, %v1498
      %v1570 = vadd.f32 %v1186, %v1500
      %v1571 = vadd.f32 %v1187, %v1502
      %v1572 = vadd.f32 %v1188, %v1504
      %v1573 = vadd.f32 %v1189, %v1506
      %v1574 = vadd.f32 %v1190, %v1508
      %v1575 = vadd.f32 %v1191, %v1510
      %v1576 = vadd.f32 %v1192, %v1512
      %v1577 = vmul.f32 %v329, -0.06832312
      %v1578 = vmul.f32 %v330, -0.06832312
      %v1579 = vmul.f32 %v331, -0.06832312
      %v1580 = vmul.f32 %v332, -0.06832312
      %v1581 = vmul.f32 %v333, -0.06832312
      %v1582 = vmul.f32 %v334, -0.06832312
      %v1583 = vmul.f32 %v335, -0.06832312
      %v1584 = vmul.f32 %v336, -0.06832312
      %v1585 = vmul.f32 %v337, -0.06832312
      %v1586 = vmul.f32 %v338, -0.06832312
      %v1587 = vmul.f32 %v339, -0.06832312
      %v1588 = vmul.f32 %v340, -0.06832312
      %v1589 = vmul.f32 %v341, -0.06832312
      %v1590 = vmul.f32 %v342, -0.06832312
      %v1591 = vmul.f32 %v343, -0.06832312
      %v1592 = vmul.f32 %v344, -0.06832312
      %v1593 = vmul.f32 %v345, -0.06832312
      %v1594 = vmul.f32 %v346, -0.06832312
      %v1595 = vmul.f32 %v347, -0.06832312
      %v1596 = vmul.f32 %v348, -0.06832312
      %v1597 = vmul.f32 %v349, -0.06832312
      %v1598 = vmul.f32 %v350, -0.06832312
      %v1599 = vmul.f32 %v351, -0.06832312
      %v1600 = vmul.f32 %v352, -0.06832312
      %v1601 = vmul.f32 %v353, -0.06832312
      %v1602 = vmul.f32 %v354, -0.06832312
      %v1603 = vmul.f32 %v355, -0.06832312
      %v1604 = vmul.f32 %v356, -0.06832312
      %v1605 = vmul.f32 %v357, -0.06832312
      %v1606 = vmul.f32 %v358, -0.06832312
      %v1607 = vmul.f32 %v359, -0.06832312
      %v1608 = vmul.f32 %v360, -0.06832312
      %1641 = vrot.lane.b32.xlu0 %v1577, 124
      %v1642 = vpop.permute.xlu0 %1641
      %1643 = vrot.lane.b32.xlu0 %v1578, 124
      %v1644 = vpop.permute.xlu0 %1643
      %1645 = vrot.lane.b32.xlu0 %v1579, 124
      %v1646 = vpop.permute.xlu0 %1645
      %1647 = vrot.lane.b32.xlu0 %v1580, 124
      %v1648 = vpop.permute.xlu0 %1647
      %1649 = vrot.lane.b32.xlu0 %v1581, 124
      %v1650 = vpop.permute.xlu0 %1649
      %1651 = vrot.lane.b32.xlu0 %v1582, 124
      %v1652 = vpop.permute.xlu0 %1651
      %1653 = vrot.lane.b32.xlu0 %v1583, 124
      %v1654 = vpop.permute.xlu0 %1653
      %1655 = vrot.lane.b32.xlu0 %v1584, 124
      %v1656 = vpop.permute.xlu0 %1655
      %1657 = vrot.lane.b32.xlu0 %v1585, 124
      %v1658 = vpop.permute.xlu0 %1657
      %1659 = vrot.lane.b32.xlu0 %v1586, 124
      %v1660 = vpop.permute.xlu0 %1659
      %1661 = vrot.lane.b32.xlu0 %v1587, 124
      %v1662 = vpop.permute.xlu0 %1661
      %1663 = vrot.lane.b32.xlu0 %v1588, 124
      %v1664 = vpop.permute.xlu0 %1663
      %1665 = vrot.lane.b32.xlu0 %v1589, 124
      %v1666 = vpop.permute.xlu0 %1665
      %1667 = vrot.lane.b32.xlu0 %v1590, 124
      %v1668 = vpop.permute.xlu0 %1667
      %1669 = vrot.lane.b32.xlu0 %v1591, 124
      %v1670 = vpop.permute.xlu0 %1669
      %1671 = vrot.lane.b32.xlu0 %v1592, 124
      %v1672 = vpop.permute.xlu0 %1671
      %1673 = vrot.lane.b32.xlu0 %v1593, 124
      %v1674 = vpop.permute.xlu0 %1673
      %1675 = vrot.lane.b32.xlu0 %v1594, 124
      %v1676 = vpop.permute.xlu0 %1675
      %1677 = vrot.lane.b32.xlu0 %v1595, 124
      %v1678 = vpop.permute.xlu0 %1677
      %1679 = vrot.lane.b32.xlu0 %v1596, 124
      %v1680 = vpop.permute.xlu0 %1679
      %1681 = vrot.lane.b32.xlu0 %v1597, 124
      %v1682 = vpop.permute.xlu0 %1681
      %1683 = vrot.lane.b32.xlu0 %v1598, 124
      %v1684 = vpop.permute.xlu0 %1683
      %1685 = vrot.lane.b32.xlu0 %v1599, 124
      %v1686 = vpop.permute.xlu0 %1685
      %1687 = vrot.lane.b32.xlu0 %v1600, 124
      %v1688 = vpop.permute.xlu0 %1687
      %1689 = vrot.lane.b32.xlu0 %v1601, 124
      %v1690 = vpop.permute.xlu0 %1689
      %1691 = vrot.lane.b32.xlu0 %v1602, 124
      %v1692 = vpop.permute.xlu0 %1691
      %1693 = vrot.lane.b32.xlu0 %v1603, 124
      %v1694 = vpop.permute.xlu0 %1693
      %1695 = vrot.lane.b32.xlu0 %v1604, 124
      %v1696 = vpop.permute.xlu0 %1695
      %1697 = vrot.lane.b32.xlu0 %v1605, 124
      %v1698 = vpop.permute.xlu0 %1697
      %1699 = vrot.lane.b32.xlu0 %v1606, 124
      %v1700 = vpop.permute.xlu0 %1699
      %1701 = vrot.lane.b32.xlu0 %v1607, 124
      %v1702 = vpop.permute.xlu0 %1701
      %1703 = vrot.lane.b32.xlu0 %v1608, 124
      %v1704 = vpop.permute.xlu0 %1703
      %v1737 = vadd.f32 %v1353, %v1642
      %v1738 = vadd.f32 %v1354, %v1644
      %v1739 = vadd.f32 %v1355, %v1646
      %v1740 = vadd.f32 %v1356, %v1648
      %v1741 = vadd.f32 %v1357, %v1650
      %v1742 = vadd.f32 %v1358, %v1652
      %v1743 = vadd.f32 %v1359, %v1654
      %v1744 = vadd.f32 %v1360, %v1656
      %v1745 = vadd.f32 %v1361, %v1658
      %v1746 = vadd.f32 %v1362, %v1660
      %v1747 = vadd.f32 %v1363, %v1662
      %v1748 = vadd.f32 %v1364, %v1664
      %v1749 = vadd.f32 %v1365, %v1666
      %v1750 = vadd.f32 %v1366, %v1668
      %v1751 = vadd.f32 %v1367, %v1670
      %v1752 = vadd.f32 %v1368, %v1672
      %v1753 = vadd.f32 %v1369, %v1674
      %v1754 = vadd.f32 %v1370, %v1676
      %v1755 = vadd.f32 %v1371, %v1678
      %v1756 = vadd.f32 %v1372, %v1680
      %v1757 = vadd.f32 %v1373, %v1682
      %v1758 = vadd.f32 %v1374, %v1684
      %v1759 = vadd.f32 %v1375, %v1686
      %v1760 = vadd.f32 %v1376, %v1688
      %v1761 = vadd.f32 %v1377, %v1690
      %v1762 = vadd.f32 %v1378, %v1692
      %v1763 = vadd.f32 %v1379, %v1694
      %v1764 = vadd.f32 %v1380, %v1696
      %v1765 = vadd.f32 %v1381, %v1698
      %v1766 = vadd.f32 %v1382, %v1700
      %v1767 = vadd.f32 %v1383, %v1702
      %v1768 = vadd.f32 %v1384, %v1704
      %v1769 = vmul.f32 %v329, -0.16686322
      %v1770 = vmul.f32 %v330, -0.16686322
      %v1771 = vmul.f32 %v331, -0.16686322
      %v1772 = vmul.f32 %v332, -0.16686322
      %v1773 = vmul.f32 %v333, -0.16686322
      %v1774 = vmul.f32 %v334, -0.16686322
      %v1775 = vmul.f32 %v335, -0.16686322
      %v1776 = vmul.f32 %v336, -0.16686322
      %v1777 = vmul.f32 %v337, -0.16686322
      %v1778 = vmul.f32 %v338, -0.16686322
      %v1779 = vmul.f32 %v339, -0.16686322
      %v1780 = vmul.f32 %v340, -0.16686322
      %v1781 = vmul.f32 %v341, -0.16686322
      %v1782 = vmul.f32 %v342, -0.16686322
      %v1783 = vmul.f32 %v343, -0.16686322
      %v1784 = vmul.f32 %v344, -0.16686322
      %v1785 = vmul.f32 %v345, -0.16686322
      %v1786 = vmul.f32 %v346, -0.16686322
      %v1787 = vmul.f32 %v347, -0.16686322
      %v1788 = vmul.f32 %v348, -0.16686322
      %v1789 = vmul.f32 %v349, -0.16686322
      %v1790 = vmul.f32 %v350, -0.16686322
      %v1791 = vmul.f32 %v351, -0.16686322
      %v1792 = vmul.f32 %v352, -0.16686322
      %v1793 = vmul.f32 %v353, -0.16686322
      %v1794 = vmul.f32 %v354, -0.16686322
      %v1795 = vmul.f32 %v355, -0.16686322
      %v1796 = vmul.f32 %v356, -0.16686322
      %v1797 = vmul.f32 %v357, -0.16686322
      %v1798 = vmul.f32 %v358, -0.16686322
      %v1799 = vmul.f32 %v359, -0.16686322
      %v1800 = vmul.f32 %v360, -0.16686322
      %1833 = vrot.lane.b32.xlu0 %v1769, 124
      %v1834 = vpop.permute.xlu0 %1833
      %1835 = vrot.lane.b32.xlu0 %v1770, 124
      %v1836 = vpop.permute.xlu0 %1835
      %1837 = vrot.lane.b32.xlu0 %v1771, 124
      %v1838 = vpop.permute.xlu0 %1837
      %1839 = vrot.lane.b32.xlu0 %v1772, 124
      %v1840 = vpop.permute.xlu0 %1839
      %1841 = vrot.lane.b32.xlu0 %v1773, 124
      %v1842 = vpop.permute.xlu0 %1841
      %1843 = vrot.lane.b32.xlu0 %v1774, 124
      %v1844 = vpop.permute.xlu0 %1843
      %1845 = vrot.lane.b32.xlu0 %v1775, 124
      %v1846 = vpop.permute.xlu0 %1845
      %1847 = vrot.lane.b32.xlu0 %v1776, 124
      %v1848 = vpop.permute.xlu0 %1847
      %1849 = vrot.lane.b32.xlu0 %v1777, 124
      %v1850 = vpop.permute.xlu0 %1849
      %1851 = vrot.lane.b32.xlu0 %v1778, 124
      %v1852 = vpop.permute.xlu0 %1851
      %1853 = vrot.lane.b32.xlu0 %v1779, 124
      %v1854 = vpop.permute.xlu0 %1853
      %1855 = vrot.lane.b32.xlu0 %v1780, 124
      %v1856 = vpop.permute.xlu0 %1855
      %1857 = vrot.lane.b32.xlu0 %v1781, 124
      %v1858 = vpop.permute.xlu0 %1857
      %1859 = vrot.lane.b32.xlu0 %v1782, 124
      %v1860 = vpop.permute.xlu0 %1859
      %1861 = vrot.lane.b32.xlu0 %v1783, 124
      %v1862 = vpop.permute.xlu0 %1861
      %1863 = vrot.lane.b32.xlu0 %v1784, 124
      %v1864 = vpop.permute.xlu0 %1863
      %1865 = vrot.lane.b32.xlu0 %v1785, 124
      %v1866 = vpop.permute.xlu0 %1865
      %1867 = vrot.lane.b32.xlu0 %v1786, 124
      %v1868 = vpop.permute.xlu0 %1867
      %1869 = vrot.lane.b32.xlu0 %v1787, 124
      %v1870 = vpop.permute.xlu0 %1869
      %1871 = vrot.lane.b32.xlu0 %v1788, 124
      %v1872 = vpop.permute.xlu0 %1871
      %1873 = vrot.lane.b32.xlu0 %v1789, 124
      %v1874 = vpop.permute.xlu0 %1873
      %1875 = vrot.lane.b32.xlu0 %v1790, 124
      %v1876 = vpop.permute.xlu0 %1875
      %1877 = vrot.lane.b32.xlu0 %v1791, 124
      %v1878 = vpop.permute.xlu0 %1877
      %1879 = vrot.lane.b32.xlu0 %v1792, 124
      %v1880 = vpop.permute.xlu0 %1879
      %1881 = vrot.lane.b32.xlu0 %v1793, 124
      %v1882 = vpop.permute.xlu0 %1881
      %1883 = vrot.lane.b32.xlu0 %v1794, 124
      %v1884 = vpop.permute.xlu0 %1883
      %1885 = vrot.lane.b32.xlu0 %v1795, 124
      %v1886 = vpop.permute.xlu0 %1885
      %1887 = vrot.lane.b32.xlu0 %v1796, 124
      %v1888 = vpop.permute.xlu0 %1887
      %1889 = vrot.lane.b32.xlu0 %v1797, 124
      %v1890 = vpop.permute.xlu0 %1889
      %1891 = vrot.lane.b32.xlu0 %v1798, 124
      %v1892 = vpop.permute.xlu0 %1891
      %1893 = vrot.lane.b32.xlu0 %v1799, 124
      %v1894 = vpop.permute.xlu0 %1893
      %1895 = vrot.lane.b32.xlu0 %v1800, 124
      %v1896 = vpop.permute.xlu0 %1895
      %v1929 = vadd.f32 %v1545, %v1834
      %v1930 = vadd.f32 %v1546, %v1836
      %v1931 = vadd.f32 %v1547, %v1838
      %v1932 = vadd.f32 %v1548, %v1840
      %v1933 = vadd.f32 %v1549, %v1842
      %v1934 = vadd.f32 %v1550, %v1844
      %v1935 = vadd.f32 %v1551, %v1846
      %v1936 = vadd.f32 %v1552, %v1848
      %v1937 = vadd.f32 %v1553, %v1850
      %v1938 = vadd.f32 %v1554, %v1852
      %v1939 = vadd.f32 %v1555, %v1854
      %v1940 = vadd.f32 %v1556, %v1856
      %v1941 = vadd.f32 %v1557, %v1858
      %v1942 = vadd.f32 %v1558, %v1860
      %v1943 = vadd.f32 %v1559, %v1862
      %v1944 = vadd.f32 %v1560, %v1864
      %v1945 = vadd.f32 %v1561, %v1866
      %v1946 = vadd.f32 %v1562, %v1868
      %v1947 = vadd.f32 %v1563, %v1870
      %v1948 = vadd.f32 %v1564, %v1872
      %v1949 = vadd.f32 %v1565, %v1874
      %v1950 = vadd.f32 %v1566, %v1876
      %v1951 = vadd.f32 %v1567, %v1878
      %v1952 = vadd.f32 %v1568, %v1880
      %v1953 = vadd.f32 %v1569, %v1882
      %v1954 = vadd.f32 %v1570, %v1884
      %v1955 = vadd.f32 %v1571, %v1886
      %v1956 = vadd.f32 %v1572, %v1888
      %v1957 = vadd.f32 %v1573, %v1890
      %v1958 = vadd.f32 %v1574, %v1892
      %v1959 = vadd.f32 %v1575, %v1894
      %v1960 = vadd.f32 %v1576, %v1896
      %v1961 = vmul.f32 %v329, 0.004936612
      %v1962 = vmul.f32 %v330, 0.004936612
      %v1963 = vmul.f32 %v331, 0.004936612
      %v1964 = vmul.f32 %v332, 0.004936612
      %v1965 = vmul.f32 %v333, 0.004936612
      %v1966 = vmul.f32 %v334, 0.004936612
      %v1967 = vmul.f32 %v335, 0.004936612
      %v1968 = vmul.f32 %v336, 0.004936612
      %v1969 = vmul.f32 %v337, 0.004936612
      %v1970 = vmul.f32 %v338, 0.004936612
      %v1971 = vmul.f32 %v339, 0.004936612
      %v1972 = vmul.f32 %v340, 0.004936612
      %v1973 = vmul.f32 %v341, 0.004936612
      %v1974 = vmul.f32 %v342, 0.004936612
      %v1975 = vmul.f32 %v343, 0.004936612
      %v1976 = vmul.f32 %v344, 0.004936612
      %v1977 = vmul.f32 %v345, 0.004936612
      %v1978 = vmul.f32 %v346, 0.004936612
      %v1979 = vmul.f32 %v347, 0.004936612
      %v1980 = vmul.f32 %v348, 0.004936612
      %v1981 = vmul.f32 %v349, 0.004936612
      %v1982 = vmul.f32 %v350, 0.004936612
      %v1983 = vmul.f32 %v351, 0.004936612
      %v1984 = vmul.f32 %v352, 0.004936612
      %v1985 = vmul.f32 %v353, 0.004936612
      %v1986 = vmul.f32 %v354, 0.004936612
      %v1987 = vmul.f32 %v355, 0.004936612
      %v1988 = vmul.f32 %v356, 0.004936612
      %v1989 = vmul.f32 %v357, 0.004936612
      %v1990 = vmul.f32 %v358, 0.004936612
      %v1991 = vmul.f32 %v359, 0.004936612
      %v1992 = vmul.f32 %v360, 0.004936612
      %2025 = vrot.lane.b32.xlu0 %v1961, 123
      %v2026 = vpop.permute.xlu0 %2025
      %2027 = vrot.lane.b32.xlu0 %v1962, 123
      %v2028 = vpop.permute.xlu0 %2027
      %2029 = vrot.lane.b32.xlu0 %v1963, 123
      %v2030 = vpop.permute.xlu0 %2029
      %2031 = vrot.lane.b32.xlu0 %v1964, 123
      %v2032 = vpop.permute.xlu0 %2031
      %2033 = vrot.lane.b32.xlu0 %v1965, 123
      %v2034 = vpop.permute.xlu0 %2033
      %2035 = vrot.lane.b32.xlu0 %v1966, 123
      %v2036 = vpop.permute.xlu0 %2035
      %2037 = vrot.lane.b32.xlu0 %v1967, 123
      %v2038 = vpop.permute.xlu0 %2037
      %2039 = vrot.lane.b32.xlu0 %v1968, 123
      %v2040 = vpop.permute.xlu0 %2039
      %2041 = vrot.lane.b32.xlu0 %v1969, 123
      %v2042 = vpop.permute.xlu0 %2041
      %2043 = vrot.lane.b32.xlu0 %v1970, 123
      %v2044 = vpop.permute.xlu0 %2043
      %2045 = vrot.lane.b32.xlu0 %v1971, 123
      %v2046 = vpop.permute.xlu0 %2045
      %2047 = vrot.lane.b32.xlu0 %v1972, 123
      %v2048 = vpop.permute.xlu0 %2047
      %2049 = vrot.lane.b32.xlu0 %v1973, 123
      %v2050 = vpop.permute.xlu0 %2049
      %2051 = vrot.lane.b32.xlu0 %v1974, 123
      %v2052 = vpop.permute.xlu0 %2051
      %2053 = vrot.lane.b32.xlu0 %v1975, 123
      %v2054 = vpop.permute.xlu0 %2053
      %2055 = vrot.lane.b32.xlu0 %v1976, 123
      %v2056 = vpop.permute.xlu0 %2055
      %2057 = vrot.lane.b32.xlu0 %v1977, 123
      %v2058 = vpop.permute.xlu0 %2057
      %2059 = vrot.lane.b32.xlu0 %v1978, 123
      %v2060 = vpop.permute.xlu0 %2059
      %2061 = vrot.lane.b32.xlu0 %v1979, 123
      %v2062 = vpop.permute.xlu0 %2061
      %2063 = vrot.lane.b32.xlu0 %v1980, 123
      %v2064 = vpop.permute.xlu0 %2063
      %2065 = vrot.lane.b32.xlu0 %v1981, 123
      %v2066 = vpop.permute.xlu0 %2065
      %2067 = vrot.lane.b32.xlu0 %v1982, 123
      %v2068 = vpop.permute.xlu0 %2067
      %2069 = vrot.lane.b32.xlu0 %v1983, 123
      %v2070 = vpop.permute.xlu0 %2069
      %2071 = vrot.lane.b32.xlu0 %v1984, 123
      %v2072 = vpop.permute.xlu0 %2071
      %2073 = vrot.lane.b32.xlu0 %v1985, 123
      %v2074 = vpop.permute.xlu0 %2073
      %2075 = vrot.lane.b32.xlu0 %v1986, 123
      %v2076 = vpop.permute.xlu0 %2075
      %2077 = vrot.lane.b32.xlu0 %v1987, 123
      %v2078 = vpop.permute.xlu0 %2077
      %2079 = vrot.lane.b32.xlu0 %v1988, 123
      %v2080 = vpop.permute.xlu0 %2079
      %2081 = vrot.lane.b32.xlu0 %v1989, 123
      %v2082 = vpop.permute.xlu0 %2081
      %2083 = vrot.lane.b32.xlu0 %v1990, 123
      %v2084 = vpop.permute.xlu0 %2083
      %2085 = vrot.lane.b32.xlu0 %v1991, 123
      %v2086 = vpop.permute.xlu0 %2085
      %2087 = vrot.lane.b32.xlu0 %v1992, 123
      %v2088 = vpop.permute.xlu0 %2087
      %v2121 = vadd.f32 %v1737, %v2026
      %v2122 = vadd.f32 %v1738, %v2028
      %v2123 = vadd.f32 %v1739, %v2030
      %v2124 = vadd.f32 %v1740, %v2032
      %v2125 = vadd.f32 %v1741, %v2034
      %v2126 = vadd.f32 %v1742, %v2036
      %v2127 = vadd.f32 %v1743, %v2038
      %v2128 = vadd.f32 %v1744, %v2040
      %v2129 = vadd.f32 %v1745, %v2042
      %v2130 = vadd.f32 %v1746, %v2044
      %v2131 = vadd.f32 %v1747, %v2046
      %v2132 = vadd.f32 %v1748, %v2048
      %v2133 = vadd.f32 %v1749, %v2050
      %v2134 = vadd.f32 %v1750, %v2052
      %v2135 = vadd.f32 %v1751, %v2054
      %v2136 = vadd.f32 %v1752, %v2056
      %v2137 = vadd.f32 %v1753, %v2058
      %v2138 = vadd.f32 %v1754, %v2060
      %v2139 = vadd.f32 %v1755, %v2062
      %v2140 = vadd.f32 %v1756, %v2064
      %v2141 = vadd.f32 %v1757, %v2066
      %v2142 = vadd.f32 %v1758, %v2068
      %v2143 = vadd.f32 %v1759, %v2070
      %v2144 = vadd.f32 %v1760, %v2072
      %v2145 = vadd.f32 %v1761, %v2074
      %v2146 = vadd.f32 %v1762, %v2076
      %v2147 = vadd.f32 %v1763, %v2078
      %v2148 = vadd.f32 %v1764, %v2080
      %v2149 = vadd.f32 %v1765, %v2082
      %v2150 = vadd.f32 %v1766, %v2084
      %v2151 = vadd.f32 %v1767, %v2086
      %v2152 = vadd.f32 %v1768, %v2088
      %v2153 = vmul.f32 %v329, 0.0217847
      %v2154 = vmul.f32 %v330, 0.0217847
      %v2155 = vmul.f32 %v331, 0.0217847
      %v2156 = vmul.f32 %v332, 0.0217847
      %v2157 = vmul.f32 %v333, 0.0217847
      %v2158 = vmul.f32 %v334, 0.0217847
      %v2159 = vmul.f32 %v335, 0.0217847
      %v2160 = vmul.f32 %v336, 0.0217847
      %v2161 = vmul.f32 %v337, 0.0217847
      %v2162 = vmul.f32 %v338, 0.0217847
      %v2163 = vmul.f32 %v339, 0.0217847
      %v2164 = vmul.f32 %v340, 0.0217847
      %v2165 = vmul.f32 %v341, 0.0217847
      %v2166 = vmul.f32 %v342, 0.0217847
      %v2167 = vmul.f32 %v343, 0.0217847
      %v2168 = vmul.f32 %v344, 0.0217847
      %v2169 = vmul.f32 %v345, 0.0217847
      %v2170 = vmul.f32 %v346, 0.0217847
      %v2171 = vmul.f32 %v347, 0.0217847
      %v2172 = vmul.f32 %v348, 0.0217847
      %v2173 = vmul.f32 %v349, 0.0217847
      %v2174 = vmul.f32 %v350, 0.0217847
      %v2175 = vmul.f32 %v351, 0.0217847
      %v2176 = vmul.f32 %v352, 0.0217847
      %v2177 = vmul.f32 %v353, 0.0217847
      %v2178 = vmul.f32 %v354, 0.0217847
      %v2179 = vmul.f32 %v355, 0.0217847
      %v2180 = vmul.f32 %v356, 0.0217847
      %v2181 = vmul.f32 %v357, 0.0217847
      %v2182 = vmul.f32 %v358, 0.0217847
      %v2183 = vmul.f32 %v359, 0.0217847
      %v2184 = vmul.f32 %v360, 0.0217847
      %2217 = vrot.lane.b32.xlu0 %v2153, 123
      %v2218 = vpop.permute.xlu0 %2217
      %2219 = vrot.lane.b32.xlu0 %v2154, 123
      %v2220 = vpop.permute.xlu0 %2219
      %2221 = vrot.lane.b32.xlu0 %v2155, 123
      %v2222 = vpop.permute.xlu0 %2221
      %2223 = vrot.lane.b32.xlu0 %v2156, 123
      %v2224 = vpop.permute.xlu0 %2223
      %2225 = vrot.lane.b32.xlu0 %v2157, 123
      %v2226 = vpop.permute.xlu0 %2225
      %2227 = vrot.lane.b32.xlu0 %v2158, 123
      %v2228 = vpop.permute.xlu0 %2227
      %2229 = vrot.lane.b32.xlu0 %v2159, 123
      %v2230 = vpop.permute.xlu0 %2229
      %2231 = vrot.lane.b32.xlu0 %v2160, 123
      %v2232 = vpop.permute.xlu0 %2231
      %2233 = vrot.lane.b32.xlu0 %v2161, 123
      %v2234 = vpop.permute.xlu0 %2233
      %2235 = vrot.lane.b32.xlu0 %v2162, 123
      %v2236 = vpop.permute.xlu0 %2235
      %2237 = vrot.lane.b32.xlu0 %v2163, 123
      %v2238 = vpop.permute.xlu0 %2237
      %2239 = vrot.lane.b32.xlu0 %v2164, 123
      %v2240 = vpop.permute.xlu0 %2239
      %2241 = vrot.lane.b32.xlu0 %v2165, 123
      %v2242 = vpop.permute.xlu0 %2241
      %2243 = vrot.lane.b32.xlu0 %v2166, 123
      %v2244 = vpop.permute.xlu0 %2243
      %2245 = vrot.lane.b32.xlu0 %v2167, 123
      %v2246 = vpop.permute.xlu0 %2245
      %2247 = vrot.lane.b32.xlu0 %v2168, 123
      %v2248 = vpop.permute.xlu0 %2247
      %2249 = vrot.lane.b32.xlu0 %v2169, 123
      %v2250 = vpop.permute.xlu0 %2249
      %2251 = vrot.lane.b32.xlu0 %v2170, 123
      %v2252 = vpop.permute.xlu0 %2251
      %2253 = vrot.lane.b32.xlu0 %v2171, 123
      %v2254 = vpop.permute.xlu0 %2253
      %2255 = vrot.lane.b32.xlu0 %v2172, 123
      %v2256 = vpop.permute.xlu0 %2255
      %2257 = vrot.lane.b32.xlu0 %v2173, 123
      %v2258 = vpop.permute.xlu0 %2257
      %2259 = vrot.lane.b32.xlu0 %v2174, 123
      %v2260 = vpop.permute.xlu0 %2259
      %2261 = vrot.lane.b32.xlu0 %v2175, 123
      %v2262 = vpop.permute.xlu0 %2261
      %2263 = vrot.lane.b32.xlu0 %v2176, 123
      %v2264 = vpop.permute.xlu0 %2263
      %2265 = vrot.lane.b32.xlu0 %v2177, 123
      %v2266 = vpop.permute.xlu0 %2265
      %2267 = vrot.lane.b32.xlu0 %v2178, 123
      %v2268 = vpop.permute.xlu0 %2267
      %2269 = vrot.lane.b32.xlu0 %v2179, 123
      %v2270 = vpop.permute.xlu0 %2269
      %2271 = vrot.lane.b32.xlu0 %v2180, 123
      %v2272 = vpop.permute.xlu0 %2271
      %2273 = vrot.lane.b32.xlu0 %v2181, 123
      %v2274 = vpop.permute.xlu0 %2273
      %2275 = vrot.lane.b32.xlu0 %v2182, 123
      %v2276 = vpop.permute.xlu0 %2275
      %2277 = vrot.lane.b32.xlu0 %v2183, 123
      %v2278 = vpop.permute.xlu0 %2277
      %2279 = vrot.lane.b32.xlu0 %v2184, 123
      %v2280 = vpop.permute.xlu0 %2279
      %v2313 = vadd.f32 %v1929, %v2218
      %v2314 = vadd.f32 %v1930, %v2220
      %v2315 = vadd.f32 %v1931, %v2222
      %v2316 = vadd.f32 %v1932, %v2224
      %v2317 = vadd.f32 %v1933, %v2226
      %v2318 = vadd.f32 %v1934, %v2228
      %v2319 = vadd.f32 %v1935, %v2230
      %v2320 = vadd.f32 %v1936, %v2232
      %v2321 = vadd.f32 %v1937, %v2234
      %v2322 = vadd.f32 %v1938, %v2236
      %v2323 = vadd.f32 %v1939, %v2238
      %v2324 = vadd.f32 %v1940, %v2240
      %v2325 = vadd.f32 %v1941, %v2242
      %v2326 = vadd.f32 %v1942, %v2244
      %v2327 = vadd.f32 %v1943, %v2246
      %v2328 = vadd.f32 %v1944, %v2248
      %v2329 = vadd.f32 %v1945, %v2250
      %v2330 = vadd.f32 %v1946, %v2252
      %v2331 = vadd.f32 %v1947, %v2254
      %v2332 = vadd.f32 %v1948, %v2256
      %v2333 = vadd.f32 %v1949, %v2258
      %v2334 = vadd.f32 %v1950, %v2260
      %v2335 = vadd.f32 %v1951, %v2262
      %v2336 = vadd.f32 %v1952, %v2264
      %v2337 = vadd.f32 %v1953, %v2266
      %v2338 = vadd.f32 %v1954, %v2268
      %v2339 = vadd.f32 %v1955, %v2270
      %v2340 = vadd.f32 %v1956, %v2272
      %v2341 = vadd.f32 %v1957, %v2274
      %v2342 = vadd.f32 %v1958, %v2276
      %v2343 = vadd.f32 %v1959, %v2278
      %v2344 = vadd.f32 %v1960, %v2280
      %vm2345 = vcmask 424960
      %2346 = vst.msk [vmem:[#allocation3] sm:$0xff] %vm2345, %v2121
      %2347 = vst.msk [vmem:[#allocation3 + $0x8] sm:$0xff] %vm2345, %v2122
      %2348 = vst.msk [vmem:[#allocation3 + $0x10] sm:$0xff] %vm2345, %v2123
      %2349 = vst.msk [vmem:[#allocation3 + $0x18] sm:$0xff] %vm2345, %v2124
      %2350 = vst.msk [vmem:[#allocation3 + $0x20] sm:$0xff] %vm2345, %v2125
      %2351 = vst.msk [vmem:[#allocation3 + $0x28] sm:$0xff] %vm2345, %v2126
      %2352 = vst.msk [vmem:[#allocation3 + $0x30] sm:$0xff] %vm2345, %v2127
      %vm2353 = vcmask 418816
      %2354 = vst.msk [vmem:[#allocation3 + $0x38] sm:$0x3] %vm2353, %v2128
      %2355 = vst.msk [vmem:[#allocation3 + $0x40] sm:$0xff] %vm2345, %v2129
      %2356 = vst.msk [vmem:[#allocation3 + $0x48] sm:$0xff] %vm2345, %v2130
      %2357 = vst.msk [vmem:[#allocation3 + $0x50] sm:$0xff] %vm2345, %v2131
      %2358 = vst.msk [vmem:[#allocation3 + $0x58] sm:$0xff] %vm2345, %v2132
      %2359 = vst.msk [vmem:[#allocation3 + $0x60] sm:$0xff] %vm2345, %v2133
      %2360 = vst.msk [vmem:[#allocation3 + $0x68] sm:$0xff] %vm2345, %v2134
      %2361 = vst.msk [vmem:[#allocation3 + $0x70] sm:$0xff] %vm2345, %v2135
      %2362 = vst.msk [vmem:[#allocation3 + $0x78] sm:$0x3] %vm2353, %v2136
      %2363 = vst.msk [vmem:[#allocation3 + $0x80] sm:$0xff] %vm2345, %v2137
      %2364 = vst.msk [vmem:[#allocation3 + $0x88] sm:$0xff] %vm2345, %v2138
      %2365 = vst.msk [vmem:[#allocation3 + $0x90] sm:$0xff] %vm2345, %v2139
      %2366 = vst.msk [vmem:[#allocation3 + $0x98] sm:$0xff] %vm2345, %v2140
      %2367 = vst.msk [vmem:[#allocation3 + $0xa0] sm:$0xff] %vm2345, %v2141
      %2368 = vst.msk [vmem:[#allocation3 + $0xa8] sm:$0xff] %vm2345, %v2142
      %2369 = vst.msk [vmem:[#allocation3 + $0xb0] sm:$0xff] %vm2345, %v2143
      %2370 = vst.msk [vmem:[#allocation3 + $0xb8] sm:$0x3] %vm2353, %v2144
      %2371 = vst.msk [vmem:[#allocation3 + $0xc0] sm:$0xff] %vm2345, %v2145
      %2372 = vst.msk [vmem:[#allocation3 + $0xc8] sm:$0xff] %vm2345, %v2146
      %2373 = vst.msk [vmem:[#allocation3 + $0xd0] sm:$0xff] %vm2345, %v2147
      %2374 = vst.msk [vmem:[#allocation3 + $0xd8] sm:$0xff] %vm2345, %v2148
      %2375 = vst.msk [vmem:[#allocation3 + $0xe0] sm:$0xff] %vm2345, %v2149
      %2376 = vst.msk [vmem:[#allocation3 + $0xe8] sm:$0xff] %vm2345, %v2150
      %2377 = vst.msk [vmem:[#allocation3 + $0xf0] sm:$0xff] %vm2345, %v2151
      %2378 = vst.msk [vmem:[#allocation3 + $0xf8] sm:$0x3] %vm2353, %v2152
      %2411 = vrot.lane.b32.xlu0 %v2313, 51
      %v2412 = vpop.permute.xlu0 %2411
      %2413 = vrot.lane.b32.xlu0 %v2314, 51
      %v2414 = vpop.permute.xlu0 %2413
      %2415 = vrot.lane.b32.xlu0 %v2315, 51
      %v2416 = vpop.permute.xlu0 %2415
      %2417 = vrot.lane.b32.xlu0 %v2316, 51
      %v2418 = vpop.permute.xlu0 %2417
      %2419 = vrot.lane.b32.xlu0 %v2317, 51
      %v2420 = vpop.permute.xlu0 %2419
      %2421 = vrot.lane.b32.xlu0 %v2318, 51
      %v2422 = vpop.permute.xlu0 %2421
      %2423 = vrot.lane.b32.xlu0 %v2319, 51
      %v2424 = vpop.permute.xlu0 %2423
      %2425 = vrot.lane.b32.xlu0 %v2320, 51
      %v2426 = vpop.permute.xlu0 %2425
      %2427 = vrot.lane.b32.xlu0 %v2321, 51
      %v2428 = vpop.permute.xlu0 %2427
      %2429 = vrot.lane.b32.xlu0 %v2322, 51
      %v2430 = vpop.permute.xlu0 %2429
      %2431 = vrot.lane.b32.xlu0 %v2323, 51
      %v2432 = vpop.permute.xlu0 %2431
      %2433 = vrot.lane.b32.xlu0 %v2324, 51
      %v2434 = vpop.permute.xlu0 %2433
      %2435 = vrot.lane.b32.xlu0 %v2325, 51
      %v2436 = vpop.permute.xlu0 %2435
      %2437 = vrot.lane.b32.xlu0 %v2326, 51
      %v2438 = vpop.permute.xlu0 %2437
      %2439 = vrot.lane.b32.xlu0 %v2327, 51
      %v2440 = vpop.permute.xlu0 %2439
      %2441 = vrot.lane.b32.xlu0 %v2328, 51
      %v2442 = vpop.permute.xlu0 %2441
      %2443 = vrot.lane.b32.xlu0 %v2329, 51
      %v2444 = vpop.permute.xlu0 %2443
      %2445 = vrot.lane.b32.xlu0 %v2330, 51
      %v2446 = vpop.permute.xlu0 %2445
      %2447 = vrot.lane.b32.xlu0 %v2331, 51
      %v2448 = vpop.permute.xlu0 %2447
      %2449 = vrot.lane.b32.xlu0 %v2332, 51
      %v2450 = vpop.permute.xlu0 %2449
      %2451 = vrot.lane.b32.xlu0 %v2333, 51
      %v2452 = vpop.permute.xlu0 %2451
      %2453 = vrot.lane.b32.xlu0 %v2334, 51
      %v2454 = vpop.permute.xlu0 %2453
      %2455 = vrot.lane.b32.xlu0 %v2335, 51
      %v2456 = vpop.permute.xlu0 %2455
      %2457 = vrot.lane.b32.xlu0 %v2336, 51
      %v2458 = vpop.permute.xlu0 %2457
      %2459 = vrot.lane.b32.xlu0 %v2337, 51
      %v2460 = vpop.permute.xlu0 %2459
      %2461 = vrot.lane.b32.xlu0 %v2338, 51
      %v2462 = vpop.permute.xlu0 %2461
      %2463 = vrot.lane.b32.xlu0 %v2339, 51
      %v2464 = vpop.permute.xlu0 %2463
      %2465 = vrot.lane.b32.xlu0 %v2340, 51
      %v2466 = vpop.permute.xlu0 %2465
      %2467 = vrot.lane.b32.xlu0 %v2341, 51
      %v2468 = vpop.permute.xlu0 %2467
      %2469 = vrot.lane.b32.xlu0 %v2342, 51
      %v2470 = vpop.permute.xlu0 %2469
      %2471 = vrot.lane.b32.xlu0 %v2343, 51
      %v2472 = vpop.permute.xlu0 %2471
      %2473 = vrot.lane.b32.xlu0 %v2344, 51
      %v2474 = vpop.permute.xlu0 %2473
      %vm2507 = vcmask 851360
      %2508 = vst.msk [vmem:[#allocation3] sm:$0xff] %vm2507, %v2412
      %2509 = vst.msk [vmem:[#allocation3 + $0x8] sm:$0xff] %vm2507, %v2414
      %2510 = vst.msk [vmem:[#allocation3 + $0x10] sm:$0xff] %vm2507, %v2416
      %2511 = vst.msk [vmem:[#allocation3 + $0x18] sm:$0xff] %vm2507, %v2418
      %2512 = vst.msk [vmem:[#allocation3 + $0x20] sm:$0xff] %vm2507, %v2420
      %2513 = vst.msk [vmem:[#allocation3 + $0x28] sm:$0xff] %vm2507, %v2422
      %2514 = vst.msk [vmem:[#allocation3 + $0x30] sm:$0xff] %vm2507, %v2424
      %vm2515 = vcmask 845216
      %2516 = vst.msk [vmem:[#allocation3 + $0x38] sm:$0x3] %vm2515, %v2426
      %2517 = vst.msk [vmem:[#allocation3 + $0x40] sm:$0xff] %vm2507, %v2428
      %2518 = vst.msk [vmem:[#allocation3 + $0x48] sm:$0xff] %vm2507, %v2430
      %2519 = vst.msk [vmem:[#allocation3 + $0x50] sm:$0xff] %vm2507, %v2432
      %2520 = vst.msk [vmem:[#allocation3 + $0x58] sm:$0xff] %vm2507, %v2434
      %2521 = vst.msk [vmem:[#allocation3 + $0x60] sm:$0xff] %vm2507, %v2436
      %2522 = vst.msk [vmem:[#allocation3 + $0x68] sm:$0xff] %vm2507, %v2438
      %2523 = vst.msk [vmem:[#allocation3 + $0x70] sm:$0xff] %vm2507, %v2440
      %2524 = vst.msk [vmem:[#allocation3 + $0x78] sm:$0x3] %vm2515, %v2442
      %2525 = vst.msk [vmem:[#allocation3 + $0x80] sm:$0xff] %vm2507, %v2444
      %2526 = vst.msk [vmem:[#allocation3 + $0x88] sm:$0xff] %vm2507, %v2446
      %2527 = vst.msk [vmem:[#allocation3 + $0x90] sm:$0xff] %vm2507, %v2448
      %2528 = vst.msk [vmem:[#allocation3 + $0x98] sm:$0xff] %vm2507, %v2450
      %2529 = vst.msk [vmem:[#allocation3 + $0xa0] sm:$0xff] %vm2507, %v2452
      %2530 = vst.msk [vmem:[#allocation3 + $0xa8] sm:$0xff] %vm2507, %v2454
      %2531 = vst.msk [vmem:[#allocation3 + $0xb0] sm:$0xff] %vm2507, %v2456
      %2532 = vst.msk [vmem:[#allocation3 + $0xb8] sm:$0x3] %vm2515, %v2458
      %2533 = vst.msk [vmem:[#allocation3 + $0xc0] sm:$0xff] %vm2507, %v2460
      %2534 = vst.msk [vmem:[#allocation3 + $0xc8] sm:$0xff] %vm2507, %v2462
      %2535 = vst.msk [vmem:[#allocation3 + $0xd0] sm:$0xff] %vm2507, %v2464
      %2536 = vst.msk [vmem:[#allocation3 + $0xd8] sm:$0xff] %vm2507, %v2466
      %2537 = vst.msk [vmem:[#allocation3 + $0xe0] sm:$0xff] %vm2507, %v2468
      %2538 = vst.msk [vmem:[#allocation3 + $0xe8] sm:$0xff] %vm2507, %v2470
      %2539 = vst.msk [vmem:[#allocation3 + $0xf0] sm:$0xff] %vm2507, %v2472
      %2540 = vst.msk [vmem:[#allocation3 + $0xf8] sm:$0x3] %vm2515, %v2474
      %v2541 = vld [vmem:[#allocation3] sm:$0xff]
      %v2542 = vld [vmem:[#allocation3 + $0x8] sm:$0xff]
      %v2543 = vld [vmem:[#allocation3 + $0x10] sm:$0xff]
      %v2544 = vld [vmem:[#allocation3 + $0x18] sm:$0xff]
      %v2545 = vld [vmem:[#allocation3 + $0x20] sm:$0xff]
      %v2546 = vld [vmem:[#allocation3 + $0x28] sm:$0xff]
      %v2547 = vld [vmem:[#allocation3 + $0x30] sm:$0xf]
      %v2548 = vld [vmem:[#allocation3 + $0x40] sm:$0xff]
      %v2549 = vld [vmem:[#allocation3 + $0x48] sm:$0xff]
      %v2550 = vld [vmem:[#allocation3 + $0x50] sm:$0xff]
      %v2551 = vld [vmem:[#allocation3 + $0x58] sm:$0xff]
      %v2552 = vld [vmem:[#allocation3 + $0x60] sm:$0xff]
      %v2553 = vld [vmem:[#allocation3 + $0x68] sm:$0xff]
      %v2554 = vld [vmem:[#allocation3 + $0x70] sm:$0xf]
      %v2555 = vld [vmem:[#allocation3 + $0x80] sm:$0xff]
      %v2556 = vld [vmem:[#allocation3 + $0x88] sm:$0xff]
      %v2557 = vld [vmem:[#allocation3 + $0x90] sm:$0xff]
      %v2558 = vld [vmem:[#allocation3 + $0x98] sm:$0xff]
      %v2559 = vld [vmem:[#allocation3 + $0xa0] sm:$0xff]
      %v2560 = vld [vmem:[#allocation3 + $0xa8] sm:$0xff]
      %v2561 = vld [vmem:[#allocation3 + $0xb0] sm:$0xf]
      %v2562 = vld [vmem:[#allocation3 + $0xc0] sm:$0xff]
      %v2563 = vld [vmem:[#allocation3 + $0xc8] sm:$0xff]
      %v2564 = vld [vmem:[#allocation3 + $0xd0] sm:$0xff]
      %v2565 = vld [vmem:[#allocation3 + $0xd8] sm:$0xff]
      %v2566 = vld [vmem:[#allocation3 + $0xe0] sm:$0xff]
      %v2567 = vld [vmem:[#allocation3 + $0xe8] sm:$0xff]
      %v2568 = vld [vmem:[#allocation3 + $0xf0] sm:$0xf]
      %v2569 = vmul.f32 %v2541, -0.011031868
      %v2570 = vmul.f32 %v2542, -0.011031868
      %v2571 = vmul.f32 %v2543, -0.011031868
      %v2572 = vmul.f32 %v2544, -0.011031868
      %v2573 = vmul.f32 %v2545, -0.011031868
      %v2574 = vmul.f32 %v2546, -0.011031868
      %v2575 = vmul.f32 %v2547, -0.011031868
      %v2576 = vmul.f32 %v2548, -0.011031868
      %v2577 = vmul.f32 %v2549, -0.011031868
      %v2578 = vmul.f32 %v2550, -0.011031868
      %v2579 = vmul.f32 %v2551, -0.011031868
      %v2580 = vmul.f32 %v2552, -0.011031868
      %v2581 = vmul.f32 %v2553, -0.011031868
      %v2582 = vmul.f32 %v2554, -0.011031868
      %v2583 = vmul.f32 %v2555, -0.011031868
      %v2584 = vmul.f32 %v2556, -0.011031868
      %v2585 = vmul.f32 %v2557, -0.011031868
      %v2586 = vmul.f32 %v2558, -0.011031868
      %v2587 = vmul.f32 %v2559, -0.011031868
      %v2588 = vmul.f32 %v2560, -0.011031868
      %v2589 = vmul.f32 %v2561, -0.011031868
      %v2590 = vmul.f32 %v2562, -0.011031868
      %v2591 = vmul.f32 %v2563, -0.011031868
      %v2592 = vmul.f32 %v2564, -0.011031868
      %v2593 = vmul.f32 %v2565, -0.011031868
      %v2594 = vmul.f32 %v2566, -0.011031868
      %v2595 = vmul.f32 %v2567, -0.011031868
      %v2596 = vmul.f32 %v2568, -0.011031868
      %v2597 = vld [vmem:[#allocation3 + $0x1] sm:$0xff]
      %v2598 = vld [vmem:[#allocation3 + $0x9] sm:$0xff]
      %v2599 = vld [vmem:[#allocation3 + $0x11] sm:$0xff]
      %v2600 = vld [vmem:[#allocation3 + $0x19] sm:$0xff]
      %v2601 = vld [vmem:[#allocation3 + $0x21] sm:$0xff]
      %v2602 = vld [vmem:[#allocation3 + $0x29] sm:$0xff]
      %v2603 = vld [vmem:[#allocation3 + $0x31] sm:$0xf]
      %v2604 = vld [vmem:[#allocation3 + $0x41] sm:$0xff]
      %v2605 = vld [vmem:[#allocation3 + $0x49] sm:$0xff]
      %v2606 = vld [vmem:[#allocation3 + $0x51] sm:$0xff]
      %v2607 = vld [vmem:[#allocation3 + $0x59] sm:$0xff]
      %v2608 = vld [vmem:[#allocation3 + $0x61] sm:$0xff]
      %v2609 = vld [vmem:[#allocation3 + $0x69] sm:$0xff]
      %v2610 = vld [vmem:[#allocation3 + $0x71] sm:$0xf]
      %v2611 = vld [vmem:[#allocation3 + $0x81] sm:$0xff]
      %v2612 = vld [vmem:[#allocation3 + $0x89] sm:$0xff]
      %v2613 = vld [vmem:[#allocation3 + $0x91] sm:$0xff]
      %v2614 = vld [vmem:[#allocation3 + $0x99] sm:$0xff]
      %v2615 = vld [vmem:[#allocation3 + $0xa1] sm:$0xff]
      %v2616 = vld [vmem:[#allocation3 + $0xa9] sm:$0xff]
      %v2617 = vld [vmem:[#allocation3 + $0xb1] sm:$0xf]
      %v2618 = vld [vmem:[#allocation3 + $0xc1] sm:$0xff]
      %v2619 = vld [vmem:[#allocation3 + $0xc9] sm:$0xff]
      %v2620 = vld [vmem:[#allocation3 + $0xd1] sm:$0xff]
      %v2621 = vld [vmem:[#allocation3 + $0xd9] sm:$0xff]
      %v2622 = vld [vmem:[#allocation3 + $0xe1] sm:$0xff]
      %v2623 = vld [vmem:[#allocation3 + $0xe9] sm:$0xff]
      %v2624 = vld [vmem:[#allocation3 + $0xf1] sm:$0xf]
      %v2625 = vmul.f32 %v2597, 0.0024999222
      %v2626 = vmul.f32 %v2598, 0.0024999222
      %v2627 = vmul.f32 %v2599, 0.0024999222
      %v2628 = vmul.f32 %v2600, 0.0024999222
      %v2629 = vmul.f32 %v2601, 0.0024999222
      %v2630 = vmul.f32 %v2602, 0.0024999222
      %v2631 = vmul.f32 %v2603, 0.0024999222
      %v2632 = vmul.f32 %v2604, 0.0024999222
      %v2633 = vmul.f32 %v2605, 0.0024999222
      %v2634 = vmul.f32 %v2606, 0.0024999222
      %v2635 = vmul.f32 %v2607, 0.0024999222
      %v2636 = vmul.f32 %v2608, 0.0024999222
      %v2637 = vmul.f32 %v2609, 0.0024999222
      %v2638 = vmul.f32 %v2610, 0.0024999222
      %v2639 = vmul.f32 %v2611, 0.0024999222
      %v2640 = vmul.f32 %v2612, 0.0024999222
      %v2641 = vmul.f32 %v2613, 0.0024999222
      %v2642 = vmul.f32 %v2614, 0.0024999222
      %v2643 = vmul.f32 %v2615, 0.0024999222
      %v2644 = vmul.f32 %v2616, 0.0024999222
      %v2645 = vmul.f32 %v2617, 0.0024999222
      %v2646 = vmul.f32 %v2618, 0.0024999222
      %v2647 = vmul.f32 %v2619, 0.0024999222
      %v2648 = vmul.f32 %v2620, 0.0024999222
      %v2649 = vmul.f32 %v2621, 0.0024999222
      %v2650 = vmul.f32 %v2622, 0.0024999222
      %v2651 = vmul.f32 %v2623, 0.0024999222
      %v2652 = vmul.f32 %v2624, 0.0024999222
      %v2653 = vmul.f32 %v2597, 0.063250564
      %v2654 = vmul.f32 %v2598, 0.063250564
      %v2655 = vmul.f32 %v2599, 0.063250564
      %v2656 = vmul.f32 %v2600, 0.063250564
      %v2657 = vmul.f32 %v2601, 0.063250564
      %v2658 = vmul.f32 %v2602, 0.063250564
      %v2659 = vmul.f32 %v2603, 0.063250564
      %v2660 = vmul.f32 %v2604, 0.063250564
      %v2661 = vmul.f32 %v2605, 0.063250564
      %v2662 = vmul.f32 %v2606, 0.063250564
      %v2663 = vmul.f32 %v2607, 0.063250564
      %v2664 = vmul.f32 %v2608, 0.063250564
      %v2665 = vmul.f32 %v2609, 0.063250564
      %v2666 = vmul.f32 %v2610, 0.063250564
      %v2667 = vmul.f32 %v2611, 0.063250564
      %v2668 = vmul.f32 %v2612, 0.063250564
      %v2669 = vmul.f32 %v2613, 0.063250564
      %v2670 = vmul.f32 %v2614, 0.063250564
      %v2671 = vmul.f32 %v2615, 0.063250564
      %v2672 = vmul.f32 %v2616, 0.063250564
      %v2673 = vmul.f32 %v2617, 0.063250564
      %v2674 = vmul.f32 %v2618, 0.063250564
      %v2675 = vmul.f32 %v2619, 0.063250564
      %v2676 = vmul.f32 %v2620, 0.063250564
      %v2677 = vmul.f32 %v2621, 0.063250564
      %v2678 = vmul.f32 %v2622, 0.063250564
      %v2679 = vmul.f32 %v2623, 0.063250564
      %v2680 = vmul.f32 %v2624, 0.063250564
      %v2681 = vadd.f32 %v2569, %v2653
      %v2682 = vadd.f32 %v2570, %v2654
      %v2683 = vadd.f32 %v2571, %v2655
      %v2684 = vadd.f32 %v2572, %v2656
      %v2685 = vadd.f32 %v2573, %v2657
      %v2686 = vadd.f32 %v2574, %v2658
      %v2687 = vadd.f32 %v2575, %v2659
      %v2688 = vadd.f32 %v2576, %v2660
      %v2689 = vadd.f32 %v2577, %v2661
      %v2690 = vadd.f32 %v2578, %v2662
      %v2691 = vadd.f32 %v2579, %v2663
      %v2692 = vadd.f32 %v2580, %v2664
      %v2693 = vadd.f32 %v2581, %v2665
      %v2694 = vadd.f32 %v2582, %v2666
      %v2695 = vadd.f32 %v2583, %v2667
      %v2696 = vadd.f32 %v2584, %v2668
      %v2697 = vadd.f32 %v2585, %v2669
      %v2698 = vadd.f32 %v2586, %v2670
      %v2699 = vadd.f32 %v2587, %v2671
      %v2700 = vadd.f32 %v2588, %v2672
      %v2701 = vadd.f32 %v2589, %v2673
      %v2702 = vadd.f32 %v2590, %v2674
      %v2703 = vadd.f32 %v2591, %v2675
      %v2704 = vadd.f32 %v2592, %v2676
      %v2705 = vadd.f32 %v2593, %v2677
      %v2706 = vadd.f32 %v2594, %v2678
      %v2707 = vadd.f32 %v2595, %v2679
      %v2708 = vadd.f32 %v2596, %v2680
      %v2709 = vld [vmem:[#allocation3 + $0x2] sm:$0xff]
      %v2710 = vld [vmem:[#allocation3 + $0xa] sm:$0xff]
      %v2711 = vld [vmem:[#allocation3 + $0x12] sm:$0xff]
      %v2712 = vld [vmem:[#allocation3 + $0x1a] sm:$0xff]
      %v2713 = vld [vmem:[#allocation3 + $0x22] sm:$0xff]
      %v2714 = vld [vmem:[#allocation3 + $0x2a] sm:$0xff]
      %v2715 = vld [vmem:[#allocation3 + $0x32] sm:$0xf]
      %v2716 = vld [vmem:[#allocation3 + $0x42] sm:$0xff]
      %v2717 = vld [vmem:[#allocation3 + $0x4a] sm:$0xff]
      %v2718 = vld [vmem:[#allocation3 + $0x52] sm:$0xff]
      %v2719 = vld [vmem:[#allocation3 + $0x5a] sm:$0xff]
      %v2720 = vld [vmem:[#allocation3 + $0x62] sm:$0xff]
      %v2721 = vld [vmem:[#allocation3 + $0x6a] sm:$0xff]
      %v2722 = vld [vmem:[#allocation3 + $0x72] sm:$0xf]
      %v2723 = vld [vmem:[#allocation3 + $0x82] sm:$0xff]
      %v2724 = vld [vmem:[#allocation3 + $0x8a] sm:$0xff]
      %v2725 = vld [vmem:[#allocation3 + $0x92] sm:$0xff]
      %v2726 = vld [vmem:[#allocation3 + $0x9a] sm:$0xff]
      %v2727 = vld [vmem:[#allocation3 + $0xa2] sm:$0xff]
      %v2728 = vld [vmem:[#allocation3 + $0xaa] sm:$0xff]
      %v2729 = vld [vmem:[#allocation3 + $0xb2] sm:$0xf]
      %v2730 = vld [vmem:[#allocation3 + $0xc2] sm:$0xff]
      %v2731 = vld [vmem:[#allocation3 + $0xca] sm:$0xff]
      %v2732 = vld [vmem:[#allocation3 + $0xd2] sm:$0xff]
      %v2733 = vld [vmem:[#allocation3 + $0xda] sm:$0xff]
      %v2734 = vld [vmem:[#allocation3 + $0xe2] sm:$0xff]
      %v2735 = vld [vmem:[#allocation3 + $0xea] sm:$0xff]
      %v2736 = vld [vmem:[#allocation3 + $0xf2] sm:$0xf]
      %v2737 = vmul.f32 %v2709, -0.029783752
      %v2738 = vmul.f32 %v2710, -0.029783752
      %v2739 = vmul.f32 %v2711, -0.029783752
      %v2740 = vmul.f32 %v2712, -0.029783752
      %v2741 = vmul.f32 %v2713, -0.029783752
      %v2742 = vmul.f32 %v2714, -0.029783752
      %v2743 = vmul.f32 %v2715, -0.029783752
      %v2744 = vmul.f32 %v2716, -0.029783752
      %v2745 = vmul.f32 %v2717, -0.029783752
      %v2746 = vmul.f32 %v2718, -0.029783752
      %v2747 = vmul.f32 %v2719, -0.029783752
      %v2748 = vmul.f32 %v2720, -0.029783752
      %v2749 = vmul.f32 %v2721, -0.029783752
      %v2750 = vmul.f32 %v2722, -0.029783752
      %v2751 = vmul.f32 %v2723, -0.029783752
      %v2752 = vmul.f32 %v2724, -0.029783752
      %v2753 = vmul.f32 %v2725, -0.029783752
      %v2754 = vmul.f32 %v2726, -0.029783752
      %v2755 = vmul.f32 %v2727, -0.029783752
      %v2756 = vmul.f32 %v2728, -0.029783752
      %v2757 = vmul.f32 %v2729, -0.029783752
      %v2758 = vmul.f32 %v2730, -0.029783752
      %v2759 = vmul.f32 %v2731, -0.029783752
      %v2760 = vmul.f32 %v2732, -0.029783752
      %v2761 = vmul.f32 %v2733, -0.029783752
      %v2762 = vmul.f32 %v2734, -0.029783752
      %v2763 = vmul.f32 %v2735, -0.029783752
      %v2764 = vmul.f32 %v2736, -0.029783752
      %v2765 = vadd.f32 %v2625, %v2737
      %v2766 = vadd.f32 %v2626, %v2738
      %v2767 = vadd.f32 %v2627, %v2739
      %v2768 = vadd.f32 %v2628, %v2740
      %v2769 = vadd.f32 %v2629, %v2741
      %v2770 = vadd.f32 %v2630, %v2742
      %v2771 = vadd.f32 %v2631, %v2743
      %v2772 = vadd.f32 %v2632, %v2744
      %v2773 = vadd.f32 %v2633, %v2745
      %v2774 = vadd.f32 %v2634, %v2746
      %v2775 = vadd.f32 %v2635, %v2747
      %v2776 = vadd.f32 %v2636, %v2748
      %v2777 = vadd.f32 %v2637, %v2749
      %v2778 = vadd.f32 %v2638, %v2750
      %v2779 = vadd.f32 %v2639, %v2751
      %v2780 = vadd.f32 %v2640, %v2752
      %v2781 = vadd.f32 %v2641, %v2753
      %v2782 = vadd.f32 %v2642, %v2754
      %v2783 = vadd.f32 %v2643, %v2755
      %v2784 = vadd.f32 %v2644, %v2756
      %v2785 = vadd.f32 %v2645, %v2757
      %v2786 = vadd.f32 %v2646, %v2758
      %v2787 = vadd.f32 %v2647, %v2759
      %v2788 = vadd.f32 %v2648, %v2760
      %v2789 = vadd.f32 %v2649, %v2761
      %v2790 = vadd.f32 %v2650, %v2762
      %v2791 = vadd.f32 %v2651, %v2763
      %v2792 = vadd.f32 %v2652, %v2764
      %v2793 = vmul.f32 %v2709, -0.10272497
      %v2794 = vmul.f32 %v2710, -0.10272497
      %v2795 = vmul.f32 %v2711, -0.10272497
      %v2796 = vmul.f32 %v2712, -0.10272497
      %v2797 = vmul.f32 %v2713, -0.10272497
      %v2798 = vmul.f32 %v2714, -0.10272497
      %v2799 = vmul.f32 %v2715, -0.10272497
      %v2800 = vmul.f32 %v2716, -0.10272497
      %v2801 = vmul.f32 %v2717, -0.10272497
      %v2802 = vmul.f32 %v2718, -0.10272497
      %v2803 = vmul.f32 %v2719, -0.10272497
      %v2804 = vmul.f32 %v2720, -0.10272497
      %v2805 = vmul.f32 %v2721, -0.10272497
      %v2806 = vmul.f32 %v2722, -0.10272497
      %v2807 = vmul.f32 %v2723, -0.10272497
      %v2808 = vmul.f32 %v2724, -0.10272497
      %v2809 = vmul.f32 %v2725, -0.10272497
      %v2810 = vmul.f32 %v2726, -0.10272497
      %v2811 = vmul.f32 %v2727, -0.10272497
      %v2812 = vmul.f32 %v2728, -0.10272497
      %v2813 = vmul.f32 %v2729, -0.10272497
      %v2814 = vmul.f32 %v2730, -0.10272497
      %v2815 = vmul.f32 %v2731, -0.10272497
      %v2816 = vmul.f32 %v2732, -0.10272497
      %v2817 = vmul.f32 %v2733, -0.10272497
      %v2818 = vmul.f32 %v2734, -0.10272497
      %v2819 = vmul.f32 %v2735, -0.10272497
      %v2820 = vmul.f32 %v2736, -0.10272497
      %v2821 = vadd.f32 %v2681, %v2793
      %v2822 = vadd.f32 %v2682, %v2794
      %v2823 = vadd.f32 %v2683, %v2795
      %v2824 = vadd.f32 %v2684, %v2796
      %v2825 = vadd.f32 %v2685, %v2797
      %v2826 = vadd.f32 %v2686, %v2798
      %v2827 = vadd.f32 %v2687, %v2799
      %v2828 = vadd.f32 %v2688, %v2800
      %v2829 = vadd.f32 %v2689, %v2801
      %v2830 = vadd.f32 %v2690, %v2802
      %v2831 = vadd.f32 %v2691, %v2803
      %v2832 = vadd.f32 %v2692, %v2804
      %v2833 = vadd.f32 %v2693, %v2805
      %v2834 = vadd.f32 %v2694, %v2806
      %v2835 = vadd.f32 %v2695, %v2807
      %v2836 = vadd.f32 %v2696, %v2808
      %v2837 = vadd.f32 %v2697, %v2809
      %v2838 = vadd.f32 %v2698, %v2810
      %v2839 = vadd.f32 %v2699, %v2811
      %v2840 = vadd.f32 %v2700, %v2812
      %v2841 = vadd.f32 %v2701, %v2813
      %v2842 = vadd.f32 %v2702, %v2814
      %v2843 = vadd.f32 %v2703, %v2815
      %v2844 = vadd.f32 %v2704, %v2816
      %v2845 = vadd.f32 %v2705, %v2817
      %v2846 = vadd.f32 %v2706, %v2818
      %v2847 = vadd.f32 %v2707, %v2819
      %v2848 = vadd.f32 %v2708, %v2820
      %v2849 = vld [vmem:[#allocation3 + $0x3] sm:$0xff]
      %v2850 = vld [vmem:[#allocation3 + $0xb] sm:$0xff]
      %v2851 = vld [vmem:[#allocation3 + $0x13] sm:$0xff]
      %v2852 = vld [vmem:[#allocation3 + $0x1b] sm:$0xff]
      %v2853 = vld [vmem:[#allocation3 + $0x23] sm:$0xff]
      %v2854 = vld [vmem:[#allocation3 + $0x2b] sm:$0xff]
      %v2855 = vld [vmem:[#allocation3 + $0x33] sm:$0xf]
      %v2856 = vld [vmem:[#allocation3 + $0x43] sm:$0xff]
      %v2857 = vld [vmem:[#allocation3 + $0x4b] sm:$0xff]
      %v2858 = vld [vmem:[#allocation3 + $0x53] sm:$0xff]
      %v2859 = vld [vmem:[#allocation3 + $0x5b] sm:$0xff]
      %v2860 = vld [vmem:[#allocation3 + $0x63] sm:$0xff]
      %v2861 = vld [vmem:[#allocation3 + $0x6b] sm:$0xff]
      %v2862 = vld [vmem:[#allocation3 + $0x73] sm:$0xf]
      %v2863 = vld [vmem:[#allocation3 + $0x83] sm:$0xff]
      %v2864 = vld [vmem:[#allocation3 + $0x8b] sm:$0xff]
      %v2865 = vld [vmem:[#allocation3 + $0x93] sm:$0xff]
      %v2866 = vld [vmem:[#allocation3 + $0x9b] sm:$0xff]
      %v2867 = vld [vmem:[#allocation3 + $0xa3] sm:$0xff]
      %v2868 = vld [vmem:[#allocation3 + $0xab] sm:$0xff]
      %v2869 = vld [vmem:[#allocation3 + $0xb3] sm:$0xf]
      %v2870 = vld [vmem:[#allocation3 + $0xc3] sm:$0xff]
      %v2871 = vld [vmem:[#allocation3 + $0xcb] sm:$0xff]
      %v2872 = vld [vmem:[#allocation3 + $0xd3] sm:$0xff]
      %v2873 = vld [vmem:[#allocation3 + $0xdb] sm:$0xff]
      %v2874 = vld [vmem:[#allocation3 + $0xe3] sm:$0xff]
      %v2875 = vld [vmem:[#allocation3 + $0xeb] sm:$0xff]
      %v2876 = vld [vmem:[#allocation3 + $0xf3] sm:$0xf]
      %v2877 = vmul.f32 %v2849, 0.47790438
      %v2878 = vmul.f32 %v2850, 0.47790438
      %v2879 = vmul.f32 %v2851, 0.47790438
      %v2880 = vmul.f32 %v2852, 0.47790438
      %v2881 = vmul.f32 %v2853, 0.47790438
      %v2882 = vmul.f32 %v2854, 0.47790438
      %v2883 = vmul.f32 %v2855, 0.47790438
      %v2884 = vmul.f32 %v2856, 0.47790438
      %v2885 = vmul.f32 %v2857, 0.47790438
      %v2886 = vmul.f32 %v2858, 0.47790438
      %v2887 = vmul.f32 %v2859, 0.47790438
      %v2888 = vmul.f32 %v2860, 0.47790438
      %v2889 = vmul.f32 %v2861, 0.47790438
      %v2890 = vmul.f32 %v2862, 0.47790438
      %v2891 = vmul.f32 %v2863, 0.47790438
      %v2892 = vmul.f32 %v2864, 0.47790438
      %v2893 = vmul.f32 %v2865, 0.47790438
      %v2894 = vmul.f32 %v2866, 0.47790438
      %v2895 = vmul.f32 %v2867, 0.47790438
      %v2896 = vmul.f32 %v2868, 0.47790438
      %v2897 = vmul.f32 %v2869, 0.47790438
      %v2898 = vmul.f32 %v2870, 0.47790438
      %v2899 = vmul.f32 %v2871, 0.47790438
      %v2900 = vmul.f32 %v2872, 0.47790438
      %v2901 = vmul.f32 %v2873, 0.47790438
      %v2902 = vmul.f32 %v2874, 0.47790438
      %v2903 = vmul.f32 %v2875, 0.47790438
      %v2904 = vmul.f32 %v2876, 0.47790438
      %v2905 = vadd.f32 %v2765, %v2877
      %v2906 = vadd.f32 %v2766, %v2878
      %v2907 = vadd.f32 %v2767, %v2879
      %v2908 = vadd.f32 %v2768, %v2880
      %v2909 = vadd.f32 %v2769, %v2881
      %v2910 = vadd.f32 %v2770, %v2882
      %v2911 = vadd.f32 %v2771, %v2883
      %v2912 = vadd.f32 %v2772, %v2884
      %v2913 = vadd.f32 %v2773, %v2885
      %v2914 = vadd.f32 %v2774, %v2886
      %v2915 = vadd.f32 %v2775, %v2887
      %v2916 = vadd.f32 %v2776, %v2888
      %v2917 = vadd.f32 %v2777, %v2889
      %v2918 = vadd.f32 %v2778, %v2890
      %v2919 = vadd.f32 %v2779, %v2891
      %v2920 = vadd.f32 %v2780, %v2892
      %v2921 = vadd.f32 %v2781, %v2893
      %v2922 = vadd.f32 %v2782, %v2894
      %v2923 = vadd.f32 %v2783, %v2895
      %v2924 = vadd.f32 %v2784, %v2896
      %v2925 = vadd.f32 %v2785, %v2897
      %v2926 = vadd.f32 %v2786, %v2898
      %v2927 = vadd.f32 %v2787, %v2899
      %v2928 = vadd.f32 %v2788, %v2900
      %v2929 = vadd.f32 %v2789, %v2901
      %v2930 = vadd.f32 %v2790, %v2902
      %v2931 = vadd.f32 %v2791, %v2903
      %v2932 = vadd.f32 %v2792, %v2904
      %v2933 = vmul.f32 %v2849, 1.1138928
      %v2934 = vmul.f32 %v2850, 1.1138928
      %v2935 = vmul.f32 %v2851, 1.1138928
      %v2936 = vmul.f32 %v2852, 1.1138928
      %v2937 = vmul.f32 %v2853, 1.1138928
      %v2938 = vmul.f32 %v2854, 1.1138928
      %v2939 = vmul.f32 %v2855, 1.1138928
      %v2940 = vmul.f32 %v2856, 1.1138928
      %v2941 = vmul.f32 %v2857, 1.1138928
      %v2942 = vmul.f32 %v2858, 1.1138928
      %v2943 = vmul.f32 %v2859, 1.1138928
      %v2944 = vmul.f32 %v2860, 1.1138928
      %v2945 = vmul.f32 %v2861, 1.1138928
      %v2946 = vmul.f32 %v2862, 1.1138928
      %v2947 = vmul.f32 %v2863, 1.1138928
      %v2948 = vmul.f32 %v2864, 1.1138928
      %v2949 = vmul.f32 %v2865, 1.1138928
      %v2950 = vmul.f32 %v2866, 1.1138928
      %v2951 = vmul.f32 %v2867, 1.1138928
      %v2952 = vmul.f32 %v2868, 1.1138928
      %v2953 = vmul.f32 %v2869, 1.1138928
      %v2954 = vmul.f32 %v2870, 1.1138928
      %v2955 = vmul.f32 %v2871, 1.1138928
      %v2956 = vmul.f32 %v2872, 1.1138928
      %v2957 = vmul.f32 %v2873, 1.1138928
      %v2958 = vmul.f32 %v2874, 1.1138928
      %v2959 = vmul.f32 %v2875, 1.1138928
      %v2960 = vmul.f32 %v2876, 1.1138928
      %v2961 = vadd.f32 %v2821, %v2933
      %v2962 = vadd.f32 %v2822, %v2934
      %v2963 = vadd.f32 %v2823, %v2935
      %v2964 = vadd.f32 %v2824, %v2936
      %v2965 = vadd.f32 %v2825, %v2937
      %v2966 = vadd.f32 %v2826, %v2938
      %v2967 = vadd.f32 %v2827, %v2939
      %v2968 = vadd.f32 %v2828, %v2940
      %v2969 = vadd.f32 %v2829, %v2941
      %v2970 = vadd.f32 %v2830, %v2942
      %v2971 = vadd.f32 %v2831, %v2943
      %v2972 = vadd.f32 %v2832, %v2944
      %v2973 = vadd.f32 %v2833, %v2945
      %v2974 = vadd.f32 %v2834, %v2946
      %v2975 = vadd.f32 %v2835, %v2947
      %v2976 = vadd.f32 %v2836, %v2948
      %v2977 = vadd.f32 %v2837, %v2949
      %v2978 = vadd.f32 %v2838, %v2950
      %v2979 = vadd.f32 %v2839, %v2951
      %v2980 = vadd.f32 %v2840, %v2952
      %v2981 = vadd.f32 %v2841, %v2953
      %v2982 = vadd.f32 %v2842, %v2954
      %v2983 = vadd.f32 %v2843, %v2955
      %v2984 = vadd.f32 %v2844, %v2956
      %v2985 = vadd.f32 %v2845, %v2957
      %v2986 = vadd.f32 %v2846, %v2958
      %v2987 = vadd.f32 %v2847, %v2959
      %v2988 = vadd.f32 %v2848, %v2960
      %v2989 = vld [vmem:[#allocation3 + $0x4] sm:$0xff]
      %v2990 = vld [vmem:[#allocation3 + $0xc] sm:$0xff]
      %v2991 = vld [vmem:[#allocation3 + $0x14] sm:$0xff]
      %v2992 = vld [vmem:[#allocation3 + $0x1c] sm:$0xff]
      %v2993 = vld [vmem:[#allocation3 + $0x24] sm:$0xff]
      %v2994 = vld [vmem:[#allocation3 + $0x2c] sm:$0xff]
      %v2995 = vld [vmem:[#allocation3 + $0x34] sm:$0xf]
      %v2996 = vld [vmem:[#allocation3 + $0x44] sm:$0xff]
      %v2997 = vld [vmem:[#allocation3 + $0x4c] sm:$0xff]
      %v2998 = vld [vmem:[#allocation3 + $0x54] sm:$0xff]
      %v2999 = vld [vmem:[#allocation3 + $0x5c] sm:$0xff]
      %v3000 = vld [vmem:[#allocation3 + $0x64] sm:$0xff]
      %v3001 = vld [vmem:[#allocation3 + $0x6c] sm:$0xff]
      %v3002 = vld [vmem:[#allocation3 + $0x74] sm:$0xf]
      %v3003 = vld [vmem:[#allocation3 + $0x84] sm:$0xff]
      %v3004 = vld [vmem:[#allocation3 + $0x8c] sm:$0xff]
      %v3005 = vld [vmem:[#allocation3 + $0x94] sm:$0xff]
      %v3006 = vld [vmem:[#allocation3 + $0x9c] sm:$0xff]
      %v3007 = vld [vmem:[#allocation3 + $0xa4] sm:$0xff]
      %v3008 = vld [vmem:[#allocation3 + $0xac] sm:$0xff]
      %v3009 = vld [vmem:[#allocation3 + $0xb4] sm:$0xf]
      %v3010 = vld [vmem:[#allocation3 + $0xc4] sm:$0xff]
      %v3011 = vld [vmem:[#allocation3 + $0xcc] sm:$0xff]
      %v3012 = vld [vmem:[#allocation3 + $0xd4] sm:$0xff]
      %v3013 = vld [vmem:[#allocation3 + $0xdc] sm:$0xff]
      %v3014 = vld [vmem:[#allocation3 + $0xe4] sm:$0xff]
      %v3015 = vld [vmem:[#allocation3 + $0xec] sm:$0xff]
      %v3016 = vld [vmem:[#allocation3 + $0xf4] sm:$0xf]
      %v3017 = vmul.f32 %v2989, 0.69445795
      %v3018 = vmul.f32 %v2990, 0.69445795
      %v3019 = vmul.f32 %v2991, 0.69445795
      %v3020 = vmul.f32 %v2992, 0.69445795
      %v3021 = vmul.f32 %v2993, 0.69445795
      %v3022 = vmul.f32 %v2994, 0.69445795
      %v3023 = vmul.f32 %v2995, 0.69445795
      %v3024 = vmul.f32 %v2996, 0.69445795
      %v3025 = vmul.f32 %v2997, 0.69445795
      %v3026 = vmul.f32 %v2998, 0.69445795
      %v3027 = vmul.f32 %v2999, 0.69445795
      %v3028 = vmul.f32 %v3000, 0.69445795
      %v3029 = vmul.f32 %v3001, 0.69445795
      %v3030 = vmul.f32 %v3002, 0.69445795
      %v3031 = vmul.f32 %v3003, 0.69445795
      %v3032 = vmul.f32 %v3004, 0.69445795
      %v3033 = vmul.f32 %v3005, 0.69445795
      %v3034 = vmul.f32 %v3006, 0.69445795
      %v3035 = vmul.f32 %v3007, 0.69445795
      %v3036 = vmul.f32 %v3008, 0.69445795
      %v3037 = vmul.f32 %v3009, 0.69445795
      %v3038 = vmul.f32 %v3010, 0.69445795
      %v3039 = vmul.f32 %v3011, 0.69445795
      %v3040 = vmul.f32 %v3012, 0.69445795
      %v3041 = vmul.f32 %v3013, 0.69445795
      %v3042 = vmul.f32 %v3014, 0.69445795
      %v3043 = vmul.f32 %v3015, 0.69445795
      %v3044 = vmul.f32 %v3016, 0.69445795
      %v3045 = vadd.f32 %v2905, %v3017
      %v3046 = vadd.f32 %v2906, %v3018
      %v3047 = vadd.f32 %v2907, %v3019
      %v3048 = vadd.f32 %v2908, %v3020
      %v3049 = vadd.f32 %v2909, %v3021
      %v3050 = vadd.f32 %v2910, %v3022
      %v3051 = vadd.f32 %v2911, %v3023
      %v3052 = vadd.f32 %v2912, %v3024
      %v3053 = vadd.f32 %v2913, %v3025
      %v3054 = vadd.f32 %v2914, %v3026
      %v3055 = vadd.f32 %v2915, %v3027
      %v3056 = vadd.f32 %v2916, %v3028
      %v3057 = vadd.f32 %v2917, %v3029
      %v3058 = vadd.f32 %v2918, %v3030
      %v3059 = vadd.f32 %v2919, %v3031
      %v3060 = vadd.f32 %v2920, %v3032
      %v3061 = vadd.f32 %v2921, %v3033
      %v3062 = vadd.f32 %v2922, %v3034
      %v3063 = vadd.f32 %v2923, %v3035
      %v3064 = vadd.f32 %v2924, %v3036
      %v3065 = vadd.f32 %v2925, %v3037
      %v3066 = vadd.f32 %v2926, %v3038
      %v3067 = vadd.f32 %v2927, %v3039
      %v3068 = vadd.f32 %v2928, %v3040
      %v3069 = vadd.f32 %v2929, %v3041
      %v3070 = vadd.f32 %v2930, %v3042
      %v3071 = vadd.f32 %v2931, %v3043
      %v3072 = vadd.f32 %v2932, %v3044
      %v3073 = vmul.f32 %v2989, -0.06832312
      %v3074 = vmul.f32 %v2990, -0.06832312
      %v3075 = vmul.f32 %v2991, -0.06832312
      %v3076 = vmul.f32 %v2992, -0.06832312
      %v3077 = vmul.f32 %v2993, -0.06832312
      %v3078 = vmul.f32 %v2994, -0.06832312
      %v3079 = vmul.f32 %v2995, -0.06832312
      %v3080 = vmul.f32 %v2996, -0.06832312
      %v3081 = vmul.f32 %v2997, -0.06832312
      %v3082 = vmul.f32 %v2998, -0.06832312
      %v3083 = vmul.f32 %v2999, -0.06832312
      %v3084 = vmul.f32 %v3000, -0.06832312
      %v3085 = vmul.f32 %v3001, -0.06832312
      %v3086 = vmul.f32 %v3002, -0.06832312
      %v3087 = vmul.f32 %v3003, -0.06832312
      %v3088 = vmul.f32 %v3004, -0.06832312
      %v3089 = vmul.f32 %v3005, -0.06832312
      %v3090 = vmul.f32 %v3006, -0.06832312
      %v3091 = vmul.f32 %v3007, -0.06832312
      %v3092 = vmul.f32 %v3008, -0.06832312
      %v3093 = vmul.f32 %v3009, -0.06832312
      %v3094 = vmul.f32 %v3010, -0.06832312
      %v3095 = vmul.f32 %v3011, -0.06832312
      %v3096 = vmul.f32 %v3012, -0.06832312
      %v3097 = vmul.f32 %v3013, -0.06832312
      %v3098 = vmul.f32 %v3014, -0.06832312
      %v3099 = vmul.f32 %v3015, -0.06832312
      %v3100 = vmul.f32 %v3016, -0.06832312
      %v3101 = vadd.f32 %v2961, %v3073
      %v3102 = vadd.f32 %v2962, %v3074
      %v3103 = vadd.f32 %v2963, %v3075
      %v3104 = vadd.f32 %v2964, %v3076
      %v3105 = vadd.f32 %v2965, %v3077
      %v3106 = vadd.f32 %v2966, %v3078
      %v3107 = vadd.f32 %v2967, %v3079
      %v3108 = vadd.f32 %v2968, %v3080
      %v3109 = vadd.f32 %v2969, %v3081
      %v3110 = vadd.f32 %v2970, %v3082
      %v3111 = vadd.f32 %v2971, %v3083
      %v3112 = vadd.f32 %v2972, %v3084
      %v3113 = vadd.f32 %v2973, %v3085
      %v3114 = vadd.f32 %v2974, %v3086
      %v3115 = vadd.f32 %v2975, %v3087
      %v3116 = vadd.f32 %v2976, %v3088
      %v3117 = vadd.f32 %v2977, %v3089
      %v3118 = vadd.f32 %v2978, %v3090
      %v3119 = vadd.f32 %v2979, %v3091
      %v3120 = vadd.f32 %v2980, %v3092
      %v3121 = vadd.f32 %v2981, %v3093
      %v3122 = vadd.f32 %v2982, %v3094
      %v3123 = vadd.f32 %v2983, %v3095
      %v3124 = vadd.f32 %v2984, %v3096
      %v3125 = vadd.f32 %v2985, %v3097
      %v3126 = vadd.f32 %v2986, %v3098
      %v3127 = vadd.f32 %v2987, %v3099
      %v3128 = vadd.f32 %v2988, %v3100
      %v3129 = vld [vmem:[#allocation3 + $0x5] sm:$0xff]
      %v3130 = vld [vmem:[#allocation3 + $0xd] sm:$0xff]
      %v3131 = vld [vmem:[#allocation3 + $0x15] sm:$0xff]
      %v3132 = vld [vmem:[#allocation3 + $0x1d] sm:$0xff]
      %v3133 = vld [vmem:[#allocation3 + $0x25] sm:$0xff]
      %v3134 = vld [vmem:[#allocation3 + $0x2d] sm:$0xff]
      %v3135 = vld [vmem:[#allocation3 + $0x35] sm:$0xf]
      %v3136 = vld [vmem:[#allocation3 + $0x45] sm:$0xff]
      %v3137 = vld [vmem:[#allocation3 + $0x4d] sm:$0xff]
      %v3138 = vld [vmem:[#allocation3 + $0x55] sm:$0xff]
      %v3139 = vld [vmem:[#allocation3 + $0x5d] sm:$0xff]
      %v3140 = vld [vmem:[#allocation3 + $0x65] sm:$0xff]
      %v3141 = vld [vmem:[#allocation3 + $0x6d] sm:$0xff]
      %v3142 = vld [vmem:[#allocation3 + $0x75] sm:$0xf]
      %v3143 = vld [vmem:[#allocation3 + $0x85] sm:$0xff]
      %v3144 = vld [vmem:[#allocation3 + $0x8d] sm:$0xff]
      %v3145 = vld [vmem:[#allocation3 + $0x95] sm:$0xff]
      %v3146 = vld [vmem:[#allocation3 + $0x9d] sm:$0xff]
      %v3147 = vld [vmem:[#allocation3 + $0xa5] sm:$0xff]
      %v3148 = vld [vmem:[#allocation3 + $0xad] sm:$0xff]
      %v3149 = vld [vmem:[#allocation3 + $0xb5] sm:$0xf]
      %v3150 = vld [vmem:[#allocation3 + $0xc5] sm:$0xff]
      %v3151 = vld [vmem:[#allocation3 + $0xcd] sm:$0xff]
      %v3152 = vld [vmem:[#allocation3 + $0xd5] sm:$0xff]
      %v3153 = vld [vmem:[#allocation3 + $0xdd] sm:$0xff]
      %v3154 = vld [vmem:[#allocation3 + $0xe5] sm:$0xff]
      %v3155 = vld [vmem:[#allocation3 + $0xed] sm:$0xff]
      %v3156 = vld [vmem:[#allocation3 + $0xf5] sm:$0xf]
      %v3157 = vmul.f32 %v3129, -0.16686322
      %v3158 = vmul.f32 %v3130, -0.16686322
      %v3159 = vmul.f32 %v3131, -0.16686322
      %v3160 = vmul.f32 %v3132, -0.16686322
      %v3161 = vmul.f32 %v3133, -0.16686322
      %v3162 = vmul.f32 %v3134, -0.16686322
      %v3163 = vmul.f32 %v3135, -0.16686322
      %v3164 = vmul.f32 %v3136, -0.16686322
      %v3165 = vmul.f32 %v3137, -0.16686322
      %v3166 = vmul.f32 %v3138, -0.16686322
      %v3167 = vmul.f32 %v3139, -0.16686322
      %v3168 = vmul.f32 %v3140, -0.16686322
      %v3169 = vmul.f32 %v3141, -0.16686322
      %v3170 = vmul.f32 %v3142, -0.16686322
      %v3171 = vmul.f32 %v3143, -0.16686322
      %v3172 = vmul.f32 %v3144, -0.16686322
      %v3173 = vmul.f32 %v3145, -0.16686322
      %v3174 = vmul.f32 %v3146, -0.16686322
      %v3175 = vmul.f32 %v3147, -0.16686322
      %v3176 = vmul.f32 %v3148, -0.16686322
      %v3177 = vmul.f32 %v3149, -0.16686322
      %v3178 = vmul.f32 %v3150, -0.16686322
      %v3179 = vmul.f32 %v3151, -0.16686322
      %v3180 = vmul.f32 %v3152, -0.16686322
      %v3181 = vmul.f32 %v3153, -0.16686322
      %v3182 = vmul.f32 %v3154, -0.16686322
      %v3183 = vmul.f32 %v3155, -0.16686322
      %v3184 = vmul.f32 %v3156, -0.16686322
      %v3185 = vadd.f32 %v3045, %v3157
      %v3186 = vadd.f32 %v3046, %v3158
      %v3187 = vadd.f32 %v3047, %v3159
      %v3188 = vadd.f32 %v3048, %v3160
      %v3189 = vadd.f32 %v3049, %v3161
      %v3190 = vadd.f32 %v3050, %v3162
      %v3191 = vadd.f32 %v3051, %v3163
      %v3192 = vadd.f32 %v3052, %v3164
      %v3193 = vadd.f32 %v3053, %v3165
      %v3194 = vadd.f32 %v3054, %v3166
      %v3195 = vadd.f32 %v3055, %v3167
      %v3196 = vadd.f32 %v3056, %v3168
      %v3197 = vadd.f32 %v3057, %v3169
      %v3198 = vadd.f32 %v3058, %v3170
      %v3199 = vadd.f32 %v3059, %v3171
      %v3200 = vadd.f32 %v3060, %v3172
      %v3201 = vadd.f32 %v3061, %v3173
      %v3202 = vadd.f32 %v3062, %v3174
      %v3203 = vadd.f32 %v3063, %v3175
      %v3204 = vadd.f32 %v3064, %v3176
      %v3205 = vadd.f32 %v3065, %v3177
      %v3206 = vadd.f32 %v3066, %v3178
      %v3207 = vadd.f32 %v3067, %v3179
      %v3208 = vadd.f32 %v3068, %v3180
      %v3209 = vadd.f32 %v3069, %v3181
      %v3210 = vadd.f32 %v3070, %v3182
      %v3211 = vadd.f32 %v3071, %v3183
      %v3212 = vadd.f32 %v3072, %v3184
      %v3213 = vmul.f32 %v3129, 0.004936612
      %v3214 = vmul.f32 %v3130, 0.004936612
      %v3215 = vmul.f32 %v3131, 0.004936612
      %v3216 = vmul.f32 %v3132, 0.004936612
      %v3217 = vmul.f32 %v3133, 0.004936612
      %v3218 = vmul.f32 %v3134, 0.004936612
      %v3219 = vmul.f32 %v3135, 0.004936612
      %v3220 = vmul.f32 %v3136, 0.004936612
      %v3221 = vmul.f32 %v3137, 0.004936612
      %v3222 = vmul.f32 %v3138, 0.004936612
      %v3223 = vmul.f32 %v3139, 0.004936612
      %v3224 = vmul.f32 %v3140, 0.004936612
      %v3225 = vmul.f32 %v3141, 0.004936612
      %v3226 = vmul.f32 %v3142, 0.004936612
      %v3227 = vmul.f32 %v3143, 0.004936612
      %v3228 = vmul.f32 %v3144, 0.004936612
      %v3229 = vmul.f32 %v3145, 0.004936612
      %v3230 = vmul.f32 %v3146, 0.004936612
      %v3231 = vmul.f32 %v3147, 0.004936612
      %v3232 = vmul.f32 %v3148, 0.004936612
      %v3233 = vmul.f32 %v3149, 0.004936612
      %v3234 = vmul.f32 %v3150, 0.004936612
      %v3235 = vmul.f32 %v3151, 0.004936612
      %v3236 = vmul.f32 %v3152, 0.004936612
      %v3237 = vmul.f32 %v3153, 0.004936612
      %v3238 = vmul.f32 %v3154, 0.004936612
      %v3239 = vmul.f32 %v3155, 0.004936612
      %v3240 = vmul.f32 %v3156, 0.004936612
      %v3241 = vadd.f32 %v3101, %v3213
      %v3242 = vadd.f32 %v3102, %v3214
      %v3243 = vadd.f32 %v3103, %v3215
      %v3244 = vadd.f32 %v3104, %v3216
      %v3245 = vadd.f32 %v3105, %v3217
      %v3246 = vadd.f32 %v3106, %v3218
      %v3247 = vadd.f32 %v3107, %v3219
      %v3248 = vadd.f32 %v3108, %v3220
      %v3249 = vadd.f32 %v3109, %v3221
      %v3250 = vadd.f32 %v3110, %v3222
      %v3251 = vadd.f32 %v3111, %v3223
      %v3252 = vadd.f32 %v3112, %v3224
      %v3253 = vadd.f32 %v3113, %v3225
      %v3254 = vadd.f32 %v3114, %v3226
      %v3255 = vadd.f32 %v3115, %v3227
      %v3256 = vadd.f32 %v3116, %v3228
      %v3257 = vadd.f32 %v3117, %v3229
      %v3258 = vadd.f32 %v3118, %v3230
      %v3259 = vadd.f32 %v3119, %v3231
      %v3260 = vadd.f32 %v3120, %v3232
      %v3261 = vadd.f32 %v3121, %v3233
      %v3262 = vadd.f32 %v3122, %v3234
      %v3263 = vadd.f32 %v3123, %v3235
      %v3264 = vadd.f32 %v3124, %v3236
      %v3265 = vadd.f32 %v3125, %v3237
      %v3266 = vadd.f32 %v3126, %v3238
      %v3267 = vadd.f32 %v3127, %v3239
      %v3268 = vadd.f32 %v3128, %v3240
      %v3269 = vld [vmem:[#allocation3 + $0x6] sm:$0xff]
      %v3270 = vld [vmem:[#allocation3 + $0xe] sm:$0xff]
      %v3271 = vld [vmem:[#allocation3 + $0x16] sm:$0xff]
      %v3272 = vld [vmem:[#allocation3 + $0x1e] sm:$0xff]
      %v3273 = vld [vmem:[#allocation3 + $0x26] sm:$0xff]
      %v3274 = vld [vmem:[#allocation3 + $0x2e] sm:$0xff]
      %v3275 = vld [vmem:[#allocation3 + $0x36] sm:$0xf]
      %v3276 = vld [vmem:[#allocation3 + $0x46] sm:$0xff]
      %v3277 = vld [vmem:[#allocation3 + $0x4e] sm:$0xff]
      %v3278 = vld [vmem:[#allocation3 + $0x56] sm:$0xff]
      %v3279 = vld [vmem:[#allocation3 + $0x5e] sm:$0xff]
      %v3280 = vld [vmem:[#allocation3 + $0x66] sm:$0xff]
      %v3281 = vld [vmem:[#allocation3 + $0x6e] sm:$0xff]
      %v3282 = vld [vmem:[#allocation3 + $0x76] sm:$0xf]
      %v3283 = vld [vmem:[#allocation3 + $0x86] sm:$0xff]
      %v3284 = vld [vmem:[#allocation3 + $0x8e] sm:$0xff]
      %v3285 = vld [vmem:[#allocation3 + $0x96] sm:$0xff]
      %v3286 = vld [vmem:[#allocation3 + $0x9e] sm:$0xff]
      %v3287 = vld [vmem:[#allocation3 + $0xa6] sm:$0xff]
      %v3288 = vld [vmem:[#allocation3 + $0xae] sm:$0xff]
      %v3289 = vld [vmem:[#allocation3 + $0xb6] sm:$0xf]
      %v3290 = vld [vmem:[#allocation3 + $0xc6] sm:$0xff]
      %v3291 = vld [vmem:[#allocation3 + $0xce] sm:$0xff]
      %v3292 = vld [vmem:[#allocation3 + $0xd6] sm:$0xff]
      %v3293 = vld [vmem:[#allocation3 + $0xde] sm:$0xff]
      %v3294 = vld [vmem:[#allocation3 + $0xe6] sm:$0xff]
      %v3295 = vld [vmem:[#allocation3 + $0xee] sm:$0xff]
      %v3296 = vld [vmem:[#allocation3 + $0xf6] sm:$0xf]
      %v3297 = vmul.f32 %v3269, 0.0217847
      %v3298 = vmul.f32 %v3270, 0.0217847
      %v3299 = vmul.f32 %v3271, 0.0217847
      %v3300 = vmul.f32 %v3272, 0.0217847
      %v3301 = vmul.f32 %v3273, 0.0217847
      %v3302 = vmul.f32 %v3274, 0.0217847
      %v3303 = vmul.f32 %v3275, 0.0217847
      %v3304 = vmul.f32 %v3276, 0.0217847
      %v3305 = vmul.f32 %v3277, 0.0217847
      %v3306 = vmul.f32 %v3278, 0.0217847
      %v3307 = vmul.f32 %v3279, 0.0217847
      %v3308 = vmul.f32 %v3280, 0.0217847
      %v3309 = vmul.f32 %v3281, 0.0217847
      %v3310 = vmul.f32 %v3282, 0.0217847
      %v3311 = vmul.f32 %v3283, 0.0217847
      %v3312 = vmul.f32 %v3284, 0.0217847
      %v3313 = vmul.f32 %v3285, 0.0217847
      %v3314 = vmul.f32 %v3286, 0.0217847
      %v3315 = vmul.f32 %v3287, 0.0217847
      %v3316 = vmul.f32 %v3288, 0.0217847
      %v3317 = vmul.f32 %v3289, 0.0217847
      %v3318 = vmul.f32 %v3290, 0.0217847
      %v3319 = vmul.f32 %v3291, 0.0217847
      %v3320 = vmul.f32 %v3292, 0.0217847
      %v3321 = vmul.f32 %v3293, 0.0217847
      %v3322 = vmul.f32 %v3294, 0.0217847
      %v3323 = vmul.f32 %v3295, 0.0217847
      %v3324 = vmul.f32 %v3296, 0.0217847
      %v3325 = vadd.f32 %v3185, %v3297
      %v3326 = vadd.f32 %v3186, %v3298
      %v3327 = vadd.f32 %v3187, %v3299
      %v3328 = vadd.f32 %v3188, %v3300
      %v3329 = vadd.f32 %v3189, %v3301
      %v3330 = vadd.f32 %v3190, %v3302
      %v3331 = vadd.f32 %v3191, %v3303
      %v3332 = vadd.f32 %v3192, %v3304
      %v3333 = vadd.f32 %v3193, %v3305
      %v3334 = vadd.f32 %v3194, %v3306
      %v3335 = vadd.f32 %v3195, %v3307
      %v3336 = vadd.f32 %v3196, %v3308
      %v3337 = vadd.f32 %v3197, %v3309
      %v3338 = vadd.f32 %v3198, %v3310
      %v3339 = vadd.f32 %v3199, %v3311
      %v3340 = vadd.f32 %v3200, %v3312
      %v3341 = vadd.f32 %v3201, %v3313
      %v3342 = vadd.f32 %v3202, %v3314
      %v3343 = vadd.f32 %v3203, %v3315
      %v3344 = vadd.f32 %v3204, %v3316
      %v3345 = vadd.f32 %v3205, %v3317
      %v3346 = vadd.f32 %v3206, %v3318
      %v3347 = vadd.f32 %v3207, %v3319
      %v3348 = vadd.f32 %v3208, %v3320
      %v3349 = vadd.f32 %v3209, %v3321
      %v3350 = vadd.f32 %v3210, %v3322
      %v3351 = vadd.f32 %v3211, %v3323
      %v3352 = vadd.f32 %v3212, %v3324
      %vm3353 = vcmask 850944
      %3354 = vst.msk [vmem:[%s123] sm:$0xff] %vm3353, %v3241
      %3355 = vst.msk [vmem:[%s123 + $0x8] sm:$0xff] %vm3353, %v3242
      %3356 = vst.msk [vmem:[%s123 + $0x10] sm:$0xff] %vm3353, %v3243
      %3357 = vst.msk [vmem:[%s123 + $0x18] sm:$0xff] %vm3353, %v3244
      %3358 = vst.msk [vmem:[%s123 + $0x20] sm:$0xff] %vm3353, %v3245
      %3359 = vst.msk [vmem:[%s123 + $0x28] sm:$0xff] %vm3353, %v3246
      %vm3360 = vcmask 846848
      %3361 = vst.msk [vmem:[%s123 + $0x30] sm:$0xf] %vm3360, %v3247
      %3362 = vst.msk [vmem:[%s123 + $0x68] sm:$0xff] %vm3353, %v3248
      %3363 = vst.msk [vmem:[%s123 + $0x70] sm:$0xff] %vm3353, %v3249
      %3364 = vst.msk [vmem:[%s123 + $0x78] sm:$0xff] %vm3353, %v3250
      %3365 = vst.msk [vmem:[%s123 + $0x80] sm:$0xff] %vm3353, %v3251
      %3366 = vst.msk [vmem:[%s123 + $0x88] sm:$0xff] %vm3353, %v3252
      %3367 = vst.msk [vmem:[%s123 + $0x90] sm:$0xff] %vm3353, %v3253
      %3368 = vst.msk [vmem:[%s123 + $0x98] sm:$0xf] %vm3360, %v3254
      %3369 = vst.msk [vmem:[%s123 + $0xd0] sm:$0xff] %vm3353, %v3255
      %3370 = vst.msk [vmem:[%s123 + $0xd8] sm:$0xff] %vm3353, %v3256
      %3371 = vst.msk [vmem:[%s123 + $0xe0] sm:$0xff] %vm3353, %v3257
      %3372 = vst.msk [vmem:[%s123 + $0xe8] sm:$0xff] %vm3353, %v3258
      %3373 = vst.msk [vmem:[%s123 + $0xf0] sm:$0xff] %vm3353, %v3259
      %3374 = vst.msk [vmem:[%s123 + $0xf8] sm:$0xff] %vm3353, %v3260
      %3375 = vst.msk [vmem:[%s123 + $0x100] sm:$0xf] %vm3360, %v3261
      %3376 = vst.msk [vmem:[%s123 + $0x138] sm:$0xff] %vm3353, %v3262
      %3377 = vst.msk [vmem:[%s123 + $0x140] sm:$0xff] %vm3353, %v3263
      %3378 = vst.msk [vmem:[%s123 + $0x148] sm:$0xff] %vm3353, %v3264
      %3379 = vst.msk [vmem:[%s123 + $0x150] sm:$0xff] %vm3353, %v3265
      %3380 = vst.msk [vmem:[%s123 + $0x158] sm:$0xff] %vm3353, %v3266
      %3381 = vst.msk [vmem:[%s123 + $0x160] sm:$0xff] %vm3353, %v3267
      %3382 = vst.msk [vmem:[%s123 + $0x168] sm:$0xf] %vm3360, %v3268
      %3383 = vst.msk [vmem:[%s123 + $0x34] sm:$0xff] %vm3353, %v3325
      %3384 = vst.msk [vmem:[%s123 + $0x3c] sm:$0xff] %vm3353, %v3326
      %3385 = vst.msk [vmem:[%s123 + $0x44] sm:$0xff] %vm3353, %v3327
      %3386 = vst.msk [vmem:[%s123 + $0x4c] sm:$0xff] %vm3353, %v3328
      %3387 = vst.msk [vmem:[%s123 + $0x54] sm:$0xff] %vm3353, %v3329
      %3388 = vst.msk [vmem:[%s123 + $0x5c] sm:$0xff] %vm3353, %v3330
      %3389 = vst.msk [vmem:[%s123 + $0x64] sm:$0xf] %vm3360, %v3331
      %3390 = vst.msk [vmem:[%s123 + $0x9c] sm:$0xff] %vm3353, %v3332
      %3391 = vst.msk [vmem:[%s123 + $0xa4] sm:$0xff] %vm3353, %v3333
      %3392 = vst.msk [vmem:[%s123 + $0xac] sm:$0xff] %vm3353, %v3334
      %3393 = vst.msk [vmem:[%s123 + $0xb4] sm:$0xff] %vm3353, %v3335
      %3394 = vst.msk [vmem:[%s123 + $0xbc] sm:$0xff] %vm3353, %v3336
      %3395 = vst.msk [vmem:[%s123 + $0xc4] sm:$0xff] %vm3353, %v3337
      %3396 = vst.msk [vmem:[%s123 + $0xcc] sm:$0xf] %vm3360, %v3338
      %3397 = vst.msk [vmem:[%s123 + $0x104] sm:$0xff] %vm3353, %v3339
      %3398 = vst.msk [vmem:[%s123 + $0x10c] sm:$0xff] %vm3353, %v3340
      %3399 = vst.msk [vmem:[%s123 + $0x114] sm:$0xff] %vm3353, %v3341
      %3400 = vst.msk [vmem:[%s123 + $0x11c] sm:$0xff] %vm3353, %v3342
      %3401 = vst.msk [vmem:[%s123 + $0x124] sm:$0xff] %vm3353, %v3343
      %3402 = vst.msk [vmem:[%s123 + $0x12c] sm:$0xff] %vm3353, %v3344
      %3403 = vst.msk [vmem:[%s123 + $0x134] sm:$0xf] %vm3360, %v3345
      %3404 = vst.msk [vmem:[%s123 + $0x16c] sm:$0xff] %vm3353, %v3346
      %3405 = vst.msk [vmem:[%s123 + $0x174] sm:$0xff] %vm3353, %v3347
      %3406 = vst.msk [vmem:[%s123 + $0x17c] sm:$0xff] %vm3353, %v3348
      %3407 = vst.msk [vmem:[%s123 + $0x184] sm:$0xff] %vm3353, %v3349
      %3408 = vst.msk [vmem:[%s123 + $0x18c] sm:$0xff] %vm3353, %v3350
      %3409 = vst.msk [vmem:[%s123 + $0x194] sm:$0xff] %vm3353, %v3351
      %3410 = vst.msk [vmem:[%s123 + $0x19c] sm:$0xf] %vm3360, %v3352
      %s3411 = smul.u32 4, %s12
      %p3412 = scmp.lt.s32.totalorder %s3411, 7
      %s3413 = scalar_select %p3412, %s3411, 7
      %s3414 = smul.addr %s3413, 13
      %s3415 = smul.addr %s3414, 8
      %s3416 = scalar_lea.vmem %s1, %s3415
      // Predicated region
      $region25: #{augment_pipe_forward.6} parent=23 // pred_check
        %p3417 = pneg %p56
      $region26: #{augment_pipe_forward.6} parent=23 // pred_check_branch
        %3419 = sbr.rel (%p3417) target = $region28
      $region27: #{augment_pipe_forward.6} parent=23 // pred_region
        %s3420 = smul.u32 4, %s12
      $region28: #{augment_pipe_forward.6} parent=23 // pred_fallthru
        _
    $region24: #{augment_pipe_forward.6} parent=5 // pred_fallthru
      _
    %p3421 = scmp.le.s32.totalorder 2, %s7
    // Predicated region
    $region29: #{augment_pipe_forward.6} parent=5 // pred_check
      %p3422 = pneg %p3421
    $region30: #{augment_pipe_forward.6} parent=5 // pred_check_branch
      %3424 = sbr.rel (%p3422) target = $region32
    $region31: #{augment_pipe_forward.6} parent=5 // pred_region
      %s3425 = ssub.s32 %s7, 2
      // Predicated region
      $region33: #{augment_pipe_forward.6} parent=31 // pred_check
        %p3426 = pneg %p62
      $region34: #{augment_pipe_forward.6} parent=31 // pred_check_branch
        %3428 = sbr.rel (%p3426) target = $region36
      $region35: #{augment_pipe_forward.6} parent=31 // pred_region
        %s3429 = smul.u32 4, %s13
        %p3430 = scmp.lt.s32.totalorder %s3429, 7
        %s3431 = scalar_select %p3430, %s3429, 7
        %s3432 = smul.addr %s3431, 13
        %s3433 = smul.addr %s3432, 8
        %s3434 = scalar_lea.vmem %s1, %s3433
      $region36: #{augment_pipe_forward.6} parent=31 // pred_fallthru
        _
    $region32: #{augment_pipe_forward.6} parent=5 // pred_fallthru
      _
  $region6: #{augment_pipe_forward.6} parent=0 // loop_footer
    %s11 = sadd.s32 1, %s7
  $region7: #{augment_pipe_forward.6} parent=0 // loop_footer_branch
    %6 = sbr.rel target = $region3
  $region8: #{augment_pipe_forward.6} parent=0 // loop_exit
    _

// kernel: augment_pipe_forward.7
$region0: #{augment_pipe_forward.7}
  #allocation0 [shape = 'u32[]', space=smem, size = 0x4, offset = 0x4, fixed_abs, tag = 'smem constant byte address 0x4 - core index']
  #allocation1 [shape = 'u32[144,128]{1,0:T(1,128)}', space=vmem, size = 0x12000, scoped, tag = 'internal scratch']
  #allocation2 [shape = 'f32[4,74,32]{2,1,0:T(8,128)}', space=vmem, size = 0x28000, scoped, tag = 'scratch operand']
  %s0 = inlined_call_operand.vmem [shape: f32[8,74,74], index: 0, kind: input, shape index: {}]
  %s1 = inlined_call_operand.vmem [shape: f32[8,32,32], index: 1, kind: output, shape index: {}]
  %s2 = sld [smem:[#allocation0]]
  $region37: #{augment_pipe_forward.7} parent=0
    _
  %s4 = ssub.s32 1, %s2
  %s5 = scalar_select 0, %s4, %s2
  loop: start=0, step=1, limit=4
  $region2: #{augment_pipe_forward.7} parent=0 // loop_pre_header
    _
  $region3: #{augment_pipe_forward.7} parent=0 // loop_header
    %s7 = sphi 0, %s11
    %p8 = scmp.ge.s32.totalorder %s7, 4
    %s17 = sphi 0, %s19
    %s20 = sphi 0, %s17
    %s21 = sphi 0, %s20
    %s37 = sphi 0, %s21
    %s43 = sphi 0, %s45
    %s46 = sphi 0, %s43
    %s47 = sphi 0, %s46
    %s63 = sphi 0, %s47
  $region4: #{augment_pipe_forward.7} parent=0 // loop_header_branch
    %10 = sbr.rel (%p8) target = $region8
  $region5: #{augment_pipe_forward.7} parent=0 // loop_body
    %s12 = ssub.s32 %s7, 1
    %s13 = ssub.s32 %s7, 2
    %s14 = sadd.s32 %s7, 1
    %s15 = ssub.s32 %s7, %s14
    %p16 = scmp.eq.s32.totalorder %s15, 0
    %s18 = sadd.s32 %s17, 1
    %s19 = scalar_select %p16, %s17, %s18
    %p22 = pneg %p16
    %p23 = scmp.eq.s32.totalorder %s7, 1
    %p24 = por %p22, %p23
    %p25 = scmp.ne.s32.totalorder %s17, %s20
    %p26 = scmp.eq.s32.totalorder %s7, 0
    %p27 = por %p25, %p26
    %p28 = scmp.ne.s32.totalorder %s17, %s20
    %p29 = scmp.eq.s32.totalorder %s12, 1
    %p30 = por %p28, %p29
    %p31 = scmp.ne.s32.totalorder %s20, %s21
    %p32 = scmp.eq.s32.totalorder %s12, 0
    %p33 = por %p31, %p32
    %p34 = scmp.ne.s32.totalorder %s20, %s21
    %p35 = scmp.eq.s32.totalorder %s13, 1
    %p36 = por %p34, %p35
    %p38 = scmp.ne.s32.totalorder %s21, %s37
    %p39 = scmp.eq.s32.totalorder %s13, 0
    %p40 = por %p38, %p39
    %s41 = ssub.s32 %s7, %s14
    %p42 = scmp.eq.s32.totalorder %s41, 0
    %s44 = sadd.s32 %s43, 1
    %s45 = scalar_select %p42, %s43, %s44
    %p48 = pneg %p42
    %p49 = scmp.eq.s32.totalorder %s7, 1
    %p50 = por %p48, %p49
    %p51 = scmp.ne.s32.totalorder %s43, %s46
    %p52 = scmp.eq.s32.totalorder %s7, 0
    %p53 = por %p51, %p52
    %p54 = scmp.ne.s32.totalorder %s43, %s46
    %p55 = scmp.eq.s32.totalorder %s12, 1
    %p56 = por %p54, %p55
    %p57 = scmp.ne.s32.totalorder %s46, %s47
    %p58 = scmp.eq.s32.totalorder %s12, 0
    %p59 = por %p57, %p58
    %p60 = scmp.ne.s32.totalorder %s46, %s47
    %p61 = scmp.eq.s32.totalorder %s13, 1
    %p62 = por %p60, %p61
    %p64 = scmp.ne.s32.totalorder %s47, %s63
    %p65 = scmp.eq.s32.totalorder %s13, 0
    %p66 = por %p64, %p65
    %p67 = scmp.le.s32.totalorder 1, %s7
    %p68 = scmp.lt.s32.totalorder %s7, 3
    %p69 = pnand %p67, %p68
    %p70 = pneg %p69
    // Predicated region
    $region9: #{augment_pipe_forward.7} parent=5 // pred_check
      _
    $region10: #{augment_pipe_forward.7} parent=5 // pred_check_branch
      %72 = sbr.rel (%p69) target = $region12
    $region11: #{augment_pipe_forward.7} parent=5 // pred_region
      %s73 = ssub.s32 %s7, 1
    $region12: #{augment_pipe_forward.7} parent=5 // pred_fallthru
      _
    %p74 = scmp.lt.s32.totalorder %s7, 2
    // Predicated region
    $region13: #{augment_pipe_forward.7} parent=5 // pred_check
      %p75 = pneg %p74
    $region14: #{augment_pipe_forward.7} parent=5 // pred_check_branch
      %77 = sbr.rel (%p75) target = $region16
    $region15: #{augment_pipe_forward.7} parent=5 // pred_region
      // Predicated region
      $region17: #{augment_pipe_forward.7} parent=15 // pred_check
        %p78 = pneg %p27
      $region18: #{augment_pipe_forward.7} parent=15 // pred_check_branch
        %80 = sbr.rel (%p78) target = $region20
      $region19: #{augment_pipe_forward.7} parent=15 // pred_region
        %s81 = smul.u32 4, %s7
        %p82 = scmp.lt.s32.totalorder %s81, 7
        %s83 = scalar_select %p82, %s81, 7
        %s84 = smul.addr %s83, 10
        %s85 = smul.addr %s84, 8
        %s86 = scalar_lea.vmem %s0, %s85
        %s87 = smul.u32 4, %s7
      $region20: #{augment_pipe_forward.7} parent=15 // pred_fallthru
        _
    $region16: #{augment_pipe_forward.7} parent=5 // pred_fallthru
      _
    %p88 = scmp.le.s32.totalorder 1, %s7
    %p89 = scmp.lt.s32.totalorder %s7, 3
    %p90 = pnand %p88, %p89
    %p91 = pneg %p90
    // Predicated region
    $region21: #{augment_pipe_forward.7} parent=5 // pred_check
      _
    $region22: #{augment_pipe_forward.7} parent=5 // pred_check_branch
      %93 = sbr.rel (%p90) target = $region24
    $region23: #{augment_pipe_forward.7} parent=5 // pred_region
      %s94 = ssub.s32 %s7, 1
      %s95 = smul.u32 4, %s12
      %p96 = scmp.lt.s32.totalorder %s95, 7
      %s97 = scalar_select %p96, %s95, 7
      %s98 = smul.addr %s97, 10
      %s99 = smul.addr %s98, 8
      %s100 = scalar_lea.vmem %s0, %s99
      %p101 = pneg %p33
      %p102 = pneg %p30
      %p103 = pneg %p59
      %p104 = pneg %p56
      %s105 = smul.u32 4, %s12
      %p106 = scmp.lt.s32.totalorder %s105, 7
      %s107 = scalar_select %p106, %s105, 7
      %s108 = smul.addr %s107, 4
      %s109 = smul.addr %s108, 8
      %s110 = scalar_lea.vmem %s1, %s109
      %s111 = smul.u32 4, %s12
      %p112 = scmp.lt.s32.totalorder %s111, 7
      %s113 = scalar_select %p112, %s111, 7
      %s114 = smul.addr %s113, 10
      %s115 = smul.addr %s114, 8
      %s116 = scalar_lea.vmem %s0, %s115
      %s117 = smul.u32 4, %s12
      %s118 = smul.u32 4, %s12
      %p119 = scmp.lt.s32.totalorder %s118, 7
      %s120 = scalar_select %p119, %s118, 7
      %s121 = smul.addr %s120, 4
      %s122 = smul.addr %s121, 8
      %s123 = scalar_lea.vmem %s1, %s122
      %s124 = smul.u32 4, %s12
      %v125 = vld [vmem:[%s116] sm:$0xff]
      %v126 = vld [vmem:[%s116 + $0x8] sm:$0xff]
      %v127 = vld [vmem:[%s116 + $0x10] sm:$0xff]
      %v128 = vld [vmem:[%s116 + $0x18] sm:$0xff]
      %v129 = vld [vmem:[%s116 + $0x20] sm:$0xff]
      %v130 = vld [vmem:[%s116 + $0x28] sm:$0xff]
      %v131 = vld [vmem:[%s116 + $0x30] sm:$0xff]
      %v132 = vld [vmem:[%s116 + $0x38] sm:$0xff]
      %v133 = vld [vmem:[%s116 + $0x40] sm:$0xff]
      %v134 = vld [vmem:[%s116 + $0x48] sm:$0x3]
      %v135 = vld [vmem:[%s116 + $0x50] sm:$0xff]
      %v136 = vld [vmem:[%s116 + $0x58] sm:$0xff]
      %v137 = vld [vmem:[%s116 + $0x60] sm:$0xff]
      %v138 = vld [vmem:[%s116 + $0x68] sm:$0xff]
      %v139 = vld [vmem:[%s116 + $0x70] sm:$0xff]
      %v140 = vld [vmem:[%s116 + $0x78] sm:$0xff]
      %v141 = vld [vmem:[%s116 + $0x80] sm:$0xff]
      %v142 = vld [vmem:[%s116 + $0x88] sm:$0xff]
      %v143 = vld [vmem:[%s116 + $0x90] sm:$0xff]
      %v144 = vld [vmem:[%s116 + $0x98] sm:$0x3]
      %v145 = vld [vmem:[%s116 + $0xa0] sm:$0xff]
      %v146 = vld [vmem:[%s116 + $0xa8] sm:$0xff]
      %v147 = vld [vmem:[%s116 + $0xb0] sm:$0xff]
      %v148 = vld [vmem:[%s116 + $0xb8] sm:$0xff]
      %v149 = vld [vmem:[%s116 + $0xc0] sm:$0xff]
      %v150 = vld [vmem:[%s116 + $0xc8] sm:$0xff]
      %v151 = vld [vmem:[%s116 + $0xd0] sm:$0xff]
      %v152 = vld [vmem:[%s116 + $0xd8] sm:$0xff]
      %v153 = vld [vmem:[%s116 + $0xe0] sm:$0xff]
      %v154 = vld [vmem:[%s116 + $0xe8] sm:$0x3]
      %v155 = vld [vmem:[%s116 + $0xf0] sm:$0xff]
      %v156 = vld [vmem:[%s116 + $0xf8] sm:$0xff]
      %v157 = vld [vmem:[%s116 + $0x100] sm:$0xff]
      %v158 = vld [vmem:[%s116 + $0x108] sm:$0xff]
      %v159 = vld [vmem:[%s116 + $0x110] sm:$0xff]
      %v160 = vld [vmem:[%s116 + $0x118] sm:$0xff]
      %v161 = vld [vmem:[%s116 + $0x120] sm:$0xff]
      %v162 = vld [vmem:[%s116 + $0x128] sm:$0xff]
      %v163 = vld [vmem:[%s116 + $0x130] sm:$0xff]
      %v164 = vld [vmem:[%s116 + $0x138] sm:$0x3]
      %v165 = vmul.f32 %v125, 0.01089235
      %v166 = vmul.f32 %v126, 0.01089235
      %v167 = vmul.f32 %v127, 0.01089235
      %v168 = vmul.f32 %v128, 0.01089235
      %v169 = vmul.f32 %v129, 0.01089235
      %v170 = vmul.f32 %v130, 0.01089235
      %v171 = vmul.f32 %v131, 0.01089235
      %v172 = vmul.f32 %v132, 0.01089235
      %v173 = vmul.f32 %v133, 0.01089235
      %v174 = vmul.f32 %v134, 0.01089235
      %v175 = vmul.f32 %v135, 0.01089235
      %v176 = vmul.f32 %v136, 0.01089235
      %v177 = vmul.f32 %v137, 0.01089235
      %v178 = vmul.f32 %v138, 0.01089235
      %v179 = vmul.f32 %v139, 0.01089235
      %v180 = vmul.f32 %v140, 0.01089235
      %v181 = vmul.f32 %v141, 0.01089235
      %v182 = vmul.f32 %v142, 0.01089235
      %v183 = vmul.f32 %v143, 0.01089235
      %v184 = vmul.f32 %v144, 0.01089235
      %v185 = vmul.f32 %v145, 0.01089235
      %v186 = vmul.f32 %v146, 0.01089235
      %v187 = vmul.f32 %v147, 0.01089235
      %v188 = vmul.f32 %v148, 0.01089235
      %v189 = vmul.f32 %v149, 0.01089235
      %v190 = vmul.f32 %v150, 0.01089235
      %v191 = vmul.f32 %v151, 0.01089235
      %v192 = vmul.f32 %v152, 0.01089235
      %v193 = vmul.f32 %v153, 0.01089235
      %v194 = vmul.f32 %v154, 0.01089235
      %v195 = vmul.f32 %v155, 0.01089235
      %v196 = vmul.f32 %v156, 0.01089235
      %v197 = vmul.f32 %v157, 0.01089235
      %v198 = vmul.f32 %v158, 0.01089235
      %v199 = vmul.f32 %v159, 0.01089235
      %v200 = vmul.f32 %v160, 0.01089235
      %v201 = vmul.f32 %v161, 0.01089235
      %v202 = vmul.f32 %v162, 0.01089235
      %v203 = vmul.f32 %v163, 0.01089235
      %v204 = vmul.f32 %v164, 0.01089235
      %v205 = vmul.f32 %v125, 0.002468306
      %v206 = vmul.f32 %v126, 0.002468306
      %v207 = vmul.f32 %v127, 0.002468306
      %v208 = vmul.f32 %v128, 0.002468306
      %v209 = vmul.f32 %v129, 0.002468306
      %v210 = vmul.f32 %v130, 0.002468306
      %v211 = vmul.f32 %v131, 0.002468306
      %v212 = vmul.f32 %v132, 0.002468306
      %v213 = vmul.f32 %v133, 0.002468306
      %v214 = vmul.f32 %v134, 0.002468306
      %v215 = vmul.f32 %v135, 0.002468306
      %v216 = vmul.f32 %v136, 0.002468306
      %v217 = vmul.f32 %v137, 0.002468306
      %v218 = vmul.f32 %v138, 0.002468306
      %v219 = vmul.f32 %v139, 0.002468306
      %v220 = vmul.f32 %v140, 0.002468306
      %v221 = vmul.f32 %v141, 0.002468306
      %v222 = vmul.f32 %v142, 0.002468306
      %v223 = vmul.f32 %v143, 0.002468306
      %v224 = vmul.f32 %v144, 0.002468306
      %v225 = vmul.f32 %v145, 0.002468306
      %v226 = vmul.f32 %v146, 0.002468306
      %v227 = vmul.f32 %v147, 0.002468306
      %v228 = vmul.f32 %v148, 0.002468306
      %v229 = vmul.f32 %v149, 0.002468306
      %v230 = vmul.f32 %v150, 0.002468306
      %v231 = vmul.f32 %v151, 0.002468306
      %v232 = vmul.f32 %v152, 0.002468306
      %v233 = vmul.f32 %v153, 0.002468306
      %v234 = vmul.f32 %v154, 0.002468306
      %v235 = vmul.f32 %v155, 0.002468306
      %v236 = vmul.f32 %v156, 0.002468306
      %v237 = vmul.f32 %v157, 0.002468306
      %v238 = vmul.f32 %v158, 0.002468306
      %v239 = vmul.f32 %v159, 0.002468306
      %v240 = vmul.f32 %v160, 0.002468306
      %v241 = vmul.f32 %v161, 0.002468306
      %v242 = vmul.f32 %v162, 0.002468306
      %v243 = vmul.f32 %v163, 0.002468306
      %v244 = vmul.f32 %v164, 0.002468306
      %285 = vrot.lane.b32.xlu0 %v205, 91
      %v286 = vpop.permute.xlu0 %285
      %287 = vrot.lane.b32.xlu0 %v206, 91
      %v288 = vpop.permute.xlu0 %287
      %289 = vrot.lane.b32.xlu0 %v207, 91
      %v290 = vpop.permute.xlu0 %289
      %291 = vrot.lane.b32.xlu0 %v208, 91
      %v292 = vpop.permute.xlu0 %291
      %293 = vrot.lane.b32.xlu0 %v209, 91
      %v294 = vpop.permute.xlu0 %293
      %295 = vrot.lane.b32.xlu0 %v210, 91
      %v296 = vpop.permute.xlu0 %295
      %297 = vrot.lane.b32.xlu0 %v211, 91
      %v298 = vpop.permute.xlu0 %297
      %299 = vrot.lane.b32.xlu0 %v212, 91
      %v300 = vpop.permute.xlu0 %299
      %301 = vrot.lane.b32.xlu0 %v213, 91
      %v302 = vpop.permute.xlu0 %301
      %303 = vrot.lane.b32.xlu0 %v214, 91
      %v304 = vpop.permute.xlu0 %303
      %305 = vrot.lane.b32.xlu0 %v215, 91
      %v306 = vpop.permute.xlu0 %305
      %307 = vrot.lane.b32.xlu0 %v216, 91
      %v308 = vpop.permute.xlu0 %307
      %309 = vrot.lane.b32.xlu0 %v217, 91
      %v310 = vpop.permute.xlu0 %309
      %311 = vrot.lane.b32.xlu0 %v218, 91
      %v312 = vpop.permute.xlu0 %311
      %313 = vrot.lane.b32.xlu0 %v219, 91
      %v314 = vpop.permute.xlu0 %313
      %315 = vrot.lane.b32.xlu0 %v220, 91
      %v316 = vpop.permute.xlu0 %315
      %317 = vrot.lane.b32.xlu0 %v221, 91
      %v318 = vpop.permute.xlu0 %317
      %319 = vrot.lane.b32.xlu0 %v222, 91
      %v320 = vpop.permute.xlu0 %319
      %321 = vrot.lane.b32.xlu0 %v223, 91
      %v322 = vpop.permute.xlu0 %321
      %323 = vrot.lane.b32.xlu0 %v224, 91
      %v324 = vpop.permute.xlu0 %323
      %325 = vrot.lane.b32.xlu0 %v225, 91
      %v326 = vpop.permute.xlu0 %325
      %327 = vrot.lane.b32.xlu0 %v226, 91
      %v328 = vpop.permute.xlu0 %327
      %329 = vrot.lane.b32.xlu0 %v227, 91
      %v330 = vpop.permute.xlu0 %329
      %331 = vrot.lane.b32.xlu0 %v228, 91
      %v332 = vpop.permute.xlu0 %331
      %333 = vrot.lane.b32.xlu0 %v229, 91
      %v334 = vpop.permute.xlu0 %333
      %335 = vrot.lane.b32.xlu0 %v230, 91
      %v336 = vpop.permute.xlu0 %335
      %337 = vrot.lane.b32.xlu0 %v231, 91
      %v338 = vpop.permute.xlu0 %337
      %339 = vrot.lane.b32.xlu0 %v232, 91
      %v340 = vpop.permute.xlu0 %339
      %341 = vrot.lane.b32.xlu0 %v233, 91
      %v342 = vpop.permute.xlu0 %341
      %343 = vrot.lane.b32.xlu0 %v234, 91
      %v344 = vpop.permute.xlu0 %343
      %345 = vrot.lane.b32.xlu0 %v235, 91
      %v346 = vpop.permute.xlu0 %345
      %347 = vrot.lane.b32.xlu0 %v236, 91
      %v348 = vpop.permute.xlu0 %347
      %349 = vrot.lane.b32.xlu0 %v237, 91
      %v350 = vpop.permute.xlu0 %349
      %351 = vrot.lane.b32.xlu0 %v238, 91
      %v352 = vpop.permute.xlu0 %351
      %353 = vrot.lane.b32.xlu0 %v239, 91
      %v354 = vpop.permute.xlu0 %353
      %355 = vrot.lane.b32.xlu0 %v240, 91
      %v356 = vpop.permute.xlu0 %355
      %357 = vrot.lane.b32.xlu0 %v241, 91
      %v358 = vpop.permute.xlu0 %357
      %359 = vrot.lane.b32.xlu0 %v242, 91
      %v360 = vpop.permute.xlu0 %359
      %361 = vrot.lane.b32.xlu0 %v243, 91
      %v362 = vpop.permute.xlu0 %361
      %363 = vrot.lane.b32.xlu0 %v244, 91
      %v364 = vpop.permute.xlu0 %363
      %v405 = vadd.f32 %v165, %v286
      %v406 = vadd.f32 %v166, %v288
      %v407 = vadd.f32 %v167, %v290
      %v408 = vadd.f32 %v168, %v292
      %v409 = vadd.f32 %v169, %v294
      %v410 = vadd.f32 %v170, %v296
      %v411 = vadd.f32 %v171, %v298
      %v412 = vadd.f32 %v172, %v300
      %v413 = vadd.f32 %v173, %v302
      %v414 = vadd.f32 %v174, %v304
      %v415 = vadd.f32 %v175, %v306
      %v416 = vadd.f32 %v176, %v308
      %v417 = vadd.f32 %v177, %v310
      %v418 = vadd.f32 %v178, %v312
      %v419 = vadd.f32 %v179, %v314
      %v420 = vadd.f32 %v180, %v316
      %v421 = vadd.f32 %v181, %v318
      %v422 = vadd.f32 %v182, %v320
      %v423 = vadd.f32 %v183, %v322
      %v424 = vadd.f32 %v184, %v324
      %v425 = vadd.f32 %v185, %v326
      %v426 = vadd.f32 %v186, %v328
      %v427 = vadd.f32 %v187, %v330
      %v428 = vadd.f32 %v188, %v332
      %v429 = vadd.f32 %v189, %v334
      %v430 = vadd.f32 %v190, %v336
      %v431 = vadd.f32 %v191, %v338
      %v432 = vadd.f32 %v192, %v340
      %v433 = vadd.f32 %v193, %v342
      %v434 = vadd.f32 %v194, %v344
      %v435 = vadd.f32 %v195, %v346
      %v436 = vadd.f32 %v196, %v348
      %v437 = vadd.f32 %v197, %v350
      %v438 = vadd.f32 %v198, %v352
      %v439 = vadd.f32 %v199, %v354
      %v440 = vadd.f32 %v200, %v356
      %v441 = vadd.f32 %v201, %v358
      %v442 = vadd.f32 %v202, %v360
      %v443 = vadd.f32 %v203, %v362
      %v444 = vadd.f32 %v204, %v364
      %v445 = vmul.f32 %v125, -0.08343161
      %v446 = vmul.f32 %v126, -0.08343161
      %v447 = vmul.f32 %v127, -0.08343161
      %v448 = vmul.f32 %v128, -0.08343161
      %v449 = vmul.f32 %v129, -0.08343161
      %v450 = vmul.f32 %v130, -0.08343161
      %v451 = vmul.f32 %v131, -0.08343161
      %v452 = vmul.f32 %v132, -0.08343161
      %v453 = vmul.f32 %v133, -0.08343161
      %v454 = vmul.f32 %v134, -0.08343161
      %v455 = vmul.f32 %v135, -0.08343161
      %v456 = vmul.f32 %v136, -0.08343161
      %v457 = vmul.f32 %v137, -0.08343161
      %v458 = vmul.f32 %v138, -0.08343161
      %v459 = vmul.f32 %v139, -0.08343161
      %v460 = vmul.f32 %v140, -0.08343161
      %v461 = vmul.f32 %v141, -0.08343161
      %v462 = vmul.f32 %v142, -0.08343161
      %v463 = vmul.f32 %v143, -0.08343161
      %v464 = vmul.f32 %v144, -0.08343161
      %v465 = vmul.f32 %v145, -0.08343161
      %v466 = vmul.f32 %v146, -0.08343161
      %v467 = vmul.f32 %v147, -0.08343161
      %v468 = vmul.f32 %v148, -0.08343161
      %v469 = vmul.f32 %v149, -0.08343161
      %v470 = vmul.f32 %v150, -0.08343161
      %v471 = vmul.f32 %v151, -0.08343161
      %v472 = vmul.f32 %v152, -0.08343161
      %v473 = vmul.f32 %v153, -0.08343161
      %v474 = vmul.f32 %v154, -0.08343161
      %v475 = vmul.f32 %v155, -0.08343161
      %v476 = vmul.f32 %v156, -0.08343161
      %v477 = vmul.f32 %v157, -0.08343161
      %v478 = vmul.f32 %v158, -0.08343161
      %v479 = vmul.f32 %v159, -0.08343161
      %v480 = vmul.f32 %v160, -0.08343161
      %v481 = vmul.f32 %v161, -0.08343161
      %v482 = vmul.f32 %v162, -0.08343161
      %v483 = vmul.f32 %v163, -0.08343161
      %v484 = vmul.f32 %v164, -0.08343161
      %525 = vrot.lane.b32.xlu0 %v445, 127
      %v526 = vpop.permute.xlu0 %525
      %527 = vrot.lane.b32.xlu0 %v446, 127
      %v528 = vpop.permute.xlu0 %527
      %529 = vrot.lane.b32.xlu0 %v447, 127
      %v530 = vpop.permute.xlu0 %529
      %531 = vrot.lane.b32.xlu0 %v448, 127
      %v532 = vpop.permute.xlu0 %531
      %533 = vrot.lane.b32.xlu0 %v449, 127
      %v534 = vpop.permute.xlu0 %533
      %535 = vrot.lane.b32.xlu0 %v450, 127
      %v536 = vpop.permute.xlu0 %535
      %537 = vrot.lane.b32.xlu0 %v451, 127
      %v538 = vpop.permute.xlu0 %537
      %539 = vrot.lane.b32.xlu0 %v452, 127
      %v540 = vpop.permute.xlu0 %539
      %541 = vrot.lane.b32.xlu0 %v453, 127
      %v542 = vpop.permute.xlu0 %541
      %543 = vrot.lane.b32.xlu0 %v454, 127
      %v544 = vpop.permute.xlu0 %543
      %545 = vrot.lane.b32.xlu0 %v455, 127
      %v546 = vpop.permute.xlu0 %545
      %547 = vrot.lane.b32.xlu0 %v456, 127
      %v548 = vpop.permute.xlu0 %547
      %549 = vrot.lane.b32.xlu0 %v457, 127
      %v550 = vpop.permute.xlu0 %549
      %551 = vrot.lane.b32.xlu0 %v458, 127
      %v552 = vpop.permute.xlu0 %551
      %553 = vrot.lane.b32.xlu0 %v459, 127
      %v554 = vpop.permute.xlu0 %553
      %555 = vrot.lane.b32.xlu0 %v460, 127
      %v556 = vpop.permute.xlu0 %555
      %557 = vrot.lane.b32.xlu0 %v461, 127
      %v558 = vpop.permute.xlu0 %557
      %559 = vrot.lane.b32.xlu0 %v462, 127
      %v560 = vpop.permute.xlu0 %559
      %561 = vrot.lane.b32.xlu0 %v463, 127
      %v562 = vpop.permute.xlu0 %561
      %563 = vrot.lane.b32.xlu0 %v464, 127
      %v564 = vpop.permute.xlu0 %563
      %565 = vrot.lane.b32.xlu0 %v465, 127
      %v566 = vpop.permute.xlu0 %565
      %567 = vrot.lane.b32.xlu0 %v466, 127
      %v568 = vpop.permute.xlu0 %567
      %569 = vrot.lane.b32.xlu0 %v467, 127
      %v570 = vpop.permute.xlu0 %569
      %571 = vrot.lane.b32.xlu0 %v468, 127
      %v572 = vpop.permute.xlu0 %571
      %573 = vrot.lane.b32.xlu0 %v469, 127
      %v574 = vpop.permute.xlu0 %573
      %575 = vrot.lane.b32.xlu0 %v470, 127
      %v576 = vpop.permute.xlu0 %575
      %577 = vrot.lane.b32.xlu0 %v471, 127
      %v578 = vpop.permute.xlu0 %577
      %579 = vrot.lane.b32.xlu0 %v472, 127
      %v580 = vpop.permute.xlu0 %579
      %581 = vrot.lane.b32.xlu0 %v473, 127
      %v582 = vpop.permute.xlu0 %581
      %583 = vrot.lane.b32.xlu0 %v474, 127
      %v584 = vpop.permute.xlu0 %583
      %585 = vrot.lane.b32.xlu0 %v475, 127
      %v586 = vpop.permute.xlu0 %585
      %587 = vrot.lane.b32.xlu0 %v476, 127
      %v588 = vpop.permute.xlu0 %587
      %589 = vrot.lane.b32.xlu0 %v477, 127
      %v590 = vpop.permute.xlu0 %589
      %591 = vrot.lane.b32.xlu0 %v478, 127
      %v592 = vpop.permute.xlu0 %591
      %593 = vrot.lane.b32.xlu0 %v479, 127
      %v594 = vpop.permute.xlu0 %593
      %595 = vrot.lane.b32.xlu0 %v480, 127
      %v596 = vpop.permute.xlu0 %595
      %597 = vrot.lane.b32.xlu0 %v481, 127
      %v598 = vpop.permute.xlu0 %597
      %599 = vrot.lane.b32.xlu0 %v482, 127
      %v600 = vpop.permute.xlu0 %599
      %601 = vrot.lane.b32.xlu0 %v483, 127
      %v602 = vpop.permute.xlu0 %601
      %603 = vrot.lane.b32.xlu0 %v484, 127
      %v604 = vpop.permute.xlu0 %603
      %v645 = vadd.f32 %v405, %v526
      %v646 = vadd.f32 %v406, %v528
      %v647 = vadd.f32 %v407, %v530
      %v648 = vadd.f32 %v408, %v532
      %v649 = vadd.f32 %v409, %v534
      %v650 = vadd.f32 %v410, %v536
      %v651 = vadd.f32 %v411, %v538
      %v652 = vadd.f32 %v412, %v540
      %v653 = vadd.f32 %v413, %v542
      %v654 = vadd.f32 %v414, %v544
      %v655 = vadd.f32 %v415, %v546
      %v656 = vadd.f32 %v416, %v548
      %v657 = vadd.f32 %v417, %v550
      %v658 = vadd.f32 %v418, %v552
      %v659 = vadd.f32 %v419, %v554
      %v660 = vadd.f32 %v420, %v556
      %v661 = vadd.f32 %v421, %v558
      %v662 = vadd.f32 %v422, %v560
      %v663 = vadd.f32 %v423, %v562
      %v664 = vadd.f32 %v424, %v564
      %v665 = vadd.f32 %v425, %v566
      %v666 = vadd.f32 %v426, %v568
      %v667 = vadd.f32 %v427, %v570
      %v668 = vadd.f32 %v428, %v572
      %v669 = vadd.f32 %v429, %v574
      %v670 = vadd.f32 %v430, %v576
      %v671 = vadd.f32 %v431, %v578
      %v672 = vadd.f32 %v432, %v580
      %v673 = vadd.f32 %v433, %v582
      %v674 = vadd.f32 %v434, %v584
      %v675 = vadd.f32 %v435, %v586
      %v676 = vadd.f32 %v436, %v588
      %v677 = vadd.f32 %v437, %v590
      %v678 = vadd.f32 %v438, %v592
      %v679 = vadd.f32 %v439, %v594
      %v680 = vadd.f32 %v440, %v596
      %v681 = vadd.f32 %v441, %v598
      %v682 = vadd.f32 %v442, %v600
      %v683 = vadd.f32 %v443, %v602
      %v684 = vadd.f32 %v444, %v604
      %v685 = vmul.f32 %v125, -0.03416156
      %v686 = vmul.f32 %v126, -0.03416156
      %v687 = vmul.f32 %v127, -0.03416156
      %v688 = vmul.f32 %v128, -0.03416156
      %v689 = vmul.f32 %v129, -0.03416156
      %v690 = vmul.f32 %v130, -0.03416156
      %v691 = vmul.f32 %v131, -0.03416156
      %v692 = vmul.f32 %v132, -0.03416156
      %v693 = vmul.f32 %v133, -0.03416156
      %v694 = vmul.f32 %v134, -0.03416156
      %v695 = vmul.f32 %v135, -0.03416156
      %v696 = vmul.f32 %v136, -0.03416156
      %v697 = vmul.f32 %v137, -0.03416156
      %v698 = vmul.f32 %v138, -0.03416156
      %v699 = vmul.f32 %v139, -0.03416156
      %v700 = vmul.f32 %v140, -0.03416156
      %v701 = vmul.f32 %v141, -0.03416156
      %v702 = vmul.f32 %v142, -0.03416156
      %v703 = vmul.f32 %v143, -0.03416156
      %v704 = vmul.f32 %v144, -0.03416156
      %v705 = vmul.f32 %v145, -0.03416156
      %v706 = vmul.f32 %v146, -0.03416156
      %v707 = vmul.f32 %v147, -0.03416156
      %v708 = vmul.f32 %v148, -0.03416156
      %v709 = vmul.f32 %v149, -0.03416156
      %v710 = vmul.f32 %v150, -0.03416156
      %v711 = vmul.f32 %v151, -0.03416156
      %v712 = vmul.f32 %v152, -0.03416156
      %v713 = vmul.f32 %v153, -0.03416156
      %v714 = vmul.f32 %v154, -0.03416156
      %v715 = vmul.f32 %v155, -0.03416156
      %v716 = vmul.f32 %v156, -0.03416156
      %v717 = vmul.f32 %v157, -0.03416156
      %v718 = vmul.f32 %v158, -0.03416156
      %v719 = vmul.f32 %v159, -0.03416156
      %v720 = vmul.f32 %v160, -0.03416156
      %v721 = vmul.f32 %v161, -0.03416156
      %v722 = vmul.f32 %v162, -0.03416156
      %v723 = vmul.f32 %v163, -0.03416156
      %v724 = vmul.f32 %v164, -0.03416156
      %765 = vrot.lane.b32.xlu0 %v685, 90
      %v766 = vpop.permute.xlu0 %765
      %767 = vrot.lane.b32.xlu0 %v686, 90
      %v768 = vpop.permute.xlu0 %767
      %769 = vrot.lane.b32.xlu0 %v687, 90
      %v770 = vpop.permute.xlu0 %769
      %771 = vrot.lane.b32.xlu0 %v688, 90
      %v772 = vpop.permute.xlu0 %771
      %773 = vrot.lane.b32.xlu0 %v689, 90
      %v774 = vpop.permute.xlu0 %773
      %775 = vrot.lane.b32.xlu0 %v690, 90
      %v776 = vpop.permute.xlu0 %775
      %777 = vrot.lane.b32.xlu0 %v691, 90
      %v778 = vpop.permute.xlu0 %777
      %779 = vrot.lane.b32.xlu0 %v692, 90
      %v780 = vpop.permute.xlu0 %779
      %781 = vrot.lane.b32.xlu0 %v693, 90
      %v782 = vpop.permute.xlu0 %781
      %783 = vrot.lane.b32.xlu0 %v694, 90
      %v784 = vpop.permute.xlu0 %783
      %785 = vrot.lane.b32.xlu0 %v695, 90
      %v786 = vpop.permute.xlu0 %785
      %787 = vrot.lane.b32.xlu0 %v696, 90
      %v788 = vpop.permute.xlu0 %787
      %789 = vrot.lane.b32.xlu0 %v697, 90
      %v790 = vpop.permute.xlu0 %789
      %791 = vrot.lane.b32.xlu0 %v698, 90
      %v792 = vpop.permute.xlu0 %791
      %793 = vrot.lane.b32.xlu0 %v699, 90
      %v794 = vpop.permute.xlu0 %793
      %795 = vrot.lane.b32.xlu0 %v700, 90
      %v796 = vpop.permute.xlu0 %795
      %797 = vrot.lane.b32.xlu0 %v701, 90
      %v798 = vpop.permute.xlu0 %797
      %799 = vrot.lane.b32.xlu0 %v702, 90
      %v800 = vpop.permute.xlu0 %799
      %801 = vrot.lane.b32.xlu0 %v703, 90
      %v802 = vpop.permute.xlu0 %801
      %803 = vrot.lane.b32.xlu0 %v704, 90
      %v804 = vpop.permute.xlu0 %803
      %805 = vrot.lane.b32.xlu0 %v705, 90
      %v806 = vpop.permute.xlu0 %805
      %807 = vrot.lane.b32.xlu0 %v706, 90
      %v808 = vpop.permute.xlu0 %807
      %809 = vrot.lane.b32.xlu0 %v707, 90
      %v810 = vpop.permute.xlu0 %809
      %811 = vrot.lane.b32.xlu0 %v708, 90
      %v812 = vpop.permute.xlu0 %811
      %813 = vrot.lane.b32.xlu0 %v709, 90
      %v814 = vpop.permute.xlu0 %813
      %815 = vrot.lane.b32.xlu0 %v710, 90
      %v816 = vpop.permute.xlu0 %815
      %817 = vrot.lane.b32.xlu0 %v711, 90
      %v818 = vpop.permute.xlu0 %817
      %819 = vrot.lane.b32.xlu0 %v712, 90
      %v820 = vpop.permute.xlu0 %819
      %821 = vrot.lane.b32.xlu0 %v713, 90
      %v822 = vpop.permute.xlu0 %821
      %823 = vrot.lane.b32.xlu0 %v714, 90
      %v824 = vpop.permute.xlu0 %823
      %825 = vrot.lane.b32.xlu0 %v715, 90
      %v826 = vpop.permute.xlu0 %825
      %827 = vrot.lane.b32.xlu0 %v716, 90
      %v828 = vpop.permute.xlu0 %827
      %829 = vrot.lane.b32.xlu0 %v717, 90
      %v830 = vpop.permute.xlu0 %829
      %831 = vrot.lane.b32.xlu0 %v718, 90
      %v832 = vpop.permute.xlu0 %831
      %833 = vrot.lane.b32.xlu0 %v719, 90
      %v834 = vpop.permute.xlu0 %833
      %835 = vrot.lane.b32.xlu0 %v720, 90
      %v836 = vpop.permute.xlu0 %835
      %837 = vrot.lane.b32.xlu0 %v721, 90
      %v838 = vpop.permute.xlu0 %837
      %839 = vrot.lane.b32.xlu0 %v722, 90
      %v840 = vpop.permute.xlu0 %839
      %841 = vrot.lane.b32.xlu0 %v723, 90
      %v842 = vpop.permute.xlu0 %841
      %843 = vrot.lane.b32.xlu0 %v724, 90
      %v844 = vpop.permute.xlu0 %843
      %v885 = vadd.f32 %v645, %v766
      %v886 = vadd.f32 %v646, %v768
      %v887 = vadd.f32 %v647, %v770
      %v888 = vadd.f32 %v648, %v772
      %v889 = vadd.f32 %v649, %v774
      %v890 = vadd.f32 %v650, %v776
      %v891 = vadd.f32 %v651, %v778
      %v892 = vadd.f32 %v652, %v780
      %v893 = vadd.f32 %v653, %v782
      %v894 = vadd.f32 %v654, %v784
      %v895 = vadd.f32 %v655, %v786
      %v896 = vadd.f32 %v656, %v788
      %v897 = vadd.f32 %v657, %v790
      %v898 = vadd.f32 %v658, %v792
      %v899 = vadd.f32 %v659, %v794
      %v900 = vadd.f32 %v660, %v796
      %v901 = vadd.f32 %v661, %v798
      %v902 = vadd.f32 %v662, %v800
      %v903 = vadd.f32 %v663, %v802
      %v904 = vadd.f32 %v664, %v804
      %v905 = vadd.f32 %v665, %v806
      %v906 = vadd.f32 %v666, %v808
      %v907 = vadd.f32 %v667, %v810
      %v908 = vadd.f32 %v668, %v812
      %v909 = vadd.f32 %v669, %v814
      %v910 = vadd.f32 %v670, %v816
      %v911 = vadd.f32 %v671, %v818
      %v912 = vadd.f32 %v672, %v820
      %v913 = vadd.f32 %v673, %v822
      %v914 = vadd.f32 %v674, %v824
      %v915 = vadd.f32 %v675, %v826
      %v916 = vadd.f32 %v676, %v828
      %v917 = vadd.f32 %v677, %v830
      %v918 = vadd.f32 %v678, %v832
      %v919 = vadd.f32 %v679, %v834
      %v920 = vadd.f32 %v680, %v836
      %v921 = vadd.f32 %v681, %v838
      %v922 = vadd.f32 %v682, %v840
      %v923 = vadd.f32 %v683, %v842
      %v924 = vadd.f32 %v684, %v844
      %v925 = vmul.f32 %v125, 0.34722897
      %v926 = vmul.f32 %v126, 0.34722897
      %v927 = vmul.f32 %v127, 0.34722897
      %v928 = vmul.f32 %v128, 0.34722897
      %v929 = vmul.f32 %v129, 0.34722897
      %v930 = vmul.f32 %v130, 0.34722897
      %v931 = vmul.f32 %v131, 0.34722897
      %v932 = vmul.f32 %v132, 0.34722897
      %v933 = vmul.f32 %v133, 0.34722897
      %v934 = vmul.f32 %v134, 0.34722897
      %v935 = vmul.f32 %v135, 0.34722897
      %v936 = vmul.f32 %v136, 0.34722897
      %v937 = vmul.f32 %v137, 0.34722897
      %v938 = vmul.f32 %v138, 0.34722897
      %v939 = vmul.f32 %v139, 0.34722897
      %v940 = vmul.f32 %v140, 0.34722897
      %v941 = vmul.f32 %v141, 0.34722897
      %v942 = vmul.f32 %v142, 0.34722897
      %v943 = vmul.f32 %v143, 0.34722897
      %v944 = vmul.f32 %v144, 0.34722897
      %v945 = vmul.f32 %v145, 0.34722897
      %v946 = vmul.f32 %v146, 0.34722897
      %v947 = vmul.f32 %v147, 0.34722897
      %v948 = vmul.f32 %v148, 0.34722897
      %v949 = vmul.f32 %v149, 0.34722897
      %v950 = vmul.f32 %v150, 0.34722897
      %v951 = vmul.f32 %v151, 0.34722897
      %v952 = vmul.f32 %v152, 0.34722897
      %v953 = vmul.f32 %v153, 0.34722897
      %v954 = vmul.f32 %v154, 0.34722897
      %v955 = vmul.f32 %v155, 0.34722897
      %v956 = vmul.f32 %v156, 0.34722897
      %v957 = vmul.f32 %v157, 0.34722897
      %v958 = vmul.f32 %v158, 0.34722897
      %v959 = vmul.f32 %v159, 0.34722897
      %v960 = vmul.f32 %v160, 0.34722897
      %v961 = vmul.f32 %v161, 0.34722897
      %v962 = vmul.f32 %v162, 0.34722897
      %v963 = vmul.f32 %v163, 0.34722897
      %v964 = vmul.f32 %v164, 0.34722897
      %1005 = vrot.lane.b32.xlu0 %v925, 126
      %v1006 = vpop.permute.xlu0 %1005
      %1007 = vrot.lane.b32.xlu0 %v926, 126
      %v1008 = vpop.permute.xlu0 %1007
      %1009 = vrot.lane.b32.xlu0 %v927, 126
      %v1010 = vpop.permute.xlu0 %1009
      %1011 = vrot.lane.b32.xlu0 %v928, 126
      %v1012 = vpop.permute.xlu0 %1011
      %1013 = vrot.lane.b32.xlu0 %v929, 126
      %v1014 = vpop.permute.xlu0 %1013
      %1015 = vrot.lane.b32.xlu0 %v930, 126
      %v1016 = vpop.permute.xlu0 %1015
      %1017 = vrot.lane.b32.xlu0 %v931, 126
      %v1018 = vpop.permute.xlu0 %1017
      %1019 = vrot.lane.b32.xlu0 %v932, 126
      %v1020 = vpop.permute.xlu0 %1019
      %1021 = vrot.lane.b32.xlu0 %v933, 126
      %v1022 = vpop.permute.xlu0 %1021
      %1023 = vrot.lane.b32.xlu0 %v934, 126
      %v1024 = vpop.permute.xlu0 %1023
      %1025 = vrot.lane.b32.xlu0 %v935, 126
      %v1026 = vpop.permute.xlu0 %1025
      %1027 = vrot.lane.b32.xlu0 %v936, 126
      %v1028 = vpop.permute.xlu0 %1027
      %1029 = vrot.lane.b32.xlu0 %v937, 126
      %v1030 = vpop.permute.xlu0 %1029
      %1031 = vrot.lane.b32.xlu0 %v938, 126
      %v1032 = vpop.permute.xlu0 %1031
      %1033 = vrot.lane.b32.xlu0 %v939, 126
      %v1034 = vpop.permute.xlu0 %1033
      %1035 = vrot.lane.b32.xlu0 %v940, 126
      %v1036 = vpop.permute.xlu0 %1035
      %1037 = vrot.lane.b32.xlu0 %v941, 126
      %v1038 = vpop.permute.xlu0 %1037
      %1039 = vrot.lane.b32.xlu0 %v942, 126
      %v1040 = vpop.permute.xlu0 %1039
      %1041 = vrot.lane.b32.xlu0 %v943, 126
      %v1042 = vpop.permute.xlu0 %1041
      %1043 = vrot.lane.b32.xlu0 %v944, 126
      %v1044 = vpop.permute.xlu0 %1043
      %1045 = vrot.lane.b32.xlu0 %v945, 126
      %v1046 = vpop.permute.xlu0 %1045
      %1047 = vrot.lane.b32.xlu0 %v946, 126
      %v1048 = vpop.permute.xlu0 %1047
      %1049 = vrot.lane.b32.xlu0 %v947, 126
      %v1050 = vpop.permute.xlu0 %1049
      %1051 = vrot.lane.b32.xlu0 %v948, 126
      %v1052 = vpop.permute.xlu0 %1051
      %1053 = vrot.lane.b32.xlu0 %v949, 126
      %v1054 = vpop.permute.xlu0 %1053
      %1055 = vrot.lane.b32.xlu0 %v950, 126
      %v1056 = vpop.permute.xlu0 %1055
      %1057 = vrot.lane.b32.xlu0 %v951, 126
      %v1058 = vpop.permute.xlu0 %1057
      %1059 = vrot.lane.b32.xlu0 %v952, 126
      %v1060 = vpop.permute.xlu0 %1059
      %1061 = vrot.lane.b32.xlu0 %v953, 126
      %v1062 = vpop.permute.xlu0 %1061
      %1063 = vrot.lane.b32.xlu0 %v954, 126
      %v1064 = vpop.permute.xlu0 %1063
      %1065 = vrot.lane.b32.xlu0 %v955, 126
      %v1066 = vpop.permute.xlu0 %1065
      %1067 = vrot.lane.b32.xlu0 %v956, 126
      %v1068 = vpop.permute.xlu0 %1067
      %1069 = vrot.lane.b32.xlu0 %v957, 126
      %v1070 = vpop.permute.xlu0 %1069
      %1071 = vrot.lane.b32.xlu0 %v958, 126
      %v1072 = vpop.permute.xlu0 %1071
      %1073 = vrot.lane.b32.xlu0 %v959, 126
      %v1074 = vpop.permute.xlu0 %1073
      %1075 = vrot.lane.b32.xlu0 %v960, 126
      %v1076 = vpop.permute.xlu0 %1075
      %1077 = vrot.lane.b32.xlu0 %v961, 126
      %v1078 = vpop.permute.xlu0 %1077
      %1079 = vrot.lane.b32.xlu0 %v962, 126
      %v1080 = vpop.permute.xlu0 %1079
      %1081 = vrot.lane.b32.xlu0 %v963, 126
      %v1082 = vpop.permute.xlu0 %1081
      %1083 = vrot.lane.b32.xlu0 %v964, 126
      %v1084 = vpop.permute.xlu0 %1083
      %v1125 = vadd.f32 %v885, %v1006
      %v1126 = vadd.f32 %v886, %v1008
      %v1127 = vadd.f32 %v887, %v1010
      %v1128 = vadd.f32 %v888, %v1012
      %v1129 = vadd.f32 %v889, %v1014
      %v1130 = vadd.f32 %v890, %v1016
      %v1131 = vadd.f32 %v891, %v1018
      %v1132 = vadd.f32 %v892, %v1020
      %v1133 = vadd.f32 %v893, %v1022
      %v1134 = vadd.f32 %v894, %v1024
      %v1135 = vadd.f32 %v895, %v1026
      %v1136 = vadd.f32 %v896, %v1028
      %v1137 = vadd.f32 %v897, %v1030
      %v1138 = vadd.f32 %v898, %v1032
      %v1139 = vadd.f32 %v899, %v1034
      %v1140 = vadd.f32 %v900, %v1036
      %v1141 = vadd.f32 %v901, %v1038
      %v1142 = vadd.f32 %v902, %v1040
      %v1143 = vadd.f32 %v903, %v1042
      %v1144 = vadd.f32 %v904, %v1044
      %v1145 = vadd.f32 %v905, %v1046
      %v1146 = vadd.f32 %v906, %v1048
      %v1147 = vadd.f32 %v907, %v1050
      %v1148 = vadd.f32 %v908, %v1052
      %v1149 = vadd.f32 %v909, %v1054
      %v1150 = vadd.f32 %v910, %v1056
      %v1151 = vadd.f32 %v911, %v1058
      %v1152 = vadd.f32 %v912, %v1060
      %v1153 = vadd.f32 %v913, %v1062
      %v1154 = vadd.f32 %v914, %v1064
      %v1155 = vadd.f32 %v915, %v1066
      %v1156 = vadd.f32 %v916, %v1068
      %v1157 = vadd.f32 %v917, %v1070
      %v1158 = vadd.f32 %v918, %v1072
      %v1159 = vadd.f32 %v919, %v1074
      %v1160 = vadd.f32 %v920, %v1076
      %v1161 = vadd.f32 %v921, %v1078
      %v1162 = vadd.f32 %v922, %v1080
      %v1163 = vadd.f32 %v923, %v1082
      %v1164 = vadd.f32 %v924, %v1084
      %v1165 = vmul.f32 %v125, 0.5569464
      %v1166 = vmul.f32 %v126, 0.5569464
      %v1167 = vmul.f32 %v127, 0.5569464
      %v1168 = vmul.f32 %v128, 0.5569464
      %v1169 = vmul.f32 %v129, 0.5569464
      %v1170 = vmul.f32 %v130, 0.5569464
      %v1171 = vmul.f32 %v131, 0.5569464
      %v1172 = vmul.f32 %v132, 0.5569464
      %v1173 = vmul.f32 %v133, 0.5569464
      %v1174 = vmul.f32 %v134, 0.5569464
      %v1175 = vmul.f32 %v135, 0.5569464
      %v1176 = vmul.f32 %v136, 0.5569464
      %v1177 = vmul.f32 %v137, 0.5569464
      %v1178 = vmul.f32 %v138, 0.5569464
      %v1179 = vmul.f32 %v139, 0.5569464
      %v1180 = vmul.f32 %v140, 0.5569464
      %v1181 = vmul.f32 %v141, 0.5569464
      %v1182 = vmul.f32 %v142, 0.5569464
      %v1183 = vmul.f32 %v143, 0.5569464
      %v1184 = vmul.f32 %v144, 0.5569464
      %v1185 = vmul.f32 %v145, 0.5569464
      %v1186 = vmul.f32 %v146, 0.5569464
      %v1187 = vmul.f32 %v147, 0.5569464
      %v1188 = vmul.f32 %v148, 0.5569464
      %v1189 = vmul.f32 %v149, 0.5569464
      %v1190 = vmul.f32 %v150, 0.5569464
      %v1191 = vmul.f32 %v151, 0.5569464
      %v1192 = vmul.f32 %v152, 0.5569464
      %v1193 = vmul.f32 %v153, 0.5569464
      %v1194 = vmul.f32 %v154, 0.5569464
      %v1195 = vmul.f32 %v155, 0.5569464
      %v1196 = vmul.f32 %v156, 0.5569464
      %v1197 = vmul.f32 %v157, 0.5569464
      %v1198 = vmul.f32 %v158, 0.5569464
      %v1199 = vmul.f32 %v159, 0.5569464
      %v1200 = vmul.f32 %v160, 0.5569464
      %v1201 = vmul.f32 %v161, 0.5569464
      %v1202 = vmul.f32 %v162, 0.5569464
      %v1203 = vmul.f32 %v163, 0.5569464
      %v1204 = vmul.f32 %v164, 0.5569464
      %1245 = vrot.lane.b32.xlu0 %v1165, 89
      %v1246 = vpop.permute.xlu0 %1245
      %1247 = vrot.lane.b32.xlu0 %v1166, 89
      %v1248 = vpop.permute.xlu0 %1247
      %1249 = vrot.lane.b32.xlu0 %v1167, 89
      %v1250 = vpop.permute.xlu0 %1249
      %1251 = vrot.lane.b32.xlu0 %v1168, 89
      %v1252 = vpop.permute.xlu0 %1251
      %1253 = vrot.lane.b32.xlu0 %v1169, 89
      %v1254 = vpop.permute.xlu0 %1253
      %1255 = vrot.lane.b32.xlu0 %v1170, 89
      %v1256 = vpop.permute.xlu0 %1255
      %1257 = vrot.lane.b32.xlu0 %v1171, 89
      %v1258 = vpop.permute.xlu0 %1257
      %1259 = vrot.lane.b32.xlu0 %v1172, 89
      %v1260 = vpop.permute.xlu0 %1259
      %1261 = vrot.lane.b32.xlu0 %v1173, 89
      %v1262 = vpop.permute.xlu0 %1261
      %1263 = vrot.lane.b32.xlu0 %v1174, 89
      %v1264 = vpop.permute.xlu0 %1263
      %1265 = vrot.lane.b32.xlu0 %v1175, 89
      %v1266 = vpop.permute.xlu0 %1265
      %1267 = vrot.lane.b32.xlu0 %v1176, 89
      %v1268 = vpop.permute.xlu0 %1267
      %1269 = vrot.lane.b32.xlu0 %v1177, 89
      %v1270 = vpop.permute.xlu0 %1269
      %1271 = vrot.lane.b32.xlu0 %v1178, 89
      %v1272 = vpop.permute.xlu0 %1271
      %1273 = vrot.lane.b32.xlu0 %v1179, 89
      %v1274 = vpop.permute.xlu0 %1273
      %1275 = vrot.lane.b32.xlu0 %v1180, 89
      %v1276 = vpop.permute.xlu0 %1275
      %1277 = vrot.lane.b32.xlu0 %v1181, 89
      %v1278 = vpop.permute.xlu0 %1277
      %1279 = vrot.lane.b32.xlu0 %v1182, 89
      %v1280 = vpop.permute.xlu0 %1279
      %1281 = vrot.lane.b32.xlu0 %v1183, 89
      %v1282 = vpop.permute.xlu0 %1281
      %1283 = vrot.lane.b32.xlu0 %v1184, 89
      %v1284 = vpop.permute.xlu0 %1283
      %1285 = vrot.lane.b32.xlu0 %v1185, 89
      %v1286 = vpop.permute.xlu0 %1285
      %1287 = vrot.lane.b32.xlu0 %v1186, 89
      %v1288 = vpop.permute.xlu0 %1287
      %1289 = vrot.lane.b32.xlu0 %v1187, 89
      %v1290 = vpop.permute.xlu0 %1289
      %1291 = vrot.lane.b32.xlu0 %v1188, 89
      %v1292 = vpop.permute.xlu0 %1291
      %1293 = vrot.lane.b32.xlu0 %v1189, 89
      %v1294 = vpop.permute.xlu0 %1293
      %1295 = vrot.lane.b32.xlu0 %v1190, 89
      %v1296 = vpop.permute.xlu0 %1295
      %1297 = vrot.lane.b32.xlu0 %v1191, 89
      %v1298 = vpop.permute.xlu0 %1297
      %1299 = vrot.lane.b32.xlu0 %v1192, 89
      %v1300 = vpop.permute.xlu0 %1299
      %1301 = vrot.lane.b32.xlu0 %v1193, 89
      %v1302 = vpop.permute.xlu0 %1301
      %1303 = vrot.lane.b32.xlu0 %v1194, 89
      %v1304 = vpop.permute.xlu0 %1303
      %1305 = vrot.lane.b32.xlu0 %v1195, 89
      %v1306 = vpop.permute.xlu0 %1305
      %1307 = vrot.lane.b32.xlu0 %v1196, 89
      %v1308 = vpop.permute.xlu0 %1307
      %1309 = vrot.lane.b32.xlu0 %v1197, 89
      %v1310 = vpop.permute.xlu0 %1309
      %1311 = vrot.lane.b32.xlu0 %v1198, 89
      %v1312 = vpop.permute.xlu0 %1311
      %1313 = vrot.lane.b32.xlu0 %v1199, 89
      %v1314 = vpop.permute.xlu0 %1313
      %1315 = vrot.lane.b32.xlu0 %v1200, 89
      %v1316 = vpop.permute.xlu0 %1315
      %1317 = vrot.lane.b32.xlu0 %v1201, 89
      %v1318 = vpop.permute.xlu0 %1317
      %1319 = vrot.lane.b32.xlu0 %v1202, 89
      %v1320 = vpop.permute.xlu0 %1319
      %1321 = vrot.lane.b32.xlu0 %v1203, 89
      %v1322 = vpop.permute.xlu0 %1321
      %1323 = vrot.lane.b32.xlu0 %v1204, 89
      %v1324 = vpop.permute.xlu0 %1323
      %v1365 = vadd.f32 %v1125, %v1246
      %v1366 = vadd.f32 %v1126, %v1248
      %v1367 = vadd.f32 %v1127, %v1250
      %v1368 = vadd.f32 %v1128, %v1252
      %v1369 = vadd.f32 %v1129, %v1254
      %v1370 = vadd.f32 %v1130, %v1256
      %v1371 = vadd.f32 %v1131, %v1258
      %v1372 = vadd.f32 %v1132, %v1260
      %v1373 = vadd.f32 %v1133, %v1262
      %v1374 = vadd.f32 %v1134, %v1264
      %v1375 = vadd.f32 %v1135, %v1266
      %v1376 = vadd.f32 %v1136, %v1268
      %v1377 = vadd.f32 %v1137, %v1270
      %v1378 = vadd.f32 %v1138, %v1272
      %v1379 = vadd.f32 %v1139, %v1274
      %v1380 = vadd.f32 %v1140, %v1276
      %v1381 = vadd.f32 %v1141, %v1278
      %v1382 = vadd.f32 %v1142, %v1280
      %v1383 = vadd.f32 %v1143, %v1282
      %v1384 = vadd.f32 %v1144, %v1284
      %v1385 = vadd.f32 %v1145, %v1286
      %v1386 = vadd.f32 %v1146, %v1288
      %v1387 = vadd.f32 %v1147, %v1290
      %v1388 = vadd.f32 %v1148, %v1292
      %v1389 = vadd.f32 %v1149, %v1294
      %v1390 = vadd.f32 %v1150, %v1296
      %v1391 = vadd.f32 %v1151, %v1298
      %v1392 = vadd.f32 %v1152, %v1300
      %v1393 = vadd.f32 %v1153, %v1302
      %v1394 = vadd.f32 %v1154, %v1304
      %v1395 = vadd.f32 %v1155, %v1306
      %v1396 = vadd.f32 %v1156, %v1308
      %v1397 = vadd.f32 %v1157, %v1310
      %v1398 = vadd.f32 %v1158, %v1312
      %v1399 = vadd.f32 %v1159, %v1314
      %v1400 = vadd.f32 %v1160, %v1316
      %v1401 = vadd.f32 %v1161, %v1318
      %v1402 = vadd.f32 %v1162, %v1320
      %v1403 = vadd.f32 %v1163, %v1322
      %v1404 = vadd.f32 %v1164, %v1324
      %v1405 = vmul.f32 %v125, 0.23895219
      %v1406 = vmul.f32 %v126, 0.23895219
      %v1407 = vmul.f32 %v127, 0.23895219
      %v1408 = vmul.f32 %v128, 0.23895219
      %v1409 = vmul.f32 %v129, 0.23895219
      %v1410 = vmul.f32 %v130, 0.23895219
      %v1411 = vmul.f32 %v131, 0.23895219
      %v1412 = vmul.f32 %v132, 0.23895219
      %v1413 = vmul.f32 %v133, 0.23895219
      %v1414 = vmul.f32 %v134, 0.23895219
      %v1415 = vmul.f32 %v135, 0.23895219
      %v1416 = vmul.f32 %v136, 0.23895219
      %v1417 = vmul.f32 %v137, 0.23895219
      %v1418 = vmul.f32 %v138, 0.23895219
      %v1419 = vmul.f32 %v139, 0.23895219
      %v1420 = vmul.f32 %v140, 0.23895219
      %v1421 = vmul.f32 %v141, 0.23895219
      %v1422 = vmul.f32 %v142, 0.23895219
      %v1423 = vmul.f32 %v143, 0.23895219
      %v1424 = vmul.f32 %v144, 0.23895219
      %v1425 = vmul.f32 %v145, 0.23895219
      %v1426 = vmul.f32 %v146, 0.23895219
      %v1427 = vmul.f32 %v147, 0.23895219
      %v1428 = vmul.f32 %v148, 0.23895219
      %v1429 = vmul.f32 %v149, 0.23895219
      %v1430 = vmul.f32 %v150, 0.23895219
      %v1431 = vmul.f32 %v151, 0.23895219
      %v1432 = vmul.f32 %v152, 0.23895219
      %v1433 = vmul.f32 %v153, 0.23895219
      %v1434 = vmul.f32 %v154, 0.23895219
      %v1435 = vmul.f32 %v155, 0.23895219
      %v1436 = vmul.f32 %v156, 0.23895219
      %v1437 = vmul.f32 %v157, 0.23895219
      %v1438 = vmul.f32 %v158, 0.23895219
      %v1439 = vmul.f32 %v159, 0.23895219
      %v1440 = vmul.f32 %v160, 0.23895219
      %v1441 = vmul.f32 %v161, 0.23895219
      %v1442 = vmul.f32 %v162, 0.23895219
      %v1443 = vmul.f32 %v163, 0.23895219
      %v1444 = vmul.f32 %v164, 0.23895219
      %1485 = vrot.lane.b32.xlu0 %v1405, 125
      %v1486 = vpop.permute.xlu0 %1485
      %1487 = vrot.lane.b32.xlu0 %v1406, 125
      %v1488 = vpop.permute.xlu0 %1487
      %1489 = vrot.lane.b32.xlu0 %v1407, 125
      %v1490 = vpop.permute.xlu0 %1489
      %1491 = vrot.lane.b32.xlu0 %v1408, 125
      %v1492 = vpop.permute.xlu0 %1491
      %1493 = vrot.lane.b32.xlu0 %v1409, 125
      %v1494 = vpop.permute.xlu0 %1493
      %1495 = vrot.lane.b32.xlu0 %v1410, 125
      %v1496 = vpop.permute.xlu0 %1495
      %1497 = vrot.lane.b32.xlu0 %v1411, 125
      %v1498 = vpop.permute.xlu0 %1497
      %1499 = vrot.lane.b32.xlu0 %v1412, 125
      %v1500 = vpop.permute.xlu0 %1499
      %1501 = vrot.lane.b32.xlu0 %v1413, 125
      %v1502 = vpop.permute.xlu0 %1501
      %1503 = vrot.lane.b32.xlu0 %v1414, 125
      %v1504 = vpop.permute.xlu0 %1503
      %1505 = vrot.lane.b32.xlu0 %v1415, 125
      %v1506 = vpop.permute.xlu0 %1505
      %1507 = vrot.lane.b32.xlu0 %v1416, 125
      %v1508 = vpop.permute.xlu0 %1507
      %1509 = vrot.lane.b32.xlu0 %v1417, 125
      %v1510 = vpop.permute.xlu0 %1509
      %1511 = vrot.lane.b32.xlu0 %v1418, 125
      %v1512 = vpop.permute.xlu0 %1511
      %1513 = vrot.lane.b32.xlu0 %v1419, 125
      %v1514 = vpop.permute.xlu0 %1513
      %1515 = vrot.lane.b32.xlu0 %v1420, 125
      %v1516 = vpop.permute.xlu0 %1515
      %1517 = vrot.lane.b32.xlu0 %v1421, 125
      %v1518 = vpop.permute.xlu0 %1517
      %1519 = vrot.lane.b32.xlu0 %v1422, 125
      %v1520 = vpop.permute.xlu0 %1519
      %1521 = vrot.lane.b32.xlu0 %v1423, 125
      %v1522 = vpop.permute.xlu0 %1521
      %1523 = vrot.lane.b32.xlu0 %v1424, 125
      %v1524 = vpop.permute.xlu0 %1523
      %1525 = vrot.lane.b32.xlu0 %v1425, 125
      %v1526 = vpop.permute.xlu0 %1525
      %1527 = vrot.lane.b32.xlu0 %v1426, 125
      %v1528 = vpop.permute.xlu0 %1527
      %1529 = vrot.lane.b32.xlu0 %v1427, 125
      %v1530 = vpop.permute.xlu0 %1529
      %1531 = vrot.lane.b32.xlu0 %v1428, 125
      %v1532 = vpop.permute.xlu0 %1531
      %1533 = vrot.lane.b32.xlu0 %v1429, 125
      %v1534 = vpop.permute.xlu0 %1533
      %1535 = vrot.lane.b32.xlu0 %v1430, 125
      %v1536 = vpop.permute.xlu0 %1535
      %1537 = vrot.lane.b32.xlu0 %v1431, 125
      %v1538 = vpop.permute.xlu0 %1537
      %1539 = vrot.lane.b32.xlu0 %v1432, 125
      %v1540 = vpop.permute.xlu0 %1539
      %1541 = vrot.lane.b32.xlu0 %v1433, 125
      %v1542 = vpop.permute.xlu0 %1541
      %1543 = vrot.lane.b32.xlu0 %v1434, 125
      %v1544 = vpop.permute.xlu0 %1543
      %1545 = vrot.lane.b32.xlu0 %v1435, 125
      %v1546 = vpop.permute.xlu0 %1545
      %1547 = vrot.lane.b32.xlu0 %v1436, 125
      %v1548 = vpop.permute.xlu0 %1547
      %1549 = vrot.lane.b32.xlu0 %v1437, 125
      %v1550 = vpop.permute.xlu0 %1549
      %1551 = vrot.lane.b32.xlu0 %v1438, 125
      %v1552 = vpop.permute.xlu0 %1551
      %1553 = vrot.lane.b32.xlu0 %v1439, 125
      %v1554 = vpop.permute.xlu0 %1553
      %1555 = vrot.lane.b32.xlu0 %v1440, 125
      %v1556 = vpop.permute.xlu0 %1555
      %1557 = vrot.lane.b32.xlu0 %v1441, 125
      %v1558 = vpop.permute.xlu0 %1557
      %1559 = vrot.lane.b32.xlu0 %v1442, 125
      %v1560 = vpop.permute.xlu0 %1559
      %1561 = vrot.lane.b32.xlu0 %v1443, 125
      %v1562 = vpop.permute.xlu0 %1561
      %1563 = vrot.lane.b32.xlu0 %v1444, 125
      %v1564 = vpop.permute.xlu0 %1563
      %v1605 = vadd.f32 %v1365, %v1486
      %v1606 = vadd.f32 %v1366, %v1488
      %v1607 = vadd.f32 %v1367, %v1490
      %v1608 = vadd.f32 %v1368, %v1492
      %v1609 = vadd.f32 %v1369, %v1494
      %v1610 = vadd.f32 %v1370, %v1496
      %v1611 = vadd.f32 %v1371, %v1498
      %v1612 = vadd.f32 %v1372, %v1500
      %v1613 = vadd.f32 %v1373, %v1502
      %v1614 = vadd.f32 %v1374, %v1504
      %v1615 = vadd.f32 %v1375, %v1506
      %v1616 = vadd.f32 %v1376, %v1508
      %v1617 = vadd.f32 %v1377, %v1510
      %v1618 = vadd.f32 %v1378, %v1512
      %v1619 = vadd.f32 %v1379, %v1514
      %v1620 = vadd.f32 %v1380, %v1516
      %v1621 = vadd.f32 %v1381, %v1518
      %v1622 = vadd.f32 %v1382, %v1520
      %v1623 = vadd.f32 %v1383, %v1522
      %v1624 = vadd.f32 %v1384, %v1524
      %v1625 = vadd.f32 %v1385, %v1526
      %v1626 = vadd.f32 %v1386, %v1528
      %v1627 = vadd.f32 %v1387, %v1530
      %v1628 = vadd.f32 %v1388, %v1532
      %v1629 = vadd.f32 %v1389, %v1534
      %v1630 = vadd.f32 %v1390, %v1536
      %v1631 = vadd.f32 %v1391, %v1538
      %v1632 = vadd.f32 %v1392, %v1540
      %v1633 = vadd.f32 %v1393, %v1542
      %v1634 = vadd.f32 %v1394, %v1544
      %v1635 = vadd.f32 %v1395, %v1546
      %v1636 = vadd.f32 %v1396, %v1548
      %v1637 = vadd.f32 %v1397, %v1550
      %v1638 = vadd.f32 %v1398, %v1552
      %v1639 = vadd.f32 %v1399, %v1554
      %v1640 = vadd.f32 %v1400, %v1556
      %v1641 = vadd.f32 %v1401, %v1558
      %v1642 = vadd.f32 %v1402, %v1560
      %v1643 = vadd.f32 %v1403, %v1562
      %v1644 = vadd.f32 %v1404, %v1564
      %v1645 = vmul.f32 %v125, -0.051362485
      %v1646 = vmul.f32 %v126, -0.051362485
      %v1647 = vmul.f32 %v127, -0.051362485
      %v1648 = vmul.f32 %v128, -0.051362485
      %v1649 = vmul.f32 %v129, -0.051362485
      %v1650 = vmul.f32 %v130, -0.051362485
      %v1651 = vmul.f32 %v131, -0.051362485
      %v1652 = vmul.f32 %v132, -0.051362485
      %v1653 = vmul.f32 %v133, -0.051362485
      %v1654 = vmul.f32 %v134, -0.051362485
      %v1655 = vmul.f32 %v135, -0.051362485
      %v1656 = vmul.f32 %v136, -0.051362485
      %v1657 = vmul.f32 %v137, -0.051362485
      %v1658 = vmul.f32 %v138, -0.051362485
      %v1659 = vmul.f32 %v139, -0.051362485
      %v1660 = vmul.f32 %v140, -0.051362485
      %v1661 = vmul.f32 %v141, -0.051362485
      %v1662 = vmul.f32 %v142, -0.051362485
      %v1663 = vmul.f32 %v143, -0.051362485
      %v1664 = vmul.f32 %v144, -0.051362485
      %v1665 = vmul.f32 %v145, -0.051362485
      %v1666 = vmul.f32 %v146, -0.051362485
      %v1667 = vmul.f32 %v147, -0.051362485
      %v1668 = vmul.f32 %v148, -0.051362485
      %v1669 = vmul.f32 %v149, -0.051362485
      %v1670 = vmul.f32 %v150, -0.051362485
      %v1671 = vmul.f32 %v151, -0.051362485
      %v1672 = vmul.f32 %v152, -0.051362485
      %v1673 = vmul.f32 %v153, -0.051362485
      %v1674 = vmul.f32 %v154, -0.051362485
      %v1675 = vmul.f32 %v155, -0.051362485
      %v1676 = vmul.f32 %v156, -0.051362485
      %v1677 = vmul.f32 %v157, -0.051362485
      %v1678 = vmul.f32 %v158, -0.051362485
      %v1679 = vmul.f32 %v159, -0.051362485
      %v1680 = vmul.f32 %v160, -0.051362485
      %v1681 = vmul.f32 %v161, -0.051362485
      %v1682 = vmul.f32 %v162, -0.051362485
      %v1683 = vmul.f32 %v163, -0.051362485
      %v1684 = vmul.f32 %v164, -0.051362485
      %1725 = vrot.lane.b32.xlu0 %v1645, 88
      %v1726 = vpop.permute.xlu0 %1725
      %1727 = vrot.lane.b32.xlu0 %v1646, 88
      %v1728 = vpop.permute.xlu0 %1727
      %1729 = vrot.lane.b32.xlu0 %v1647, 88
      %v1730 = vpop.permute.xlu0 %1729
      %1731 = vrot.lane.b32.xlu0 %v1648, 88
      %v1732 = vpop.permute.xlu0 %1731
      %1733 = vrot.lane.b32.xlu0 %v1649, 88
      %v1734 = vpop.permute.xlu0 %1733
      %1735 = vrot.lane.b32.xlu0 %v1650, 88
      %v1736 = vpop.permute.xlu0 %1735
      %1737 = vrot.lane.b32.xlu0 %v1651, 88
      %v1738 = vpop.permute.xlu0 %1737
      %1739 = vrot.lane.b32.xlu0 %v1652, 88
      %v1740 = vpop.permute.xlu0 %1739
      %1741 = vrot.lane.b32.xlu0 %v1653, 88
      %v1742 = vpop.permute.xlu0 %1741
      %1743 = vrot.lane.b32.xlu0 %v1654, 88
      %v1744 = vpop.permute.xlu0 %1743
      %1745 = vrot.lane.b32.xlu0 %v1655, 88
      %v1746 = vpop.permute.xlu0 %1745
      %1747 = vrot.lane.b32.xlu0 %v1656, 88
      %v1748 = vpop.permute.xlu0 %1747
      %1749 = vrot.lane.b32.xlu0 %v1657, 88
      %v1750 = vpop.permute.xlu0 %1749
      %1751 = vrot.lane.b32.xlu0 %v1658, 88
      %v1752 = vpop.permute.xlu0 %1751
      %1753 = vrot.lane.b32.xlu0 %v1659, 88
      %v1754 = vpop.permute.xlu0 %1753
      %1755 = vrot.lane.b32.xlu0 %v1660, 88
      %v1756 = vpop.permute.xlu0 %1755
      %1757 = vrot.lane.b32.xlu0 %v1661, 88
      %v1758 = vpop.permute.xlu0 %1757
      %1759 = vrot.lane.b32.xlu0 %v1662, 88
      %v1760 = vpop.permute.xlu0 %1759
      %1761 = vrot.lane.b32.xlu0 %v1663, 88
      %v1762 = vpop.permute.xlu0 %1761
      %1763 = vrot.lane.b32.xlu0 %v1664, 88
      %v1764 = vpop.permute.xlu0 %1763
      %1765 = vrot.lane.b32.xlu0 %v1665, 88
      %v1766 = vpop.permute.xlu0 %1765
      %1767 = vrot.lane.b32.xlu0 %v1666, 88
      %v1768 = vpop.permute.xlu0 %1767
      %1769 = vrot.lane.b32.xlu0 %v1667, 88
      %v1770 = vpop.permute.xlu0 %1769
      %1771 = vrot.lane.b32.xlu0 %v1668, 88
      %v1772 = vpop.permute.xlu0 %1771
      %1773 = vrot.lane.b32.xlu0 %v1669, 88
      %v1774 = vpop.permute.xlu0 %1773
      %1775 = vrot.lane.b32.xlu0 %v1670, 88
      %v1776 = vpop.permute.xlu0 %1775
      %1777 = vrot.lane.b32.xlu0 %v1671, 88
      %v1778 = vpop.permute.xlu0 %1777
      %1779 = vrot.lane.b32.xlu0 %v1672, 88
      %v1780 = vpop.permute.xlu0 %1779
      %1781 = vrot.lane.b32.xlu0 %v1673, 88
      %v1782 = vpop.permute.xlu0 %1781
      %1783 = vrot.lane.b32.xlu0 %v1674, 88
      %v1784 = vpop.permute.xlu0 %1783
      %1785 = vrot.lane.b32.xlu0 %v1675, 88
      %v1786 = vpop.permute.xlu0 %1785
      %1787 = vrot.lane.b32.xlu0 %v1676, 88
      %v1788 = vpop.permute.xlu0 %1787
      %1789 = vrot.lane.b32.xlu0 %v1677, 88
      %v1790 = vpop.permute.xlu0 %1789
      %1791 = vrot.lane.b32.xlu0 %v1678, 88
      %v1792 = vpop.permute.xlu0 %1791
      %1793 = vrot.lane.b32.xlu0 %v1679, 88
      %v1794 = vpop.permute.xlu0 %1793
      %1795 = vrot.lane.b32.xlu0 %v1680, 88
      %v1796 = vpop.permute.xlu0 %1795
      %1797 = vrot.lane.b32.xlu0 %v1681, 88
      %v1798 = vpop.permute.xlu0 %1797
      %1799 = vrot.lane.b32.xlu0 %v1682, 88
      %v1800 = vpop.permute.xlu0 %1799
      %1801 = vrot.lane.b32.xlu0 %v1683, 88
      %v1802 = vpop.permute.xlu0 %1801
      %1803 = vrot.lane.b32.xlu0 %v1684, 88
      %v1804 = vpop.permute.xlu0 %1803
      %v1845 = vadd.f32 %v1605, %v1726
      %v1846 = vadd.f32 %v1606, %v1728
      %v1847 = vadd.f32 %v1607, %v1730
      %v1848 = vadd.f32 %v1608, %v1732
      %v1849 = vadd.f32 %v1609, %v1734
      %v1850 = vadd.f32 %v1610, %v1736
      %v1851 = vadd.f32 %v1611, %v1738
      %v1852 = vadd.f32 %v1612, %v1740
      %v1853 = vadd.f32 %v1613, %v1742
      %v1854 = vadd.f32 %v1614, %v1744
      %v1855 = vadd.f32 %v1615, %v1746
      %v1856 = vadd.f32 %v1616, %v1748
      %v1857 = vadd.f32 %v1617, %v1750
      %v1858 = vadd.f32 %v1618, %v1752
      %v1859 = vadd.f32 %v1619, %v1754
      %v1860 = vadd.f32 %v1620, %v1756
      %v1861 = vadd.f32 %v1621, %v1758
      %v1862 = vadd.f32 %v1622, %v1760
      %v1863 = vadd.f32 %v1623, %v1762
      %v1864 = vadd.f32 %v1624, %v1764
      %v1865 = vadd.f32 %v1625, %v1766
      %v1866 = vadd.f32 %v1626, %v1768
      %v1867 = vadd.f32 %v1627, %v1770
      %v1868 = vadd.f32 %v1628, %v1772
      %v1869 = vadd.f32 %v1629, %v1774
      %v1870 = vadd.f32 %v1630, %v1776
      %v1871 = vadd.f32 %v1631, %v1778
      %v1872 = vadd.f32 %v1632, %v1780
      %v1873 = vadd.f32 %v1633, %v1782
      %v1874 = vadd.f32 %v1634, %v1784
      %v1875 = vadd.f32 %v1635, %v1786
      %v1876 = vadd.f32 %v1636, %v1788
      %v1877 = vadd.f32 %v1637, %v1790
      %v1878 = vadd.f32 %v1638, %v1792
      %v1879 = vadd.f32 %v1639, %v1794
      %v1880 = vadd.f32 %v1640, %v1796
      %v1881 = vadd.f32 %v1641, %v1798
      %v1882 = vadd.f32 %v1642, %v1800
      %v1883 = vadd.f32 %v1643, %v1802
      %v1884 = vadd.f32 %v1644, %v1804
      %v1885 = vmul.f32 %v125, -0.014891876
      %v1886 = vmul.f32 %v126, -0.014891876
      %v1887 = vmul.f32 %v127, -0.014891876
      %v1888 = vmul.f32 %v128, -0.014891876
      %v1889 = vmul.f32 %v129, -0.014891876
      %v1890 = vmul.f32 %v130, -0.014891876
      %v1891 = vmul.f32 %v131, -0.014891876
      %v1892 = vmul.f32 %v132, -0.014891876
      %v1893 = vmul.f32 %v133, -0.014891876
      %v1894 = vmul.f32 %v134, -0.014891876
      %v1895 = vmul.f32 %v135, -0.014891876
      %v1896 = vmul.f32 %v136, -0.014891876
      %v1897 = vmul.f32 %v137, -0.014891876
      %v1898 = vmul.f32 %v138, -0.014891876
      %v1899 = vmul.f32 %v139, -0.014891876
      %v1900 = vmul.f32 %v140, -0.014891876
      %v1901 = vmul.f32 %v141, -0.014891876
      %v1902 = vmul.f32 %v142, -0.014891876
      %v1903 = vmul.f32 %v143, -0.014891876
      %v1904 = vmul.f32 %v144, -0.014891876
      %v1905 = vmul.f32 %v145, -0.014891876
      %v1906 = vmul.f32 %v146, -0.014891876
      %v1907 = vmul.f32 %v147, -0.014891876
      %v1908 = vmul.f32 %v148, -0.014891876
      %v1909 = vmul.f32 %v149, -0.014891876
      %v1910 = vmul.f32 %v150, -0.014891876
      %v1911 = vmul.f32 %v151, -0.014891876
      %v1912 = vmul.f32 %v152, -0.014891876
      %v1913 = vmul.f32 %v153, -0.014891876
      %v1914 = vmul.f32 %v154, -0.014891876
      %v1915 = vmul.f32 %v155, -0.014891876
      %v1916 = vmul.f32 %v156, -0.014891876
      %v1917 = vmul.f32 %v157, -0.014891876
      %v1918 = vmul.f32 %v158, -0.014891876
      %v1919 = vmul.f32 %v159, -0.014891876
      %v1920 = vmul.f32 %v160, -0.014891876
      %v1921 = vmul.f32 %v161, -0.014891876
      %v1922 = vmul.f32 %v162, -0.014891876
      %v1923 = vmul.f32 %v163, -0.014891876
      %v1924 = vmul.f32 %v164, -0.014891876
      %1965 = vrot.lane.b32.xlu0 %v1885, 124
      %v1966 = vpop.permute.xlu0 %1965
      %1967 = vrot.lane.b32.xlu0 %v1886, 124
      %v1968 = vpop.permute.xlu0 %1967
      %1969 = vrot.lane.b32.xlu0 %v1887, 124
      %v1970 = vpop.permute.xlu0 %1969
      %1971 = vrot.lane.b32.xlu0 %v1888, 124
      %v1972 = vpop.permute.xlu0 %1971
      %1973 = vrot.lane.b32.xlu0 %v1889, 124
      %v1974 = vpop.permute.xlu0 %1973
      %1975 = vrot.lane.b32.xlu0 %v1890, 124
      %v1976 = vpop.permute.xlu0 %1975
      %1977 = vrot.lane.b32.xlu0 %v1891, 124
      %v1978 = vpop.permute.xlu0 %1977
      %1979 = vrot.lane.b32.xlu0 %v1892, 124
      %v1980 = vpop.permute.xlu0 %1979
      %1981 = vrot.lane.b32.xlu0 %v1893, 124
      %v1982 = vpop.permute.xlu0 %1981
      %1983 = vrot.lane.b32.xlu0 %v1894, 124
      %v1984 = vpop.permute.xlu0 %1983
      %1985 = vrot.lane.b32.xlu0 %v1895, 124
      %v1986 = vpop.permute.xlu0 %1985
      %1987 = vrot.lane.b32.xlu0 %v1896, 124
      %v1988 = vpop.permute.xlu0 %1987
      %1989 = vrot.lane.b32.xlu0 %v1897, 124
      %v1990 = vpop.permute.xlu0 %1989
      %1991 = vrot.lane.b32.xlu0 %v1898, 124
      %v1992 = vpop.permute.xlu0 %1991
      %1993 = vrot.lane.b32.xlu0 %v1899, 124
      %v1994 = vpop.permute.xlu0 %1993
      %1995 = vrot.lane.b32.xlu0 %v1900, 124
      %v1996 = vpop.permute.xlu0 %1995
      %1997 = vrot.lane.b32.xlu0 %v1901, 124
      %v1998 = vpop.permute.xlu0 %1997
      %1999 = vrot.lane.b32.xlu0 %v1902, 124
      %v2000 = vpop.permute.xlu0 %1999
      %2001 = vrot.lane.b32.xlu0 %v1903, 124
      %v2002 = vpop.permute.xlu0 %2001
      %2003 = vrot.lane.b32.xlu0 %v1904, 124
      %v2004 = vpop.permute.xlu0 %2003
      %2005 = vrot.lane.b32.xlu0 %v1905, 124
      %v2006 = vpop.permute.xlu0 %2005
      %2007 = vrot.lane.b32.xlu0 %v1906, 124
      %v2008 = vpop.permute.xlu0 %2007
      %2009 = vrot.lane.b32.xlu0 %v1907, 124
      %v2010 = vpop.permute.xlu0 %2009
      %2011 = vrot.lane.b32.xlu0 %v1908, 124
      %v2012 = vpop.permute.xlu0 %2011
      %2013 = vrot.lane.b32.xlu0 %v1909, 124
      %v2014 = vpop.permute.xlu0 %2013
      %2015 = vrot.lane.b32.xlu0 %v1910, 124
      %v2016 = vpop.permute.xlu0 %2015
      %2017 = vrot.lane.b32.xlu0 %v1911, 124
      %v2018 = vpop.permute.xlu0 %2017
      %2019 = vrot.lane.b32.xlu0 %v1912, 124
      %v2020 = vpop.permute.xlu0 %2019
      %2021 = vrot.lane.b32.xlu0 %v1913, 124
      %v2022 = vpop.permute.xlu0 %2021
      %2023 = vrot.lane.b32.xlu0 %v1914, 124
      %v2024 = vpop.permute.xlu0 %2023
      %2025 = vrot.lane.b32.xlu0 %v1915, 124
      %v2026 = vpop.permute.xlu0 %2025
      %2027 = vrot.lane.b32.xlu0 %v1916, 124
      %v2028 = vpop.permute.xlu0 %2027
      %2029 = vrot.lane.b32.xlu0 %v1917, 124
      %v2030 = vpop.permute.xlu0 %2029
      %2031 = vrot.lane.b32.xlu0 %v1918, 124
      %v2032 = vpop.permute.xlu0 %2031
      %2033 = vrot.lane.b32.xlu0 %v1919, 124
      %v2034 = vpop.permute.xlu0 %2033
      %2035 = vrot.lane.b32.xlu0 %v1920, 124
      %v2036 = vpop.permute.xlu0 %2035
      %2037 = vrot.lane.b32.xlu0 %v1921, 124
      %v2038 = vpop.permute.xlu0 %2037
      %2039 = vrot.lane.b32.xlu0 %v1922, 124
      %v2040 = vpop.permute.xlu0 %2039
      %2041 = vrot.lane.b32.xlu0 %v1923, 124
      %v2042 = vpop.permute.xlu0 %2041
      %2043 = vrot.lane.b32.xlu0 %v1924, 124
      %v2044 = vpop.permute.xlu0 %2043
      %v2085 = vadd.f32 %v1845, %v1966
      %v2086 = vadd.f32 %v1846, %v1968
      %v2087 = vadd.f32 %v1847, %v1970
      %v2088 = vadd.f32 %v1848, %v1972
      %v2089 = vadd.f32 %v1849, %v1974
      %v2090 = vadd.f32 %v1850, %v1976
      %v2091 = vadd.f32 %v1851, %v1978
      %v2092 = vadd.f32 %v1852, %v1980
      %v2093 = vadd.f32 %v1853, %v1982
      %v2094 = vadd.f32 %v1854, %v1984
      %v2095 = vadd.f32 %v1855, %v1986
      %v2096 = vadd.f32 %v1856, %v1988
      %v2097 = vadd.f32 %v1857, %v1990
      %v2098 = vadd.f32 %v1858, %v1992
      %v2099 = vadd.f32 %v1859, %v1994
      %v2100 = vadd.f32 %v1860, %v1996
      %v2101 = vadd.f32 %v1861, %v1998
      %v2102 = vadd.f32 %v1862, %v2000
      %v2103 = vadd.f32 %v1863, %v2002
      %v2104 = vadd.f32 %v1864, %v2004
      %v2105 = vadd.f32 %v1865, %v2006
      %v2106 = vadd.f32 %v1866, %v2008
      %v2107 = vadd.f32 %v1867, %v2010
      %v2108 = vadd.f32 %v1868, %v2012
      %v2109 = vadd.f32 %v1869, %v2014
      %v2110 = vadd.f32 %v1870, %v2016
      %v2111 = vadd.f32 %v1871, %v2018
      %v2112 = vadd.f32 %v1872, %v2020
      %v2113 = vadd.f32 %v1873, %v2022
      %v2114 = vadd.f32 %v1874, %v2024
      %v2115 = vadd.f32 %v1875, %v2026
      %v2116 = vadd.f32 %v1876, %v2028
      %v2117 = vadd.f32 %v1877, %v2030
      %v2118 = vadd.f32 %v1878, %v2032
      %v2119 = vadd.f32 %v1879, %v2034
      %v2120 = vadd.f32 %v1880, %v2036
      %v2121 = vadd.f32 %v1881, %v2038
      %v2122 = vadd.f32 %v1882, %v2040
      %v2123 = vadd.f32 %v1883, %v2042
      %v2124 = vadd.f32 %v1884, %v2044
      %v2125 = vmul.f32 %v125, 0.031625282
      %v2126 = vmul.f32 %v126, 0.031625282
      %v2127 = vmul.f32 %v127, 0.031625282
      %v2128 = vmul.f32 %v128, 0.031625282
      %v2129 = vmul.f32 %v129, 0.031625282
      %v2130 = vmul.f32 %v130, 0.031625282
      %v2131 = vmul.f32 %v131, 0.031625282
      %v2132 = vmul.f32 %v132, 0.031625282
      %v2133 = vmul.f32 %v133, 0.031625282
      %v2134 = vmul.f32 %v134, 0.031625282
      %v2135 = vmul.f32 %v135, 0.031625282
      %v2136 = vmul.f32 %v136, 0.031625282
      %v2137 = vmul.f32 %v137, 0.031625282
      %v2138 = vmul.f32 %v138, 0.031625282
      %v2139 = vmul.f32 %v139, 0.031625282
      %v2140 = vmul.f32 %v140, 0.031625282
      %v2141 = vmul.f32 %v141, 0.031625282
      %v2142 = vmul.f32 %v142, 0.031625282
      %v2143 = vmul.f32 %v143, 0.031625282
      %v2144 = vmul.f32 %v144, 0.031625282
      %v2145 = vmul.f32 %v145, 0.031625282
      %v2146 = vmul.f32 %v146, 0.031625282
      %v2147 = vmul.f32 %v147, 0.031625282
      %v2148 = vmul.f32 %v148, 0.031625282
      %v2149 = vmul.f32 %v149, 0.031625282
      %v2150 = vmul.f32 %v150, 0.031625282
      %v2151 = vmul.f32 %v151, 0.031625282
      %v2152 = vmul.f32 %v152, 0.031625282
      %v2153 = vmul.f32 %v153, 0.031625282
      %v2154 = vmul.f32 %v154, 0.031625282
      %v2155 = vmul.f32 %v155, 0.031625282
      %v2156 = vmul.f32 %v156, 0.031625282
      %v2157 = vmul.f32 %v157, 0.031625282
      %v2158 = vmul.f32 %v158, 0.031625282
      %v2159 = vmul.f32 %v159, 0.031625282
      %v2160 = vmul.f32 %v160, 0.031625282
      %v2161 = vmul.f32 %v161, 0.031625282
      %v2162 = vmul.f32 %v162, 0.031625282
      %v2163 = vmul.f32 %v163, 0.031625282
      %v2164 = vmul.f32 %v164, 0.031625282
      %2205 = vrot.lane.b32.xlu0 %v2125, 87
      %v2206 = vpop.permute.xlu0 %2205
      %2207 = vrot.lane.b32.xlu0 %v2126, 87
      %v2208 = vpop.permute.xlu0 %2207
      %2209 = vrot.lane.b32.xlu0 %v2127, 87
      %v2210 = vpop.permute.xlu0 %2209
      %2211 = vrot.lane.b32.xlu0 %v2128, 87
      %v2212 = vpop.permute.xlu0 %2211
      %2213 = vrot.lane.b32.xlu0 %v2129, 87
      %v2214 = vpop.permute.xlu0 %2213
      %2215 = vrot.lane.b32.xlu0 %v2130, 87
      %v2216 = vpop.permute.xlu0 %2215
      %2217 = vrot.lane.b32.xlu0 %v2131, 87
      %v2218 = vpop.permute.xlu0 %2217
      %2219 = vrot.lane.b32.xlu0 %v2132, 87
      %v2220 = vpop.permute.xlu0 %2219
      %2221 = vrot.lane.b32.xlu0 %v2133, 87
      %v2222 = vpop.permute.xlu0 %2221
      %2223 = vrot.lane.b32.xlu0 %v2134, 87
      %v2224 = vpop.permute.xlu0 %2223
      %2225 = vrot.lane.b32.xlu0 %v2135, 87
      %v2226 = vpop.permute.xlu0 %2225
      %2227 = vrot.lane.b32.xlu0 %v2136, 87
      %v2228 = vpop.permute.xlu0 %2227
      %2229 = vrot.lane.b32.xlu0 %v2137, 87
      %v2230 = vpop.permute.xlu0 %2229
      %2231 = vrot.lane.b32.xlu0 %v2138, 87
      %v2232 = vpop.permute.xlu0 %2231
      %2233 = vrot.lane.b32.xlu0 %v2139, 87
      %v2234 = vpop.permute.xlu0 %2233
      %2235 = vrot.lane.b32.xlu0 %v2140, 87
      %v2236 = vpop.permute.xlu0 %2235
      %2237 = vrot.lane.b32.xlu0 %v2141, 87
      %v2238 = vpop.permute.xlu0 %2237
      %2239 = vrot.lane.b32.xlu0 %v2142, 87
      %v2240 = vpop.permute.xlu0 %2239
      %2241 = vrot.lane.b32.xlu0 %v2143, 87
      %v2242 = vpop.permute.xlu0 %2241
      %2243 = vrot.lane.b32.xlu0 %v2144, 87
      %v2244 = vpop.permute.xlu0 %2243
      %2245 = vrot.lane.b32.xlu0 %v2145, 87
      %v2246 = vpop.permute.xlu0 %2245
      %2247 = vrot.lane.b32.xlu0 %v2146, 87
      %v2248 = vpop.permute.xlu0 %2247
      %2249 = vrot.lane.b32.xlu0 %v2147, 87
      %v2250 = vpop.permute.xlu0 %2249
      %2251 = vrot.lane.b32.xlu0 %v2148, 87
      %v2252 = vpop.permute.xlu0 %2251
      %2253 = vrot.lane.b32.xlu0 %v2149, 87
      %v2254 = vpop.permute.xlu0 %2253
      %2255 = vrot.lane.b32.xlu0 %v2150, 87
      %v2256 = vpop.permute.xlu0 %2255
      %2257 = vrot.lane.b32.xlu0 %v2151, 87
      %v2258 = vpop.permute.xlu0 %2257
      %2259 = vrot.lane.b32.xlu0 %v2152, 87
      %v2260 = vpop.permute.xlu0 %2259
      %2261 = vrot.lane.b32.xlu0 %v2153, 87
      %v2262 = vpop.permute.xlu0 %2261
      %2263 = vrot.lane.b32.xlu0 %v2154, 87
      %v2264 = vpop.permute.xlu0 %2263
      %2265 = vrot.lane.b32.xlu0 %v2155, 87
      %v2266 = vpop.permute.xlu0 %2265
      %2267 = vrot.lane.b32.xlu0 %v2156, 87
      %v2268 = vpop.permute.xlu0 %2267
      %2269 = vrot.lane.b32.xlu0 %v2157, 87
      %v2270 = vpop.permute.xlu0 %2269
      %2271 = vrot.lane.b32.xlu0 %v2158, 87
      %v2272 = vpop.permute.xlu0 %2271
      %2273 = vrot.lane.b32.xlu0 %v2159, 87
      %v2274 = vpop.permute.xlu0 %2273
      %2275 = vrot.lane.b32.xlu0 %v2160, 87
      %v2276 = vpop.permute.xlu0 %2275
      %2277 = vrot.lane.b32.xlu0 %v2161, 87
      %v2278 = vpop.permute.xlu0 %2277
      %2279 = vrot.lane.b32.xlu0 %v2162, 87
      %v2280 = vpop.permute.xlu0 %2279
      %2281 = vrot.lane.b32.xlu0 %v2163, 87
      %v2282 = vpop.permute.xlu0 %2281
      %2283 = vrot.lane.b32.xlu0 %v2164, 87
      %v2284 = vpop.permute.xlu0 %2283
      %v2325 = vadd.f32 %v2085, %v2206
      %v2326 = vadd.f32 %v2086, %v2208
      %v2327 = vadd.f32 %v2087, %v2210
      %v2328 = vadd.f32 %v2088, %v2212
      %v2329 = vadd.f32 %v2089, %v2214
      %v2330 = vadd.f32 %v2090, %v2216
      %v2331 = vadd.f32 %v2091, %v2218
      %v2332 = vadd.f32 %v2092, %v2220
      %v2333 = vadd.f32 %v2093, %v2222
      %v2334 = vadd.f32 %v2094, %v2224
      %v2335 = vadd.f32 %v2095, %v2226
      %v2336 = vadd.f32 %v2096, %v2228
      %v2337 = vadd.f32 %v2097, %v2230
      %v2338 = vadd.f32 %v2098, %v2232
      %v2339 = vadd.f32 %v2099, %v2234
      %v2340 = vadd.f32 %v2100, %v2236
      %v2341 = vadd.f32 %v2101, %v2238
      %v2342 = vadd.f32 %v2102, %v2240
      %v2343 = vadd.f32 %v2103, %v2242
      %v2344 = vadd.f32 %v2104, %v2244
      %v2345 = vadd.f32 %v2105, %v2246
      %v2346 = vadd.f32 %v2106, %v2248
      %v2347 = vadd.f32 %v2107, %v2250
      %v2348 = vadd.f32 %v2108, %v2252
      %v2349 = vadd.f32 %v2109, %v2254
      %v2350 = vadd.f32 %v2110, %v2256
      %v2351 = vadd.f32 %v2111, %v2258
      %v2352 = vadd.f32 %v2112, %v2260
      %v2353 = vadd.f32 %v2113, %v2262
      %v2354 = vadd.f32 %v2114, %v2264
      %v2355 = vadd.f32 %v2115, %v2266
      %v2356 = vadd.f32 %v2116, %v2268
      %v2357 = vadd.f32 %v2117, %v2270
      %v2358 = vadd.f32 %v2118, %v2272
      %v2359 = vadd.f32 %v2119, %v2274
      %v2360 = vadd.f32 %v2120, %v2276
      %v2361 = vadd.f32 %v2121, %v2278
      %v2362 = vadd.f32 %v2122, %v2280
      %v2363 = vadd.f32 %v2123, %v2282
      %v2364 = vadd.f32 %v2124, %v2284
      %v2365 = vmul.f32 %v125, 0.0012499611
      %v2366 = vmul.f32 %v126, 0.0012499611
      %v2367 = vmul.f32 %v127, 0.0012499611
      %v2368 = vmul.f32 %v128, 0.0012499611
      %v2369 = vmul.f32 %v129, 0.0012499611
      %v2370 = vmul.f32 %v130, 0.0012499611
      %v2371 = vmul.f32 %v131, 0.0012499611
      %v2372 = vmul.f32 %v132, 0.0012499611
      %v2373 = vmul.f32 %v133, 0.0012499611
      %v2374 = vmul.f32 %v134, 0.0012499611
      %v2375 = vmul.f32 %v135, 0.0012499611
      %v2376 = vmul.f32 %v136, 0.0012499611
      %v2377 = vmul.f32 %v137, 0.0012499611
      %v2378 = vmul.f32 %v138, 0.0012499611
      %v2379 = vmul.f32 %v139, 0.0012499611
      %v2380 = vmul.f32 %v140, 0.0012499611
      %v2381 = vmul.f32 %v141, 0.0012499611
      %v2382 = vmul.f32 %v142, 0.0012499611
      %v2383 = vmul.f32 %v143, 0.0012499611
      %v2384 = vmul.f32 %v144, 0.0012499611
      %v2385 = vmul.f32 %v145, 0.0012499611
      %v2386 = vmul.f32 %v146, 0.0012499611
      %v2387 = vmul.f32 %v147, 0.0012499611
      %v2388 = vmul.f32 %v148, 0.0012499611
      %v2389 = vmul.f32 %v149, 0.0012499611
      %v2390 = vmul.f32 %v150, 0.0012499611
      %v2391 = vmul.f32 %v151, 0.0012499611
      %v2392 = vmul.f32 %v152, 0.0012499611
      %v2393 = vmul.f32 %v153, 0.0012499611
      %v2394 = vmul.f32 %v154, 0.0012499611
      %v2395 = vmul.f32 %v155, 0.0012499611
      %v2396 = vmul.f32 %v156, 0.0012499611
      %v2397 = vmul.f32 %v157, 0.0012499611
      %v2398 = vmul.f32 %v158, 0.0012499611
      %v2399 = vmul.f32 %v159, 0.0012499611
      %v2400 = vmul.f32 %v160, 0.0012499611
      %v2401 = vmul.f32 %v161, 0.0012499611
      %v2402 = vmul.f32 %v162, 0.0012499611
      %v2403 = vmul.f32 %v163, 0.0012499611
      %v2404 = vmul.f32 %v164, 0.0012499611
      %2445 = vrot.lane.b32.xlu0 %v2365, 123
      %v2446 = vpop.permute.xlu0 %2445
      %2447 = vrot.lane.b32.xlu0 %v2366, 123
      %v2448 = vpop.permute.xlu0 %2447
      %2449 = vrot.lane.b32.xlu0 %v2367, 123
      %v2450 = vpop.permute.xlu0 %2449
      %2451 = vrot.lane.b32.xlu0 %v2368, 123
      %v2452 = vpop.permute.xlu0 %2451
      %2453 = vrot.lane.b32.xlu0 %v2369, 123
      %v2454 = vpop.permute.xlu0 %2453
      %2455 = vrot.lane.b32.xlu0 %v2370, 123
      %v2456 = vpop.permute.xlu0 %2455
      %2457 = vrot.lane.b32.xlu0 %v2371, 123
      %v2458 = vpop.permute.xlu0 %2457
      %2459 = vrot.lane.b32.xlu0 %v2372, 123
      %v2460 = vpop.permute.xlu0 %2459
      %2461 = vrot.lane.b32.xlu0 %v2373, 123
      %v2462 = vpop.permute.xlu0 %2461
      %2463 = vrot.lane.b32.xlu0 %v2374, 123
      %v2464 = vpop.permute.xlu0 %2463
      %2465 = vrot.lane.b32.xlu0 %v2375, 123
      %v2466 = vpop.permute.xlu0 %2465
      %2467 = vrot.lane.b32.xlu0 %v2376, 123
      %v2468 = vpop.permute.xlu0 %2467
      %2469 = vrot.lane.b32.xlu0 %v2377, 123
      %v2470 = vpop.permute.xlu0 %2469
      %2471 = vrot.lane.b32.xlu0 %v2378, 123
      %v2472 = vpop.permute.xlu0 %2471
      %2473 = vrot.lane.b32.xlu0 %v2379, 123
      %v2474 = vpop.permute.xlu0 %2473
      %2475 = vrot.lane.b32.xlu0 %v2380, 123
      %v2476 = vpop.permute.xlu0 %2475
      %2477 = vrot.lane.b32.xlu0 %v2381, 123
      %v2478 = vpop.permute.xlu0 %2477
      %2479 = vrot.lane.b32.xlu0 %v2382, 123
      %v2480 = vpop.permute.xlu0 %2479
      %2481 = vrot.lane.b32.xlu0 %v2383, 123
      %v2482 = vpop.permute.xlu0 %2481
      %2483 = vrot.lane.b32.xlu0 %v2384, 123
      %v2484 = vpop.permute.xlu0 %2483
      %2485 = vrot.lane.b32.xlu0 %v2385, 123
      %v2486 = vpop.permute.xlu0 %2485
      %2487 = vrot.lane.b32.xlu0 %v2386, 123
      %v2488 = vpop.permute.xlu0 %2487
      %2489 = vrot.lane.b32.xlu0 %v2387, 123
      %v2490 = vpop.permute.xlu0 %2489
      %2491 = vrot.lane.b32.xlu0 %v2388, 123
      %v2492 = vpop.permute.xlu0 %2491
      %2493 = vrot.lane.b32.xlu0 %v2389, 123
      %v2494 = vpop.permute.xlu0 %2493
      %2495 = vrot.lane.b32.xlu0 %v2390, 123
      %v2496 = vpop.permute.xlu0 %2495
      %2497 = vrot.lane.b32.xlu0 %v2391, 123
      %v2498 = vpop.permute.xlu0 %2497
      %2499 = vrot.lane.b32.xlu0 %v2392, 123
      %v2500 = vpop.permute.xlu0 %2499
      %2501 = vrot.lane.b32.xlu0 %v2393, 123
      %v2502 = vpop.permute.xlu0 %2501
      %2503 = vrot.lane.b32.xlu0 %v2394, 123
      %v2504 = vpop.permute.xlu0 %2503
      %2505 = vrot.lane.b32.xlu0 %v2395, 123
      %v2506 = vpop.permute.xlu0 %2505
      %2507 = vrot.lane.b32.xlu0 %v2396, 123
      %v2508 = vpop.permute.xlu0 %2507
      %2509 = vrot.lane.b32.xlu0 %v2397, 123
      %v2510 = vpop.permute.xlu0 %2509
      %2511 = vrot.lane.b32.xlu0 %v2398, 123
      %v2512 = vpop.permute.xlu0 %2511
      %2513 = vrot.lane.b32.xlu0 %v2399, 123
      %v2514 = vpop.permute.xlu0 %2513
      %2515 = vrot.lane.b32.xlu0 %v2400, 123
      %v2516 = vpop.permute.xlu0 %2515
      %2517 = vrot.lane.b32.xlu0 %v2401, 123
      %v2518 = vpop.permute.xlu0 %2517
      %2519 = vrot.lane.b32.xlu0 %v2402, 123
      %v2520 = vpop.permute.xlu0 %2519
      %2521 = vrot.lane.b32.xlu0 %v2403, 123
      %v2522 = vpop.permute.xlu0 %2521
      %2523 = vrot.lane.b32.xlu0 %v2404, 123
      %v2524 = vpop.permute.xlu0 %2523
      %v2565 = vadd.f32 %v2325, %v2446
      %v2566 = vadd.f32 %v2326, %v2448
      %v2567 = vadd.f32 %v2327, %v2450
      %v2568 = vadd.f32 %v2328, %v2452
      %v2569 = vadd.f32 %v2329, %v2454
      %v2570 = vadd.f32 %v2330, %v2456
      %v2571 = vadd.f32 %v2331, %v2458
      %v2572 = vadd.f32 %v2332, %v2460
      %v2573 = vadd.f32 %v2333, %v2462
      %v2574 = vadd.f32 %v2334, %v2464
      %v2575 = vadd.f32 %v2335, %v2466
      %v2576 = vadd.f32 %v2336, %v2468
      %v2577 = vadd.f32 %v2337, %v2470
      %v2578 = vadd.f32 %v2338, %v2472
      %v2579 = vadd.f32 %v2339, %v2474
      %v2580 = vadd.f32 %v2340, %v2476
      %v2581 = vadd.f32 %v2341, %v2478
      %v2582 = vadd.f32 %v2342, %v2480
      %v2583 = vadd.f32 %v2343, %v2482
      %v2584 = vadd.f32 %v2344, %v2484
      %v2585 = vadd.f32 %v2345, %v2486
      %v2586 = vadd.f32 %v2346, %v2488
      %v2587 = vadd.f32 %v2347, %v2490
      %v2588 = vadd.f32 %v2348, %v2492
      %v2589 = vadd.f32 %v2349, %v2494
      %v2590 = vadd.f32 %v2350, %v2496
      %v2591 = vadd.f32 %v2351, %v2498
      %v2592 = vadd.f32 %v2352, %v2500
      %v2593 = vadd.f32 %v2353, %v2502
      %v2594 = vadd.f32 %v2354, %v2504
      %v2595 = vadd.f32 %v2355, %v2506
      %v2596 = vadd.f32 %v2356, %v2508
      %v2597 = vadd.f32 %v2357, %v2510
      %v2598 = vadd.f32 %v2358, %v2512
      %v2599 = vadd.f32 %v2359, %v2514
      %v2600 = vadd.f32 %v2360, %v2516
      %v2601 = vadd.f32 %v2361, %v2518
      %v2602 = vadd.f32 %v2362, %v2520
      %v2603 = vadd.f32 %v2363, %v2522
      %v2604 = vadd.f32 %v2364, %v2524
      %v2605 = vmul.f32 %v125, -0.005515934
      %v2606 = vmul.f32 %v126, -0.005515934
      %v2607 = vmul.f32 %v127, -0.005515934
      %v2608 = vmul.f32 %v128, -0.005515934
      %v2609 = vmul.f32 %v129, -0.005515934
      %v2610 = vmul.f32 %v130, -0.005515934
      %v2611 = vmul.f32 %v131, -0.005515934
      %v2612 = vmul.f32 %v132, -0.005515934
      %v2613 = vmul.f32 %v133, -0.005515934
      %v2614 = vmul.f32 %v134, -0.005515934
      %v2615 = vmul.f32 %v135, -0.005515934
      %v2616 = vmul.f32 %v136, -0.005515934
      %v2617 = vmul.f32 %v137, -0.005515934
      %v2618 = vmul.f32 %v138, -0.005515934
      %v2619 = vmul.f32 %v139, -0.005515934
      %v2620 = vmul.f32 %v140, -0.005515934
      %v2621 = vmul.f32 %v141, -0.005515934
      %v2622 = vmul.f32 %v142, -0.005515934
      %v2623 = vmul.f32 %v143, -0.005515934
      %v2624 = vmul.f32 %v144, -0.005515934
      %v2625 = vmul.f32 %v145, -0.005515934
      %v2626 = vmul.f32 %v146, -0.005515934
      %v2627 = vmul.f32 %v147, -0.005515934
      %v2628 = vmul.f32 %v148, -0.005515934
      %v2629 = vmul.f32 %v149, -0.005515934
      %v2630 = vmul.f32 %v150, -0.005515934
      %v2631 = vmul.f32 %v151, -0.005515934
      %v2632 = vmul.f32 %v152, -0.005515934
      %v2633 = vmul.f32 %v153, -0.005515934
      %v2634 = vmul.f32 %v154, -0.005515934
      %v2635 = vmul.f32 %v155, -0.005515934
      %v2636 = vmul.f32 %v156, -0.005515934
      %v2637 = vmul.f32 %v157, -0.005515934
      %v2638 = vmul.f32 %v158, -0.005515934
      %v2639 = vmul.f32 %v159, -0.005515934
      %v2640 = vmul.f32 %v160, -0.005515934
      %v2641 = vmul.f32 %v161, -0.005515934
      %v2642 = vmul.f32 %v162, -0.005515934
      %v2643 = vmul.f32 %v163, -0.005515934
      %v2644 = vmul.f32 %v164, -0.005515934
      %2685 = vrot.lane.b32.xlu0 %v2605, 86
      %v2686 = vpop.permute.xlu0 %2685
      %2687 = vrot.lane.b32.xlu0 %v2606, 86
      %v2688 = vpop.permute.xlu0 %2687
      %2689 = vrot.lane.b32.xlu0 %v2607, 86
      %v2690 = vpop.permute.xlu0 %2689
      %2691 = vrot.lane.b32.xlu0 %v2608, 86
      %v2692 = vpop.permute.xlu0 %2691
      %2693 = vrot.lane.b32.xlu0 %v2609, 86
      %v2694 = vpop.permute.xlu0 %2693
      %2695 = vrot.lane.b32.xlu0 %v2610, 86
      %v2696 = vpop.permute.xlu0 %2695
      %2697 = vrot.lane.b32.xlu0 %v2611, 86
      %v2698 = vpop.permute.xlu0 %2697
      %2699 = vrot.lane.b32.xlu0 %v2612, 86
      %v2700 = vpop.permute.xlu0 %2699
      %2701 = vrot.lane.b32.xlu0 %v2613, 86
      %v2702 = vpop.permute.xlu0 %2701
      %2703 = vrot.lane.b32.xlu0 %v2614, 86
      %v2704 = vpop.permute.xlu0 %2703
      %2705 = vrot.lane.b32.xlu0 %v2615, 86
      %v2706 = vpop.permute.xlu0 %2705
      %2707 = vrot.lane.b32.xlu0 %v2616, 86
      %v2708 = vpop.permute.xlu0 %2707
      %2709 = vrot.lane.b32.xlu0 %v2617, 86
      %v2710 = vpop.permute.xlu0 %2709
      %2711 = vrot.lane.b32.xlu0 %v2618, 86
      %v2712 = vpop.permute.xlu0 %2711
      %2713 = vrot.lane.b32.xlu0 %v2619, 86
      %v2714 = vpop.permute.xlu0 %2713
      %2715 = vrot.lane.b32.xlu0 %v2620, 86
      %v2716 = vpop.permute.xlu0 %2715
      %2717 = vrot.lane.b32.xlu0 %v2621, 86
      %v2718 = vpop.permute.xlu0 %2717
      %2719 = vrot.lane.b32.xlu0 %v2622, 86
      %v2720 = vpop.permute.xlu0 %2719
      %2721 = vrot.lane.b32.xlu0 %v2623, 86
      %v2722 = vpop.permute.xlu0 %2721
      %2723 = vrot.lane.b32.xlu0 %v2624, 86
      %v2724 = vpop.permute.xlu0 %2723
      %2725 = vrot.lane.b32.xlu0 %v2625, 86
      %v2726 = vpop.permute.xlu0 %2725
      %2727 = vrot.lane.b32.xlu0 %v2626, 86
      %v2728 = vpop.permute.xlu0 %2727
      %2729 = vrot.lane.b32.xlu0 %v2627, 86
      %v2730 = vpop.permute.xlu0 %2729
      %2731 = vrot.lane.b32.xlu0 %v2628, 86
      %v2732 = vpop.permute.xlu0 %2731
      %2733 = vrot.lane.b32.xlu0 %v2629, 86
      %v2734 = vpop.permute.xlu0 %2733
      %2735 = vrot.lane.b32.xlu0 %v2630, 86
      %v2736 = vpop.permute.xlu0 %2735
      %2737 = vrot.lane.b32.xlu0 %v2631, 86
      %v2738 = vpop.permute.xlu0 %2737
      %2739 = vrot.lane.b32.xlu0 %v2632, 86
      %v2740 = vpop.permute.xlu0 %2739
      %2741 = vrot.lane.b32.xlu0 %v2633, 86
      %v2742 = vpop.permute.xlu0 %2741
      %2743 = vrot.lane.b32.xlu0 %v2634, 86
      %v2744 = vpop.permute.xlu0 %2743
      %2745 = vrot.lane.b32.xlu0 %v2635, 86
      %v2746 = vpop.permute.xlu0 %2745
      %2747 = vrot.lane.b32.xlu0 %v2636, 86
      %v2748 = vpop.permute.xlu0 %2747
      %2749 = vrot.lane.b32.xlu0 %v2637, 86
      %v2750 = vpop.permute.xlu0 %2749
      %2751 = vrot.lane.b32.xlu0 %v2638, 86
      %v2752 = vpop.permute.xlu0 %2751
      %2753 = vrot.lane.b32.xlu0 %v2639, 86
      %v2754 = vpop.permute.xlu0 %2753
      %2755 = vrot.lane.b32.xlu0 %v2640, 86
      %v2756 = vpop.permute.xlu0 %2755
      %2757 = vrot.lane.b32.xlu0 %v2641, 86
      %v2758 = vpop.permute.xlu0 %2757
      %2759 = vrot.lane.b32.xlu0 %v2642, 86
      %v2760 = vpop.permute.xlu0 %2759
      %2761 = vrot.lane.b32.xlu0 %v2643, 86
      %v2762 = vpop.permute.xlu0 %2761
      %2763 = vrot.lane.b32.xlu0 %v2644, 86
      %v2764 = vpop.permute.xlu0 %2763
      %v2805 = vadd.f32 %v2565, %v2686
      %v2806 = vadd.f32 %v2566, %v2688
      %v2807 = vadd.f32 %v2567, %v2690
      %v2808 = vadd.f32 %v2568, %v2692
      %v2809 = vadd.f32 %v2569, %v2694
      %v2810 = vadd.f32 %v2570, %v2696
      %v2811 = vadd.f32 %v2571, %v2698
      %v2812 = vadd.f32 %v2572, %v2700
      %v2813 = vadd.f32 %v2573, %v2702
      %v2814 = vadd.f32 %v2574, %v2704
      %v2815 = vadd.f32 %v2575, %v2706
      %v2816 = vadd.f32 %v2576, %v2708
      %v2817 = vadd.f32 %v2577, %v2710
      %v2818 = vadd.f32 %v2578, %v2712
      %v2819 = vadd.f32 %v2579, %v2714
      %v2820 = vadd.f32 %v2580, %v2716
      %v2821 = vadd.f32 %v2581, %v2718
      %v2822 = vadd.f32 %v2582, %v2720
      %v2823 = vadd.f32 %v2583, %v2722
      %v2824 = vadd.f32 %v2584, %v2724
      %v2825 = vadd.f32 %v2585, %v2726
      %v2826 = vadd.f32 %v2586, %v2728
      %v2827 = vadd.f32 %v2587, %v2730
      %v2828 = vadd.f32 %v2588, %v2732
      %v2829 = vadd.f32 %v2589, %v2734
      %v2830 = vadd.f32 %v2590, %v2736
      %v2831 = vadd.f32 %v2591, %v2738
      %v2832 = vadd.f32 %v2592, %v2740
      %v2833 = vadd.f32 %v2593, %v2742
      %v2834 = vadd.f32 %v2594, %v2744
      %v2835 = vadd.f32 %v2595, %v2746
      %v2836 = vadd.f32 %v2596, %v2748
      %v2837 = vadd.f32 %v2597, %v2750
      %v2838 = vadd.f32 %v2598, %v2752
      %v2839 = vadd.f32 %v2599, %v2754
      %v2840 = vadd.f32 %v2600, %v2756
      %v2841 = vadd.f32 %v2601, %v2758
      %v2842 = vadd.f32 %v2602, %v2760
      %v2843 = vadd.f32 %v2603, %v2762
      %v2844 = vadd.f32 %v2604, %v2764
      %vm2845 = vcmask 261120
      %2846 = vst.msk [vmem:[#allocation2] sm:$0xff] %vm2845, %v2805
      %2847 = vst.msk [vmem:[#allocation2 + $0x8] sm:$0xff] %vm2845, %v2806
      %2848 = vst.msk [vmem:[#allocation2 + $0x10] sm:$0xff] %vm2845, %v2807
      %2849 = vst.msk [vmem:[#allocation2 + $0x18] sm:$0xff] %vm2845, %v2808
      %2850 = vst.msk [vmem:[#allocation2 + $0x20] sm:$0xff] %vm2845, %v2809
      %2851 = vst.msk [vmem:[#allocation2 + $0x28] sm:$0xff] %vm2845, %v2810
      %2852 = vst.msk [vmem:[#allocation2 + $0x30] sm:$0xff] %vm2845, %v2811
      %2853 = vst.msk [vmem:[#allocation2 + $0x38] sm:$0xff] %vm2845, %v2812
      %2854 = vst.msk [vmem:[#allocation2 + $0x40] sm:$0xff] %vm2845, %v2813
      %vm2855 = vcmask 254976
      %2856 = vst.msk [vmem:[#allocation2 + $0x48] sm:$0x3] %vm2855, %v2814
      %2857 = vst.msk [vmem:[#allocation2 + $0x50] sm:$0xff] %vm2845, %v2815
      %2858 = vst.msk [vmem:[#allocation2 + $0x58] sm:$0xff] %vm2845, %v2816
      %2859 = vst.msk [vmem:[#allocation2 + $0x60] sm:$0xff] %vm2845, %v2817
      %2860 = vst.msk [vmem:[#allocation2 + $0x68] sm:$0xff] %vm2845, %v2818
      %2861 = vst.msk [vmem:[#allocation2 + $0x70] sm:$0xff] %vm2845, %v2819
      %2862 = vst.msk [vmem:[#allocation2 + $0x78] sm:$0xff] %vm2845, %v2820
      %2863 = vst.msk [vmem:[#allocation2 + $0x80] sm:$0xff] %vm2845, %v2821
      %2864 = vst.msk [vmem:[#allocation2 + $0x88] sm:$0xff] %vm2845, %v2822
      %2865 = vst.msk [vmem:[#allocation2 + $0x90] sm:$0xff] %vm2845, %v2823
      %2866 = vst.msk [vmem:[#allocation2 + $0x98] sm:$0x3] %vm2855, %v2824
      %2867 = vst.msk [vmem:[#allocation2 + $0xa0] sm:$0xff] %vm2845, %v2825
      %2868 = vst.msk [vmem:[#allocation2 + $0xa8] sm:$0xff] %vm2845, %v2826
      %2869 = vst.msk [vmem:[#allocation2 + $0xb0] sm:$0xff] %vm2845, %v2827
      %2870 = vst.msk [vmem:[#allocation2 + $0xb8] sm:$0xff] %vm2845, %v2828
      %2871 = vst.msk [vmem:[#allocation2 + $0xc0] sm:$0xff] %vm2845, %v2829
      %2872 = vst.msk [vmem:[#allocation2 + $0xc8] sm:$0xff] %vm2845, %v2830
      %2873 = vst.msk [vmem:[#allocation2 + $0xd0] sm:$0xff] %vm2845, %v2831
      %2874 = vst.msk [vmem:[#allocation2 + $0xd8] sm:$0xff] %vm2845, %v2832
      %2875 = vst.msk [vmem:[#allocation2 + $0xe0] sm:$0xff] %vm2845, %v2833
      %2876 = vst.msk [vmem:[#allocation2 + $0xe8] sm:$0x3] %vm2855, %v2834
      %2877 = vst.msk [vmem:[#allocation2 + $0xf0] sm:$0xff] %vm2845, %v2835
      %2878 = vst.msk [vmem:[#allocation2 + $0xf8] sm:$0xff] %vm2845, %v2836
      %2879 = vst.msk [vmem:[#allocation2 + $0x100] sm:$0xff] %vm2845, %v2837
      %2880 = vst.msk [vmem:[#allocation2 + $0x108] sm:$0xff] %vm2845, %v2838
      %2881 = vst.msk [vmem:[#allocation2 + $0x110] sm:$0xff] %vm2845, %v2839
      %2882 = vst.msk [vmem:[#allocation2 + $0x118] sm:$0xff] %vm2845, %v2840
      %2883 = vst.msk [vmem:[#allocation2 + $0x120] sm:$0xff] %vm2845, %v2841
      %2884 = vst.msk [vmem:[#allocation2 + $0x128] sm:$0xff] %vm2845, %v2842
      %2885 = vst.msk [vmem:[#allocation2 + $0x130] sm:$0xff] %vm2845, %v2843
      %2886 = vst.msk [vmem:[#allocation2 + $0x138] sm:$0x3] %vm2855, %v2844
      %v2887 = vld [vmem:[#allocation2] sm:$0xff]
      %v2888 = vld [vmem:[#allocation2 + $0x8] sm:$0xff]
      %v2889 = vld [vmem:[#allocation2 + $0x10] sm:$0xff]
      %v2890 = vld [vmem:[#allocation2 + $0x18] sm:$0xff]
      %v2891 = vld [vmem:[#allocation2 + $0x50] sm:$0xff]
      %v2892 = vld [vmem:[#allocation2 + $0x58] sm:$0xff]
      %v2893 = vld [vmem:[#allocation2 + $0x60] sm:$0xff]
      %v2894 = vld [vmem:[#allocation2 + $0x68] sm:$0xff]
      %v2895 = vld [vmem:[#allocation2 + $0xa0] sm:$0xff]
      %v2896 = vld [vmem:[#allocation2 + $0xa8] sm:$0xff]
      %v2897 = vld [vmem:[#allocation2 + $0xb0] sm:$0xff]
      %v2898 = vld [vmem:[#allocation2 + $0xb8] sm:$0xff]
      %v2899 = vld [vmem:[#allocation2 + $0xf0] sm:$0xff]
      %v2900 = vld [vmem:[#allocation2 + $0xf8] sm:$0xff]
      %v2901 = vld [vmem:[#allocation2 + $0x100] sm:$0xff]
      %v2902 = vld [vmem:[#allocation2 + $0x108] sm:$0xff]
      %v2903 = vmul.f32 %v2887, 0.01089235
      %v2904 = vmul.f32 %v2888, 0.01089235
      %v2905 = vmul.f32 %v2889, 0.01089235
      %v2906 = vmul.f32 %v2890, 0.01089235
      %v2907 = vmul.f32 %v2891, 0.01089235
      %v2908 = vmul.f32 %v2892, 0.01089235
      %v2909 = vmul.f32 %v2893, 0.01089235
      %v2910 = vmul.f32 %v2894, 0.01089235
      %v2911 = vmul.f32 %v2895, 0.01089235
      %v2912 = vmul.f32 %v2896, 0.01089235
      %v2913 = vmul.f32 %v2897, 0.01089235
      %v2914 = vmul.f32 %v2898, 0.01089235
      %v2915 = vmul.f32 %v2899, 0.01089235
      %v2916 = vmul.f32 %v2900, 0.01089235
      %v2917 = vmul.f32 %v2901, 0.01089235
      %v2918 = vmul.f32 %v2902, 0.01089235
      %v2919 = vld [vmem:[#allocation2 + $0x25] sm:$0xff]
      %v2920 = vld [vmem:[#allocation2 + $0x2d] sm:$0xff]
      %v2921 = vld [vmem:[#allocation2 + $0x35] sm:$0xff]
      %v2922 = vld [vmem:[#allocation2 + $0x3d] sm:$0xff]
      %v2923 = vld [vmem:[#allocation2 + $0x75] sm:$0xff]
      %v2924 = vld [vmem:[#allocation2 + $0x7d] sm:$0xff]
      %v2925 = vld [vmem:[#allocation2 + $0x85] sm:$0xff]
      %v2926 = vld [vmem:[#allocation2 + $0x8d] sm:$0xff]
      %v2927 = vld [vmem:[#allocation2 + $0xc5] sm:$0xff]
      %v2928 = vld [vmem:[#allocation2 + $0xcd] sm:$0xff]
      %v2929 = vld [vmem:[#allocation2 + $0xd5] sm:$0xff]
      %v2930 = vld [vmem:[#allocation2 + $0xdd] sm:$0xff]
      %v2931 = vld [vmem:[#allocation2 + $0x115] sm:$0xff]
      %v2932 = vld [vmem:[#allocation2 + $0x11d] sm:$0xff]
      %v2933 = vld [vmem:[#allocation2 + $0x125] sm:$0xff]
      %v2934 = vld [vmem:[#allocation2 + $0x12d] sm:$0xff]
      %v2935 = vmul.f32 %v2919, 0.002468306
      %v2936 = vmul.f32 %v2920, 0.002468306
      %v2937 = vmul.f32 %v2921, 0.002468306
      %v2938 = vmul.f32 %v2922, 0.002468306
      %v2939 = vmul.f32 %v2923, 0.002468306
      %v2940 = vmul.f32 %v2924, 0.002468306
      %v2941 = vmul.f32 %v2925, 0.002468306
      %v2942 = vmul.f32 %v2926, 0.002468306
      %v2943 = vmul.f32 %v2927, 0.002468306
      %v2944 = vmul.f32 %v2928, 0.002468306
      %v2945 = vmul.f32 %v2929, 0.002468306
      %v2946 = vmul.f32 %v2930, 0.002468306
      %v2947 = vmul.f32 %v2931, 0.002468306
      %v2948 = vmul.f32 %v2932, 0.002468306
      %v2949 = vmul.f32 %v2933, 0.002468306
      %v2950 = vmul.f32 %v2934, 0.002468306
      %v2951 = vadd.f32 %v2903, %v2935
      %v2952 = vadd.f32 %v2904, %v2936
      %v2953 = vadd.f32 %v2905, %v2937
      %v2954 = vadd.f32 %v2906, %v2938
      %v2955 = vadd.f32 %v2907, %v2939
      %v2956 = vadd.f32 %v2908, %v2940
      %v2957 = vadd.f32 %v2909, %v2941
      %v2958 = vadd.f32 %v2910, %v2942
      %v2959 = vadd.f32 %v2911, %v2943
      %v2960 = vadd.f32 %v2912, %v2944
      %v2961 = vadd.f32 %v2913, %v2945
      %v2962 = vadd.f32 %v2914, %v2946
      %v2963 = vadd.f32 %v2915, %v2947
      %v2964 = vadd.f32 %v2916, %v2948
      %v2965 = vadd.f32 %v2917, %v2949
      %v2966 = vadd.f32 %v2918, %v2950
      %v2967 = vld [vmem:[#allocation2 + $0x1] sm:$0xff]
      %v2968 = vld [vmem:[#allocation2 + $0x9] sm:$0xff]
      %v2969 = vld [vmem:[#allocation2 + $0x11] sm:$0xff]
      %v2970 = vld [vmem:[#allocation2 + $0x19] sm:$0xff]
      %v2971 = vld [vmem:[#allocation2 + $0x51] sm:$0xff]
      %v2972 = vld [vmem:[#allocation2 + $0x59] sm:$0xff]
      %v2973 = vld [vmem:[#allocation2 + $0x61] sm:$0xff]
      %v2974 = vld [vmem:[#allocation2 + $0x69] sm:$0xff]
      %v2975 = vld [vmem:[#allocation2 + $0xa1] sm:$0xff]
      %v2976 = vld [vmem:[#allocation2 + $0xa9] sm:$0xff]
      %v2977 = vld [vmem:[#allocation2 + $0xb1] sm:$0xff]
      %v2978 = vld [vmem:[#allocation2 + $0xb9] sm:$0xff]
      %v2979 = vld [vmem:[#allocation2 + $0xf1] sm:$0xff]
      %v2980 = vld [vmem:[#allocation2 + $0xf9] sm:$0xff]
      %v2981 = vld [vmem:[#allocation2 + $0x101] sm:$0xff]
      %v2982 = vld [vmem:[#allocation2 + $0x109] sm:$0xff]
      %v2983 = vmul.f32 %v2967, -0.08343161
      %v2984 = vmul.f32 %v2968, -0.08343161
      %v2985 = vmul.f32 %v2969, -0.08343161
      %v2986 = vmul.f32 %v2970, -0.08343161
      %v2987 = vmul.f32 %v2971, -0.08343161
      %v2988 = vmul.f32 %v2972, -0.08343161
      %v2989 = vmul.f32 %v2973, -0.08343161
      %v2990 = vmul.f32 %v2974, -0.08343161
      %v2991 = vmul.f32 %v2975, -0.08343161
      %v2992 = vmul.f32 %v2976, -0.08343161
      %v2993 = vmul.f32 %v2977, -0.08343161
      %v2994 = vmul.f32 %v2978, -0.08343161
      %v2995 = vmul.f32 %v2979, -0.08343161
      %v2996 = vmul.f32 %v2980, -0.08343161
      %v2997 = vmul.f32 %v2981, -0.08343161
      %v2998 = vmul.f32 %v2982, -0.08343161
      %v2999 = vadd.f32 %v2951, %v2983
      %v3000 = vadd.f32 %v2952, %v2984
      %v3001 = vadd.f32 %v2953, %v2985
      %v3002 = vadd.f32 %v2954, %v2986
      %v3003 = vadd.f32 %v2955, %v2987
      %v3004 = vadd.f32 %v2956, %v2988
      %v3005 = vadd.f32 %v2957, %v2989
      %v3006 = vadd.f32 %v2958, %v2990
      %v3007 = vadd.f32 %v2959, %v2991
      %v3008 = vadd.f32 %v2960, %v2992
      %v3009 = vadd.f32 %v2961, %v2993
      %v3010 = vadd.f32 %v2962, %v2994
      %v3011 = vadd.f32 %v2963, %v2995
      %v3012 = vadd.f32 %v2964, %v2996
      %v3013 = vadd.f32 %v2965, %v2997
      %v3014 = vadd.f32 %v2966, %v2998
      %v3015 = vld [vmem:[#allocation2 + $0x26] sm:$0xff]
      %v3016 = vld [vmem:[#allocation2 + $0x2e] sm:$0xff]
      %v3017 = vld [vmem:[#allocation2 + $0x36] sm:$0xff]
      %v3018 = vld [vmem:[#allocation2 + $0x3e] sm:$0xff]
      %v3019 = vld [vmem:[#allocation2 + $0x76] sm:$0xff]
      %v3020 = vld [vmem:[#allocation2 + $0x7e] sm:$0xff]
      %v3021 = vld [vmem:[#allocation2 + $0x86] sm:$0xff]
      %v3022 = vld [vmem:[#allocation2 + $0x8e] sm:$0xff]
      %v3023 = vld [vmem:[#allocation2 + $0xc6] sm:$0xff]
      %v3024 = vld [vmem:[#allocation2 + $0xce] sm:$0xff]
      %v3025 = vld [vmem:[#allocation2 + $0xd6] sm:$0xff]
      %v3026 = vld [vmem:[#allocation2 + $0xde] sm:$0xff]
      %v3027 = vld [vmem:[#allocation2 + $0x116] sm:$0xff]
      %v3028 = vld [vmem:[#allocation2 + $0x11e] sm:$0xff]
      %v3029 = vld [vmem:[#allocation2 + $0x126] sm:$0xff]
      %v3030 = vld [vmem:[#allocation2 + $0x12e] sm:$0xff]
      %v3031 = vmul.f32 %v3015, -0.03416156
      %v3032 = vmul.f32 %v3016, -0.03416156
      %v3033 = vmul.f32 %v3017, -0.03416156
      %v3034 = vmul.f32 %v3018, -0.03416156
      %v3035 = vmul.f32 %v3019, -0.03416156
      %v3036 = vmul.f32 %v3020, -0.03416156
      %v3037 = vmul.f32 %v3021, -0.03416156
      %v3038 = vmul.f32 %v3022, -0.03416156
      %v3039 = vmul.f32 %v3023, -0.03416156
      %v3040 = vmul.f32 %v3024, -0.03416156
      %v3041 = vmul.f32 %v3025, -0.03416156
      %v3042 = vmul.f32 %v3026, -0.03416156
      %v3043 = vmul.f32 %v3027, -0.03416156
      %v3044 = vmul.f32 %v3028, -0.03416156
      %v3045 = vmul.f32 %v3029, -0.03416156
      %v3046 = vmul.f32 %v3030, -0.03416156
      %v3047 = vadd.f32 %v2999, %v3031
      %v3048 = vadd.f32 %v3000, %v3032
      %v3049 = vadd.f32 %v3001, %v3033
      %v3050 = vadd.f32 %v3002, %v3034
      %v3051 = vadd.f32 %v3003, %v3035
      %v3052 = vadd.f32 %v3004, %v3036
      %v3053 = vadd.f32 %v3005, %v3037
      %v3054 = vadd.f32 %v3006, %v3038
      %v3055 = vadd.f32 %v3007, %v3039
      %v3056 = vadd.f32 %v3008, %v3040
      %v3057 = vadd.f32 %v3009, %v3041
      %v3058 = vadd.f32 %v3010, %v3042
      %v3059 = vadd.f32 %v3011, %v3043
      %v3060 = vadd.f32 %v3012, %v3044
      %v3061 = vadd.f32 %v3013, %v3045
      %v3062 = vadd.f32 %v3014, %v3046
      %v3063 = vld [vmem:[#allocation2 + $0x2] sm:$0xff]
      %v3064 = vld [vmem:[#allocation2 + $0xa] sm:$0xff]
      %v3065 = vld [vmem:[#allocation2 + $0x12] sm:$0xff]
      %v3066 = vld [vmem:[#allocation2 + $0x1a] sm:$0xff]
      %v3067 = vld [vmem:[#allocation2 + $0x52] sm:$0xff]
      %v3068 = vld [vmem:[#allocation2 + $0x5a] sm:$0xff]
      %v3069 = vld [vmem:[#allocation2 + $0x62] sm:$0xff]
      %v3070 = vld [vmem:[#allocation2 + $0x6a] sm:$0xff]
      %v3071 = vld [vmem:[#allocation2 + $0xa2] sm:$0xff]
      %v3072 = vld [vmem:[#allocation2 + $0xaa] sm:$0xff]
      %v3073 = vld [vmem:[#allocation2 + $0xb2] sm:$0xff]
      %v3074 = vld [vmem:[#allocation2 + $0xba] sm:$0xff]
      %v3075 = vld [vmem:[#allocation2 + $0xf2] sm:$0xff]
      %v3076 = vld [vmem:[#allocation2 + $0xfa] sm:$0xff]
      %v3077 = vld [vmem:[#allocation2 + $0x102] sm:$0xff]
      %v3078 = vld [vmem:[#allocation2 + $0x10a] sm:$0xff]
      %v3079 = vmul.f32 %v3063, 0.34722897
      %v3080 = vmul.f32 %v3064, 0.34722897
      %v3081 = vmul.f32 %v3065, 0.34722897
      %v3082 = vmul.f32 %v3066, 0.34722897
      %v3083 = vmul.f32 %v3067, 0.34722897
      %v3084 = vmul.f32 %v3068, 0.34722897
      %v3085 = vmul.f32 %v3069, 0.34722897
      %v3086 = vmul.f32 %v3070, 0.34722897
      %v3087 = vmul.f32 %v3071, 0.34722897
      %v3088 = vmul.f32 %v3072, 0.34722897
      %v3089 = vmul.f32 %v3073, 0.34722897
      %v3090 = vmul.f32 %v3074, 0.34722897
      %v3091 = vmul.f32 %v3075, 0.34722897
      %v3092 = vmul.f32 %v3076, 0.34722897
      %v3093 = vmul.f32 %v3077, 0.34722897
      %v3094 = vmul.f32 %v3078, 0.34722897
      %v3095 = vadd.f32 %v3047, %v3079
      %v3096 = vadd.f32 %v3048, %v3080
      %v3097 = vadd.f32 %v3049, %v3081
      %v3098 = vadd.f32 %v3050, %v3082
      %v3099 = vadd.f32 %v3051, %v3083
      %v3100 = vadd.f32 %v3052, %v3084
      %v3101 = vadd.f32 %v3053, %v3085
      %v3102 = vadd.f32 %v3054, %v3086
      %v3103 = vadd.f32 %v3055, %v3087
      %v3104 = vadd.f32 %v3056, %v3088
      %v3105 = vadd.f32 %v3057, %v3089
      %v3106 = vadd.f32 %v3058, %v3090
      %v3107 = vadd.f32 %v3059, %v3091
      %v3108 = vadd.f32 %v3060, %v3092
      %v3109 = vadd.f32 %v3061, %v3093
      %v3110 = vadd.f32 %v3062, %v3094
      %v3111 = vld [vmem:[#allocation2 + $0x27] sm:$0xff]
      %v3112 = vld [vmem:[#allocation2 + $0x2f] sm:$0xff]
      %v3113 = vld [vmem:[#allocation2 + $0x37] sm:$0xff]
      %v3114 = vld [vmem:[#allocation2 + $0x3f] sm:$0xff]
      %v3115 = vld [vmem:[#allocation2 + $0x77] sm:$0xff]
      %v3116 = vld [vmem:[#allocation2 + $0x7f] sm:$0xff]
      %v3117 = vld [vmem:[#allocation2 + $0x87] sm:$0xff]
      %v3118 = vld [vmem:[#allocation2 + $0x8f] sm:$0xff]
      %v3119 = vld [vmem:[#allocation2 + $0xc7] sm:$0xff]
      %v3120 = vld [vmem:[#allocation2 + $0xcf] sm:$0xff]
      %v3121 = vld [vmem:[#allocation2 + $0xd7] sm:$0xff]
      %v3122 = vld [vmem:[#allocation2 + $0xdf] sm:$0xff]
      %v3123 = vld [vmem:[#allocation2 + $0x117] sm:$0xff]
      %v3124 = vld [vmem:[#allocation2 + $0x11f] sm:$0xff]
      %v3125 = vld [vmem:[#allocation2 + $0x127] sm:$0xff]
      %v3126 = vld [vmem:[#allocation2 + $0x12f] sm:$0xff]
      %v3127 = vmul.f32 %v3111, 0.5569464
      %v3128 = vmul.f32 %v3112, 0.5569464
      %v3129 = vmul.f32 %v3113, 0.5569464
      %v3130 = vmul.f32 %v3114, 0.5569464
      %v3131 = vmul.f32 %v3115, 0.5569464
      %v3132 = vmul.f32 %v3116, 0.5569464
      %v3133 = vmul.f32 %v3117, 0.5569464
      %v3134 = vmul.f32 %v3118, 0.5569464
      %v3135 = vmul.f32 %v3119, 0.5569464
      %v3136 = vmul.f32 %v3120, 0.5569464
      %v3137 = vmul.f32 %v3121, 0.5569464
      %v3138 = vmul.f32 %v3122, 0.5569464
      %v3139 = vmul.f32 %v3123, 0.5569464
      %v3140 = vmul.f32 %v3124, 0.5569464
      %v3141 = vmul.f32 %v3125, 0.5569464
      %v3142 = vmul.f32 %v3126, 0.5569464
      %v3143 = vadd.f32 %v3095, %v3127
      %v3144 = vadd.f32 %v3096, %v3128
      %v3145 = vadd.f32 %v3097, %v3129
      %v3146 = vadd.f32 %v3098, %v3130
      %v3147 = vadd.f32 %v3099, %v3131
      %v3148 = vadd.f32 %v3100, %v3132
      %v3149 = vadd.f32 %v3101, %v3133
      %v3150 = vadd.f32 %v3102, %v3134
      %v3151 = vadd.f32 %v3103, %v3135
      %v3152 = vadd.f32 %v3104, %v3136
      %v3153 = vadd.f32 %v3105, %v3137
      %v3154 = vadd.f32 %v3106, %v3138
      %v3155 = vadd.f32 %v3107, %v3139
      %v3156 = vadd.f32 %v3108, %v3140
      %v3157 = vadd.f32 %v3109, %v3141
      %v3158 = vadd.f32 %v3110, %v3142
      %v3159 = vld [vmem:[#allocation2 + $0x3] sm:$0xff]
      %v3160 = vld [vmem:[#allocation2 + $0xb] sm:$0xff]
      %v3161 = vld [vmem:[#allocation2 + $0x13] sm:$0xff]
      %v3162 = vld [vmem:[#allocation2 + $0x1b] sm:$0xff]
      %v3163 = vld [vmem:[#allocation2 + $0x53] sm:$0xff]
      %v3164 = vld [vmem:[#allocation2 + $0x5b] sm:$0xff]
      %v3165 = vld [vmem:[#allocation2 + $0x63] sm:$0xff]
      %v3166 = vld [vmem:[#allocation2 + $0x6b] sm:$0xff]
      %v3167 = vld [vmem:[#allocation2 + $0xa3] sm:$0xff]
      %v3168 = vld [vmem:[#allocation2 + $0xab] sm:$0xff]
      %v3169 = vld [vmem:[#allocation2 + $0xb3] sm:$0xff]
      %v3170 = vld [vmem:[#allocation2 + $0xbb] sm:$0xff]
      %v3171 = vld [vmem:[#allocation2 + $0xf3] sm:$0xff]
      %v3172 = vld [vmem:[#allocation2 + $0xfb] sm:$0xff]
      %v3173 = vld [vmem:[#allocation2 + $0x103] sm:$0xff]
      %v3174 = vld [vmem:[#allocation2 + $0x10b] sm:$0xff]
      %v3175 = vmul.f32 %v3159, 0.23895219
      %v3176 = vmul.f32 %v3160, 0.23895219
      %v3177 = vmul.f32 %v3161, 0.23895219
      %v3178 = vmul.f32 %v3162, 0.23895219
      %v3179 = vmul.f32 %v3163, 0.23895219
      %v3180 = vmul.f32 %v3164, 0.23895219
      %v3181 = vmul.f32 %v3165, 0.23895219
      %v3182 = vmul.f32 %v3166, 0.23895219
      %v3183 = vmul.f32 %v3167, 0.23895219
      %v3184 = vmul.f32 %v3168, 0.23895219
      %v3185 = vmul.f32 %v3169, 0.23895219
      %v3186 = vmul.f32 %v3170, 0.23895219
      %v3187 = vmul.f32 %v3171, 0.23895219
      %v3188 = vmul.f32 %v3172, 0.23895219
      %v3189 = vmul.f32 %v3173, 0.23895219
      %v3190 = vmul.f32 %v3174, 0.23895219
      %v3191 = vadd.f32 %v3143, %v3175
      %v3192 = vadd.f32 %v3144, %v3176
      %v3193 = vadd.f32 %v3145, %v3177
      %v3194 = vadd.f32 %v3146, %v3178
      %v3195 = vadd.f32 %v3147, %v3179
      %v3196 = vadd.f32 %v3148, %v3180
      %v3197 = vadd.f32 %v3149, %v3181
      %v3198 = vadd.f32 %v3150, %v3182
      %v3199 = vadd.f32 %v3151, %v3183
      %v3200 = vadd.f32 %v3152, %v3184
      %v3201 = vadd.f32 %v3153, %v3185
      %v3202 = vadd.f32 %v3154, %v3186
      %v3203 = vadd.f32 %v3155, %v3187
      %v3204 = vadd.f32 %v3156, %v3188
      %v3205 = vadd.f32 %v3157, %v3189
      %v3206 = vadd.f32 %v3158, %v3190
      %v3207 = vld [vmem:[#allocation2 + $0x28] sm:$0xff]
      %v3208 = vld [vmem:[#allocation2 + $0x30] sm:$0xff]
      %v3209 = vld [vmem:[#allocation2 + $0x38] sm:$0xff]
      %v3210 = vld [vmem:[#allocation2 + $0x40] sm:$0xff]
      %v3211 = vld [vmem:[#allocation2 + $0x78] sm:$0xff]
      %v3212 = vld [vmem:[#allocation2 + $0x80] sm:$0xff]
      %v3213 = vld [vmem:[#allocation2 + $0x88] sm:$0xff]
      %v3214 = vld [vmem:[#allocation2 + $0x90] sm:$0xff]
      %v3215 = vld [vmem:[#allocation2 + $0xc8] sm:$0xff]
      %v3216 = vld [vmem:[#allocation2 + $0xd0] sm:$0xff]
      %v3217 = vld [vmem:[#allocation2 + $0xd8] sm:$0xff]
      %v3218 = vld [vmem:[#allocation2 + $0xe0] sm:$0xff]
      %v3219 = vld [vmem:[#allocation2 + $0x118] sm:$0xff]
      %v3220 = vld [vmem:[#allocation2 + $0x120] sm:$0xff]
      %v3221 = vld [vmem:[#allocation2 + $0x128] sm:$0xff]
      %v3222 = vld [vmem:[#allocation2 + $0x130] sm:$0xff]
      %v3223 = vmul.f32 %v3207, -0.051362485
      %v3224 = vmul.f32 %v3208, -0.051362485
      %v3225 = vmul.f32 %v3209, -0.051362485
      %v3226 = vmul.f32 %v3210, -0.051362485
      %v3227 = vmul.f32 %v3211, -0.051362485
      %v3228 = vmul.f32 %v3212, -0.051362485
      %v3229 = vmul.f32 %v3213, -0.051362485
      %v3230 = vmul.f32 %v3214, -0.051362485
      %v3231 = vmul.f32 %v3215, -0.051362485
      %v3232 = vmul.f32 %v3216, -0.051362485
      %v3233 = vmul.f32 %v3217, -0.051362485
      %v3234 = vmul.f32 %v3218, -0.051362485
      %v3235 = vmul.f32 %v3219, -0.051362485
      %v3236 = vmul.f32 %v3220, -0.051362485
      %v3237 = vmul.f32 %v3221, -0.051362485
      %v3238 = vmul.f32 %v3222, -0.051362485
      %v3239 = vadd.f32 %v3191, %v3223
      %v3240 = vadd.f32 %v3192, %v3224
      %v3241 = vadd.f32 %v3193, %v3225
      %v3242 = vadd.f32 %v3194, %v3226
      %v3243 = vadd.f32 %v3195, %v3227
      %v3244 = vadd.f32 %v3196, %v3228
      %v3245 = vadd.f32 %v3197, %v3229
      %v3246 = vadd.f32 %v3198, %v3230
      %v3247 = vadd.f32 %v3199, %v3231
      %v3248 = vadd.f32 %v3200, %v3232
      %v3249 = vadd.f32 %v3201, %v3233
      %v3250 = vadd.f32 %v3202, %v3234
      %v3251 = vadd.f32 %v3203, %v3235
      %v3252 = vadd.f32 %v3204, %v3236
      %v3253 = vadd.f32 %v3205, %v3237
      %v3254 = vadd.f32 %v3206, %v3238
      %v3255 = vld [vmem:[#allocation2 + $0x4] sm:$0xff]
      %v3256 = vld [vmem:[#allocation2 + $0xc] sm:$0xff]
      %v3257 = vld [vmem:[#allocation2 + $0x14] sm:$0xff]
      %v3258 = vld [vmem:[#allocation2 + $0x1c] sm:$0xff]
      %v3259 = vld [vmem:[#allocation2 + $0x54] sm:$0xff]
      %v3260 = vld [vmem:[#allocation2 + $0x5c] sm:$0xff]
      %v3261 = vld [vmem:[#allocation2 + $0x64] sm:$0xff]
      %v3262 = vld [vmem:[#allocation2 + $0x6c] sm:$0xff]
      %v3263 = vld [vmem:[#allocation2 + $0xa4] sm:$0xff]
      %v3264 = vld [vmem:[#allocation2 + $0xac] sm:$0xff]
      %v3265 = vld [vmem:[#allocation2 + $0xb4] sm:$0xff]
      %v3266 = vld [vmem:[#allocation2 + $0xbc] sm:$0xff]
      %v3267 = vld [vmem:[#allocation2 + $0xf4] sm:$0xff]
      %v3268 = vld [vmem:[#allocation2 + $0xfc] sm:$0xff]
      %v3269 = vld [vmem:[#allocation2 + $0x104] sm:$0xff]
      %v3270 = vld [vmem:[#allocation2 + $0x10c] sm:$0xff]
      %v3271 = vmul.f32 %v3255, -0.014891876
      %v3272 = vmul.f32 %v3256, -0.014891876
      %v3273 = vmul.f32 %v3257, -0.014891876
      %v3274 = vmul.f32 %v3258, -0.014891876
      %v3275 = vmul.f32 %v3259, -0.014891876
      %v3276 = vmul.f32 %v3260, -0.014891876
      %v3277 = vmul.f32 %v3261, -0.014891876
      %v3278 = vmul.f32 %v3262, -0.014891876
      %v3279 = vmul.f32 %v3263, -0.014891876
      %v3280 = vmul.f32 %v3264, -0.014891876
      %v3281 = vmul.f32 %v3265, -0.014891876
      %v3282 = vmul.f32 %v3266, -0.014891876
      %v3283 = vmul.f32 %v3267, -0.014891876
      %v3284 = vmul.f32 %v3268, -0.014891876
      %v3285 = vmul.f32 %v3269, -0.014891876
      %v3286 = vmul.f32 %v3270, -0.014891876
      %v3287 = vadd.f32 %v3239, %v3271
      %v3288 = vadd.f32 %v3240, %v3272
      %v3289 = vadd.f32 %v3241, %v3273
      %v3290 = vadd.f32 %v3242, %v3274
      %v3291 = vadd.f32 %v3243, %v3275
      %v3292 = vadd.f32 %v3244, %v3276
      %v3293 = vadd.f32 %v3245, %v3277
      %v3294 = vadd.f32 %v3246, %v3278
      %v3295 = vadd.f32 %v3247, %v3279
      %v3296 = vadd.f32 %v3248, %v3280
      %v3297 = vadd.f32 %v3249, %v3281
      %v3298 = vadd.f32 %v3250, %v3282
      %v3299 = vadd.f32 %v3251, %v3283
      %v3300 = vadd.f32 %v3252, %v3284
      %v3301 = vadd.f32 %v3253, %v3285
      %v3302 = vadd.f32 %v3254, %v3286
      %v3303 = vld [vmem:[#allocation2 + $0x29] sm:$0xff]
      %v3304 = vld [vmem:[#allocation2 + $0x31] sm:$0xff]
      %v3305 = vld [vmem:[#allocation2 + $0x39] sm:$0xff]
      %v3306 = vld [vmem:[#allocation2 + $0x41] sm:$0xff]
      %v3307 = vld [vmem:[#allocation2 + $0x79] sm:$0xff]
      %v3308 = vld [vmem:[#allocation2 + $0x81] sm:$0xff]
      %v3309 = vld [vmem:[#allocation2 + $0x89] sm:$0xff]
      %v3310 = vld [vmem:[#allocation2 + $0x91] sm:$0xff]
      %v3311 = vld [vmem:[#allocation2 + $0xc9] sm:$0xff]
      %v3312 = vld [vmem:[#allocation2 + $0xd1] sm:$0xff]
      %v3313 = vld [vmem:[#allocation2 + $0xd9] sm:$0xff]
      %v3314 = vld [vmem:[#allocation2 + $0xe1] sm:$0xff]
      %v3315 = vld [vmem:[#allocation2 + $0x119] sm:$0xff]
      %v3316 = vld [vmem:[#allocation2 + $0x121] sm:$0xff]
      %v3317 = vld [vmem:[#allocation2 + $0x129] sm:$0xff]
      %v3318 = vld [vmem:[#allocation2 + $0x131] sm:$0xff]
      %v3319 = vmul.f32 %v3303, 0.031625282
      %v3320 = vmul.f32 %v3304, 0.031625282
      %v3321 = vmul.f32 %v3305, 0.031625282
      %v3322 = vmul.f32 %v3306, 0.031625282
      %v3323 = vmul.f32 %v3307, 0.031625282
      %v3324 = vmul.f32 %v3308, 0.031625282
      %v3325 = vmul.f32 %v3309, 0.031625282
      %v3326 = vmul.f32 %v3310, 0.031625282
      %v3327 = vmul.f32 %v3311, 0.031625282
      %v3328 = vmul.f32 %v3312, 0.031625282
      %v3329 = vmul.f32 %v3313, 0.031625282
      %v3330 = vmul.f32 %v3314, 0.031625282
      %v3331 = vmul.f32 %v3315, 0.031625282
      %v3332 = vmul.f32 %v3316, 0.031625282
      %v3333 = vmul.f32 %v3317, 0.031625282
      %v3334 = vmul.f32 %v3318, 0.031625282
      %v3335 = vadd.f32 %v3287, %v3319
      %v3336 = vadd.f32 %v3288, %v3320
      %v3337 = vadd.f32 %v3289, %v3321
      %v3338 = vadd.f32 %v3290, %v3322
      %v3339 = vadd.f32 %v3291, %v3323
      %v3340 = vadd.f32 %v3292, %v3324
      %v3341 = vadd.f32 %v3293, %v3325
      %v3342 = vadd.f32 %v3294, %v3326
      %v3343 = vadd.f32 %v3295, %v3327
      %v3344 = vadd.f32 %v3296, %v3328
      %v3345 = vadd.f32 %v3297, %v3329
      %v3346 = vadd.f32 %v3298, %v3330
      %v3347 = vadd.f32 %v3299, %v3331
      %v3348 = vadd.f32 %v3300, %v3332
      %v3349 = vadd.f32 %v3301, %v3333
      %v3350 = vadd.f32 %v3302, %v3334
      %v3351 = vld [vmem:[#allocation2 + $0x5] sm:$0xff]
      %v3352 = vld [vmem:[#allocation2 + $0xd] sm:$0xff]
      %v3353 = vld [vmem:[#allocation2 + $0x15] sm:$0xff]
      %v3354 = vld [vmem:[#allocation2 + $0x1d] sm:$0xff]
      %v3355 = vld [vmem:[#allocation2 + $0x55] sm:$0xff]
      %v3356 = vld [vmem:[#allocation2 + $0x5d] sm:$0xff]
      %v3357 = vld [vmem:[#allocation2 + $0x65] sm:$0xff]
      %v3358 = vld [vmem:[#allocation2 + $0x6d] sm:$0xff]
      %v3359 = vld [vmem:[#allocation2 + $0xa5] sm:$0xff]
      %v3360 = vld [vmem:[#allocation2 + $0xad] sm:$0xff]
      %v3361 = vld [vmem:[#allocation2 + $0xb5] sm:$0xff]
      %v3362 = vld [vmem:[#allocation2 + $0xbd] sm:$0xff]
      %v3363 = vld [vmem:[#allocation2 + $0xf5] sm:$0xff]
      %v3364 = vld [vmem:[#allocation2 + $0xfd] sm:$0xff]
      %v3365 = vld [vmem:[#allocation2 + $0x105] sm:$0xff]
      %v3366 = vld [vmem:[#allocation2 + $0x10d] sm:$0xff]
      %v3367 = vmul.f32 %v3351, 0.0012499611
      %v3368 = vmul.f32 %v3352, 0.0012499611
      %v3369 = vmul.f32 %v3353, 0.0012499611
      %v3370 = vmul.f32 %v3354, 0.0012499611
      %v3371 = vmul.f32 %v3355, 0.0012499611
      %v3372 = vmul.f32 %v3356, 0.0012499611
      %v3373 = vmul.f32 %v3357, 0.0012499611
      %v3374 = vmul.f32 %v3358, 0.0012499611
      %v3375 = vmul.f32 %v3359, 0.0012499611
      %v3376 = vmul.f32 %v3360, 0.0012499611
      %v3377 = vmul.f32 %v3361, 0.0012499611
      %v3378 = vmul.f32 %v3362, 0.0012499611
      %v3379 = vmul.f32 %v3363, 0.0012499611
      %v3380 = vmul.f32 %v3364, 0.0012499611
      %v3381 = vmul.f32 %v3365, 0.0012499611
      %v3382 = vmul.f32 %v3366, 0.0012499611
      %v3383 = vadd.f32 %v3335, %v3367
      %v3384 = vadd.f32 %v3336, %v3368
      %v3385 = vadd.f32 %v3337, %v3369
      %v3386 = vadd.f32 %v3338, %v3370
      %v3387 = vadd.f32 %v3339, %v3371
      %v3388 = vadd.f32 %v3340, %v3372
      %v3389 = vadd.f32 %v3341, %v3373
      %v3390 = vadd.f32 %v3342, %v3374
      %v3391 = vadd.f32 %v3343, %v3375
      %v3392 = vadd.f32 %v3344, %v3376
      %v3393 = vadd.f32 %v3345, %v3377
      %v3394 = vadd.f32 %v3346, %v3378
      %v3395 = vadd.f32 %v3347, %v3379
      %v3396 = vadd.f32 %v3348, %v3380
      %v3397 = vadd.f32 %v3349, %v3381
      %v3398 = vadd.f32 %v3350, %v3382
      %v3399 = vld [vmem:[#allocation2 + $0x2a] sm:$0xff]
      %v3400 = vld [vmem:[#allocation2 + $0x32] sm:$0xff]
      %v3401 = vld [vmem:[#allocation2 + $0x3a] sm:$0xff]
      %v3402 = vld [vmem:[#allocation2 + $0x42] sm:$0xff]
      %v3403 = vld [vmem:[#allocation2 + $0x7a] sm:$0xff]
      %v3404 = vld [vmem:[#allocation2 + $0x82] sm:$0xff]
      %v3405 = vld [vmem:[#allocation2 + $0x8a] sm:$0xff]
      %v3406 = vld [vmem:[#allocation2 + $0x92] sm:$0xff]
      %v3407 = vld [vmem:[#allocation2 + $0xca] sm:$0xff]
      %v3408 = vld [vmem:[#allocation2 + $0xd2] sm:$0xff]
      %v3409 = vld [vmem:[#allocation2 + $0xda] sm:$0xff]
      %v3410 = vld [vmem:[#allocation2 + $0xe2] sm:$0xff]
      %v3411 = vld [vmem:[#allocation2 + $0x11a] sm:$0xff]
      %v3412 = vld [vmem:[#allocation2 + $0x122] sm:$0xff]
      %v3413 = vld [vmem:[#allocation2 + $0x12a] sm:$0xff]
      %v3414 = vld [vmem:[#allocation2 + $0x132] sm:$0xff]
      %v3415 = vmul.f32 %v3399, -0.005515934
      %v3416 = vmul.f32 %v3400, -0.005515934
      %v3417 = vmul.f32 %v3401, -0.005515934
      %v3418 = vmul.f32 %v3402, -0.005515934
      %v3419 = vmul.f32 %v3403, -0.005515934
      %v3420 = vmul.f32 %v3404, -0.005515934
      %v3421 = vmul.f32 %v3405, -0.005515934
      %v3422 = vmul.f32 %v3406, -0.005515934
      %v3423 = vmul.f32 %v3407, -0.005515934
      %v3424 = vmul.f32 %v3408, -0.005515934
      %v3425 = vmul.f32 %v3409, -0.005515934
      %v3426 = vmul.f32 %v3410, -0.005515934
      %v3427 = vmul.f32 %v3411, -0.005515934
      %v3428 = vmul.f32 %v3412, -0.005515934
      %v3429 = vmul.f32 %v3413, -0.005515934
      %v3430 = vmul.f32 %v3414, -0.005515934
      %v3431 = vadd.f32 %v3383, %v3415
      %v3432 = vadd.f32 %v3384, %v3416
      %v3433 = vadd.f32 %v3385, %v3417
      %v3434 = vadd.f32 %v3386, %v3418
      %v3435 = vadd.f32 %v3387, %v3419
      %v3436 = vadd.f32 %v3388, %v3420
      %v3437 = vadd.f32 %v3389, %v3421
      %v3438 = vadd.f32 %v3390, %v3422
      %v3439 = vadd.f32 %v3391, %v3423
      %v3440 = vadd.f32 %v3392, %v3424
      %v3441 = vadd.f32 %v3393, %v3425
      %v3442 = vadd.f32 %v3394, %v3426
      %v3443 = vadd.f32 %v3395, %v3427
      %v3444 = vadd.f32 %v3396, %v3428
      %v3445 = vadd.f32 %v3397, %v3429
      %v3446 = vadd.f32 %v3398, %v3430
      %3447 = vst.msk [vmem:[%s123] sm:$0xff] %vm2845, %v3431
      %3448 = vst.msk [vmem:[%s123 + $0x8] sm:$0xff] %vm2845, %v3432
      %3449 = vst.msk [vmem:[%s123 + $0x10] sm:$0xff] %vm2845, %v3433
      %3450 = vst.msk [vmem:[%s123 + $0x18] sm:$0xff] %vm2845, %v3434
      %3451 = vst.msk [vmem:[%s123 + $0x20] sm:$0xff] %vm2845, %v3435
      %3452 = vst.msk [vmem:[%s123 + $0x28] sm:$0xff] %vm2845, %v3436
      %3453 = vst.msk [vmem:[%s123 + $0x30] sm:$0xff] %vm2845, %v3437
      %3454 = vst.msk [vmem:[%s123 + $0x38] sm:$0xff] %vm2845, %v3438
      %3455 = vst.msk [vmem:[%s123 + $0x40] sm:$0xff] %vm2845, %v3439
      %3456 = vst.msk [vmem:[%s123 + $0x48] sm:$0xff] %vm2845, %v3440
      %3457 = vst.msk [vmem:[%s123 + $0x50] sm:$0xff] %vm2845, %v3441
      %3458 = vst.msk [vmem:[%s123 + $0x58] sm:$0xff] %vm2845, %v3442
      %3459 = vst.msk [vmem:[%s123 + $0x60] sm:$0xff] %vm2845, %v3443
      %3460 = vst.msk [vmem:[%s123 + $0x68] sm:$0xff] %vm2845, %v3444
      %3461 = vst.msk [vmem:[%s123 + $0x70] sm:$0xff] %vm2845, %v3445
      %3462 = vst.msk [vmem:[%s123 + $0x78] sm:$0xff] %vm2845, %v3446
      %s3463 = smul.u32 4, %s12
      %p3464 = scmp.lt.s32.totalorder %s3463, 7
      %s3465 = scalar_select %p3464, %s3463, 7
      %s3466 = smul.addr %s3465, 4
      %s3467 = smul.addr %s3466, 8
      %s3468 = scalar_lea.vmem %s1, %s3467
      // Predicated region
      $region25: #{augment_pipe_forward.7} parent=23 // pred_check
        %p3469 = pneg %p56
      $region26: #{augment_pipe_forward.7} parent=23 // pred_check_branch
        %3471 = sbr.rel (%p3469) target = $region28
      $region27: #{augment_pipe_forward.7} parent=23 // pred_region
        %s3472 = smul.u32 4, %s12
      $region28: #{augment_pipe_forward.7} parent=23 // pred_fallthru
        _
    $region24: #{augment_pipe_forward.7} parent=5 // pred_fallthru
      _
    %p3473 = scmp.le.s32.totalorder 2, %s7
    // Predicated region
    $region29: #{augment_pipe_forward.7} parent=5 // pred_check
      %p3474 = pneg %p3473
    $region30: #{augment_pipe_forward.7} parent=5 // pred_check_branch
      %3476 = sbr.rel (%p3474) target = $region32
    $region31: #{augment_pipe_forward.7} parent=5 // pred_region
      %s3477 = ssub.s32 %s7, 2
      // Predicated region
      $region33: #{augment_pipe_forward.7} parent=31 // pred_check
        %p3478 = pneg %p62
      $region34: #{augment_pipe_forward.7} parent=31 // pred_check_branch
        %3480 = sbr.rel (%p3478) target = $region36
      $region35: #{augment_pipe_forward.7} parent=31 // pred_region
        %s3481 = smul.u32 4, %s13
        %p3482 = scmp.lt.s32.totalorder %s3481, 7
        %s3483 = scalar_select %p3482, %s3481, 7
        %s3484 = smul.addr %s3483, 4
        %s3485 = smul.addr %s3484, 8
        %s3486 = scalar_lea.vmem %s1, %s3485
      $region36: #{augment_pipe_forward.7} parent=31 // pred_fallthru
        _
    $region32: #{augment_pipe_forward.7} parent=5 // pred_fallthru
      _
  $region6: #{augment_pipe_forward.7} parent=0 // loop_footer
    %s11 = sadd.s32 1, %s7
  $region7: #{augment_pipe_forward.7} parent=0 // loop_footer_branch
    %6 = sbr.rel target = $region3
  $region8: #{augment_pipe_forward.7} parent=0 // loop_exit
    _

// kernel: augment_pipe_forward.8
$region0: #{augment_pipe_forward.8}
  #allocation0 [shape = 'u32[]', space=smem, size = 0x4, offset = 0x4, fixed_abs, tag = 'smem constant byte address 0x4 - core index']
  #allocation1 [shape = 'u32[144,128]{1,0:T(1,128)}', space=vmem, size = 0x12000, scoped, tag = 'internal scratch']
  %s0 = inlined_call_operand.vmem [shape: f32[2,4,32,32], index: 0, kind: input, shape index: {}]
  %s1 = inlined_call_operand.vmem [shape: f32[2,32,32], index: 1, kind: input, shape index: {}]
  %s2 = inlined_call_operand.vmem [shape: f32[2,32,32], index: 2, kind: input, shape index: {}]
  %s3 = inlined_call_operand.vmem [shape: f32[2,4,32,32], index: 3, kind: output, shape index: {}]
  %s4 = sld [smem:[#allocation0]]
  $region45: #{augment_pipe_forward.8} parent=0
    _
  %s6 = ssub.s32 1, %s4
  %s7 = scalar_select 0, %s6, %s4
  loop: start=0, step=1, limit=4
  $region2: #{augment_pipe_forward.8} parent=0 // loop_pre_header
    _
  $region3: #{augment_pipe_forward.8} parent=0 // loop_header
    %s9 = sphi 0, %s13
    %p10 = scmp.ge.s32.totalorder %s9, 4
    %s19 = sphi 0, %s21
    %s22 = sphi 0, %s19
    %s23 = sphi 0, %s22
    %s39 = sphi 0, %s23
    %s45 = sphi 0, %s47
    %s48 = sphi 0, %s45
    %s49 = sphi 0, %s48
    %s65 = sphi 0, %s49
    %s71 = sphi 0, %s73
    %s74 = sphi 0, %s71
    %s75 = sphi 0, %s74
    %s91 = sphi 0, %s75
    %s97 = sphi 0, %s99
    %s100 = sphi 0, %s97
    %s101 = sphi 0, %s100
    %s117 = sphi 0, %s101
  $region4: #{augment_pipe_forward.8} parent=0 // loop_header_branch
    %12 = sbr.rel (%p10) target = $region8
  $region5: #{augment_pipe_forward.8} parent=0 // loop_body
    %s14 = ssub.s32 %s9, 1
    %s15 = ssub.s32 %s9, 2
    %s16 = sadd.s32 %s9, 1
    %s17 = ssub.s32 %s9, %s16
    %p18 = scmp.eq.s32.totalorder %s17, 0
    %s20 = sadd.s32 %s19, 1
    %s21 = scalar_select %p18, %s19, %s20
    %p24 = pneg %p18
    %p25 = scmp.eq.s32.totalorder %s9, 1
    %p26 = por %p24, %p25
    %p27 = scmp.ne.s32.totalorder %s19, %s22
    %p28 = scmp.eq.s32.totalorder %s9, 0
    %p29 = por %p27, %p28
    %p30 = scmp.ne.s32.totalorder %s19, %s22
    %p31 = scmp.eq.s32.totalorder %s14, 1
    %p32 = por %p30, %p31
    %p33 = scmp.ne.s32.totalorder %s22, %s23
    %p34 = scmp.eq.s32.totalorder %s14, 0
    %p35 = por %p33, %p34
    %p36 = scmp.ne.s32.totalorder %s22, %s23
    %p37 = scmp.eq.s32.totalorder %s15, 1
    %p38 = por %p36, %p37
    %p40 = scmp.ne.s32.totalorder %s23, %s39
    %p41 = scmp.eq.s32.totalorder %s15, 0
    %p42 = por %p40, %p41
    %s43 = ssub.s32 %s9, %s16
    %p44 = scmp.eq.s32.totalorder %s43, 0
    %s46 = sadd.s32 %s45, 1
    %s47 = scalar_select %p44, %s45, %s46
    %p50 = pneg %p44
    %p51 = scmp.eq.s32.totalorder %s9, 1
    %p52 = por %p50, %p51
    %p53 = scmp.ne.s32.totalorder %s45, %s48
    %p54 = scmp.eq.s32.totalorder %s9, 0
    %p55 = por %p53, %p54
    %p56 = scmp.ne.s32.totalorder %s45, %s48
    %p57 = scmp.eq.s32.totalorder %s14, 1
    %p58 = por %p56, %p57
    %p59 = scmp.ne.s32.totalorder %s48, %s49
    %p60 = scmp.eq.s32.totalorder %s14, 0
    %p61 = por %p59, %p60
    %p62 = scmp.ne.s32.totalorder %s48, %s49
    %p63 = scmp.eq.s32.totalorder %s15, 1
    %p64 = por %p62, %p63
    %p66 = scmp.ne.s32.totalorder %s49, %s65
    %p67 = scmp.eq.s32.totalorder %s15, 0
    %p68 = por %p66, %p67
    %s69 = ssub.s32 %s9, %s16
    %p70 = scmp.eq.s32.totalorder %s69, 0
    %s72 = sadd.s32 %s71, 1
    %s73 = scalar_select %p70, %s71, %s72
    %p76 = pneg %p70
    %p77 = scmp.eq.s32.totalorder %s9, 1
    %p78 = por %p76, %p77
    %p79 = scmp.ne.s32.totalorder %s71, %s74
    %p80 = scmp.eq.s32.totalorder %s9, 0
    %p81 = por %p79, %p80
    %p82 = scmp.ne.s32.totalorder %s71, %s74
    %p83 = scmp.eq.s32.totalorder %s14, 1
    %p84 = por %p82, %p83
    %p85 = scmp.ne.s32.totalorder %s74, %s75
    %p86 = scmp.eq.s32.totalorder %s14, 0
    %p87 = por %p85, %p86
    %p88 = scmp.ne.s32.totalorder %s74, %s75
    %p89 = scmp.eq.s32.totalorder %s15, 1
    %p90 = por %p88, %p89
    %p92 = scmp.ne.s32.totalorder %s75, %s91
    %p93 = scmp.eq.s32.totalorder %s15, 0
    %p94 = por %p92, %p93
    %s95 = ssub.s32 %s9, %s16
    %p96 = scmp.eq.s32.totalorder %s95, 0
    %s98 = sadd.s32 %s97, 1
    %s99 = scalar_select %p96, %s97, %s98
    %p102 = pneg %p96
    %p103 = scmp.eq.s32.totalorder %s9, 1
    %p104 = por %p102, %p103
    %p105 = scmp.ne.s32.totalorder %s97, %s100
    %p106 = scmp.eq.s32.totalorder %s9, 0
    %p107 = por %p105, %p106
    %p108 = scmp.ne.s32.totalorder %s97, %s100
    %p109 = scmp.eq.s32.totalorder %s14, 1
    %p110 = por %p108, %p109
    %p111 = scmp.ne.s32.totalorder %s100, %s101
    %p112 = scmp.eq.s32.totalorder %s14, 0
    %p113 = por %p111, %p112
    %p114 = scmp.ne.s32.totalorder %s100, %s101
    %p115 = scmp.eq.s32.totalorder %s15, 1
    %p116 = por %p114, %p115
    %p118 = scmp.ne.s32.totalorder %s101, %s117
    %p119 = scmp.eq.s32.totalorder %s15, 0
    %p120 = por %p118, %p119
    %p121 = scmp.le.s32.totalorder 1, %s9
    %p122 = scmp.lt.s32.totalorder %s9, 3
    %p123 = pnand %p121, %p122
    %p124 = pneg %p123
    // Predicated region
    $region9: #{augment_pipe_forward.8} parent=5 // pred_check
      _
    $region10: #{augment_pipe_forward.8} parent=5 // pred_check_branch
      %126 = sbr.rel (%p123) target = $region12
    $region11: #{augment_pipe_forward.8} parent=5 // pred_region
      %s127 = ssub.s32 %s9, 1
    $region12: #{augment_pipe_forward.8} parent=5 // pred_fallthru
      _
    %p128 = scmp.lt.s32.totalorder %s9, 2
    // Predicated region
    $region13: #{augment_pipe_forward.8} parent=5 // pred_check
      %p129 = pneg %p128
    $region14: #{augment_pipe_forward.8} parent=5 // pred_check_branch
      %131 = sbr.rel (%p129) target = $region16
    $region15: #{augment_pipe_forward.8} parent=5 // pred_region
      // Predicated region
      $region17: #{augment_pipe_forward.8} parent=15 // pred_check
        %p132 = pneg %p29
      $region18: #{augment_pipe_forward.8} parent=15 // pred_check_branch
        %134 = sbr.rel (%p132) target = $region20
      $region19: #{augment_pipe_forward.8} parent=15 // pred_region
        %p135 = scmp.lt.s32.totalorder %s9, 1
        %s136 = scalar_select %p135, %s9, 1
        %s137 = smul.addr %s136, 16
        %s138 = smul.addr %s137, 8
        %s139 = scalar_lea.vmem %s0, %s138
      $region20: #{augment_pipe_forward.8} parent=15 // pred_fallthru
        _
      // Predicated region
      $region21: #{augment_pipe_forward.8} parent=15 // pred_check
        %p140 = pneg %p55
      $region22: #{augment_pipe_forward.8} parent=15 // pred_check_branch
        %142 = sbr.rel (%p140) target = $region24
      $region23: #{augment_pipe_forward.8} parent=15 // pred_region
        %p143 = scmp.lt.s32.totalorder %s9, 1
        %s144 = scalar_select %p143, %s9, 1
        %s145 = smul.addr %s144, 4
        %s146 = smul.addr %s145, 8
        %s147 = scalar_lea.vmem %s1, %s146
      $region24: #{augment_pipe_forward.8} parent=15 // pred_fallthru
        _
      // Predicated region
      $region25: #{augment_pipe_forward.8} parent=15 // pred_check
        %p148 = pneg %p81
      $region26: #{augment_pipe_forward.8} parent=15 // pred_check_branch
        %150 = sbr.rel (%p148) target = $region28
      $region27: #{augment_pipe_forward.8} parent=15 // pred_region
        %p151 = scmp.lt.s32.totalorder %s9, 1
        %s152 = scalar_select %p151, %s9, 1
        %s153 = smul.addr %s152, 4
        %s154 = smul.addr %s153, 8
        %s155 = scalar_lea.vmem %s2, %s154
      $region28: #{augment_pipe_forward.8} parent=15 // pred_fallthru
        _
    $region16: #{augment_pipe_forward.8} parent=5 // pred_fallthru
      _
    %p156 = scmp.le.s32.totalorder 1, %s9
    %p157 = scmp.lt.s32.totalorder %s9, 3
    %p158 = pnand %p156, %p157
    %p159 = pneg %p158
    // Predicated region
    $region29: #{augment_pipe_forward.8} parent=5 // pred_check
      _
    $region30: #{augment_pipe_forward.8} parent=5 // pred_check_branch
      %161 = sbr.rel (%p158) target = $region32
    $region31: #{augment_pipe_forward.8} parent=5 // pred_region
      %s162 = ssub.s32 %s9, 1
      %p163 = scmp.lt.s32.totalorder %s14, 1
      %s164 = scalar_select %p163, %s14, 1
      %s165 = smul.addr %s164, 16
      %s166 = smul.addr %s165, 8
      %s167 = scalar_lea.vmem %s0, %s166
      %p168 = pneg %p35
      %p169 = pneg %p32
      %p170 = scmp.lt.s32.totalorder %s14, 1
      %s171 = scalar_select %p170, %s14, 1
      %s172 = smul.addr %s171, 4
      %s173 = smul.addr %s172, 8
      %s174 = scalar_lea.vmem %s1, %s173
      %p175 = pneg %p61
      %p176 = pneg %p58
      %p177 = scmp.lt.s32.totalorder %s14, 1
      %s178 = scalar_select %p177, %s14, 1
      %s179 = smul.addr %s178, 4
      %s180 = smul.addr %s179, 8
      %s181 = scalar_lea.vmem %s2, %s180
      %p182 = pneg %p87
      %p183 = pneg %p84
      %p184 = pneg %p113
      %p185 = pneg %p110
      %p186 = scmp.lt.s32.totalorder %s14, 1
      %s187 = scalar_select %p186, %s14, 1
      %s188 = smul.addr %s187, 16
      %s189 = smul.addr %s188, 8
      %s190 = scalar_lea.vmem %s3, %s189
      %p191 = scmp.lt.s32.totalorder %s14, 1
      %s192 = scalar_select %p191, %s14, 1
      %s193 = smul.addr %s192, 16
      %s194 = smul.addr %s193, 8
      %s195 = scalar_lea.vmem %s0, %s194
      %p196 = scmp.lt.s32.totalorder %s14, 1
      %s197 = scalar_select %p196, %s14, 1
      %s198 = smul.addr %s197, 4
      %s199 = smul.addr %s198, 8
      %s200 = scalar_lea.vmem %s1, %s199
      %p201 = scmp.lt.s32.totalorder %s14, 1
      %s202 = scalar_select %p201, %s14, 1
      %s203 = smul.addr %s202, 4
      %s204 = smul.addr %s203, 8
      %s205 = scalar_lea.vmem %s2, %s204
      %p206 = scmp.lt.s32.totalorder %s14, 1
      %s207 = scalar_select %p206, %s14, 1
      %s208 = smul.addr %s207, 16
      %s209 = smul.addr %s208, 8
      %s210 = scalar_lea.vmem %s3, %s209
      %v211 = vld [vmem:[%s200] sm:$0xff]
      %v212 = vld [vmem:[%s200 + $0x8] sm:$0xff]
      %v213 = vld [vmem:[%s200 + $0x10] sm:$0xff]
      %v214 = vld [vmem:[%s200 + $0x18] sm:$0xff]
      %v215 = vld [vmem:[%s205] sm:$0xff]
      %v216 = vld [vmem:[%s205 + $0x8] sm:$0xff]
      %v217 = vld [vmem:[%s205 + $0x10] sm:$0xff]
      %v218 = vld [vmem:[%s205 + $0x18] sm:$0xff]
      %v219 = vld [vmem:[%s195] sm:$0xff]
      %v220 = vld [vmem:[%s195 + $0x8] sm:$0xff]
      %v221 = vld [vmem:[%s195 + $0x10] sm:$0xff]
      %v222 = vld [vmem:[%s195 + $0x18] sm:$0xff]
      %v223 = vld [vmem:[%s195 + $0x20] sm:$0xff]
      %v224 = vld [vmem:[%s195 + $0x28] sm:$0xff]
      %v225 = vld [vmem:[%s195 + $0x30] sm:$0xff]
      %v226 = vld [vmem:[%s195 + $0x38] sm:$0xff]
      %v227 = vld [vmem:[%s195 + $0x40] sm:$0xff]
      %v228 = vld [vmem:[%s195 + $0x48] sm:$0xff]
      %v229 = vld [vmem:[%s195 + $0x50] sm:$0xff]
      %v230 = vld [vmem:[%s195 + $0x58] sm:$0xff]
      %v231 = vld [vmem:[%s195 + $0x60] sm:$0xff]
      %v232 = vld [vmem:[%s195 + $0x68] sm:$0xff]
      %v233 = vld [vmem:[%s195 + $0x70] sm:$0xff]
      %v234 = vld [vmem:[%s195 + $0x78] sm:$0xff]
      %vm235 = vcmask 261120
      %v237 = vsel %vm235, %v219, 0
      %v240 = vsel %vm235, %v220, 0
      %v243 = vsel %vm235, %v221, 0
      %v246 = vsel %vm235, %v222, 0
      %v249 = vsel %vm235, %v223, 0
      %v252 = vsel %vm235, %v224, 0
      %v255 = vsel %vm235, %v225, 0
      %v258 = vsel %vm235, %v226, 0
      %v261 = vsel %vm235, %v227, 0
      %v264 = vsel %vm235, %v228, 0
      %v267 = vsel %vm235, %v229, 0
      %v270 = vsel %vm235, %v230, 0
      %v273 = vsel %vm235, %v231, 0
      %v276 = vsel %vm235, %v232, 0
      %v279 = vsel %vm235, %v233, 0
      %v282 = vsel %vm235, %v234, 0
      %284 = vmatprep.subr.mxu0 0.0
      %285 = vmatpush1.msra.mxu0 0.0
      %286 = vmatprep.subr.mxu0 0.0
      %287 = vmatpush1.msra.mxu0 0.0
      %288 = vmatprep.subr.mxu0 0.0
      %289 = vmatpush1.msra.mxu0 0.0
      %290 = vmatprep.subr.mxu0 0.0
      %291 = vmatpush1.msra.mxu0 0.0
      %292 = vmatprep.subr.mxu0 0.0
      %293 = vmatpush1.msra.mxu0 0.0
      %294 = vmatprep.subr.mxu0 0.0
      %295 = vmatpush1.msra.mxu0 0.0
      %296 = vmatprep.subr.mxu0 0.0
      %297 = vmatpush1.msra.mxu0 0.0
      %298 = vmatprep.subr.mxu0 0.0
      %299 = vmatpush1.msra.mxu0 0.0
      %300 = vmatprep.subr.mxu0 0.0
      %301 = vmatpush1.msra.mxu0 0.0
      %302 = vmatprep.subr.mxu0 0.0
      %303 = vmatpush1.msra.mxu0 0.0
      %304 = vmatprep.subr.mxu0 0.0
      %305 = vmatpush1.msra.mxu0 0.0
      %306 = vmatprep.subr.mxu0 0.0
      %307 = vmatpush1.msra.mxu0 0.0
      %308 = vmatprep.subr.mxu0 0.0
      %309 = vmatpush1.msra.mxu0 %v214
      %310 = vmatprep.subr.mxu0 0.0
      %311 = vmatpush1.msra.mxu0 %v213
      %312 = vmatprep.subr.mxu0 0.0
      %313 = vmatpush1.msra.mxu0 %v212
      %314 = vmatprep.subr.mxu0 0.0
      %315 = vmatpush1.msra.mxu0 %v211
      %316 = vmatprep.subr.mxu0 0.0
      %317 = vmatpush2.msra.mxu0 0.0
      %318 = vmatprep.subr.mxu0 0.0
      %319 = vmatpush2.msra.mxu0 0.0
      %320 = vmatprep.subr.mxu0 0.0
      %321 = vmatpush2.msra.mxu0 0.0
      %322 = vmatprep.subr.mxu0 0.0
      %323 = vmatpush2.msra.mxu0 0.0
      %324 = vmatprep.subr.mxu0 0.0
      %325 = vmatpush2.msra.mxu0 0.0
      %326 = vmatprep.subr.mxu0 0.0
      %327 = vmatpush2.msra.mxu0 0.0
      %328 = vmatprep.subr.mxu0 0.0
      %329 = vmatpush2.msra.mxu0 0.0
      %330 = vmatprep.subr.mxu0 0.0
      %331 = vmatpush2.msra.mxu0 0.0
      %332 = vmatprep.subr.mxu0 0.0
      %333 = vmatpush2.msra.mxu0 0.0
      %334 = vmatprep.subr.mxu0 0.0
      %335 = vmatpush2.msra.mxu0 0.0
      %336 = vmatprep.subr.mxu0 0.0
      %337 = vmatpush2.msra.mxu0 0.0
      %338 = vmatprep.subr.mxu0 0.0
      %339 = vmatpush2.msra.mxu0 0.0
      %340 = vmatprep.subr.mxu0 0.0
      %341 = vmatpush2.msra.mxu0 0.0
      %342 = vmatprep.subr.mxu0 0.0
      %343 = vmatpush2.msra.mxu0 0.0
      %344 = vmatprep.subr.mxu0 0.0
      %345 = vmatpush2.msra.mxu0 0.0
      %346 = vmatprep.subr.mxu0 0.0
      %347 = vmatpush2.msra.mxu0 0.0
      %348 = vmatprep.mubr.f32.mxu0 0.0
      %349 = vmatmul.mubr.f32.gmra.mxu0 %v237
      %v350 = vpop.f32.mrf.mxu0
      %v351 = vadd.f32 0.0, %v350
      %v352 = vpop.f32.mrf.mxu0
      %353 = vmatprep.mubr.f32.mxu0 0.0
      %354 = vmatmul.mubr.f32.gmra.mxu0 %v240
      %v355 = vpop.f32.mrf.mxu0
      %v356 = vadd.f32 0.0, %v355
      %v357 = vpop.f32.mrf.mxu0
      %358 = vmatprep.mubr.f32.mxu0 0.0
      %359 = vmatmul.mubr.f32.gmra.mxu0 %v243
      %v360 = vpop.f32.mrf.mxu0
      %v361 = vadd.f32 0.0, %v360
      %v362 = vpop.f32.mrf.mxu0
      %363 = vmatprep.mubr.f32.mxu0 0.0
      %364 = vmatmul.mubr.f32.gmra.mxu0 %v246
      %v365 = vpop.f32.mrf.mxu0
      %v366 = vadd.f32 0.0, %v365
      %v367 = vpop.f32.mrf.mxu0
      %368 = vmatprep.mubr.f32.mxu0 0.0
      %369 = vmatmul.mubr.f32.gmra.mxu0 %v249
      %v370 = vpop.f32.mrf.mxu0
      %v371 = vadd.f32 0.0, %v370
      %v372 = vpop.f32.mrf.mxu0
      %373 = vmatprep.mubr.f32.mxu0 0.0
      %374 = vmatmul.mubr.f32.gmra.mxu0 %v252
      %v375 = vpop.f32.mrf.mxu0
      %v376 = vadd.f32 0.0, %v375
      %v377 = vpop.f32.mrf.mxu0
      %378 = vmatprep.mubr.f32.mxu0 0.0
      %379 = vmatmul.mubr.f32.gmra.mxu0 %v255
      %v380 = vpop.f32.mrf.mxu0
      %v381 = vadd.f32 0.0, %v380
      %v382 = vpop.f32.mrf.mxu0
      %383 = vmatprep.mubr.f32.mxu0 0.0
      %384 = vmatmul.mubr.f32.gmra.mxu0 %v258
      %v385 = vpop.f32.mrf.mxu0
      %v386 = vadd.f32 0.0, %v385
      %v387 = vpop.f32.mrf.mxu0
      %388 = vmatprep.mubr.f32.mxu0 0.0
      %389 = vmatmul.mubr.f32.gmra.mxu0 %v261
      %v390 = vpop.f32.mrf.mxu0
      %v391 = vadd.f32 0.0, %v390
      %v392 = vpop.f32.mrf.mxu0
      %393 = vmatprep.mubr.f32.mxu0 0.0
      %394 = vmatmul.mubr.f32.gmra.mxu0 %v264
      %v395 = vpop.f32.mrf.mxu0
      %v396 = vadd.f32 0.0, %v395
      %v397 = vpop.f32.mrf.mxu0
      %398 = vmatprep.mubr.f32.mxu0 0.0
      %399 = vmatmul.mubr.f32.gmra.mxu0 %v267
      %v400 = vpop.f32.mrf.mxu0
      %v401 = vadd.f32 0.0, %v400
      %v402 = vpop.f32.mrf.mxu0
      %403 = vmatprep.mubr.f32.mxu0 0.0
      %404 = vmatmul.mubr.f32.gmra.mxu0 %v270
      %v405 = vpop.f32.mrf.mxu0
      %v406 = vadd.f32 0.0, %v405
      %v407 = vpop.f32.mrf.mxu0
      %408 = vmatprep.mubr.f32.mxu0 0.0
      %409 = vmatmul.mubr.f32.gmra.mxu0 %v273
      %v410 = vpop.f32.mrf.mxu0
      %v411 = vadd.f32 0.0, %v410
      %v412 = vpop.f32.mrf.mxu0
      %413 = vmatprep.mubr.f32.mxu0 0.0
      %414 = vmatmul.mubr.f32.gmra.mxu0 %v276
      %v415 = vpop.f32.mrf.mxu0
      %v416 = vadd.f32 0.0, %v415
      %v417 = vpop.f32.mrf.mxu0
      %418 = vmatprep.mubr.f32.mxu0 0.0
      %419 = vmatmul.mubr.f32.gmra.mxu0 %v279
      %v420 = vpop.f32.mrf.mxu0
      %v421 = vadd.f32 0.0, %v420
      %v422 = vpop.f32.mrf.mxu0
      %423 = vmatprep.mubr.f32.mxu0 0.0
      %424 = vmatmul.mubr.f32.gmra.mxu0 %v282
      %v425 = vpop.f32.mrf.mxu0
      %v426 = vadd.f32 0.0, %v425
      %v427 = vpop.f32.mrf.mxu0
      %428 = vdwg.mxu0
      %v430 = vsel %vm235, %v215, 0
      %v433 = vsel %vm235, %v216, 0
      %v436 = vsel %vm235, %v217, 0
      %v439 = vsel %vm235, %v218, 0
      %441 = vmatprep.subr.mxu0 0.0
      %442 = vmatpush1.msra.mxu0 0.0
      %443 = vmatprep.subr.mxu0 0.0
      %444 = vmatpush1.msra.mxu0 0.0
      %445 = vmatprep.subr.mxu0 0.0
      %446 = vmatpush1.msra.mxu0 0.0
      %447 = vmatprep.subr.mxu0 0.0
      %448 = vmatpush1.msra.mxu0 0.0
      %449 = vmatprep.subr.mxu0 0.0
      %450 = vmatpush1.msra.mxu0 0.0
      %451 = vmatprep.subr.mxu0 0.0
      %452 = vmatpush1.msra.mxu0 0.0
      %453 = vmatprep.subr.mxu0 0.0
      %454 = vmatpush1.msra.mxu0 0.0
      %455 = vmatprep.subr.mxu0 0.0
      %456 = vmatpush1.msra.mxu0 0.0
      %457 = vmatprep.subr.mxu0 0.0
      %458 = vmatpush1.msra.mxu0 0.0
      %459 = vmatprep.subr.mxu0 0.0
      %460 = vmatpush1.msra.mxu0 0.0
      %461 = vmatprep.subr.mxu0 0.0
      %462 = vmatpush1.msra.mxu0 0.0
      %463 = vmatprep.subr.mxu0 0.0
      %464 = vmatpush1.msra.mxu0 0.0
      %465 = vmatprep.subr.mxu0 0.0
      %466 = vmatpush1.msra.mxu0 %v366
      %467 = vmatprep.subr.mxu0 0.0
      %468 = vmatpush1.msra.mxu0 %v361
      %469 = vmatprep.subr.mxu0 0.0
      %470 = vmatpush1.msra.mxu0 %v356
      %471 = vmatprep.subr.mxu0 0.0
      %472 = vmatpush1.msra.mxu0 %v351
      %473 = vmatprep.subr.mxu0 0.0
      %474 = vmatpush2.msra.mxu0 0.0
      %475 = vmatprep.subr.mxu0 0.0
      %476 = vmatpush2.msra.mxu0 0.0
      %477 = vmatprep.subr.mxu0 0.0
      %478 = vmatpush2.msra.mxu0 0.0
      %479 = vmatprep.subr.mxu0 0.0
      %480 = vmatpush2.msra.mxu0 0.0
      %481 = vmatprep.subr.mxu0 0.0
      %482 = vmatpush2.msra.mxu0 0.0
      %483 = vmatprep.subr.mxu0 0.0
      %484 = vmatpush2.msra.mxu0 0.0
      %485 = vmatprep.subr.mxu0 0.0
      %486 = vmatpush2.msra.mxu0 0.0
      %487 = vmatprep.subr.mxu0 0.0
      %488 = vmatpush2.msra.mxu0 0.0
      %489 = vmatprep.subr.mxu0 0.0
      %490 = vmatpush2.msra.mxu0 0.0
      %491 = vmatprep.subr.mxu0 0.0
      %492 = vmatpush2.msra.mxu0 0.0
      %493 = vmatprep.subr.mxu0 0.0
      %494 = vmatpush2.msra.mxu0 0.0
      %495 = vmatprep.subr.mxu0 0.0
      %496 = vmatpush2.msra.mxu0 0.0
      %497 = vmatprep.subr.mxu0 0.0
      %498 = vmatpush2.msra.mxu0 0.0
      %499 = vmatprep.subr.mxu0 0.0
      %500 = vmatpush2.msra.mxu0 0.0
      %501 = vmatprep.subr.mxu0 0.0
      %502 = vmatpush2.msra.mxu0 0.0
      %503 = vmatprep.subr.mxu0 0.0
      %504 = vmatpush2.msra.mxu0 0.0
      %505 = vmatprep.mubr.f32.mxu0 0.0
      %506 = vmatmul.mubr.f32.gmra.mxu0 %v430
      %v507 = vpop.f32.mrf.mxu0
      %v508 = vadd.f32 0.0, %v507
      %v509 = vpop.f32.mrf.mxu0
      %510 = vmatprep.mubr.f32.mxu0 0.0
      %511 = vmatmul.mubr.f32.gmra.mxu0 %v433
      %v512 = vpop.f32.mrf.mxu0
      %v513 = vadd.f32 0.0, %v512
      %v514 = vpop.f32.mrf.mxu0
      %515 = vmatprep.mubr.f32.mxu0 0.0
      %516 = vmatmul.mubr.f32.gmra.mxu0 %v436
      %v517 = vpop.f32.mrf.mxu0
      %v518 = vadd.f32 0.0, %v517
      %v519 = vpop.f32.mrf.mxu0
      %520 = vmatprep.mubr.f32.mxu0 0.0
      %521 = vmatmul.mubr.f32.gmra.mxu0 %v439
      %v522 = vpop.f32.mrf.mxu0
      %v523 = vadd.f32 0.0, %v522
      %v524 = vpop.f32.mrf.mxu0
      %525 = vdwg.mxu0
      %526 = vst.msk [vmem:[%s210] sm:$0xff] %vm235, %v508
      %527 = vst.msk [vmem:[%s210 + $0x8] sm:$0xff] %vm235, %v513
      %528 = vst.msk [vmem:[%s210 + $0x10] sm:$0xff] %vm235, %v518
      %529 = vst.msk [vmem:[%s210 + $0x18] sm:$0xff] %vm235, %v523
      %530 = vmatprep.subr.mxu0 0.0
      %531 = vmatpush1.msra.mxu0 0.0
      %532 = vmatprep.subr.mxu0 0.0
      %533 = vmatpush1.msra.mxu0 0.0
      %534 = vmatprep.subr.mxu0 0.0
      %535 = vmatpush1.msra.mxu0 0.0
      %536 = vmatprep.subr.mxu0 0.0
      %537 = vmatpush1.msra.mxu0 0.0
      %538 = vmatprep.subr.mxu0 0.0
      %539 = vmatpush1.msra.mxu0 0.0
      %540 = vmatprep.subr.mxu0 0.0
      %541 = vmatpush1.msra.mxu0 0.0
      %542 = vmatprep.subr.mxu0 0.0
      %543 = vmatpush1.msra.mxu0 0.0
      %544 = vmatprep.subr.mxu0 0.0
      %545 = vmatpush1.msra.mxu0 0.0
      %546 = vmatprep.subr.mxu0 0.0
      %547 = vmatpush1.msra.mxu0 0.0
      %548 = vmatprep.subr.mxu0 0.0
      %549 = vmatpush1.msra.mxu0 0.0
      %550 = vmatprep.subr.mxu0 0.0
      %551 = vmatpush1.msra.mxu0 0.0
      %552 = vmatprep.subr.mxu0 0.0
      %553 = vmatpush1.msra.mxu0 0.0
      %554 = vmatprep.subr.mxu0 0.0
      %555 = vmatpush1.msra.mxu0 %v386
      %556 = vmatprep.subr.mxu0 0.0
      %557 = vmatpush1.msra.mxu0 %v381
      %558 = vmatprep.subr.mxu0 0.0
      %559 = vmatpush1.msra.mxu0 %v376
      %560 = vmatprep.subr.mxu0 0.0
      %561 = vmatpush1.msra.mxu0 %v371
      %562 = vmatprep.subr.mxu0 0.0
      %563 = vmatpush2.msra.mxu0 0.0
      %564 = vmatprep.subr.mxu0 0.0
      %565 = vmatpush2.msra.mxu0 0.0
      %566 = vmatprep.subr.mxu0 0.0
      %567 = vmatpush2.msra.mxu0 0.0
      %568 = vmatprep.subr.mxu0 0.0
      %569 = vmatpush2.msra.mxu0 0.0
      %570 = vmatprep.subr.mxu0 0.0
      %571 = vmatpush2.msra.mxu0 0.0
      %572 = vmatprep.subr.mxu0 0.0
      %573 = vmatpush2.msra.mxu0 0.0
      %574 = vmatprep.subr.mxu0 0.0
      %575 = vmatpush2.msra.mxu0 0.0
      %576 = vmatprep.subr.mxu0 0.0
      %577 = vmatpush2.msra.mxu0 0.0
      %578 = vmatprep.subr.mxu0 0.0
      %579 = vmatpush2.msra.mxu0 0.0
      %580 = vmatprep.subr.mxu0 0.0
      %581 = vmatpush2.msra.mxu0 0.0
      %582 = vmatprep.subr.mxu0 0.0
      %583 = vmatpush2.msra.mxu0 0.0
      %584 = vmatprep.subr.mxu0 0.0
      %585 = vmatpush2.msra.mxu0 0.0
      %586 = vmatprep.subr.mxu0 0.0
      %587 = vmatpush2.msra.mxu0 0.0
      %588 = vmatprep.subr.mxu0 0.0
      %589 = vmatpush2.msra.mxu0 0.0
      %590 = vmatprep.subr.mxu0 0.0
      %591 = vmatpush2.msra.mxu0 0.0
      %592 = vmatprep.subr.mxu0 0.0
      %593 = vmatpush2.msra.mxu0 0.0
      %594 = vmatprep.mubr.f32.mxu0 0.0
      %595 = vmatmul.mubr.f32.gmra.mxu0 %v430
      %v596 = vpop.f32.mrf.mxu0
      %v597 = vadd.f32 0.0, %v596
      %v598 = vpop.f32.mrf.mxu0
      %599 = vmatprep.mubr.f32.mxu0 0.0
      %600 = vmatmul.mubr.f32.gmra.mxu0 %v433
      %v601 = vpop.f32.mrf.mxu0
      %v602 = vadd.f32 0.0, %v601
      %v603 = vpop.f32.mrf.mxu0
      %604 = vmatprep.mubr.f32.mxu0 0.0
      %605 = vmatmul.mubr.f32.gmra.mxu0 %v436
      %v606 = vpop.f32.mrf.mxu0
      %v607 = vadd.f32 0.0, %v606
      %v608 = vpop.f32.mrf.mxu0
      %609 = vmatprep.mubr.f32.mxu0 0.0
      %610 = vmatmul.mubr.f32.gmra.mxu0 %v439
      %v611 = vpop.f32.mrf.mxu0
      %v612 = vadd.f32 0.0, %v611
      %v613 = vpop.f32.mrf.mxu0
      %614 = vdwg.mxu0
      %s615 = scalar_lea.vmem %s210, 32
      %616 = vst.msk [vmem:[%s615] sm:$0xff] %vm235, %v597
      %617 = vst.msk [vmem:[%s615 + $0x8] sm:$0xff] %vm235, %v602
      %618 = vst.msk [vmem:[%s615 + $0x10] sm:$0xff] %vm235, %v607
      %619 = vst.msk [vmem:[%s615 + $0x18] sm:$0xff] %vm235, %v612
      %620 = vmatprep.subr.mxu0 0.0
      %621 = vmatpush1.msra.mxu0 0.0
      %622 = vmatprep.subr.mxu0 0.0
      %623 = vmatpush1.msra.mxu0 0.0
      %624 = vmatprep.subr.mxu0 0.0
      %625 = vmatpush1.msra.mxu0 0.0
      %626 = vmatprep.subr.mxu0 0.0
      %627 = vmatpush1.msra.mxu0 0.0
      %628 = vmatprep.subr.mxu0 0.0
      %629 = vmatpush1.msra.mxu0 0.0
      %630 = vmatprep.subr.mxu0 0.0
      %631 = vmatpush1.msra.mxu0 0.0
      %632 = vmatprep.subr.mxu0 0.0
      %633 = vmatpush1.msra.mxu0 0.0
      %634 = vmatprep.subr.mxu0 0.0
      %635 = vmatpush1.msra.mxu0 0.0
      %636 = vmatprep.subr.mxu0 0.0
      %637 = vmatpush1.msra.mxu0 0.0
      %638 = vmatprep.subr.mxu0 0.0
      %639 = vmatpush1.msra.mxu0 0.0
      %640 = vmatprep.subr.mxu0 0.0
      %641 = vmatpush1.msra.mxu0 0.0
      %642 = vmatprep.subr.mxu0 0.0
      %643 = vmatpush1.msra.mxu0 0.0
      %644 = vmatprep.subr.mxu0 0.0
      %645 = vmatpush1.msra.mxu0 %v406
      %646 = vmatprep.subr.mxu0 0.0
      %647 = vmatpush1.msra.mxu0 %v401
      %648 = vmatprep.subr.mxu0 0.0
      %649 = vmatpush1.msra.mxu0 %v396
      %650 = vmatprep.subr.mxu0 0.0
      %651 = vmatpush1.msra.mxu0 %v391
      %652 = vmatprep.subr.mxu0 0.0
      %653 = vmatpush2.msra.mxu0 0.0
      %654 = vmatprep.subr.mxu0 0.0
      %655 = vmatpush2.msra.mxu0 0.0
      %656 = vmatprep.subr.mxu0 0.0
      %657 = vmatpush2.msra.mxu0 0.0
      %658 = vmatprep.subr.mxu0 0.0
      %659 = vmatpush2.msra.mxu0 0.0
      %660 = vmatprep.subr.mxu0 0.0
      %661 = vmatpush2.msra.mxu0 0.0
      %662 = vmatprep.subr.mxu0 0.0
      %663 = vmatpush2.msra.mxu0 0.0
      %664 = vmatprep.subr.mxu0 0.0
      %665 = vmatpush2.msra.mxu0 0.0
      %666 = vmatprep.subr.mxu0 0.0
      %667 = vmatpush2.msra.mxu0 0.0
      %668 = vmatprep.subr.mxu0 0.0
      %669 = vmatpush2.msra.mxu0 0.0
      %670 = vmatprep.subr.mxu0 0.0
      %671 = vmatpush2.msra.mxu0 0.0
      %672 = vmatprep.subr.mxu0 0.0
      %673 = vmatpush2.msra.mxu0 0.0
      %674 = vmatprep.subr.mxu0 0.0
      %675 = vmatpush2.msra.mxu0 0.0
      %676 = vmatprep.subr.mxu0 0.0
      %677 = vmatpush2.msra.mxu0 0.0
      %678 = vmatprep.subr.mxu0 0.0
      %679 = vmatpush2.msra.mxu0 0.0
      %680 = vmatprep.subr.mxu0 0.0
      %681 = vmatpush2.msra.mxu0 0.0
      %682 = vmatprep.subr.mxu0 0.0
      %683 = vmatpush2.msra.mxu0 0.0
      %684 = vmatprep.mubr.f32.mxu0 0.0
      %685 = vmatmul.mubr.f32.gmra.mxu0 %v430
      %v686 = vpop.f32.mrf.mxu0
      %v687 = vadd.f32 0.0, %v686
      %v688 = vpop.f32.mrf.mxu0
      %689 = vmatprep.mubr.f32.mxu0 0.0
      %690 = vmatmul.mubr.f32.gmra.mxu0 %v433
      %v691 = vpop.f32.mrf.mxu0
      %v692 = vadd.f32 0.0, %v691
      %v693 = vpop.f32.mrf.mxu0
      %694 = vmatprep.mubr.f32.mxu0 0.0
      %695 = vmatmul.mubr.f32.gmra.mxu0 %v436
      %v696 = vpop.f32.mrf.mxu0
      %v697 = vadd.f32 0.0, %v696
      %v698 = vpop.f32.mrf.mxu0
      %699 = vmatprep.mubr.f32.mxu0 0.0
      %700 = vmatmul.mubr.f32.gmra.mxu0 %v439
      %v701 = vpop.f32.mrf.mxu0
      %v702 = vadd.f32 0.0, %v701
      %v703 = vpop.f32.mrf.mxu0
      %704 = vdwg.mxu0
      %s705 = scalar_lea.vmem %s210, 64
      %706 = vst.msk [vmem:[%s705] sm:$0xff] %vm235, %v687
      %707 = vst.msk [vmem:[%s705 + $0x8] sm:$0xff] %vm235, %v692
      %708 = vst.msk [vmem:[%s705 + $0x10] sm:$0xff] %vm235, %v697
      %709 = vst.msk [vmem:[%s705 + $0x18] sm:$0xff] %vm235, %v702
      %710 = vmatprep.subr.mxu0 0.0
      %711 = vmatpush1.msra.mxu0 0.0
      %712 = vmatprep.subr.mxu0 0.0
      %713 = vmatpush1.msra.mxu0 0.0
      %714 = vmatprep.subr.mxu0 0.0
      %715 = vmatpush1.msra.mxu0 0.0
      %716 = vmatprep.subr.mxu0 0.0
      %717 = vmatpush1.msra.mxu0 0.0
      %718 = vmatprep.subr.mxu0 0.0
      %719 = vmatpush1.msra.mxu0 0.0
      %720 = vmatprep.subr.mxu0 0.0
      %721 = vmatpush1.msra.mxu0 0.0
      %722 = vmatprep.subr.mxu0 0.0
      %723 = vmatpush1.msra.mxu0 0.0
      %724 = vmatprep.subr.mxu0 0.0
      %725 = vmatpush1.msra.mxu0 0.0
      %726 = vmatprep.subr.mxu0 0.0
      %727 = vmatpush1.msra.mxu0 0.0
      %728 = vmatprep.subr.mxu0 0.0
      %729 = vmatpush1.msra.mxu0 0.0
      %730 = vmatprep.subr.mxu0 0.0
      %731 = vmatpush1.msra.mxu0 0.0
      %732 = vmatprep.subr.mxu0 0.0
      %733 = vmatpush1.msra.mxu0 0.0
      %734 = vmatprep.subr.mxu0 0.0
      %735 = vmatpush1.msra.mxu0 %v426
      %736 = vmatprep.subr.mxu0 0.0
      %737 = vmatpush1.msra.mxu0 %v421
      %738 = vmatprep.subr.mxu0 0.0
      %739 = vmatpush1.msra.mxu0 %v416
      %740 = vmatprep.subr.mxu0 0.0
      %741 = vmatpush1.msra.mxu0 %v411
      %742 = vmatprep.subr.mxu0 0.0
      %743 = vmatpush2.msra.mxu0 0.0
      %744 = vmatprep.subr.mxu0 0.0
      %745 = vmatpush2.msra.mxu0 0.0
      %746 = vmatprep.subr.mxu0 0.0
      %747 = vmatpush2.msra.mxu0 0.0
      %748 = vmatprep.subr.mxu0 0.0
      %749 = vmatpush2.msra.mxu0 0.0
      %750 = vmatprep.subr.mxu0 0.0
      %751 = vmatpush2.msra.mxu0 0.0
      %752 = vmatprep.subr.mxu0 0.0
      %753 = vmatpush2.msra.mxu0 0.0
      %754 = vmatprep.subr.mxu0 0.0
      %755 = vmatpush2.msra.mxu0 0.0
      %756 = vmatprep.subr.mxu0 0.0
      %757 = vmatpush2.msra.mxu0 0.0
      %758 = vmatprep.subr.mxu0 0.0
      %759 = vmatpush2.msra.mxu0 0.0
      %760 = vmatprep.subr.mxu0 0.0
      %761 = vmatpush2.msra.mxu0 0.0
      %762 = vmatprep.subr.mxu0 0.0
      %763 = vmatpush2.msra.mxu0 0.0
      %764 = vmatprep.subr.mxu0 0.0
      %765 = vmatpush2.msra.mxu0 0.0
      %766 = vmatprep.subr.mxu0 0.0
      %767 = vmatpush2.msra.mxu0 0.0
      %768 = vmatprep.subr.mxu0 0.0
      %769 = vmatpush2.msra.mxu0 0.0
      %770 = vmatprep.subr.mxu0 0.0
      %771 = vmatpush2.msra.mxu0 0.0
      %772 = vmatprep.subr.mxu0 0.0
      %773 = vmatpush2.msra.mxu0 0.0
      %774 = vmatprep.mubr.f32.mxu0 0.0
      %775 = vmatmul.mubr.f32.gmra.mxu0 %v430
      %v776 = vpop.f32.mrf.mxu0
      %v777 = vadd.f32 0.0, %v776
      %v778 = vpop.f32.mrf.mxu0
      %779 = vmatprep.mubr.f32.mxu0 0.0
      %780 = vmatmul.mubr.f32.gmra.mxu0 %v433
      %v781 = vpop.f32.mrf.mxu0
      %v782 = vadd.f32 0.0, %v781
      %v783 = vpop.f32.mrf.mxu0
      %784 = vmatprep.mubr.f32.mxu0 0.0
      %785 = vmatmul.mubr.f32.gmra.mxu0 %v436
      %v786 = vpop.f32.mrf.mxu0
      %v787 = vadd.f32 0.0, %v786
      %v788 = vpop.f32.mrf.mxu0
      %789 = vmatprep.mubr.f32.mxu0 0.0
      %790 = vmatmul.mubr.f32.gmra.mxu0 %v439
      %v791 = vpop.f32.mrf.mxu0
      %v792 = vadd.f32 0.0, %v791
      %v793 = vpop.f32.mrf.mxu0
      %794 = vdwg.mxu0
      %s795 = scalar_lea.vmem %s210, 96
      %796 = vst.msk [vmem:[%s795] sm:$0xff] %vm235, %v777
      %797 = vst.msk [vmem:[%s795 + $0x8] sm:$0xff] %vm235, %v782
      %798 = vst.msk [vmem:[%s795 + $0x10] sm:$0xff] %vm235, %v787
      %799 = vst.msk [vmem:[%s795 + $0x18] sm:$0xff] %vm235, %v792
      %p800 = scmp.lt.s32.totalorder %s14, 1
      %s801 = scalar_select %p800, %s14, 1
      %s802 = smul.addr %s801, 16
      %s803 = smul.addr %s802, 8
      %s804 = scalar_lea.vmem %s3, %s803
      // Predicated region
      $region33: #{augment_pipe_forward.8} parent=31 // pred_check
        %p805 = pneg %p110
      $region34: #{augment_pipe_forward.8} parent=31 // pred_check_branch
        %807 = sbr.rel (%p805) target = $region36
      $region35: #{augment_pipe_forward.8} parent=31 // pred_region
        _
      $region36: #{augment_pipe_forward.8} parent=31 // pred_fallthru
        _
    $region32: #{augment_pipe_forward.8} parent=5 // pred_fallthru
      _
    %p808 = scmp.le.s32.totalorder 2, %s9
    // Predicated region
    $region37: #{augment_pipe_forward.8} parent=5 // pred_check
      %p809 = pneg %p808
    $region38: #{augment_pipe_forward.8} parent=5 // pred_check_branch
      %811 = sbr.rel (%p809) target = $region40
    $region39: #{augment_pipe_forward.8} parent=5 // pred_region
      %s812 = ssub.s32 %s9, 2
      // Predicated region
      $region41: #{augment_pipe_forward.8} parent=39 // pred_check
        %p813 = pneg %p116
      $region42: #{augment_pipe_forward.8} parent=39 // pred_check_branch
        %815 = sbr.rel (%p813) target = $region44
      $region43: #{augment_pipe_forward.8} parent=39 // pred_region
        %p816 = scmp.lt.s32.totalorder %s15, 1
        %s817 = scalar_select %p816, %s15, 1
        %s818 = smul.addr %s817, 16
        %s819 = smul.addr %s818, 8
        %s820 = scalar_lea.vmem %s3, %s819
      $region44: #{augment_pipe_forward.8} parent=39 // pred_fallthru
        _
    $region40: #{augment_pipe_forward.8} parent=5 // pred_fallthru
      _
  $region6: #{augment_pipe_forward.8} parent=0 // loop_footer
    %s13 = sadd.s32 1, %s9
  $region7: #{augment_pipe_forward.8} parent=0 // loop_footer_branch
    %8 = sbr.rel target = $region3
  $region8: #{augment_pipe_forward.8} parent=0 // loop_exit
    _

// kernel: augment_pipe_forward.9
$region0: #{augment_pipe_forward.9}
  #allocation0 [shape = 'u32[]', space=smem, size = 0x4, offset = 0x4, fixed_abs, tag = 'smem constant byte address 0x4 - core index']
  #allocation1 [shape = 'u32[144,128]{1,0:T(1,128)}', space=vmem, size = 0x12000, scoped, tag = 'internal scratch']
  #allocation2 [shape = 's32[1]{0}', space=sflag, size = 0x4, scoped, tag = 'scoped memory for augment_pipe_forward.9']
  #allocation3 [shape = 'u8[512]{0}', space=smem, size = 0x200, scoped, tag = 'prefetched SMEM operand 0']
  %s0 = inlined_call_operand.vmem [shape: f32[8], index: 0, kind: input, shape index: {}]
  %s1 = inlined_call_operand.vmem [shape: f32[2,4,32,32], index: 1, kind: input, shape index: {}]
  %s2 = inlined_call_operand.vmem [shape: f32[2,4,32,32], index: 2, kind: input, shape index: {}]
  %s3 = inlined_call_operand.hbm [shape: f32[2,4,32,32], index: 3, kind: output, shape index: {}]
  %s4 = sld [smem:[#allocation0]]
  $region41: #{augment_pipe_forward.9} parent=0
    _
  %s6 = ssub.s32 1, %s4
  %s7 = scalar_select 0, %s6, %s4
  %s8 = sshll.u32 %s0, 4
  %s9 = int_to_ptr.vmem [resolvable:$true] %s8
  %11 = dma.vmem_to_smem %s9, 16, [#allocation3], [#allocation2]
  %12 = dma.done [#allocation2], 16
  %13 = sfence
  $region1: #{augment_pipe_forward.9} parent=0
    #allocation4 [shape = 'u8[131072]{0}', space=vmem, size = 0x20000, scoped, tag = 'output window, operand 0']
    #allocation5 [shape = 's32[2]{0}', space=sflag, size = 0x8, scoped, tag = 'scoped memory for augment_pipe_forward.9']
    %14 = vsyncpa [#allocation5], 0
    %s15 = scalar_lea.sflag [#allocation5], 1
    %16 = vsyncpa %s15, 0
    loop: start=0, step=1, limit=4
    $region2: #{augment_pipe_forward.9} parent=1 // loop_pre_header
      _
    $region3: #{augment_pipe_forward.9} parent=1 // loop_header
      %s18 = sphi 0, %s22
      %p19 = scmp.ge.s32.totalorder %s18, 4
      %s28 = sphi 0, %s30
      %s31 = sphi 0, %s28
      %s32 = sphi 0, %s31
      %s48 = sphi 0, %s32
      %s54 = sphi 0, %s56
      %s57 = sphi 0, %s54
      %s58 = sphi 0, %s57
      %s74 = sphi 0, %s58
      %s80 = sphi 0, %s82
      %s83 = sphi 0, %s80
      %s84 = sphi 0, %s83
      %s100 = sphi 0, %s84
    $region4: #{augment_pipe_forward.9} parent=1 // loop_header_branch
      %21 = sbr.rel (%p19) target = $region8
    $region5: #{augment_pipe_forward.9} parent=1 // loop_body
      %s23 = ssub.s32 %s18, 1
      %s24 = ssub.s32 %s18, 2
      %s25 = sadd.s32 %s18, 1
      %s26 = ssub.s32 %s18, %s25
      %p27 = scmp.eq.s32.totalorder %s26, 0
      %s29 = sadd.s32 %s28, 1
      %s30 = scalar_select %p27, %s28, %s29
      %p33 = pneg %p27
      %p34 = scmp.eq.s32.totalorder %s18, 1
      %p35 = por %p33, %p34
      %p36 = scmp.ne.s32.totalorder %s28, %s31
      %p37 = scmp.eq.s32.totalorder %s18, 0
      %p38 = por %p36, %p37
      %p39 = scmp.ne.s32.totalorder %s28, %s31
      %p40 = scmp.eq.s32.totalorder %s23, 1
      %p41 = por %p39, %p40
      %p42 = scmp.ne.s32.totalorder %s31, %s32
      %p43 = scmp.eq.s32.totalorder %s23, 0
      %p44 = por %p42, %p43
      %p45 = scmp.ne.s32.totalorder %s31, %s32
      %p46 = scmp.eq.s32.totalorder %s24, 1
      %p47 = por %p45, %p46
      %p49 = scmp.ne.s32.totalorder %s32, %s48
      %p50 = scmp.eq.s32.totalorder %s24, 0
      %p51 = por %p49, %p50
      %s52 = ssub.s32 %s18, %s25
      %p53 = scmp.eq.s32.totalorder %s52, 0
      %s55 = sadd.s32 %s54, 1
      %s56 = scalar_select %p53, %s54, %s55
      %p59 = pneg %p53
      %p60 = scmp.eq.s32.totalorder %s18, 1
      %p61 = por %p59, %p60
      %p62 = scmp.ne.s32.totalorder %s54, %s57
      %p63 = scmp.eq.s32.totalorder %s18, 0
      %p64 = por %p62, %p63
      %p65 = scmp.ne.s32.totalorder %s54, %s57
      %p66 = scmp.eq.s32.totalorder %s23, 1
      %p67 = por %p65, %p66
      %p68 = scmp.ne.s32.totalorder %s57, %s58
      %p69 = scmp.eq.s32.totalorder %s23, 0
      %p70 = por %p68, %p69
      %p71 = scmp.ne.s32.totalorder %s57, %s58
      %p72 = scmp.eq.s32.totalorder %s24, 1
      %p73 = por %p71, %p72
      %p75 = scmp.ne.s32.totalorder %s58, %s74
      %p76 = scmp.eq.s32.totalorder %s24, 0
      %p77 = por %p75, %p76
      %s78 = ssub.s32 %s18, %s25
      %p79 = scmp.eq.s32.totalorder %s78, 0
      %s81 = sadd.s32 %s80, 1
      %s82 = scalar_select %p79, %s80, %s81
      %p85 = pneg %p79
      %p86 = scmp.eq.s32.totalorder %s18, 1
      %p87 = por %p85, %p86
      %p88 = scmp.ne.s32.totalorder %s80, %s83
      %p89 = scmp.eq.s32.totalorder %s18, 0
      %p90 = por %p88, %p89
      %p91 = scmp.ne.s32.totalorder %s80, %s83
      %p92 = scmp.eq.s32.totalorder %s23, 1
      %p93 = por %p91, %p92
      %p94 = scmp.ne.s32.totalorder %s83, %s84
      %p95 = scmp.eq.s32.totalorder %s23, 0
      %p96 = por %p94, %p95
      %p97 = scmp.ne.s32.totalorder %s83, %s84
      %p98 = scmp.eq.s32.totalorder %s24, 1
      %p99 = por %p97, %p98
      %p101 = scmp.ne.s32.totalorder %s84, %s100
      %p102 = scmp.eq.s32.totalorder %s24, 0
      %p103 = por %p101, %p102
      %p104 = scmp.le.s32.totalorder 1, %s18
      %p105 = scmp.lt.s32.totalorder %s18, 3
      %p106 = pnand %p104, %p105
      %p107 = pneg %p106
      // Predicated region
      $region9: #{augment_pipe_forward.9} parent=5 // pred_check
        _
      $region10: #{augment_pipe_forward.9} parent=5 // pred_check_branch
        %109 = sbr.rel (%p106) target = $region12
      $region11: #{augment_pipe_forward.9} parent=5 // pred_region
        %s110 = ssub.s32 %s18, 1
      $region12: #{augment_pipe_forward.9} parent=5 // pred_fallthru
        _
      %p111 = scmp.lt.s32.totalorder %s18, 2
      // Predicated region
      $region13: #{augment_pipe_forward.9} parent=5 // pred_check
        %p112 = pneg %p111
      $region14: #{augment_pipe_forward.9} parent=5 // pred_check_branch
        %114 = sbr.rel (%p112) target = $region16
      $region15: #{augment_pipe_forward.9} parent=5 // pred_region
        // Predicated region
        $region17: #{augment_pipe_forward.9} parent=15 // pred_check
          %p115 = pneg %p38
        $region18: #{augment_pipe_forward.9} parent=15 // pred_check_branch
          %117 = sbr.rel (%p115) target = $region20
        $region19: #{augment_pipe_forward.9} parent=15 // pred_region
          %p118 = scmp.lt.s32.totalorder %s18, 1
          %s119 = scalar_select %p118, %s18, 1
          %s120 = smul.addr %s119, 16
          %s121 = smul.addr %s120, 8
          %s122 = scalar_lea.vmem %s1, %s121
        $region20: #{augment_pipe_forward.9} parent=15 // pred_fallthru
          _
        // Predicated region
        $region21: #{augment_pipe_forward.9} parent=15 // pred_check
          %p123 = pneg %p64
        $region22: #{augment_pipe_forward.9} parent=15 // pred_check_branch
          %125 = sbr.rel (%p123) target = $region24
        $region23: #{augment_pipe_forward.9} parent=15 // pred_region
          %p126 = scmp.lt.s32.totalorder %s18, 1
          %s127 = scalar_select %p126, %s18, 1
          %s128 = smul.addr %s127, 16
          %s129 = smul.addr %s128, 8
          %s130 = scalar_lea.vmem %s2, %s129
        $region24: #{augment_pipe_forward.9} parent=15 // pred_fallthru
          _
      $region16: #{augment_pipe_forward.9} parent=5 // pred_fallthru
        _
      %p131 = scmp.le.s32.totalorder 1, %s18
      %p132 = scmp.lt.s32.totalorder %s18, 3
      %p133 = pnand %p131, %p132
      %p134 = pneg %p133
      // Predicated region
      $region25: #{augment_pipe_forward.9} parent=5 // pred_check
        _
      $region26: #{augment_pipe_forward.9} parent=5 // pred_check_branch
        %136 = sbr.rel (%p133) target = $region28
      $region27: #{augment_pipe_forward.9} parent=5 // pred_region
        %s137 = ssub.s32 %s18, 1
        %p138 = scmp.lt.s32.totalorder %s23, 1
        %s139 = scalar_select %p138, %s23, 1
        %s140 = smul.addr %s139, 16
        %s141 = smul.addr %s140, 8
        %s142 = scalar_lea.vmem %s1, %s141
        %p143 = pneg %p44
        %p144 = pneg %p41
        %p145 = scmp.lt.s32.totalorder %s23, 1
        %s146 = scalar_select %p145, %s23, 1
        %s147 = smul.addr %s146, 16
        %s148 = smul.addr %s147, 8
        %s149 = scalar_lea.vmem %s2, %s148
        %p150 = pneg %p70
        %p151 = pneg %p67
        %p152 = pneg %p96
        %p153 = pneg %p93
        %s154 = sand.u32 %s83, 1
        %s155 = scalar_lea.sflag [#allocation5], %s154
        %s156 = sand.u32 %s83, 1
        %s157 = smul.addr %s156, 128
        %s158 = scalar_lea.vmem [#allocation4], %s157
        %p159 = scmp.lt.s32.totalorder %s23, 1
        %s160 = scalar_select %p159, %s23, 1
        %s161 = smul.addr %s160, 16
        %s162 = smul.addr %s161, 8
        %s163 = scalar_lea.vmem %s1, %s162
        %p164 = scmp.lt.s32.totalorder %s23, 1
        %s165 = scalar_select %p164, %s23, 1
        %s166 = smul.addr %s165, 16
        %s167 = smul.addr %s166, 8
        %s168 = scalar_lea.vmem %s2, %s167
        %s169 = smul.u32 %s23, 4
        %s170 = sld [smem:[#allocation3 + %s169]]
        %s171 = sadd.s32 %s169, 1
        %s172 = sld [smem:[#allocation3 + %s171]]
        %s173 = sadd.s32 %s169, 2
        %s174 = sld [smem:[#allocation3 + %s173]]
        %s175 = sadd.s32 %s169, 3
        %s176 = sld [smem:[#allocation3 + %s175]]
        %v177 = vlaneseq
        %v178 = vand.u32 %v177, 127
        %v179 = vcvt.s32.f32 %v178
        %v180 = vadd.f32 %v179, 0.5
        %v181 = vmul.f32 %v180, 0.03125
        %v182 = vlaneseq
        %v183 = vshrl.u32 %v182, 7
        %v184 = vadd.s32 %v183, 8
        %v185 = vadd.s32 %v183, 16
        %v186 = vadd.s32 %v183, 24
        %v187 = vcvt.s32.f32 %v183
        %v188 = vcvt.s32.f32 %v184
        %v189 = vcvt.s32.f32 %v185
        %v190 = vcvt.s32.f32 %v186
        %v191 = vadd.f32 %v187, 0.5
        %v192 = vadd.f32 %v188, 0.5
        %v193 = vadd.f32 %v189, 0.5
        %v194 = vadd.f32 %v190, 0.5
        %v195 = vmul.f32 %v191, 0.03125
        %v196 = vmul.f32 %v192, 0.03125
        %v197 = vmul.f32 %v193, 0.03125
        %v198 = vmul.f32 %v194, 0.03125
        %v199 = vstv %s170
        %v200 = vsub.f32 %v181, %v199
        %v201 = vand.u32 2147483647, %v200
        %s202 = smul.f32 %s174, 0.5
        %v203 = vstv %s202
        %vm204 = vcmp.ge.f32.partialorder %v201, %v203
        %v205 = vstv %s172
        %v206 = vsub.f32 %v195, %v205
        %v207 = vsub.f32 %v196, %v205
        %v208 = vsub.f32 %v197, %v205
        %v209 = vsub.f32 %v198, %v205
        %v210 = vand.u32 2147483647, %v206
        %v211 = vand.u32 2147483647, %v207
        %v212 = vand.u32 2147483647, %v208
        %v213 = vand.u32 2147483647, %v209
        %s214 = smul.f32 %s176, 0.5
        %v215 = vstv %s214
        %vm216 = vcmp.ge.f32.partialorder %v210, %v215
        %vm217 = vcmp.ge.f32.partialorder %v211, %v215
        %vm218 = vcmp.ge.f32.partialorder %v212, %v215
        %vm219 = vcmp.ge.f32.partialorder %v213, %v215
        %vm220 = vmor %vm204, %vm216
        %vm221 = vmor %vm204, %vm217
        %vm222 = vmor %vm204, %vm218
        %vm223 = vmor %vm204, %vm219
        %v224 = vsel %vm220, 1, 0
        %v225 = vsel %vm221, 1, 0
        %v226 = vsel %vm222, 1, 0
        %v227 = vsel %vm223, 1, 0
        %v228 = vcvt.s32.f32 %v224
        %v229 = vcvt.s32.f32 %v225
        %v230 = vcvt.s32.f32 %v226
        %v231 = vcvt.s32.f32 %v227
        %v232 = vld [vmem:[%s163] sm:$0xff]
        %v233 = vld [vmem:[%s163 + $0x8] sm:$0xff]
        %v234 = vld [vmem:[%s163 + $0x10] sm:$0xff]
        %v235 = vld [vmem:[%s163 + $0x18] sm:$0xff]
        %v236 = vld [vmem:[%s163 + $0x20] sm:$0xff]
        %v237 = vld [vmem:[%s163 + $0x28] sm:$0xff]
        %v238 = vld [vmem:[%s163 + $0x30] sm:$0xff]
        %v239 = vld [vmem:[%s163 + $0x38] sm:$0xff]
        %v240 = vld [vmem:[%s163 + $0x40] sm:$0xff]
        %v241 = vld [vmem:[%s163 + $0x48] sm:$0xff]
        %v242 = vld [vmem:[%s163 + $0x50] sm:$0xff]
        %v243 = vld [vmem:[%s163 + $0x58] sm:$0xff]
        %v244 = vld [vmem:[%s163 + $0x60] sm:$0xff]
        %v245 = vld [vmem:[%s163 + $0x68] sm:$0xff]
        %v246 = vld [vmem:[%s163 + $0x70] sm:$0xff]
        %v247 = vld [vmem:[%s163 + $0x78] sm:$0xff]
        %v248 = vld [vmem:[%s168] sm:$0xff]
        %v249 = vld [vmem:[%s168 + $0x8] sm:$0xff]
        %v250 = vld [vmem:[%s168 + $0x10] sm:$0xff]
        %v251 = vld [vmem:[%s168 + $0x18] sm:$0xff]
        %v252 = vld [vmem:[%s168 + $0x20] sm:$0xff]
        %v253 = vld [vmem:[%s168 + $0x28] sm:$0xff]
        %v254 = vld [vmem:[%s168 + $0x30] sm:$0xff]
        %v255 = vld [vmem:[%s168 + $0x38] sm:$0xff]
        %v256 = vld [vmem:[%s168 + $0x40] sm:$0xff]
        %v257 = vld [vmem:[%s168 + $0x48] sm:$0xff]
        %v258 = vld [vmem:[%s168 + $0x50] sm:$0xff]
        %v259 = vld [vmem:[%s168 + $0x58] sm:$0xff]
        %v260 = vld [vmem:[%s168 + $0x60] sm:$0xff]
        %v261 = vld [vmem:[%s168 + $0x68] sm:$0xff]
        %v262 = vld [vmem:[%s168 + $0x70] sm:$0xff]
        %v263 = vld [vmem:[%s168 + $0x78] sm:$0xff]
        %v264 = vadd.f32 %v232, %v248
        %v265 = vadd.f32 %v233, %v249
        %v266 = vadd.f32 %v234, %v250
        %v267 = vadd.f32 %v235, %v251
        %v268 = vadd.f32 %v236, %v252
        %v269 = vadd.f32 %v237, %v253
        %v270 = vadd.f32 %v238, %v254
        %v271 = vadd.f32 %v239, %v255
        %v272 = vadd.f32 %v240, %v256
        %v273 = vadd.f32 %v241, %v257
        %v274 = vadd.f32 %v242, %v258
        %v275 = vadd.f32 %v243, %v259
        %v276 = vadd.f32 %v244, %v260
        %v277 = vadd.f32 %v245, %v261
        %v278 = vadd.f32 %v246, %v262
        %v279 = vadd.f32 %v247, %v263
        %v280 = vmul.f32 %v264, %v228
        %v281 = vmul.f32 %v265, %v229
        %v282 = vmul.f32 %v266, %v230
        %v283 = vmul.f32 %v267, %v231
        %v284 = vmul.f32 %v268, %v228
        %v285 = vmul.f32 %v269, %v229
        %v286 = vmul.f32 %v270, %v230
        %v287 = vmul.f32 %v271, %v231
        %v288 = vmul.f32 %v272, %v228
        %v289 = vmul.f32 %v273, %v229
        %v290 = vmul.f32 %v274, %v230
        %v291 = vmul.f32 %v275, %v231
        %v292 = vmul.f32 %v276, %v228
        %v293 = vmul.f32 %v277, %v229
        %v294 = vmul.f32 %v278, %v230
        %v295 = vmul.f32 %v279, %v231
        %vm296 = vcmask 261120
        %297 = vst.msk [vmem:[%s158] sm:$0xff] %vm296, %v280
        %298 = vst.msk [vmem:[%s158 + $0x8] sm:$0xff] %vm296, %v281
        %299 = vst.msk [vmem:[%s158 + $0x10] sm:$0xff] %vm296, %v282
        %300 = vst.msk [vmem:[%s158 + $0x18] sm:$0xff] %vm296, %v283
        %301 = vst.msk [vmem:[%s158 + $0x20] sm:$0xff] %vm296, %v284
        %302 = vst.msk [vmem:[%s158 + $0x28] sm:$0xff] %vm296, %v285
        %303 = vst.msk [vmem:[%s158 + $0x30] sm:$0xff] %vm296, %v286
        %304 = vst.msk [vmem:[%s158 + $0x38] sm:$0xff] %vm296, %v287
        %305 = vst.msk [vmem:[%s158 + $0x40] sm:$0xff] %vm296, %v288
        %306 = vst.msk [vmem:[%s158 + $0x48] sm:$0xff] %vm296, %v289
        %307 = vst.msk [vmem:[%s158 + $0x50] sm:$0xff] %vm296, %v290
        %308 = vst.msk [vmem:[%s158 + $0x58] sm:$0xff] %vm296, %v291
        %309 = vst.msk [vmem:[%s158 + $0x60] sm:$0xff] %vm296, %v292
        %310 = vst.msk [vmem:[%s158 + $0x68] sm:$0xff] %vm296, %v293
        %311 = vst.msk [vmem:[%s158 + $0x70] sm:$0xff] %vm296, %v294
        %312 = vst.msk [vmem:[%s158 + $0x78] sm:$0xff] %vm296, %v295
        %s313 = sand.u32 %s83, 1
        %s314 = scalar_lea.sflag [#allocation5], %s313
        %s315 = sand.u32 %s83, 1
        %s316 = smul.addr %s315, 128
        %s317 = scalar_lea.vmem [#allocation4], %s316
        // Predicated region
        $region29: #{augment_pipe_forward.9} parent=27 // pred_check
          %p318 = pneg %p93
        $region30: #{augment_pipe_forward.9} parent=27 // pred_check_branch
          %320 = sbr.rel (%p318) target = $region32
        $region31: #{augment_pipe_forward.9} parent=27 // pred_region
          %s322 = ssub.s32 2048, 2048
          %323 = vsyncadd %s314, %s322
          %s324 = smul.addr %s23, 16
          %s325 = smul.addr %s324, 128
          %s326 = scalar_lea.hbm %s3, %s325
          %s327 = sshll.u32 %s317, 4
          %s328 = int_to_ptr.vmem [resolvable:$true] %s327
          %333 = dma.vmem_to_hbm [thread:$0]  %s328, 2048, %s326, %s314, 128, 128, 8
        $region32: #{augment_pipe_forward.9} parent=27 // pred_fallthru
          _
      $region28: #{augment_pipe_forward.9} parent=5 // pred_fallthru
        _
      %p334 = scmp.le.s32.totalorder 2, %s18
      // Predicated region
      $region33: #{augment_pipe_forward.9} parent=5 // pred_check
        %p335 = pneg %p334
      $region34: #{augment_pipe_forward.9} parent=5 // pred_check_branch
        %337 = sbr.rel (%p335) target = $region36
      $region35: #{augment_pipe_forward.9} parent=5 // pred_region
        %s338 = ssub.s32 %s18, 2
        // Predicated region
        $region37: #{augment_pipe_forward.9} parent=35 // pred_check
          %p339 = pneg %p99
        $region38: #{augment_pipe_forward.9} parent=35 // pred_check_branch
          %341 = sbr.rel (%p339) target = $region40
        $region39: #{augment_pipe_forward.9} parent=35 // pred_region
          %s342 = sand.u32 %s84, 1
          %s343 = scalar_lea.sflag [#allocation5], %s342
          %s344 = sand.u32 %s84, 1
          %s345 = smul.addr %s344, 128
          %s346 = scalar_lea.vmem [#allocation4], %s345
          %347 = dma.done %s343, 2048
        $region40: #{augment_pipe_forward.9} parent=35 // pred_fallthru
          _
      $region36: #{augment_pipe_forward.9} parent=5 // pred_fallthru
        _
    $region6: #{augment_pipe_forward.9} parent=1 // loop_footer
      %s22 = sadd.s32 1, %s18
    $region7: #{augment_pipe_forward.9} parent=1 // loop_footer_branch
      %17 = sbr.rel target = $region3
    $region8: #{augment_pipe_forward.9} parent=1 // loop_exit
      _
    %348 = vsyncpa [#allocation5], 1
    %s349 = scalar_lea.sflag [#allocation5], 1
    %350 = vsyncpa %s349, 1

</llo_original>
